<compile_context>
chip_gen: v7x
topology: tpu7x:2x2x1
jax: 0.10.0
libtpu: 0.0.40
codegen_flags: <defaults>
</compile_context>

<pallas_src>
import jax
import jax.numpy as jnp
from jax import lax
from jax.experimental import pallas as pl
from jax.experimental.pallas import tpu as pltpu


# ---- architecture constants (fixed by SimpleCNN: 3->16->32 ch, 64x64 input so that
# ---- Flatten yields 32*16*16 = 8192 features for fc1) ---------------------------------
_H = _W = 64
_C_IN, _C1, _C2 = 3, 16, 32
_WP = 16                     # parity-plane width for both stages: 64/4 = 32/2 = 16
_NP = _WP * _WP              # flattened plane spatial = 256 (also final pooled spatial)
_MG0, _T0 = 64, 64 + 256 + 64        # input-plane margin / padded length (mult of 128)
_MG2, _T2 = 128, 128 + 256 + 128     # p1-plane margin / padded length   (mult of 128)
_CP0 = 16                    # stage-1 input channels padded 3 -> 16 (full bf16 tile)


# --------------------------------------------------------------------------------------
# Fused conv1(3x3,p=1)+ReLU+pool2  ->  conv2(3x3,p=1)+ReLU+pool2, NB images per step.
# --------------------------------------------------------------------------------------
def _make_fused_conv_kernel(NB):
    def kernel(x_ref, w1_ref, b1_ref, w2_ref, b2_ref, o_ref, p1_ref):
        # x_ref : (NB, 16, CP0, T0) bf16   input parity planes (index 4*(r%4)+(c%4)),
        #                                  zero margins, channels padded to 16
        # w1_ref: (16, 144) bf16   conv1 weight, columns ordered (kh, kw, cin_padded)
        # w2_ref: (32, 144) bf16   conv2 weight, columns ordered (kh, kw, cin)
        # b*_ref: (C, 1) f32
        # o_ref : (NB, 32, 256) bf16   pooled conv2 output (channel-major, row-major)
        # p1_ref: (4, 16, T2) bf16 scratch: stage-1 pooled output as parity planes with
        #                                  zero margins; only the interior is rewritten.
        p1_ref[...] = jnp.zeros_like(p1_ref)

        col0 = (lax.broadcasted_iota(jnp.int32, (1, _T0), 1) - _MG0) % _WP
        col1 = (lax.broadcasted_iota(jnp.int32, (1, _T2), 1) - _MG2) % _WP

        def masked(plane, col, dc):
            # zero the plane column that a +/-1 lane shift would otherwise wrap into
            if dc == 0:
                return plane
            edge = _WP - 1 if dc == -1 else 0
            return jnp.where(col == edge, jnp.zeros_like(plane), plane)

        for n in range(NB):                     # static unroll over this batch block
            # ---------------- stage 1 ----------------
            plane1, tap1c = {}, {}

            def s1_plane(ra, ca, dc):
                key = (ra, ca, dc)
                if key not in plane1:
                    plane1[key] = masked(x_ref[n, 4 * ra + ca], col0, dc)
                return plane1[key]

            def s1_tap(rho, sigma):             # input offset (rho, sigma) rel. 4i,4j
                key = (rho, sigma)
                if key not in tap1c:
                    ra, dr = rho % 4, rho // 4
                    ca, dc = sigma % 4, sigma // 4
                    src = s1_plane(ra, ca, dc)
                    start = _MG0 + dr * _WP + dc
                    tap1c[key] = src[:, start:start + _NP]
                return tap1c[key]

            groups = []
            for a in range(2):                  # p1 row parity
                for b in range(2):              # p1 col parity
                    for u in range(2):          # pool-window row
                        for v in range(2):      # pool-window col
                            taps = [s1_tap(2 * a + u + kh - 1, 2 * b + v + kw - 1)
                                    for kh in range(3) for kw in range(3)]
                            groups.append(jnp.concatenate(taps, axis=0))  # (144, 256)
            tap1 = jnp.concatenate(groups, axis=1)                        # (144, 4096)
            r1 = jnp.dot(w1_ref[...], tap1,
                         preferred_element_type=jnp.float32)              # (16, 4096)

            for a in range(2):
                for b in range(2):
                    g0 = (2 * a + b) * 4
                    pooled = r1[:, g0 * _NP:(g0 + 1) * _NP]
                    for q in range(1, 4):       # 2x2 max-pool = 3 full-lane vmax
                        pooled = jnp.maximum(
                            pooled, r1[:, (g0 + q) * _NP:(g0 + q + 1) * _NP])
                    y = jnp.maximum(pooled + b1_ref[...], 0.0)
                    p1_ref[2 * a + b, :, _MG2:_MG2 + _NP] = y.astype(p1_ref.dtype)

            # ---------------- stage 2 ----------------
            plane2, tap2c = {}, {}

            def s2_plane(al, be, dc):
                key = (al, be, dc)
                if key not in plane2:
                    plane2[key] = masked(p1_ref[2 * al + be], col1, dc)
                return plane2[key]

            def s2_tap(d_r, d_c):               # p1 offset rel. (2*i2, 2*j2)
                key = (d_r, d_c)
                if key not in tap2c:
                    al, dr = d_r % 2, d_r // 2
                    be, dc = d_c % 2, d_c // 2
                    src = s2_plane(al, be, dc)
                    start = _MG2 + dr * _WP + dc
                    tap2c[key] = src[:, start:start + _NP]
                return tap2c[key]

            groups2 = []
            for s in range(2):                  # pool-window / conv2-output row parity
                for t in range(2):
                    taps = [s2_tap(s + kh - 1, t + kw - 1)
                            for kh in range(3) for kw in range(3)]
                    groups2.append(jnp.concatenate(taps, axis=0))         # (144, 256)
            tap2 = jnp.concatenate(groups2, axis=1)                       # (144, 1024)
            r2 = jnp.dot(w2_ref[...], tap2,
                         preferred_element_type=jnp.float32)              # (32, 1024)

            pooled2 = r2[:, :_NP]
            for q in range(1, 4):
                pooled2 = jnp.maximum(pooled2, r2[:, q * _NP:(q + 1) * _NP])
            y2 = jnp.maximum(pooled2 + b2_ref[...], 0.0)                  # (32, 256)
            o_ref[n] = y2.astype(o_ref.dtype)

    return kernel


def _pick_batch_block(batch):
    # >= 2 grid steps when B >= 2 (v7x megacore), block capped at 4 images (v5e VMEM).
    target = max(1, min(4, batch // 2))
    for nb in range(target, 0, -1):
        if batch % nb == 0:
            return nb
    return 1


def conv_stages(x_bchw, w1, b1, w2, b2):
    """Both conv+ReLU+pool stages fused in one pallas_call.

    x_bchw: (B, 3, 64, 64) f32.  Returns (B, 32, 256) bf16: channels-first, row-major
    pooled spatial — exactly PyTorch's NCHW Flatten order per image.
    """
    B, Cin, H, W = x_bchw.shape
    assert (Cin, H, W) == (_C_IN, _H, _W), "SimpleCNN fixes a 3x64x64 input"
    NB = _pick_batch_block(B)

    # ---- host-side prep: 16-way (row%4, col%4) parity split (pure permutation),
    # ---- zero margins, channel pad 3->16, bf16 cast.
    xr = x_bchw.reshape(B, Cin, _WP, 4, _WP, 4)
    xp = xr.transpose(0, 3, 5, 1, 2, 4).reshape(B, 16, Cin, _NP)
    xp = jnp.pad(xp, ((0, 0), (0, 0), (0, _CP0 - Cin), (_MG0, _MG0))).astype(jnp.bfloat16)

    def conv_w_mat(w, cp):
        cout, cin = w.shape[0], w.shape[1]
        w4 = jnp.transpose(w, (0, 2, 3, 1))                       # (Cout, 3, 3, Cin)
        w4 = jnp.pad(w4, ((0, 0), (0, 0), (0, 0), (0, cp - cin)))
        return w4.reshape(cout, 9 * cp).astype(jnp.bfloat16)

    w1m = conv_w_mat(w1, _CP0)                                    # (16, 144)
    w2m = conv_w_mat(w2, _C1)                                     # (32, 144)
    b1m = b1.reshape(_C1, 1).astype(jnp.float32)
    b2m = b2.reshape(_C2, 1).astype(jnp.float32)

    return pl.pallas_call(
        _make_fused_conv_kernel(NB),
        out_shape=jax.ShapeDtypeStruct((B, _C2, _NP), jnp.bfloat16),
        grid=(B // NB,),
        in_specs=[
            pl.BlockSpec((NB, 16, _CP0, _T0), lambda i: (i, 0, 0, 0)),
            pl.BlockSpec((_C1, 9 * _CP0), lambda i: (0, 0)),
            pl.BlockSpec((_C1, 1), lambda i: (0, 0)),
            pl.BlockSpec((_C2, 9 * _C1), lambda i: (0, 0)),
            pl.BlockSpec((_C2, 1), lambda i: (0, 0)),
        ],
        out_specs=pl.BlockSpec((NB, _C2, _NP), lambda i: (i, 0, 0)),
        scratch_shapes=[pltpu.VMEM((4, _C1, _T2), jnp.bfloat16)],
        compiler_params=pltpu.CompilerParams(dimension_semantics=("parallel",)),
    )(xp, w1m, b1m, w2m, b2m)


# --------------------------------------------------------------------------------------
# FC head: Linear(8192, 64) -> ReLU -> Linear(64, 3), single kernel, VMEM-resident.
# --------------------------------------------------------------------------------------
def _fc_kernel(x_ref, w1_ref, b1_ref, w2_ref, b2_ref, o_ref):
    h = jnp.dot(x_ref[...], w1_ref[...], preferred_element_type=jnp.float32) + b1_ref[...]
    h = jnp.maximum(h, 0.0)
    o = jnp.dot(h, w2_ref[...], preferred_element_type=jnp.float32) + b2_ref[...]
    o_ref[...] = o.astype(o_ref.dtype)


def fc_head(x_flat, w1_t, b1, w2_t, b2):
    B, K = x_flat.shape
    H1 = w1_t.shape[1]
    C = w2_t.shape[1]
    return pl.pallas_call(
        _fc_kernel,
        out_shape=jax.ShapeDtypeStruct((B, C), jnp.float32),
        grid=(1,),
        in_specs=[
            pl.BlockSpec((B, K), lambda i: (0, 0)),      # bf16 activations
            pl.BlockSpec((K, H1), lambda i: (0, 0)),     # bf16 fc1 weight, VMEM-resident
            pl.BlockSpec((1, H1), lambda i: (0, 0)),
            pl.BlockSpec((H1, C), lambda i: (0, 0)),
            pl.BlockSpec((1, C), lambda i: (0, 0)),
        ],
        out_specs=pl.BlockSpec((B, C), lambda i: (0, 0)),
    )(x_flat, w1_t, b1, w2_t, b2)


# --------------------------------------------------------------------------------------
# Full forward pass (matches SimpleCNN.forward)
# --------------------------------------------------------------------------------------
def simple_cnn_forward(x_nchw, params):
    B = x_nchw.shape[0]
    y = conv_stages(x_nchw, params["conv1_w"], params["conv1_b"],
                    params["conv2_w"], params["conv2_b"])            # (B, 32, 256) bf16

    # Channel-major, row-major pooled spatial == PyTorch Flatten order: free reshape.
    x_flat = y.reshape(B, -1)                                        # (B, 8192) bf16

    w1_t = params["fc1_w"].T.astype(jnp.bfloat16)                    # (8192, 64)
    b1 = params["fc1_b"].reshape(1, -1).astype(jnp.float32)
    w2_t = params["fc2_w"].T.astype(jnp.float32)                     # (64, 3)
    b2 = params["fc2_b"].reshape(1, -1).astype(jnp.float32)
    return fc_head(x_flat, w1_t, b1, w2_t, b2)                       # (B, 3) f32


# --------------------------------------------------------------------------------------
# Pure-JAX reference (f32) for a sanity check.
# --------------------------------------------------------------------------------------
def _reference_forward(x, params):
    def stage(x, w, b):
        y = lax.conv_general_dilated(
            x, w, window_strides=(1, 1), padding=((1, 1), (1, 1)),
            dimension_numbers=("NCHW", "OIHW", "NCHW"))
        y = jnp.maximum(y + b[None, :, None, None], 0.0)
        return lax.reduce_window(y, -jnp.inf, lax.max,
                                 (1, 1, 2, 2), (1, 1, 2, 2), "VALID")

    y = stage(x, params["conv1_w"], params["conv1_b"])
    y = stage(y, params["conv2_w"], params["conv2_b"])
    y = y.reshape(y.shape[0], -1)
    h = jnp.maximum(y @ params["fc1_w"].T + params["fc1_b"], 0.0)
    return h @ params["fc2_w"].T + params["fc2_b"]


def init_params(key):
    """Deterministic synthetic parameters, PyTorch-shaped (Conv2d OIHW, Linear (out,in))."""
    ks = jax.random.split(key, 8)

    def u(k, shape, fan_in):
        bound = 1.0 / jnp.sqrt(jnp.float32(fan_in))
        return jax.random.uniform(k, shape, jnp.float32, -bound, bound)

    return {
        "conv1_w": u(ks[0], (16, 3, 3, 3), 3 * 9),
        "conv1_b": u(ks[1], (16,), 3 * 9),
        "conv2_w": u(ks[2], (32, 16, 3, 3), 16 * 9),
        "conv2_b": u(ks[3], (32,), 16 * 9),
        "fc1_w": u(ks[4], (64, 32 * 16 * 16), 32 * 16 * 16),
        "fc1_b": u(ks[5], (64,), 32 * 16 * 16),
        "fc2_w": u(ks[6], (3, 64), 64),
        "fc2_b": u(ks[7], (3,), 64),
    }


if __name__ == "__main__":
    key = jax.random.PRNGKey(0)
    pkey, xkey = jax.random.split(key)
    params = init_params(pkey)

    # Batch=2 of 3x64x64 images: 64x64 spatial is forced by fc1's 32*16*16 input size.
    x = jax.random.normal(xkey, (2, 3, 64, 64), jnp.float32)

    out = jax.jit(simple_cnn_forward)(x, params)
    out = jax.block_until_ready(out)

    assert out.shape == (2, 3), out.shape
    assert bool(jnp.all(jnp.isfinite(out)))

    # Loose tolerance: kernel uses bf16 matmul operands (f32 accumulation) by design.
    ref = _reference_forward(x, params)
    assert bool(jnp.max(jnp.abs(out - ref)) < 5e-2), "mismatch vs pure-JAX reference"
    print("KERNEL_OK")
</pallas_src>

<mosaic_0001>
module attributes {stable_mosaic.version = 11 : i64} {
  func.func @kernel(%arg0: i32, %arg1: memref<1x16x16x384xbf16, #tpu.memory_space<vmem>>, %arg2: memref<16x144xbf16, #tpu.memory_space<vmem>>, %arg3: memref<16x1xf32, #tpu.memory_space<vmem>>, %arg4: memref<32x144xbf16, #tpu.memory_space<vmem>>, %arg5: memref<32x1xf32, #tpu.memory_space<vmem>>, %arg6: memref<1x32x256xbf16, #tpu.memory_space<vmem>>, %arg7: memref<4x16x512xbf16, #tpu.memory_space<vmem>>) attributes {dimension_semantics = [#tpu.dimension_semantics<parallel>], iteration_bounds = array<i64: 2>, scalar_prefetch = 0 : i64, scratch_operands = 1 : i64, tpu.core_type = #tpu.core_type<tc>, window_params = [{transform_indices = @transform_0, window_bounds = array<i64: 1, 16, 16, 384>}, {pipeline_mode = #tpu.pipeline_mode<synchronous>, transform_indices = @transform_1, window_bounds = array<i64: 16, 144>}, {pipeline_mode = #tpu.pipeline_mode<synchronous>, transform_indices = @transform_2, window_bounds = array<i64: 16, 1>}, {pipeline_mode = #tpu.pipeline_mode<synchronous>, transform_indices = @transform_3, window_bounds = array<i64: 32, 144>}, {pipeline_mode = #tpu.pipeline_mode<synchronous>, transform_indices = @transform_4, window_bounds = array<i64: 32, 1>}, {transform_indices = @transform_5, window_bounds = array<i64: 1, 32, 256>}]} {
    %cst = arith.constant 0.000000e+00 : bf16
    %0 = vector.broadcast %cst : bf16 to vector<4x16x512xbf16>
    %c0 = arith.constant 0 : index
    %c0_0 = arith.constant 0 : index
    %c0_1 = arith.constant 0 : index
    %1 = vector.load %arg7[%c0, %c0_0, %c0_1] : memref<4x16x512xbf16, #tpu.memory_space<vmem>>, vector<4x16x512xbf16>
    tpu.vector_store %arg7[%c0, %c0_0, %c0_1], %0 {strides = array<i32>} : memref<4x16x512xbf16, #tpu.memory_space<vmem>>, vector<4x16x512xbf16>,
    %2 = tpu.iota {dimensions = array<i32: 1>} : vector<1x384xi32>
    %c64_i32 = arith.constant 64 : i32
    %3 = vector.broadcast %c64_i32 : i32 to vector<1x384xi32>
    %4 = arith.subi %2, %3 : vector<1x384xi32>
    %c16_i32 = arith.constant 16 : i32
    %c0_i32 = arith.constant 0 : i32
    %5 = arith.cmpi eq, %c16_i32, %c0_i32 : i32
    %c1_i32 = arith.constant 1 : i32
    %6 = arith.select %5, %c1_i32, %c16_i32 : i32
    %7 = vector.broadcast %6 : i32 to vector<1x384xi32>
    %8 = arith.remsi %4, %7 : vector<1x384xi32>
    %c0_i32_2 = arith.constant 0 : i32
    %9 = vector.broadcast %c0_i32_2 : i32 to vector<1x384xi32>
    %10 = arith.cmpi ne, %8, %9 : vector<1x384xi32>
    %c0_i32_3 = arith.constant 0 : i32
    %11 = vector.broadcast %c0_i32_3 : i32 to vector<1x384xi32>
    %12 = arith.cmpi slt, %8, %11 : vector<1x384xi32>
    %c0_i32_4 = arith.constant 0 : i32
    %13 = arith.cmpi slt, %6, %c0_i32_4 : i32
    %14 = vector.broadcast %13 : i1 to vector<1x384xi1>
    %15 = vector.broadcast %14 : vector<1x384xi1> to vector<1x384xi1>
    %16 = arith.xori %12, %15 : vector<1x384xi1>
    %17 = arith.andi %16, %10 : vector<1x384xi1>
    %18 = vector.broadcast %6 : i32 to vector<1x384xi32>
    %19 = arith.addi %8, %18 : vector<1x384xi32>
    %20 = arith.select %17, %19, %8 : vector<1x384xi1>, vector<1x384xi32>
    %21 = tpu.iota {dimensions = array<i32: 1>} : vector<1x512xi32>
    %c128_i32 = arith.constant 128 : i32
    %22 = vector.broadcast %c128_i32 : i32 to vector<1x512xi32>
    %23 = arith.subi %21, %22 : vector<1x512xi32>
    %c16_i32_5 = arith.constant 16 : i32
    %c0_i32_6 = arith.constant 0 : i32
    %24 = arith.cmpi eq, %c16_i32_5, %c0_i32_6 : i32
    %c1_i32_7 = arith.constant 1 : i32
    %25 = arith.select %24, %c1_i32_7, %c16_i32_5 : i32
    %26 = vector.broadcast %25 : i32 to vector<1x512xi32>
    %27 = arith.remsi %23, %26 : vector<1x512xi32>
    %c0_i32_8 = arith.constant 0 : i32
    %28 = vector.broadcast %c0_i32_8 : i32 to vector<1x512xi32>
    %29 = arith.cmpi ne, %27, %28 : vector<1x512xi32>
    %c0_i32_9 = arith.constant 0 : i32
    %30 = vector.broadcast %c0_i32_9 : i32 to vector<1x512xi32>
    %31 = arith.cmpi slt, %27, %30 : vector<1x512xi32>
    %c0_i32_10 = arith.constant 0 : i32
    %32 = arith.cmpi slt, %25, %c0_i32_10 : i32
    %33 = vector.broadcast %32 : i1 to vector<1x512xi1>
    %34 = vector.broadcast %33 : vector<1x512xi1> to vector<1x512xi1>
    %35 = arith.xori %31, %34 : vector<1x512xi1>
    %36 = arith.andi %35, %29 : vector<1x512xi1>
    %37 = vector.broadcast %25 : i32 to vector<1x512xi32>
    %38 = arith.addi %27, %37 : vector<1x512xi32>
    %39 = arith.select %36, %38, %27 : vector<1x512xi1>, vector<1x512xi32>
    %c0_11 = arith.constant 0 : index
    %c15 = arith.constant 15 : index
    %c0_12 = arith.constant 0 : index
    %c0_13 = arith.constant 0 : index
    %40 = vector.load %arg1[%c0_11, %c15, %c0_12, %c0_13] : memref<1x16x16x384xbf16, #tpu.memory_space<vmem>>, vector<1x1x16x384xbf16>
    %41 = vector.shape_cast %40 : vector<1x1x16x384xbf16> to vector<16x384xbf16>
    %c15_i32 = arith.constant 15 : i32
    %42 = vector.broadcast %c15_i32 : i32 to vector<1x384xi32>
    %43 = arith.cmpi eq, %20, %42 : vector<1x384xi32>
    %cst_14 = arith.constant 0.000000e+00 : bf16
    %44 = vector.broadcast %cst_14 : bf16 to vector<16x384xbf16>
    %45 = vector.shape_cast %43 : vector<1x384xi1> to vector<1x384xi1>
    %46 = vector.broadcast %45 : vector<1x384xi1> to vector<16x384xi1>
    %47 = arith.select %46, %44, %41 : vector<16x384xi1>, vector<16x384xbf16>
    %48 = vector.extract_strided_slice %47 {offsets = [0, 47], sizes = [16, 256], strides = [1, 1]} : vector<16x384xbf16> to vector<16x256xbf16>
    %c0_15 = arith.constant 0 : index
    %c12 = arith.constant 12 : index
    %c0_16 = arith.constant 0 : index
    %c0_17 = arith.constant 0 : index
    %49 = vector.load %arg1[%c0_15, %c12, %c0_16, %c0_17] : memref<1x16x16x384xbf16, #tpu.memory_space<vmem>>, vector<1x1x16x384xbf16>
    %50 = vector.shape_cast %49 : vector<1x1x16x384xbf16> to vector<16x384xbf16>
    %51 = vector.extract_strided_slice %50 {offsets = [0, 48], sizes = [16, 256], strides = [1, 1]} : vector<16x384xbf16> to vector<16x256xbf16>
    %c0_18 = arith.constant 0 : index
    %c13 = arith.constant 13 : index
    %c0_19 = arith.constant 0 : index
    %c0_20 = arith.constant 0 : index
    %52 = vector.load %arg1[%c0_18, %c13, %c0_19, %c0_20] : memref<1x16x16x384xbf16, #tpu.memory_space<vmem>>, vector<1x1x16x384xbf16>
    %53 = vector.shape_cast %52 : vector<1x1x16x384xbf16> to vector<16x384xbf16>
    %54 = vector.extract_strided_slice %53 {offsets = [0, 48], sizes = [16, 256], strides = [1, 1]} : vector<16x384xbf16> to vector<16x256xbf16>
    %c0_21 = arith.constant 0 : index
    %c3 = arith.constant 3 : index
    %c0_22 = arith.constant 0 : index
    %c0_23 = arith.constant 0 : index
    %55 = vector.load %arg1[%c0_21, %c3, %c0_22, %c0_23] : memref<1x16x16x384xbf16, #tpu.memory_space<vmem>>, vector<1x1x16x384xbf16>
    %56 = vector.shape_cast %55 : vector<1x1x16x384xbf16> to vector<16x384xbf16>
    %c15_i32_24 = arith.constant 15 : i32
    %57 = vector.broadcast %c15_i32_24 : i32 to vector<1x384xi32>
    %58 = arith.cmpi eq, %20, %57 : vector<1x384xi32>
    %cst_25 = arith.constant 0.000000e+00 : bf16
    %59 = vector.broadcast %cst_25 : bf16 to vector<16x384xbf16>
    %60 = vector.shape_cast %58 : vector<1x384xi1> to vector<1x384xi1>
    %61 = vector.broadcast %60 : vector<1x384xi1> to vector<16x384xi1>
    %62 = arith.select %61, %59, %56 : vector<16x384xi1>, vector<16x384xbf16>
    %63 = vector.extract_strided_slice %62 {offsets = [0, 63], sizes = [16, 256], strides = [1, 1]} : vector<16x384xbf16> to vector<16x256xbf16>
    %c0_26 = arith.constant 0 : index
    %c0_27 = arith.constant 0 : index
    %c0_28 = arith.constant 0 : index
    %c0_29 = arith.constant 0 : index
    %64 = vector.load %arg1[%c0_26, %c0_27, %c0_28, %c0_29] : memref<1x16x16x384xbf16, #tpu.memory_space<vmem>>, vector<1x1x16x384xbf16>
    %65 = vector.shape_cast %64 : vector<1x1x16x384xbf16> to vector<16x384xbf16>
    %66 = vector.extract_strided_slice %65 {offsets = [0, 64], sizes = [16, 256], strides = [1, 1]} : vector<16x384xbf16> to vector<16x256xbf16>
    %c0_30 = arith.constant 0 : index
    %c1 = arith.constant 1 : index
    %c0_31 = arith.constant 0 : index
    %c0_32 = arith.constant 0 : index
    %67 = vector.load %arg1[%c0_30, %c1, %c0_31, %c0_32] : memref<1x16x16x384xbf16, #tpu.memory_space<vmem>>, vector<1x1x16x384xbf16>
    %68 = vector.shape_cast %67 : vector<1x1x16x384xbf16> to vector<16x384xbf16>
    %69 = vector.extract_strided_slice %68 {offsets = [0, 64], sizes = [16, 256], strides = [1, 1]} : vector<16x384xbf16> to vector<16x256xbf16>
    %c0_33 = arith.constant 0 : index
    %c7 = arith.constant 7 : index
    %c0_34 = arith.constant 0 : index
    %c0_35 = arith.constant 0 : index
    %70 = vector.load %arg1[%c0_33, %c7, %c0_34, %c0_35] : memref<1x16x16x384xbf16, #tpu.memory_space<vmem>>, vector<1x1x16x384xbf16>
    %71 = vector.shape_cast %70 : vector<1x1x16x384xbf16> to vector<16x384xbf16>
    %c15_i32_36 = arith.constant 15 : i32
    %72 = vector.broadcast %c15_i32_36 : i32 to vector<1x384xi32>
    %73 = arith.cmpi eq, %20, %72 : vector<1x384xi32>
    %cst_37 = arith.constant 0.000000e+00 : bf16
    %74 = vector.broadcast %cst_37 : bf16 to vector<16x384xbf16>
    %75 = vector.shape_cast %73 : vector<1x384xi1> to vector<1x384xi1>
    %76 = vector.broadcast %75 : vector<1x384xi1> to vector<16x384xi1>
    %77 = arith.select %76, %74, %71 : vector<16x384xi1>, vector<16x384xbf16>
    %78 = vector.extract_strided_slice %77 {offsets = [0, 63], sizes = [16, 256], strides = [1, 1]} : vector<16x384xbf16> to vector<16x256xbf16>
    %c0_38 = arith.constant 0 : index
    %c4 = arith.constant 4 : index
    %c0_39 = arith.constant 0 : index
    %c0_40 = arith.constant 0 : index
    %79 = vector.load %arg1[%c0_38, %c4, %c0_39, %c0_40] : memref<1x16x16x384xbf16, #tpu.memory_space<vmem>>, vector<1x1x16x384xbf16>
    %80 = vector.shape_cast %79 : vector<1x1x16x384xbf16> to vector<16x384xbf16>
    %81 = vector.extract_strided_slice %80 {offsets = [0, 64], sizes = [16, 256], strides = [1, 1]} : vector<16x384xbf16> to vector<16x256xbf16>
    %c0_41 = arith.constant 0 : index
    %c5 = arith.constant 5 : index
    %c0_42 = arith.constant 0 : index
    %c0_43 = arith.constant 0 : index
    %82 = vector.load %arg1[%c0_41, %c5, %c0_42, %c0_43] : memref<1x16x16x384xbf16, #tpu.memory_space<vmem>>, vector<1x1x16x384xbf16>
    %83 = vector.shape_cast %82 : vector<1x1x16x384xbf16> to vector<16x384xbf16>
    %84 = vector.extract_strided_slice %83 {offsets = [0, 64], sizes = [16, 256], strides = [1, 1]} : vector<16x384xbf16> to vector<16x256xbf16>
    %85 = tpu.concatenate %48, %51, %54, %63, %66, %69, %78, %81, %84 in 0 : vector<16x256xbf16>, vector<16x256xbf16>, vector<16x256xbf16>, vector<16x256xbf16>, vector<16x256xbf16>, vector<16x256xbf16>, vector<16x256xbf16>, vector<16x256xbf16>, vector<16x256xbf16> -> vector<144x256xbf16>
    %c0_44 = arith.constant 0 : index
    %c14 = arith.constant 14 : index
    %c0_45 = arith.constant 0 : index
    %c0_46 = arith.constant 0 : index
    %86 = vector.load %arg1[%c0_44, %c14, %c0_45, %c0_46] : memref<1x16x16x384xbf16, #tpu.memory_space<vmem>>, vector<1x1x16x384xbf16>
    %87 = vector.shape_cast %86 : vector<1x1x16x384xbf16> to vector<16x384xbf16>
    %88 = vector.extract_strided_slice %87 {offsets = [0, 48], sizes = [16, 256], strides = [1, 1]} : vector<16x384xbf16> to vector<16x256xbf16>
    %c0_47 = arith.constant 0 : index
    %c2 = arith.constant 2 : index
    %c0_48 = arith.constant 0 : index
    %c0_49 = arith.constant 0 : index
    %89 = vector.load %arg1[%c0_47, %c2, %c0_48, %c0_49] : memref<1x16x16x384xbf16, #tpu.memory_space<vmem>>, vector<1x1x16x384xbf16>
    %90 = vector.shape_cast %89 : vector<1x1x16x384xbf16> to vector<16x384xbf16>
    %91 = vector.extract_strided_slice %90 {offsets = [0, 64], sizes = [16, 256], strides = [1, 1]} : vector<16x384xbf16> to vector<16x256xbf16>
    %c0_50 = arith.constant 0 : index
    %c6 = arith.constant 6 : index
    %c0_51 = arith.constant 0 : index
    %c0_52 = arith.constant 0 : index
    %92 = vector.load %arg1[%c0_50, %c6, %c0_51, %c0_52] : memref<1x16x16x384xbf16, #tpu.memory_space<vmem>>, vector<1x1x16x384xbf16>
    %93 = vector.shape_cast %92 : vector<1x1x16x384xbf16> to vector<16x384xbf16>
    %94 = vector.extract_strided_slice %93 {offsets = [0, 64], sizes = [16, 256], strides = [1, 1]} : vector<16x384xbf16> to vector<16x256xbf16>
    %95 = tpu.concatenate %51, %54, %88, %66, %69, %91, %81, %84, %94 in 0 : vector<16x256xbf16>, vector<16x256xbf16>, vector<16x256xbf16>, vector<16x256xbf16>, vector<16x256xbf16>, vector<16x256xbf16>, vector<16x256xbf16>, vector<16x256xbf16>, vector<16x256xbf16> -> vector<144x256xbf16>
    %c0_53 = arith.constant 0 : index
    %c11 = arith.constant 11 : index
    %c0_54 = arith.constant 0 : index
    %c0_55 = arith.constant 0 : index
    %96 = vector.load %arg1[%c0_53, %c11, %c0_54, %c0_55] : memref<1x16x16x384xbf16, #tpu.memory_space<vmem>>, vector<1x1x16x384xbf16>
    %97 = vector.shape_cast %96 : vector<1x1x16x384xbf16> to vector<16x384xbf16>
    %c15_i32_56 = arith.constant 15 : i32
    %98 = vector.broadcast %c15_i32_56 : i32 to vector<1x384xi32>
    %99 = arith.cmpi eq, %20, %98 : vector<1x384xi32>
    %cst_57 = arith.constant 0.000000e+00 : bf16
    %100 = vector.broadcast %cst_57 : bf16 to vector<16x384xbf16>
    %101 = vector.shape_cast %99 : vector<1x384xi1> to vector<1x384xi1>
    %102 = vector.broadcast %101 : vector<1x384xi1> to vector<16x384xi1>
    %103 = arith.select %102, %100, %97 : vector<16x384xi1>, vector<16x384xbf16>
    %104 = vector.extract_strided_slice %103 {offsets = [0, 63], sizes = [16, 256], strides = [1, 1]} : vector<16x384xbf16> to vector<16x256xbf16>
    %c0_58 = arith.constant 0 : index
    %c8 = arith.constant 8 : index
    %c0_59 = arith.constant 0 : index
    %c0_60 = arith.constant 0 : index
    %105 = vector.load %arg1[%c0_58, %c8, %c0_59, %c0_60] : memref<1x16x16x384xbf16, #tpu.memory_space<vmem>>, vector<1x1x16x384xbf16>
    %106 = vector.shape_cast %105 : vector<1x1x16x384xbf16> to vector<16x384xbf16>
    %107 = vector.extract_strided_slice %106 {offsets = [0, 64], sizes = [16, 256], strides = [1, 1]} : vector<16x384xbf16> to vector<16x256xbf16>
    %c0_61 = arith.constant 0 : index
    %c9 = arith.constant 9 : index
    %c0_62 = arith.constant 0 : index
    %c0_63 = arith.constant 0 : index
    %108 = vector.load %arg1[%c0_61, %c9, %c0_62, %c0_63] : memref<1x16x16x384xbf16, #tpu.memory_space<vmem>>, vector<1x1x16x384xbf16>
    %109 = vector.shape_cast %108 : vector<1x1x16x384xbf16> to vector<16x384xbf16>
    %110 = vector.extract_strided_slice %109 {offsets = [0, 64], sizes = [16, 256], strides = [1, 1]} : vector<16x384xbf16> to vector<16x256xbf16>
    %111 = tpu.concatenate %63, %66, %69, %78, %81, %84, %104, %107, %110 in 0 : vector<16x256xbf16>, vector<16x256xbf16>, vector<16x256xbf16>, vector<16x256xbf16>, vector<16x256xbf16>, vector<16x256xbf16>, vector<16x256xbf16>, vector<16x256xbf16>, vector<16x256xbf16> -> vector<144x256xbf16>
    %c0_64 = arith.constant 0 : index
    %c10 = arith.constant 10 : index
    %c0_65 = arith.constant 0 : index
    %c0_66 = arith.constant 0 : index
    %112 = vector.load %arg1[%c0_64, %c10, %c0_65, %c0_66] : memref<1x16x16x384xbf16, #tpu.memory_space<vmem>>, vector<1x1x16x384xbf16>
    %113 = vector.shape_cast %112 : vector<1x1x16x384xbf16> to vector<16x384xbf16>
    %114 = vector.extract_strided_slice %113 {offsets = [0, 64], sizes = [16, 256], strides = [1, 1]} : vector<16x384xbf16> to vector<16x256xbf16>
    %115 = tpu.concatenate %66, %69, %91, %81, %84, %94, %107, %110, %114 in 0 : vector<16x256xbf16>, vector<16x256xbf16>, vector<16x256xbf16>, vector<16x256xbf16>, vector<16x256xbf16>, vector<16x256xbf16>, vector<16x256xbf16>, vector<16x256xbf16>, vector<16x256xbf16> -> vector<144x256xbf16>
    %c0_67 = arith.constant 0 : index
    %c15_68 = arith.constant 15 : index
    %c0_69 = arith.constant 0 : index
    %c0_70 = arith.constant 0 : index
    %116 = vector.load %arg1[%c0_67, %c15_68, %c0_69, %c0_70] : memref<1x16x16x384xbf16, #tpu.memory_space<vmem>>, vector<1x1x16x384xbf16>
    %117 = vector.shape_cast %116 : vector<1x1x16x384xbf16> to vector<16x384xbf16>
    %118 = vector.extract_strided_slice %117 {offsets = [0, 48], sizes = [16, 256], strides = [1, 1]} : vector<16x384xbf16> to vector<16x256xbf16>
    %c0_71 = arith.constant 0 : index
    %c3_72 = arith.constant 3 : index
    %c0_73 = arith.constant 0 : index
    %c0_74 = arith.constant 0 : index
    %119 = vector.load %arg1[%c0_71, %c3_72, %c0_73, %c0_74] : memref<1x16x16x384xbf16, #tpu.memory_space<vmem>>, vector<1x1x16x384xbf16>
    %120 = vector.shape_cast %119 : vector<1x1x16x384xbf16> to vector<16x384xbf16>
    %121 = vector.extract_strided_slice %120 {offsets = [0, 64], sizes = [16, 256], strides = [1, 1]} : vector<16x384xbf16> to vector<16x256xbf16>
    %c0_75 = arith.constant 0 : index
    %c7_76 = arith.constant 7 : index
    %c0_77 = arith.constant 0 : index
    %c0_78 = arith.constant 0 : index
    %122 = vector.load %arg1[%c0_75, %c7_76, %c0_77, %c0_78] : memref<1x16x16x384xbf16, #tpu.memory_space<vmem>>, vector<1x1x16x384xbf16>
    %123 = vector.shape_cast %122 : vector<1x1x16x384xbf16> to vector<16x384xbf16>
    %124 = vector.extract_strided_slice %123 {offsets = [0, 64], sizes = [16, 256], strides = [1, 1]} : vector<16x384xbf16> to vector<16x256xbf16>
    %125 = tpu.concatenate %54, %88, %118, %69, %91, %121, %84, %94, %124 in 0 : vector<16x256xbf16>, vector<16x256xbf16>, vector<16x256xbf16>, vector<16x256xbf16>, vector<16x256xbf16>, vector<16x256xbf16>, vector<16x256xbf16>, vector<16x256xbf16>, vector<16x256xbf16> -> vector<144x256xbf16>
    %c0_79 = arith.constant 0 : index
    %c12_80 = arith.constant 12 : index
    %c0_81 = arith.constant 0 : index
    %c0_82 = arith.constant 0 : index
    %126 = vector.load %arg1[%c0_79, %c12_80, %c0_81, %c0_82] : memref<1x16x16x384xbf16, #tpu.memory_space<vmem>>, vector<1x1x16x384xbf16>
    %127 = vector.shape_cast %126 : vector<1x1x16x384xbf16> to vector<16x384xbf16>
    %c0_i32_83 = arith.constant 0 : i32
    %128 = vector.broadcast %c0_i32_83 : i32 to vector<1x384xi32>
    %129 = arith.cmpi eq, %20, %128 : vector<1x384xi32>
    %cst_84 = arith.constant 0.000000e+00 : bf16
    %130 = vector.broadcast %cst_84 : bf16 to vector<16x384xbf16>
    %131 = vector.shape_cast %129 : vector<1x384xi1> to vector<1x384xi1>
    %132 = vector.broadcast %131 : vector<1x384xi1> to vector<16x384xi1>
    %133 = arith.select %132, %130, %127 : vector<16x384xi1>, vector<16x384xbf16>
    %134 = vector.extract_strided_slice %133 {offsets = [0, 49], sizes = [16, 256], strides = [1, 1]} : vector<16x384xbf16> to vector<16x256xbf16>
    %c0_85 = arith.constant 0 : index
    %c0_86 = arith.constant 0 : index
    %c0_87 = arith.constant 0 : index
    %c0_88 = arith.constant 0 : index
    %135 = vector.load %arg1[%c0_85, %c0_86, %c0_87, %c0_88] : memref<1x16x16x384xbf16, #tpu.memory_space<vmem>>, vector<1x1x16x384xbf16>
    %136 = vector.shape_cast %135 : vector<1x1x16x384xbf16> to vector<16x384xbf16>
    %c0_i32_89 = arith.constant 0 : i32
    %137 = vector.broadcast %c0_i32_89 : i32 to vector<1x384xi32>
    %138 = arith.cmpi eq, %20, %137 : vector<1x384xi32>
    %cst_90 = arith.constant 0.000000e+00 : bf16
    %139 = vector.broadcast %cst_90 : bf16 to vector<16x384xbf16>
    %140 = vector.shape_cast %138 : vector<1x384xi1> to vector<1x384xi1>
    %141 = vector.broadcast %140 : vector<1x384xi1> to vector<16x384xi1>
    %142 = arith.select %141, %139, %136 : vector<16x384xi1>, vector<16x384xbf16>
    %143 = vector.extract_strided_slice %142 {offsets = [0, 65], sizes = [16, 256], strides = [1, 1]} : vector<16x384xbf16> to vector<16x256xbf16>
    %c0_91 = arith.constant 0 : index
    %c4_92 = arith.constant 4 : index
    %c0_93 = arith.constant 0 : index
    %c0_94 = arith.constant 0 : index
    %144 = vector.load %arg1[%c0_91, %c4_92, %c0_93, %c0_94] : memref<1x16x16x384xbf16, #tpu.memory_space<vmem>>, vector<1x1x16x384xbf16>
    %145 = vector.shape_cast %144 : vector<1x1x16x384xbf16> to vector<16x384xbf16>
    %c0_i32_95 = arith.constant 0 : i32
    %146 = vector.broadcast %c0_i32_95 : i32 to vector<1x384xi32>
    %147 = arith.cmpi eq, %20, %146 : vector<1x384xi32>
    %cst_96 = arith.constant 0.000000e+00 : bf16
    %148 = vector.broadcast %cst_96 : bf16 to vector<16x384xbf16>
    %149 = vector.shape_cast %147 : vector<1x384xi1> to vector<1x384xi1>
    %150 = vector.broadcast %149 : vector<1x384xi1> to vector<16x384xi1>
    %151 = arith.select %150, %148, %145 : vector<16x384xi1>, vector<16x384xbf16>
    %152 = vector.extract_strided_slice %151 {offsets = [0, 65], sizes = [16, 256], strides = [1, 1]} : vector<16x384xbf16> to vector<16x256xbf16>
    %153 = tpu.concatenate %88, %118, %134, %91, %121, %143, %94, %124, %152 in 0 : vector<16x256xbf16>, vector<16x256xbf16>, vector<16x256xbf16>, vector<16x256xbf16>, vector<16x256xbf16>, vector<16x256xbf16>, vector<16x256xbf16>, vector<16x256xbf16>, vector<16x256xbf16> -> vector<144x256xbf16>
    %c0_97 = arith.constant 0 : index
    %c11_98 = arith.constant 11 : index
    %c0_99 = arith.constant 0 : index
    %c0_100 = arith.constant 0 : index
    %154 = vector.load %arg1[%c0_97, %c11_98, %c0_99, %c0_100] : memref<1x16x16x384xbf16, #tpu.memory_space<vmem>>, vector<1x1x16x384xbf16>
    %155 = vector.shape_cast %154 : vector<1x1x16x384xbf16> to vector<16x384xbf16>
    %156 = vector.extract_strided_slice %155 {offsets = [0, 64], sizes = [16, 256], strides = [1, 1]} : vector<16x384xbf16> to vector<16x256xbf16>
    %157 = tpu.concatenate %69, %91, %121, %84, %94, %124, %110, %114, %156 in 0 : vector<16x256xbf16>, vector<16x256xbf16>, vector<16x256xbf16>, vector<16x256xbf16>, vector<16x256xbf16>, vector<16x256xbf16>, vector<16x256xbf16>, vector<16x256xbf16>, vector<16x256xbf16> -> vector<144x256xbf16>
    %c0_101 = arith.constant 0 : index
    %c8_102 = arith.constant 8 : index
    %c0_103 = arith.constant 0 : index
    %c0_104 = arith.constant 0 : index
    %158 = vector.load %arg1[%c0_101, %c8_102, %c0_103, %c0_104] : memref<1x16x16x384xbf16, #tpu.memory_space<vmem>>, vector<1x1x16x384xbf16>
    %159 = vector.shape_cast %158 : vector<1x1x16x384xbf16> to vector<16x384xbf16>
    %c0_i32_105 = arith.constant 0 : i32
    %160 = vector.broadcast %c0_i32_105 : i32 to vector<1x384xi32>
    %161 = arith.cmpi eq, %20, %160 : vector<1x384xi32>
    %cst_106 = arith.constant 0.000000e+00 : bf16
    %162 = vector.broadcast %cst_106 : bf16 to vector<16x384xbf16>
    %163 = vector.shape_cast %161 : vector<1x384xi1> to vector<1x384xi1>
    %164 = vector.broadcast %163 : vector<1x384xi1> to vector<16x384xi1>
    %165 = arith.select %164, %162, %159 : vector<16x384xi1>, vector<16x384xbf16>
    %166 = vector.extract_strided_slice %165 {offsets = [0, 65], sizes = [16, 256], strides = [1, 1]} : vector<16x384xbf16> to vector<16x256xbf16>
    %167 = tpu.concatenate %91, %121, %143, %94, %124, %152, %114, %156, %166 in 0 : vector<16x256xbf16>, vector<16x256xbf16>, vector<16x256xbf16>, vector<16x256xbf16>, vector<16x256xbf16>, vector<16x256xbf16>, vector<16x256xbf16>, vector<16x256xbf16>, vector<16x256xbf16> -> vector<144x256xbf16>
    %168 = vector.extract_strided_slice %47 {offsets = [0, 63], sizes = [16, 256], strides = [1, 1]} : vector<16x384xbf16> to vector<16x256xbf16>
    %169 = vector.extract_strided_slice %50 {offsets = [0, 64], sizes = [16, 256], strides = [1, 1]} : vector<16x384xbf16> to vector<16x256xbf16>
    %170 = vector.extract_strided_slice %53 {offsets = [0, 64], sizes = [16, 256], strides = [1, 1]} : vector<16x384xbf16> to vector<16x256xbf16>
    %171 = tpu.concatenate %78, %81, %84, %104, %107, %110, %168, %169, %170 in 0 : vector<16x256xbf16>, vector<16x256xbf16>, vector<16x256xbf16>, vector<16x256xbf16>, vector<16x256xbf16>, vector<16x256xbf16>, vector<16x256xbf16>, vector<16x256xbf16>, vector<16x256xbf16> -> vector<144x256xbf16>
    %172 = vector.extract_strided_slice %87 {offsets = [0, 64], sizes = [16, 256], strides = [1, 1]} : vector<16x384xbf16> to vector<16x256xbf16>
    %173 = tpu.concatenate %81, %84, %94, %107, %110, %114, %169, %170, %172 in 0 : vector<16x256xbf16>, vector<16x256xbf16>, vector<16x256xbf16>, vector<16x256xbf16>, vector<16x256xbf16>, vector<16x256xbf16>, vector<16x256xbf16>, vector<16x256xbf16>, vector<16x256xbf16> -> vector<144x256xbf16>
    %174 = vector.extract_strided_slice %62 {offsets = [0, 79], sizes = [16, 256], strides = [1, 1]} : vector<16x384xbf16> to vector<16x256xbf16>
    %175 = vector.extract_strided_slice %65 {offsets = [0, 80], sizes = [16, 256], strides = [1, 1]} : vector<16x384xbf16> to vector<16x256xbf16>
    %176 = vector.extract_strided_slice %68 {offsets = [0, 80], sizes = [16, 256], strides = [1, 1]} : vector<16x384xbf16> to vector<16x256xbf16>
    %177 = tpu.concatenate %104, %107, %110, %168, %169, %170, %174, %175, %176 in 0 : vector<16x256xbf16>, vector<16x256xbf16>, vector<16x256xbf16>, vector<16x256xbf16>, vector<16x256xbf16>, vector<16x256xbf16>, vector<16x256xbf16>, vector<16x256xbf16>, vector<16x256xbf16> -> vector<144x256xbf16>
    %178 = vector.extract_strided_slice %90 {offsets = [0, 80], sizes = [16, 256], strides = [1, 1]} : vector<16x384xbf16> to vector<16x256xbf16>
    %179 = tpu.concatenate %107, %110, %114, %169, %170, %172, %175, %176, %178 in 0 : vector<16x256xbf16>, vector<16x256xbf16>, vector<16x256xbf16>, vector<16x256xbf16>, vector<16x256xbf16>, vector<16x256xbf16>, vector<16x256xbf16>, vector<16x256xbf16>, vector<16x256xbf16> -> vector<144x256xbf16>
    %180 = vector.extract_strided_slice %117 {offsets = [0, 64], sizes = [16, 256], strides = [1, 1]} : vector<16x384xbf16> to vector<16x256xbf16>
    %181 = tpu.concatenate %84, %94, %124, %110, %114, %156, %170, %172, %180 in 0 : vector<16x256xbf16>, vector<16x256xbf16>, vector<16x256xbf16>, vector<16x256xbf16>, vector<16x256xbf16>, vector<16x256xbf16>, vector<16x256xbf16>, vector<16x256xbf16>, vector<16x256xbf16> -> vector<144x256xbf16>
    %182 = vector.extract_strided_slice %133 {offsets = [0, 65], sizes = [16, 256], strides = [1, 1]} : vector<16x384xbf16> to vector<16x256xbf16>
    %183 = tpu.concatenate %94, %124, %152, %114, %156, %166, %172, %180, %182 in 0 : vector<16x256xbf16>, vector<16x256xbf16>, vector<16x256xbf16>, vector<16x256xbf16>, vector<16x256xbf16>, vector<16x256xbf16>, vector<16x256xbf16>, vector<16x256xbf16>, vector<16x256xbf16> -> vector<144x256xbf16>
    %184 = vector.extract_strided_slice %120 {offsets = [0, 80], sizes = [16, 256], strides = [1, 1]} : vector<16x384xbf16> to vector<16x256xbf16>
    %185 = tpu.concatenate %110, %114, %156, %170, %172, %180, %176, %178, %184 in 0 : vector<16x256xbf16>, vector<16x256xbf16>, vector<16x256xbf16>, vector<16x256xbf16>, vector<16x256xbf16>, vector<16x256xbf16>, vector<16x256xbf16>, vector<16x256xbf16>, vector<16x256xbf16> -> vector<144x256xbf16>
    %186 = vector.extract_strided_slice %142 {offsets = [0, 81], sizes = [16, 256], strides = [1, 1]} : vector<16x384xbf16> to vector<16x256xbf16>
    %187 = tpu.concatenate %114, %156, %166, %172, %180, %182, %178, %184, %186 in 0 : vector<16x256xbf16>, vector<16x256xbf16>, vector<16x256xbf16>, vector<16x256xbf16>, vector<16x256xbf16>, vector<16x256xbf16>, vector<16x256xbf16>, vector<16x256xbf16>, vector<16x256xbf16> -> vector<144x256xbf16>
    %188 = tpu.concatenate %85, %95, %111, %115, %125, %153, %157, %167, %171, %173, %177, %179, %181, %183, %185, %187 in 1 : vector<144x256xbf16>, vector<144x256xbf16>, vector<144x256xbf16>, vector<144x256xbf16>, vector<144x256xbf16>, vector<144x256xbf16>, vector<144x256xbf16>, vector<144x256xbf16>, vector<144x256xbf16>, vector<144x256xbf16>, vector<144x256xbf16>, vector<144x256xbf16>, vector<144x256xbf16>, vector<144x256xbf16>, vector<144x256xbf16>, vector<144x256xbf16> -> vector<144x4096xbf16>
    %c0_107 = arith.constant 0 : index
    %c0_108 = arith.constant 0 : index
    %189 = vector.load %arg2[%c0_107, %c0_108] : memref<16x144xbf16, #tpu.memory_space<vmem>>, vector<16x144xbf16>
    %cst_109 = arith.constant dense<0.000000e+00> : vector<16x4096xf32>
    %190 = tpu.matmul %189, %188, %cst_109 {dimension_numbers = #tpu.dot_dimension_numbers<[1], [0], [0], [1], [0, 0, 1, 1], [], []>} : vector<16x144xbf16>, vector<144x4096xbf16>, vector<16x4096xf32> -> vector<16x4096xf32>
    %191 = vector.extract_strided_slice %190 {offsets = [0, 0], sizes = [16, 256], strides = [1, 1]} : vector<16x4096xf32> to vector<16x256xf32>
    %192 = vector.extract_strided_slice %190 {offsets = [0, 256], sizes = [16, 256], strides = [1, 1]} : vector<16x4096xf32> to vector<16x256xf32>
    %193 = arith.maximumf %191, %192 : vector<16x256xf32>
    %194 = vector.extract_strided_slice %190 {offsets = [0, 512], sizes = [16, 256], strides = [1, 1]} : vector<16x4096xf32> to vector<16x256xf32>
    %195 = arith.maximumf %193, %194 : vector<16x256xf32>
    %196 = vector.extract_strided_slice %190 {offsets = [0, 768], sizes = [16, 256], strides = [1, 1]} : vector<16x4096xf32> to vector<16x256xf32>
    %197 = arith.maximumf %195, %196 : vector<16x256xf32>
    %c0_110 = arith.constant 0 : index
    %c0_111 = arith.constant 0 : index
    %198 = vector.load %arg3[%c0_110, %c0_111] : memref<16x1xf32, #tpu.memory_space<vmem>>, vector<16x1xf32>
    %199 = vector.broadcast %198 : vector<16x1xf32> to vector<16x256xf32>
    %200 = arith.addf %197, %199 : vector<16x256xf32>
    %cst_112 = arith.constant 0.000000e+00 : f32
    %201 = vector.broadcast %cst_112 : f32 to vector<16x256xf32>
    %202 = arith.maximumf %200, %201 : vector<16x256xf32>
    %203 = arith.truncf %202 : vector<16x256xf32> to vector<16x256xbf16>
    %c0_113 = arith.constant 0 : index
    %c0_114 = arith.constant 0 : index
    %c128 = arith.constant 128 : index
    %204 = vector.load %arg7[%c0_113, %c0_114, %c128] : memref<4x16x512xbf16, #tpu.memory_space<vmem>>, vector<1x16x256xbf16>
    %205 = vector.shape_cast %204 : vector<1x16x256xbf16> to vector<16x256xbf16>
    %206 = vector.shape_cast %203 : vector<16x256xbf16> to vector<1x16x256xbf16>
    tpu.vector_store %arg7[%c0_113, %c0_114, %c128], %206 {strides = array<i32>} : memref<4x16x512xbf16, #tpu.memory_space<vmem>>, vector<1x16x256xbf16>,
    %207 = vector.extract_strided_slice %190 {offsets = [0, 1024], sizes = [16, 256], strides = [1, 1]} : vector<16x4096xf32> to vector<16x256xf32>
    %208 = vector.extract_strided_slice %190 {offsets = [0, 1280], sizes = [16, 256], strides = [1, 1]} : vector<16x4096xf32> to vector<16x256xf32>
    %209 = arith.maximumf %207, %208 : vector<16x256xf32>
    %210 = vector.extract_strided_slice %190 {offsets = [0, 1536], sizes = [16, 256], strides = [1, 1]} : vector<16x4096xf32> to vector<16x256xf32>
    %211 = arith.maximumf %209, %210 : vector<16x256xf32>
    %212 = vector.extract_strided_slice %190 {offsets = [0, 1792], sizes = [16, 256], strides = [1, 1]} : vector<16x4096xf32> to vector<16x256xf32>
    %213 = arith.maximumf %211, %212 : vector<16x256xf32>
    %c0_115 = arith.constant 0 : index
    %c0_116 = arith.constant 0 : index
    %214 = vector.load %arg3[%c0_115, %c0_116] : memref<16x1xf32, #tpu.memory_space<vmem>>, vector<16x1xf32>
    %215 = vector.broadcast %214 : vector<16x1xf32> to vector<16x256xf32>
    %216 = arith.addf %213, %215 : vector<16x256xf32>
    %cst_117 = arith.constant 0.000000e+00 : f32
    %217 = vector.broadcast %cst_117 : f32 to vector<16x256xf32>
    %218 = arith.maximumf %216, %217 : vector<16x256xf32>
    %219 = arith.truncf %218 : vector<16x256xf32> to vector<16x256xbf16>
    %c1_118 = arith.constant 1 : index
    %c0_119 = arith.constant 0 : index
    %c128_120 = arith.constant 128 : index
    %220 = vector.load %arg7[%c1_118, %c0_119, %c128_120] : memref<4x16x512xbf16, #tpu.memory_space<vmem>>, vector<1x16x256xbf16>
    %221 = vector.shape_cast %220 : vector<1x16x256xbf16> to vector<16x256xbf16>
    %222 = vector.shape_cast %219 : vector<16x256xbf16> to vector<1x16x256xbf16>
    tpu.vector_store %arg7[%c1_118, %c0_119, %c128_120], %222 {strides = array<i32>} : memref<4x16x512xbf16, #tpu.memory_space<vmem>>, vector<1x16x256xbf16>,
    %223 = vector.extract_strided_slice %190 {offsets = [0, 2048], sizes = [16, 256], strides = [1, 1]} : vector<16x4096xf32> to vector<16x256xf32>
    %224 = vector.extract_strided_slice %190 {offsets = [0, 2304], sizes = [16, 256], strides = [1, 1]} : vector<16x4096xf32> to vector<16x256xf32>
    %225 = arith.maximumf %223, %224 : vector<16x256xf32>
    %226 = vector.extract_strided_slice %190 {offsets = [0, 2560], sizes = [16, 256], strides = [1, 1]} : vector<16x4096xf32> to vector<16x256xf32>
    %227 = arith.maximumf %225, %226 : vector<16x256xf32>
    %228 = vector.extract_strided_slice %190 {offsets = [0, 2816], sizes = [16, 256], strides = [1, 1]} : vector<16x4096xf32> to vector<16x256xf32>
    %229 = arith.maximumf %227, %228 : vector<16x256xf32>
    %c0_121 = arith.constant 0 : index
    %c0_122 = arith.constant 0 : index
    %230 = vector.load %arg3[%c0_121, %c0_122] : memref<16x1xf32, #tpu.memory_space<vmem>>, vector<16x1xf32>
    %231 = vector.broadcast %230 : vector<16x1xf32> to vector<16x256xf32>
    %232 = arith.addf %229, %231 : vector<16x256xf32>
    %cst_123 = arith.constant 0.000000e+00 : f32
    %233 = vector.broadcast %cst_123 : f32 to vector<16x256xf32>
    %234 = arith.maximumf %232, %233 : vector<16x256xf32>
    %235 = arith.truncf %234 : vector<16x256xf32> to vector<16x256xbf16>
    %c2_124 = arith.constant 2 : index
    %c0_125 = arith.constant 0 : index
    %c128_126 = arith.constant 128 : index
    %236 = vector.load %arg7[%c2_124, %c0_125, %c128_126] : memref<4x16x512xbf16, #tpu.memory_space<vmem>>, vector<1x16x256xbf16>
    %237 = vector.shape_cast %236 : vector<1x16x256xbf16> to vector<16x256xbf16>
    %238 = vector.shape_cast %235 : vector<16x256xbf16> to vector<1x16x256xbf16>
    tpu.vector_store %arg7[%c2_124, %c0_125, %c128_126], %238 {strides = array<i32>} : memref<4x16x512xbf16, #tpu.memory_space<vmem>>, vector<1x16x256xbf16>,
    %239 = vector.extract_strided_slice %190 {offsets = [0, 3072], sizes = [16, 256], strides = [1, 1]} : vector<16x4096xf32> to vector<16x256xf32>
    %240 = vector.extract_strided_slice %190 {offsets = [0, 3328], sizes = [16, 256], strides = [1, 1]} : vector<16x4096xf32> to vector<16x256xf32>
    %241 = arith.maximumf %239, %240 : vector<16x256xf32>
    %242 = vector.extract_strided_slice %190 {offsets = [0, 3584], sizes = [16, 256], strides = [1, 1]} : vector<16x4096xf32> to vector<16x256xf32>
    %243 = arith.maximumf %241, %242 : vector<16x256xf32>
    %244 = vector.extract_strided_slice %190 {offsets = [0, 3840], sizes = [16, 256], strides = [1, 1]} : vector<16x4096xf32> to vector<16x256xf32>
    %245 = arith.maximumf %243, %244 : vector<16x256xf32>
    %c0_127 = arith.constant 0 : index
    %c0_128 = arith.constant 0 : index
    %246 = vector.load %arg3[%c0_127, %c0_128] : memref<16x1xf32, #tpu.memory_space<vmem>>, vector<16x1xf32>
    %247 = vector.broadcast %246 : vector<16x1xf32> to vector<16x256xf32>
    %248 = arith.addf %245, %247 : vector<16x256xf32>
    %cst_129 = arith.constant 0.000000e+00 : f32
    %249 = vector.broadcast %cst_129 : f32 to vector<16x256xf32>
    %250 = arith.maximumf %248, %249 : vector<16x256xf32>
    %251 = arith.truncf %250 : vector<16x256xf32> to vector<16x256xbf16>
    %c3_130 = arith.constant 3 : index
    %c0_131 = arith.constant 0 : index
    %c128_132 = arith.constant 128 : index
    %252 = vector.load %arg7[%c3_130, %c0_131, %c128_132] : memref<4x16x512xbf16, #tpu.memory_space<vmem>>, vector<1x16x256xbf16>
    %253 = vector.shape_cast %252 : vector<1x16x256xbf16> to vector<16x256xbf16>
    %254 = vector.shape_cast %251 : vector<16x256xbf16> to vector<1x16x256xbf16>
    tpu.vector_store %arg7[%c3_130, %c0_131, %c128_132], %254 {strides = array<i32>} : memref<4x16x512xbf16, #tpu.memory_space<vmem>>, vector<1x16x256xbf16>,
    %c3_133 = arith.constant 3 : index
    %c0_134 = arith.constant 0 : index
    %c0_135 = arith.constant 0 : index
    %255 = vector.load %arg7[%c3_133, %c0_134, %c0_135] : memref<4x16x512xbf16, #tpu.memory_space<vmem>>, vector<1x16x512xbf16>
    %256 = vector.shape_cast %255 : vector<1x16x512xbf16> to vector<16x512xbf16>
    %c15_i32_136 = arith.constant 15 : i32
    %257 = vector.broadcast %c15_i32_136 : i32 to vector<1x512xi32>
    %258 = arith.cmpi eq, %39, %257 : vector<1x512xi32>
    %cst_137 = arith.constant 0.000000e+00 : bf16
    %259 = vector.broadcast %cst_137 : bf16 to vector<16x512xbf16>
    %260 = vector.shape_cast %258 : vector<1x512xi1> to vector<1x512xi1>
    %261 = vector.broadcast %260 : vector<1x512xi1> to vector<16x512xi1>
    %262 = arith.select %261, %259, %256 : vector<16x512xi1>, vector<16x512xbf16>
    %263 = vector.extract_strided_slice %262 {offsets = [0, 111], sizes = [16, 256], strides = [1, 1]} : vector<16x512xbf16> to vector<16x256xbf16>
    %c2_138 = arith.constant 2 : index
    %c0_139 = arith.constant 0 : index
    %c0_140 = arith.constant 0 : index
    %264 = vector.load %arg7[%c2_138, %c0_139, %c0_140] : memref<4x16x512xbf16, #tpu.memory_space<vmem>>, vector<1x16x512xbf16>
    %265 = vector.shape_cast %264 : vector<1x16x512xbf16> to vector<16x512xbf16>
    %266 = vector.extract_strided_slice %265 {offsets = [0, 112], sizes = [16, 256], strides = [1, 1]} : vector<16x512xbf16> to vector<16x256xbf16>
    %c3_141 = arith.constant 3 : index
    %c0_142 = arith.constant 0 : index
    %c0_143 = arith.constant 0 : index
    %267 = vector.load %arg7[%c3_141, %c0_142, %c0_143] : memref<4x16x512xbf16, #tpu.memory_space<vmem>>, vector<1x16x512xbf16>
    %268 = vector.shape_cast %267 : vector<1x16x512xbf16> to vector<16x512xbf16>
    %269 = vector.extract_strided_slice %268 {offsets = [0, 112], sizes = [16, 256], strides = [1, 1]} : vector<16x512xbf16> to vector<16x256xbf16>
    %c1_144 = arith.constant 1 : index
    %c0_145 = arith.constant 0 : index
    %c0_146 = arith.constant 0 : index
    %270 = vector.load %arg7[%c1_144, %c0_145, %c0_146] : memref<4x16x512xbf16, #tpu.memory_space<vmem>>, vector<1x16x512xbf16>
    %271 = vector.shape_cast %270 : vector<1x16x512xbf16> to vector<16x512xbf16>
    %c15_i32_147 = arith.constant 15 : i32
    %272 = vector.broadcast %c15_i32_147 : i32 to vector<1x512xi32>
    %273 = arith.cmpi eq, %39, %272 : vector<1x512xi32>
    %cst_148 = arith.constant 0.000000e+00 : bf16
    %274 = vector.broadcast %cst_148 : bf16 to vector<16x512xbf16>
    %275 = vector.shape_cast %273 : vector<1x512xi1> to vector<1x512xi1>
    %276 = vector.broadcast %275 : vector<1x512xi1> to vector<16x512xi1>
    %277 = arith.select %276, %274, %271 : vector<16x512xi1>, vector<16x512xbf16>
    %278 = vector.extract_strided_slice %277 {offsets = [0, 127], sizes = [16, 256], strides = [1, 1]} : vector<16x512xbf16> to vector<16x256xbf16>
    %c0_149 = arith.constant 0 : index
    %c0_150 = arith.constant 0 : index
    %c0_151 = arith.constant 0 : index
    %279 = vector.load %arg7[%c0_149, %c0_150, %c0_151] : memref<4x16x512xbf16, #tpu.memory_space<vmem>>, vector<1x16x512xbf16>
    %280 = vector.shape_cast %279 : vector<1x16x512xbf16> to vector<16x512xbf16>
    %281 = vector.extract_strided_slice %280 {offsets = [0, 128], sizes = [16, 256], strides = [1, 1]} : vector<16x512xbf16> to vector<16x256xbf16>
    %c1_152 = arith.constant 1 : index
    %c0_153 = arith.constant 0 : index
    %c0_154 = arith.constant 0 : index
    %282 = vector.load %arg7[%c1_152, %c0_153, %c0_154] : memref<4x16x512xbf16, #tpu.memory_space<vmem>>, vector<1x16x512xbf16>
    %283 = vector.shape_cast %282 : vector<1x16x512xbf16> to vector<16x512xbf16>
    %284 = vector.extract_strided_slice %283 {offsets = [0, 128], sizes = [16, 256], strides = [1, 1]} : vector<16x512xbf16> to vector<16x256xbf16>
    %285 = vector.extract_strided_slice %262 {offsets = [0, 127], sizes = [16, 256], strides = [1, 1]} : vector<16x512xbf16> to vector<16x256xbf16>
    %286 = vector.extract_strided_slice %265 {offsets = [0, 128], sizes = [16, 256], strides = [1, 1]} : vector<16x512xbf16> to vector<16x256xbf16>
    %287 = vector.extract_strided_slice %268 {offsets = [0, 128], sizes = [16, 256], strides = [1, 1]} : vector<16x512xbf16> to vector<16x256xbf16>
    %288 = tpu.concatenate %263, %266, %269, %278, %281, %284, %285, %286, %287 in 0 : vector<16x256xbf16>, vector<16x256xbf16>, vector<16x256xbf16>, vector<16x256xbf16>, vector<16x256xbf16>, vector<16x256xbf16>, vector<16x256xbf16>, vector<16x256xbf16>, vector<16x256xbf16> -> vector<144x256xbf16>
    %c2_155 = arith.constant 2 : index
    %c0_156 = arith.constant 0 : index
    %c0_157 = arith.constant 0 : index
    %289 = vector.load %arg7[%c2_155, %c0_156, %c0_157] : memref<4x16x512xbf16, #tpu.memory_space<vmem>>, vector<1x16x512xbf16>
    %290 = vector.shape_cast %289 : vector<1x16x512xbf16> to vector<16x512xbf16>
    %c0_i32_158 = arith.constant 0 : i32
    %291 = vector.broadcast %c0_i32_158 : i32 to vector<1x512xi32>
    %292 = arith.cmpi eq, %39, %291 : vector<1x512xi32>
    %cst_159 = arith.constant 0.000000e+00 : bf16
    %293 = vector.broadcast %cst_159 : bf16 to vector<16x512xbf16>
    %294 = vector.shape_cast %292 : vector<1x512xi1> to vector<1x512xi1>
    %295 = vector.broadcast %294 : vector<1x512xi1> to vector<16x512xi1>
    %296 = arith.select %295, %293, %290 : vector<16x512xi1>, vector<16x512xbf16>
    %297 = vector.extract_strided_slice %296 {offsets = [0, 113], sizes = [16, 256], strides = [1, 1]} : vector<16x512xbf16> to vector<16x256xbf16>
    %c0_160 = arith.constant 0 : index
    %c0_161 = arith.constant 0 : index
    %c0_162 = arith.constant 0 : index
    %298 = vector.load %arg7[%c0_160, %c0_161, %c0_162] : memref<4x16x512xbf16, #tpu.memory_space<vmem>>, vector<1x16x512xbf16>
    %299 = vector.shape_cast %298 : vector<1x16x512xbf16> to vector<16x512xbf16>
    %c0_i32_163 = arith.constant 0 : i32
    %300 = vector.broadcast %c0_i32_163 : i32 to vector<1x512xi32>
    %301 = arith.cmpi eq, %39, %300 : vector<1x512xi32>
    %cst_164 = arith.constant 0.000000e+00 : bf16
    %302 = vector.broadcast %cst_164 : bf16 to vector<16x512xbf16>
    %303 = vector.shape_cast %301 : vector<1x512xi1> to vector<1x512xi1>
    %304 = vector.broadcast %303 : vector<1x512xi1> to vector<16x512xi1>
    %305 = arith.select %304, %302, %299 : vector<16x512xi1>, vector<16x512xbf16>
    %306 = vector.extract_strided_slice %305 {offsets = [0, 129], sizes = [16, 256], strides = [1, 1]} : vector<16x512xbf16> to vector<16x256xbf16>
    %307 = vector.extract_strided_slice %296 {offsets = [0, 129], sizes = [16, 256], strides = [1, 1]} : vector<16x512xbf16> to vector<16x256xbf16>
    %308 = tpu.concatenate %266, %269, %297, %281, %284, %306, %286, %287, %307 in 0 : vector<16x256xbf16>, vector<16x256xbf16>, vector<16x256xbf16>, vector<16x256xbf16>, vector<16x256xbf16>, vector<16x256xbf16>, vector<16x256xbf16>, vector<16x256xbf16>, vector<16x256xbf16> -> vector<144x256xbf16>
    %309 = vector.extract_strided_slice %277 {offsets = [0, 143], sizes = [16, 256], strides = [1, 1]} : vector<16x512xbf16> to vector<16x256xbf16>
    %310 = vector.extract_strided_slice %280 {offsets = [0, 144], sizes = [16, 256], strides = [1, 1]} : vector<16x512xbf16> to vector<16x256xbf16>
    %311 = vector.extract_strided_slice %283 {offsets = [0, 144], sizes = [16, 256], strides = [1, 1]} : vector<16x512xbf16> to vector<16x256xbf16>
    %312 = tpu.concatenate %278, %281, %284, %285, %286, %287, %309, %310, %311 in 0 : vector<16x256xbf16>, vector<16x256xbf16>, vector<16x256xbf16>, vector<16x256xbf16>, vector<16x256xbf16>, vector<16x256xbf16>, vector<16x256xbf16>, vector<16x256xbf16>, vector<16x256xbf16> -> vector<144x256xbf16>
    %313 = vector.extract_strided_slice %305 {offsets = [0, 145], sizes = [16, 256], strides = [1, 1]} : vector<16x512xbf16> to vector<16x256xbf16>
    %314 = tpu.concatenate %281, %284, %306, %286, %287, %307, %310, %311, %313 in 0 : vector<16x256xbf16>, vector<16x256xbf16>, vector<16x256xbf16>, vector<16x256xbf16>, vector<16x256xbf16>, vector<16x256xbf16>, vector<16x256xbf16>, vector<16x256xbf16>, vector<16x256xbf16> -> vector<144x256xbf16>
    %315 = tpu.concatenate %288, %308, %312, %314 in 1 : vector<144x256xbf16>, vector<144x256xbf16>, vector<144x256xbf16>, vector<144x256xbf16> -> vector<144x1024xbf16>
    %c0_165 = arith.constant 0 : index
    %c0_166 = arith.constant 0 : index
    %316 = vector.load %arg4[%c0_165, %c0_166] : memref<32x144xbf16, #tpu.memory_space<vmem>>, vector<32x144xbf16>
    %cst_167 = arith.constant dense<0.000000e+00> : vector<32x1024xf32>
    %317 = tpu.matmul %316, %315, %cst_167 {dimension_numbers = #tpu.dot_dimension_numbers<[1], [0], [0], [1], [0, 0, 1, 1], [], []>} : vector<32x144xbf16>, vector<144x1024xbf16>, vector<32x1024xf32> -> vector<32x1024xf32>
    %318 = vector.extract_strided_slice %317 {offsets = [0, 0], sizes = [32, 256], strides = [1, 1]} : vector<32x1024xf32> to vector<32x256xf32>
    %319 = vector.extract_strided_slice %317 {offsets = [0, 256], sizes = [32, 256], strides = [1, 1]} : vector<32x1024xf32> to vector<32x256xf32>
    %320 = arith.maximumf %318, %319 : vector<32x256xf32>
    %321 = vector.extract_strided_slice %317 {offsets = [0, 512], sizes = [32, 256], strides = [1, 1]} : vector<32x1024xf32> to vector<32x256xf32>
    %322 = arith.maximumf %320, %321 : vector<32x256xf32>
    %323 = vector.extract_strided_slice %317 {offsets = [0, 768], sizes = [32, 256], strides = [1, 1]} : vector<32x1024xf32> to vector<32x256xf32>
    %324 = arith.maximumf %322, %323 : vector<32x256xf32>
    %c0_168 = arith.constant 0 : index
    %c0_169 = arith.constant 0 : index
    %325 = vector.load %arg5[%c0_168, %c0_169] : memref<32x1xf32, #tpu.memory_space<vmem>>, vector<32x1xf32>
    %326 = vector.broadcast %325 : vector<32x1xf32> to vector<32x256xf32>
    %327 = arith.addf %324, %326 : vector<32x256xf32>
    %cst_170 = arith.constant 0.000000e+00 : f32
    %328 = vector.broadcast %cst_170 : f32 to vector<32x256xf32>
    %329 = arith.maximumf %327, %328 : vector<32x256xf32>
    %330 = arith.truncf %329 : vector<32x256xf32> to vector<32x256xbf16>
    %c0_171 = arith.constant 0 : index
    %c0_172 = arith.constant 0 : index
    %c0_173 = arith.constant 0 : index
    %331 = vector.load %arg6[%c0_171, %c0_172, %c0_173] : memref<1x32x256xbf16, #tpu.memory_space<vmem>>, vector<1x32x256xbf16>
    %332 = vector.shape_cast %331 : vector<1x32x256xbf16> to vector<32x256xbf16>
    %333 = vector.shape_cast %330 : vector<32x256xbf16> to vector<1x32x256xbf16>
    tpu.vector_store %arg6[%c0_171, %c0_172, %c0_173], %333 {strides = array<i32>} : memref<1x32x256xbf16, #tpu.memory_space<vmem>>, vector<1x32x256xbf16>,
    return
  }
  func.func @transform_0(%arg0: i32) -> (i32, i32, i32, i32) {
    %c0_i32 = arith.constant 0 : i32
    %c0_i32_0 = arith.constant 0 : i32
    %c0_i32_1 = arith.constant 0 : i32
    %c0_i32_2 = arith.constant 0 : i32
    return %arg0, %c0_i32, %c0_i32_0, %c0_i32_1 : i32, i32, i32, i32
  }
  func.func @transform_1(%arg0: i32) -> (i32, i32) {
    %c0_i32 = arith.constant 0 : i32
    %c0_i32_0 = arith.constant 0 : i32
    %c0_i32_1 = arith.constant 0 : i32
    return %c0_i32, %c0_i32_0 : i32, i32
  }
  func.func @transform_2(%arg0: i32) -> (i32, i32) {
    %c0_i32 = arith.constant 0 : i32
    %c0_i32_0 = arith.constant 0 : i32
    %c0_i32_1 = arith.constant 0 : i32
    return %c0_i32, %c0_i32_0 : i32, i32
  }
  func.func @transform_3(%arg0: i32) -> (i32, i32) {
    %c0_i32 = arith.constant 0 : i32
    %c0_i32_0 = arith.constant 0 : i32
    %c0_i32_1 = arith.constant 0 : i32
    return %c0_i32, %c0_i32_0 : i32, i32
  }
  func.func @transform_4(%arg0: i32) -> (i32, i32) {
    %c0_i32 = arith.constant 0 : i32
    %c0_i32_0 = arith.constant 0 : i32
    %c0_i32_1 = arith.constant 0 : i32
    return %c0_i32, %c0_i32_0 : i32, i32
  }
  func.func @transform_5(%arg0: i32) -> (i32, i32, i32) {
    %c0_i32 = arith.constant 0 : i32
    %c0_i32_0 = arith.constant 0 : i32
    %c0_i32_1 = arith.constant 0 : i32
    return %arg0, %c0_i32, %c0_i32_0 : i32, i32, i32
  }
}

module attributes {stable_mosaic.version = 11 : i64} {
  func.func @_fc_kernel(%arg0: i32, %arg1: memref<2x8192xbf16, #tpu.memory_space<vmem>>, %arg2: memref<8192x64xbf16, #tpu.memory_space<vmem>>, %arg3: memref<1x64xf32, #tpu.memory_space<vmem>>, %arg4: memref<64x3xf32, #tpu.memory_space<vmem>>, %arg5: memref<1x3xf32, #tpu.memory_space<vmem>>, %arg6: memref<2x3xf32, #tpu.memory_space<vmem>>) attributes {dimension_semantics = [#tpu.dimension_semantics<arbitrary>], iteration_bounds = array<i64: 1>, scalar_prefetch = 0 : i64, scratch_operands = 0 : i64, tpu.core_type = #tpu.core_type<tc>, window_params = [{pipeline_mode = #tpu.pipeline_mode<synchronous>, transform_indices = @transform_0, window_bounds = array<i64: 2, 8192>}, {pipeline_mode = #tpu.pipeline_mode<synchronous>, transform_indices = @transform_1, window_bounds = array<i64: 8192, 64>}, {pipeline_mode = #tpu.pipeline_mode<synchronous>, transform_indices = @transform_2, window_bounds = array<i64: 1, 64>}, {pipeline_mode = #tpu.pipeline_mode<synchronous>, transform_indices = @transform_3, window_bounds = array<i64: 64, 3>}, {pipeline_mode = #tpu.pipeline_mode<synchronous>, transform_indices = @transform_4, window_bounds = array<i64: 1, 3>}, {pipeline_mode = #tpu.pipeline_mode<synchronous>, transform_indices = @transform_5, window_bounds = array<i64: 2, 3>}]} {
    %c0 = arith.constant 0 : index
    %c0_0 = arith.constant 0 : index
    %0 = vector.load %arg1[%c0, %c0_0] : memref<2x8192xbf16, #tpu.memory_space<vmem>>, vector<2x8192xbf16>
    %c0_1 = arith.constant 0 : index
    %c0_2 = arith.constant 0 : index
    %1 = vector.load %arg2[%c0_1, %c0_2] : memref<8192x64xbf16, #tpu.memory_space<vmem>>, vector<8192x64xbf16>
    %cst = arith.constant dense<0.000000e+00> : vector<2x64xf32>
    %2 = tpu.matmul %0, %1, %cst {dimension_numbers = #tpu.dot_dimension_numbers<[1], [0], [0], [1], [0, 0, 1, 1], [], []>} : vector<2x8192xbf16>, vector<8192x64xbf16>, vector<2x64xf32> -> vector<2x64xf32>
    %c0_3 = arith.constant 0 : index
    %c0_4 = arith.constant 0 : index
    %3 = vector.load %arg3[%c0_3, %c0_4] : memref<1x64xf32, #tpu.memory_space<vmem>>, vector<1x64xf32>
    %4 = vector.broadcast %3 : vector<1x64xf32> to vector<2x64xf32>
    %5 = arith.addf %2, %4 : vector<2x64xf32>
    %cst_5 = arith.constant 0.000000e+00 : f32
    %6 = vector.broadcast %cst_5 : f32 to vector<2x64xf32>
    %7 = arith.maximumf %5, %6 : vector<2x64xf32>
    %c0_6 = arith.constant 0 : index
    %c0_7 = arith.constant 0 : index
    %8 = vector.load %arg4[%c0_6, %c0_7] : memref<64x3xf32, #tpu.memory_space<vmem>>, vector<64x3xf32>
    %cst_8 = arith.constant dense<0.000000e+00> : vector<2x3xf32>
    %9 = tpu.matmul %7, %8, %cst_8 {dimension_numbers = #tpu.dot_dimension_numbers<[1], [0], [0], [1], [0, 0, 1, 1], [], []>} : vector<2x64xf32>, vector<64x3xf32>, vector<2x3xf32> -> vector<2x3xf32>
    %c0_9 = arith.constant 0 : index
    %c0_10 = arith.constant 0 : index
    %10 = vector.load %arg5[%c0_9, %c0_10] : memref<1x3xf32, #tpu.memory_space<vmem>>, vector<1x3xf32>
    %11 = vector.broadcast %10 : vector<1x3xf32> to vector<2x3xf32>
    %12 = arith.addf %9, %11 : vector<2x3xf32>
    %c0_11 = arith.constant 0 : index
    %c0_12 = arith.constant 0 : index
    %13 = vector.load %arg6[%c0_11, %c0_12] : memref<2x3xf32, #tpu.memory_space<vmem>>, vector<2x3xf32>
    tpu.vector_store %arg6[%c0_11, %c0_12], %12 {strides = array<i32>} : memref<2x3xf32, #tpu.memory_space<vmem>>, vector<2x3xf32>,
    return
  }
  func.func @transform_0(%arg0: i32) -> (i32, i32) {
    %c0_i32 = arith.constant 0 : i32
    %c0_i32_0 = arith.constant 0 : i32
    %c0_i32_1 = arith.constant 0 : i32
    return %c0_i32, %c0_i32_0 : i32, i32
  }
  func.func @transform_1(%arg0: i32) -> (i32, i32) {
    %c0_i32 = arith.constant 0 : i32
    %c0_i32_0 = arith.constant 0 : i32
    %c0_i32_1 = arith.constant 0 : i32
    return %c0_i32, %c0_i32_0 : i32, i32
  }
  func.func @transform_2(%arg0: i32) -> (i32, i32) {
    %c0_i32 = arith.constant 0 : i32
    %c0_i32_0 = arith.constant 0 : i32
    %c0_i32_1 = arith.constant 0 : i32
    return %c0_i32, %c0_i32_0 : i32, i32
  }
  func.func @transform_3(%arg0: i32) -> (i32, i32) {
    %c0_i32 = arith.constant 0 : i32
    %c0_i32_0 = arith.constant 0 : i32
    %c0_i32_1 = arith.constant 0 : i32
    return %c0_i32, %c0_i32_0 : i32, i32
  }
  func.func @transform_4(%arg0: i32) -> (i32, i32) {
    %c0_i32 = arith.constant 0 : i32
    %c0_i32_0 = arith.constant 0 : i32
    %c0_i32_1 = arith.constant 0 : i32
    return %c0_i32, %c0_i32_0 : i32, i32
  }
  func.func @transform_5(%arg0: i32) -> (i32, i32) {
    %c0_i32 = arith.constant 0 : i32
    %c0_i32_0 = arith.constant 0 : i32
    %c0_i32_1 = arith.constant 0 : i32
    return %c0_i32, %c0_i32_0 : i32, i32
  }
}

</mosaic_0001>

<llo_original>
// kernel: simple_cnn_forward.2
$region0: #{simple_cnn_forward.2}
  #allocation0 [shape = 'u32[]', space=smem, size = 0x4, offset = 0x4, fixed_abs, tag = 'smem constant byte address 0x4 - core index']
  #allocation1 [shape = 'u32[144,128]{1,0:T(1,128)}', space=vmem, size = 0x12000, scoped, tag = 'internal scratch']
  #allocation2 [shape = 'bf16[4,16,512]{2,1,0:T(16,128)(2,1)}', space=vmem, size = 0x10000, scoped, tag = 'scratch operand']
  %s0 = inlined_call_operand.vmem [shape: bf16[2,16,16,384], index: 0, kind: input, shape index: {}]
  %s1 = inlined_call_operand.vmem [shape: bf16[16,144], index: 1, kind: input, shape index: {}]
  %s2 = inlined_call_operand.vmem [shape: f32[16,1], index: 2, kind: input, shape index: {}]
  %s3 = inlined_call_operand.vmem [shape: bf16[32,144], index: 3, kind: input, shape index: {}]
  %s4 = inlined_call_operand.vmem [shape: f32[32,1], index: 4, kind: input, shape index: {}]
  %s5 = inlined_call_operand.vmem [shape: bf16[2,32,256], index: 5, kind: output, shape index: {}]
  %s6 = sld [smem:[#allocation0]]
  $region53: #{simple_cnn_forward.2} parent=0
    _
  %s8 = ssub.s32 1, %s6
  %s9 = scalar_select 0, %s8, %s6
  loop: start=0, step=1, limit=4
  $region2: #{simple_cnn_forward.2} parent=0 // loop_pre_header
    _
  $region3: #{simple_cnn_forward.2} parent=0 // loop_header
    %s11 = sphi 0, %s15
    %p12 = scmp.ge.s32.totalorder %s11, 4
    %s21 = sphi 0, %s23
    %s24 = sphi 0, %s21
    %s25 = sphi 0, %s24
    %s41 = sphi 0, %s25
    %s45 = sphi 0, %s45
    %s47 = sphi 0, %s45
    %s48 = sphi 0, %s47
    %s62 = sphi 0, %s48
    %s66 = sphi 0, %s66
    %s68 = sphi 0, %s66
    %s69 = sphi 0, %s68
    %s83 = sphi 0, %s69
    %s87 = sphi 0, %s87
    %s89 = sphi 0, %s87
    %s90 = sphi 0, %s89
    %s104 = sphi 0, %s90
    %s108 = sphi 0, %s108
    %s110 = sphi 0, %s108
    %s111 = sphi 0, %s110
    %s125 = sphi 0, %s111
    %s131 = sphi 0, %s133
    %s134 = sphi 0, %s131
    %s135 = sphi 0, %s134
    %s151 = sphi 0, %s135
  $region4: #{simple_cnn_forward.2} parent=0 // loop_header_branch
    %14 = sbr.rel (%p12) target = $region8
  $region5: #{simple_cnn_forward.2} parent=0 // loop_body
    %s16 = ssub.s32 %s11, 1
    %s17 = ssub.s32 %s11, 2
    %s18 = sadd.s32 %s11, 1
    %s19 = ssub.s32 %s11, %s18
    %p20 = scmp.eq.s32.totalorder %s19, 0
    %s22 = sadd.s32 %s21, 1
    %s23 = scalar_select %p20, %s21, %s22
    %p26 = pneg %p20
    %p27 = scmp.eq.s32.totalorder %s11, 1
    %p28 = por %p26, %p27
    %p29 = scmp.ne.s32.totalorder %s21, %s24
    %p30 = scmp.eq.s32.totalorder %s11, 0
    %p31 = por %p29, %p30
    %p32 = scmp.ne.s32.totalorder %s21, %s24
    %p33 = scmp.eq.s32.totalorder %s16, 1
    %p34 = por %p32, %p33
    %p35 = scmp.ne.s32.totalorder %s24, %s25
    %p36 = scmp.eq.s32.totalorder %s16, 0
    %p37 = por %p35, %p36
    %p38 = scmp.ne.s32.totalorder %s24, %s25
    %p39 = scmp.eq.s32.totalorder %s17, 1
    %p40 = por %p38, %p39
    %p42 = scmp.ne.s32.totalorder %s25, %s41
    %p43 = scmp.eq.s32.totalorder %s17, 0
    %p44 = por %p42, %p43
    %s46 = sadd.s32 %s45, 1
    %p49 = scmp.eq.s32.totalorder %s11, 1
    %p50 = scmp.ne.s32.totalorder %s45, %s47
    %p51 = scmp.eq.s32.totalorder %s11, 0
    %p52 = por %p50, %p51
    %p53 = scmp.ne.s32.totalorder %s45, %s47
    %p54 = scmp.eq.s32.totalorder %s16, 1
    %p55 = por %p53, %p54
    %p56 = scmp.ne.s32.totalorder %s47, %s48
    %p57 = scmp.eq.s32.totalorder %s16, 0
    %p58 = por %p56, %p57
    %p59 = scmp.ne.s32.totalorder %s47, %s48
    %p60 = scmp.eq.s32.totalorder %s17, 1
    %p61 = por %p59, %p60
    %p63 = scmp.ne.s32.totalorder %s48, %s62
    %p64 = scmp.eq.s32.totalorder %s17, 0
    %p65 = por %p63, %p64
    %s67 = sadd.s32 %s66, 1
    %p70 = scmp.eq.s32.totalorder %s11, 1
    %p71 = scmp.ne.s32.totalorder %s66, %s68
    %p72 = scmp.eq.s32.totalorder %s11, 0
    %p73 = por %p71, %p72
    %p74 = scmp.ne.s32.totalorder %s66, %s68
    %p75 = scmp.eq.s32.totalorder %s16, 1
    %p76 = por %p74, %p75
    %p77 = scmp.ne.s32.totalorder %s68, %s69
    %p78 = scmp.eq.s32.totalorder %s16, 0
    %p79 = por %p77, %p78
    %p80 = scmp.ne.s32.totalorder %s68, %s69
    %p81 = scmp.eq.s32.totalorder %s17, 1
    %p82 = por %p80, %p81
    %p84 = scmp.ne.s32.totalorder %s69, %s83
    %p85 = scmp.eq.s32.totalorder %s17, 0
    %p86 = por %p84, %p85
    %s88 = sadd.s32 %s87, 1
    %p91 = scmp.eq.s32.totalorder %s11, 1
    %p92 = scmp.ne.s32.totalorder %s87, %s89
    %p93 = scmp.eq.s32.totalorder %s11, 0
    %p94 = por %p92, %p93
    %p95 = scmp.ne.s32.totalorder %s87, %s89
    %p96 = scmp.eq.s32.totalorder %s16, 1
    %p97 = por %p95, %p96
    %p98 = scmp.ne.s32.totalorder %s89, %s90
    %p99 = scmp.eq.s32.totalorder %s16, 0
    %p100 = por %p98, %p99
    %p101 = scmp.ne.s32.totalorder %s89, %s90
    %p102 = scmp.eq.s32.totalorder %s17, 1
    %p103 = por %p101, %p102
    %p105 = scmp.ne.s32.totalorder %s90, %s104
    %p106 = scmp.eq.s32.totalorder %s17, 0
    %p107 = por %p105, %p106
    %s109 = sadd.s32 %s108, 1
    %p112 = scmp.eq.s32.totalorder %s11, 1
    %p113 = scmp.ne.s32.totalorder %s108, %s110
    %p114 = scmp.eq.s32.totalorder %s11, 0
    %p115 = por %p113, %p114
    %p116 = scmp.ne.s32.totalorder %s108, %s110
    %p117 = scmp.eq.s32.totalorder %s16, 1
    %p118 = por %p116, %p117
    %p119 = scmp.ne.s32.totalorder %s110, %s111
    %p120 = scmp.eq.s32.totalorder %s16, 0
    %p121 = por %p119, %p120
    %p122 = scmp.ne.s32.totalorder %s110, %s111
    %p123 = scmp.eq.s32.totalorder %s17, 1
    %p124 = por %p122, %p123
    %p126 = scmp.ne.s32.totalorder %s111, %s125
    %p127 = scmp.eq.s32.totalorder %s17, 0
    %p128 = por %p126, %p127
    %s129 = ssub.s32 %s11, %s18
    %p130 = scmp.eq.s32.totalorder %s129, 0
    %s132 = sadd.s32 %s131, 1
    %s133 = scalar_select %p130, %s131, %s132
    %p136 = pneg %p130
    %p137 = scmp.eq.s32.totalorder %s11, 1
    %p138 = por %p136, %p137
    %p139 = scmp.ne.s32.totalorder %s131, %s134
    %p140 = scmp.eq.s32.totalorder %s11, 0
    %p141 = por %p139, %p140
    %p142 = scmp.ne.s32.totalorder %s131, %s134
    %p143 = scmp.eq.s32.totalorder %s16, 1
    %p144 = por %p142, %p143
    %p145 = scmp.ne.s32.totalorder %s134, %s135
    %p146 = scmp.eq.s32.totalorder %s16, 0
    %p147 = por %p145, %p146
    %p148 = scmp.ne.s32.totalorder %s134, %s135
    %p149 = scmp.eq.s32.totalorder %s17, 1
    %p150 = por %p148, %p149
    %p152 = scmp.ne.s32.totalorder %s135, %s151
    %p153 = scmp.eq.s32.totalorder %s17, 0
    %p154 = por %p152, %p153
    %p155 = scmp.le.s32.totalorder 1, %s11
    %p156 = scmp.lt.s32.totalorder %s11, 3
    %p157 = pnand %p155, %p156
    %p158 = pneg %p157
    // Predicated region
    $region9: #{simple_cnn_forward.2} parent=5 // pred_check
      _
    $region10: #{simple_cnn_forward.2} parent=5 // pred_check_branch
      %160 = sbr.rel (%p157) target = $region12
    $region11: #{simple_cnn_forward.2} parent=5 // pred_region
      %s161 = ssub.s32 %s11, 1
      // Predicated region
      $region13: #{simple_cnn_forward.2} parent=11 // pred_check
        %p162 = pneg %p58
      $region14: #{simple_cnn_forward.2} parent=11 // pred_check_branch
        %164 = sbr.rel (%p162) target = $region16
      $region15: #{simple_cnn_forward.2} parent=11 // pred_region
        _
      $region16: #{simple_cnn_forward.2} parent=11 // pred_fallthru
        _
      // Predicated region
      $region17: #{simple_cnn_forward.2} parent=11 // pred_check
        %p165 = pneg %p79
      $region18: #{simple_cnn_forward.2} parent=11 // pred_check_branch
        %167 = sbr.rel (%p165) target = $region20
      $region19: #{simple_cnn_forward.2} parent=11 // pred_region
        _
      $region20: #{simple_cnn_forward.2} parent=11 // pred_fallthru
        _
      // Predicated region
      $region21: #{simple_cnn_forward.2} parent=11 // pred_check
        %p168 = pneg %p100
      $region22: #{simple_cnn_forward.2} parent=11 // pred_check_branch
        %170 = sbr.rel (%p168) target = $region24
      $region23: #{simple_cnn_forward.2} parent=11 // pred_region
        _
      $region24: #{simple_cnn_forward.2} parent=11 // pred_fallthru
        _
      // Predicated region
      $region25: #{simple_cnn_forward.2} parent=11 // pred_check
        %p171 = pneg %p121
      $region26: #{simple_cnn_forward.2} parent=11 // pred_check_branch
        %173 = sbr.rel (%p171) target = $region28
      $region27: #{simple_cnn_forward.2} parent=11 // pred_region
        _
      $region28: #{simple_cnn_forward.2} parent=11 // pred_fallthru
        _
    $region12: #{simple_cnn_forward.2} parent=5 // pred_fallthru
      _
    %p174 = scmp.lt.s32.totalorder %s11, 2
    // Predicated region
    $region29: #{simple_cnn_forward.2} parent=5 // pred_check
      %p175 = pneg %p174
    $region30: #{simple_cnn_forward.2} parent=5 // pred_check_branch
      %177 = sbr.rel (%p175) target = $region32
    $region31: #{simple_cnn_forward.2} parent=5 // pred_region
      // Predicated region
      $region33: #{simple_cnn_forward.2} parent=31 // pred_check
        %p178 = pneg %p31
      $region34: #{simple_cnn_forward.2} parent=31 // pred_check_branch
        %180 = sbr.rel (%p178) target = $region36
      $region35: #{simple_cnn_forward.2} parent=31 // pred_region
        %p181 = scmp.lt.s32.totalorder %s11, 1
        %s182 = scalar_select %p181, %s11, 1
        %s183 = smul.addr %s182, 96
        %s184 = smul.addr %s183, 4
        %s185 = scalar_lea.vmem %s0, %s184
      $region36: #{simple_cnn_forward.2} parent=31 // pred_fallthru
        _
    $region32: #{simple_cnn_forward.2} parent=5 // pred_fallthru
      _
    %p186 = scmp.le.s32.totalorder 1, %s11
    %p187 = scmp.lt.s32.totalorder %s11, 3
    %p188 = pnand %p186, %p187
    %p189 = pneg %p188
    // Predicated region
    $region37: #{simple_cnn_forward.2} parent=5 // pred_check
      _
    $region38: #{simple_cnn_forward.2} parent=5 // pred_check_branch
      %191 = sbr.rel (%p188) target = $region40
    $region39: #{simple_cnn_forward.2} parent=5 // pred_region
      %s192 = ssub.s32 %s11, 1
      %p193 = scmp.lt.s32.totalorder %s16, 1
      %s194 = scalar_select %p193, %s16, 1
      %s195 = smul.addr %s194, 96
      %s196 = smul.addr %s195, 4
      %s197 = scalar_lea.vmem %s0, %s196
      %p198 = pneg %p37
      %p199 = pneg %p34
      %p200 = pneg %p58
      %p201 = pneg %p55
      %p202 = pneg %p79
      %p203 = pneg %p76
      %p204 = pneg %p100
      %p205 = pneg %p97
      %p206 = pneg %p121
      %p207 = pneg %p118
      %p208 = pneg %p147
      %p209 = pneg %p144
      %p210 = scmp.lt.s32.totalorder %s16, 1
      %s211 = scalar_select %p210, %s16, 1
      %s212 = smul.addr %s211, 8
      %s213 = smul.addr %s212, 4
      %s214 = scalar_lea.vmem %s5, %s213
      %p215 = scmp.lt.s32.totalorder %s16, 1
      %s216 = scalar_select %p215, %s16, 1
      %s217 = smul.addr %s216, 96
      %s218 = smul.addr %s217, 4
      %s219 = scalar_lea.vmem %s0, %s218
      %p220 = scmp.lt.s32.totalorder %s16, 1
      %s221 = scalar_select %p220, %s16, 1
      %s222 = smul.addr %s221, 8
      %s223 = smul.addr %s222, 4
      %s224 = scalar_lea.vmem %s5, %s223
      %228 = vst [vmem:[#allocation2] sm:$0xff] 0
      %229 = vst [vmem:[#allocation2 + $0x8] sm:$0xff] 0
      %230 = vst [vmem:[#allocation2 + $0x10] sm:$0xff] 0
      %231 = vst [vmem:[#allocation2 + $0x18] sm:$0xff] 0
      %232 = vst [vmem:[#allocation2 + $0x20] sm:$0xff] 0
      %233 = vst [vmem:[#allocation2 + $0x28] sm:$0xff] 0
      %234 = vst [vmem:[#allocation2 + $0x30] sm:$0xff] 0
      %235 = vst [vmem:[#allocation2 + $0x38] sm:$0xff] 0
      %236 = vst [vmem:[#allocation2 + $0x40] sm:$0xff] 0
      %237 = vst [vmem:[#allocation2 + $0x48] sm:$0xff] 0
      %238 = vst [vmem:[#allocation2 + $0x50] sm:$0xff] 0
      %239 = vst [vmem:[#allocation2 + $0x58] sm:$0xff] 0
      %240 = vst [vmem:[#allocation2 + $0x60] sm:$0xff] 0
      %241 = vst [vmem:[#allocation2 + $0x68] sm:$0xff] 0
      %242 = vst [vmem:[#allocation2 + $0x70] sm:$0xff] 0
      %243 = vst [vmem:[#allocation2 + $0x78] sm:$0xff] 0
      %v244 = vlaneseq
      %v245 = vand.u32 %v244, 127
      %v246 = vadd.s32 %v245, 128
      %v247 = vadd.s32 %v245, 256
      %v248 = vsub.s32 %v245, 64
      %v249 = vsub.s32 %v246, 64
      %v250 = vsub.s32 %v247, 64
      %vm251 = vcmp.lt.s32.totalorder %v248, 0
      %v252 = vsub.s32 0, %v248
      %v253 = vsel %vm251, %v252, %v248
      %v254 = vshrl.u32 %v253, 4
      %v255 = vand.u32 %v253, 15
      %v256 = vsub.s32 0, %v255
      %v257 = vsel %vm251, %v256, %v255
      %vm258 = vcmp.lt.s32.totalorder %v249, 0
      %v259 = vsub.s32 0, %v249
      %v260 = vsel %vm258, %v259, %v249
      %v261 = vshrl.u32 %v260, 4
      %v262 = vand.u32 %v260, 15
      %v263 = vsub.s32 0, %v262
      %v264 = vsel %vm258, %v263, %v262
      %vm265 = vcmp.lt.s32.totalorder %v250, 0
      %v266 = vsub.s32 0, %v250
      %v267 = vsel %vm265, %v266, %v250
      %v268 = vshrl.u32 %v267, 4
      %v269 = vand.u32 %v267, 15
      %v270 = vsub.s32 0, %v269
      %v271 = vsel %vm265, %v270, %v269
      %vm272 = vcmp.ne.s32.totalorder %v257, 0
      %vm273 = vcmp.ne.s32.totalorder %v264, 0
      %vm274 = vcmp.ne.s32.totalorder %v271, 0
      %vm275 = vcmp.lt.s32.totalorder %v257, 0
      %vm276 = vcmp.lt.s32.totalorder %v264, 0
      %vm277 = vcmp.lt.s32.totalorder %v271, 0
      %vm278 = vmand %vm275, %vm272
      %vm279 = vmand %vm276, %vm273
      %vm280 = vmand %vm277, %vm274
      %v281 = vadd.s32 %v257, 16
      %v282 = vadd.s32 %v264, 16
      %v283 = vadd.s32 %v271, 16
      %v284 = vsel %vm278, %v281, %v257
      %v285 = vsel %vm279, %v282, %v264
      %v286 = vsel %vm280, %v283, %v271
      %v287 = vadd.s32 %v245, 384
      %v288 = vsub.s32 %v245, 128
      %v289 = vsub.s32 %v247, 128
      %v290 = vsub.s32 %v287, 128
      %vm291 = vcmp.lt.s32.totalorder %v288, 0
      %v292 = vsub.s32 0, %v288
      %v293 = vsel %vm291, %v292, %v288
      %v294 = vshrl.u32 %v293, 4
      %v295 = vand.u32 %v293, 15
      %v296 = vsub.s32 0, %v295
      %v297 = vsel %vm291, %v296, %v295
      %vm298 = vcmp.lt.s32.totalorder %v245, 0
      %v299 = vsub.s32 0, %v245
      %v300 = vsel %vm298, %v299, %v245
      %v301 = vshrl.u32 %v300, 4
      %v302 = vand.u32 %v300, 15
      %v303 = vsub.s32 0, %v302
      %v304 = vsel %vm298, %v303, %v302
      %vm305 = vcmp.lt.s32.totalorder %v289, 0
      %v306 = vsub.s32 0, %v289
      %v307 = vsel %vm305, %v306, %v289
      %v308 = vshrl.u32 %v307, 4
      %v309 = vand.u32 %v307, 15
      %v310 = vsub.s32 0, %v309
      %v311 = vsel %vm305, %v310, %v309
      %vm312 = vcmp.lt.s32.totalorder %v290, 0
      %v313 = vsub.s32 0, %v290
      %v314 = vsel %vm312, %v313, %v290
      %v315 = vshrl.u32 %v314, 4
      %v316 = vand.u32 %v314, 15
      %v317 = vsub.s32 0, %v316
      %v318 = vsel %vm312, %v317, %v316
      %vm319 = vcmp.ne.s32.totalorder %v297, 0
      %vm320 = vcmp.ne.s32.totalorder %v304, 0
      %vm321 = vcmp.ne.s32.totalorder %v311, 0
      %vm322 = vcmp.ne.s32.totalorder %v318, 0
      %vm323 = vcmp.lt.s32.totalorder %v297, 0
      %vm324 = vcmp.lt.s32.totalorder %v304, 0
      %vm325 = vcmp.lt.s32.totalorder %v311, 0
      %vm326 = vcmp.lt.s32.totalorder %v318, 0
      %vm327 = vmand %vm323, %vm319
      %vm328 = vmand %vm324, %vm320
      %vm329 = vmand %vm325, %vm321
      %vm330 = vmand %vm326, %vm322
      %v331 = vadd.s32 %v297, 16
      %v332 = vadd.s32 %v304, 16
      %v333 = vadd.s32 %v311, 16
      %v334 = vadd.s32 %v318, 16
      %v335 = vsel %vm327, %v331, %v297
      %v336 = vsel %vm328, %v332, %v304
      %v337 = vsel %vm329, %v333, %v311
      %v338 = vsel %vm330, %v334, %v318
      %s339 = scalar_lea.vmem %s219, 360
      %v340 = vld [vmem:[%s339] sm:$0xff]
      %v341 = vld [vmem:[%s339 + $0x8] sm:$0xf]
      %v342 = vld [vmem:[%s339 + $0xc] sm:$0xff]
      %v343 = vld [vmem:[%s339 + $0x14] sm:$0xf]
      %vm344 = vcmp.eq.s32.totalorder %v284, 15
      %vm345 = vcmp.eq.s32.totalorder %v285, 15
      %vm346 = vcmp.eq.s32.totalorder %v286, 15
      %v347 = vsel %vm344, 1, 0
      %v348 = vsel %vm345, 1, 0
      %v349 = vsel %vm346, 1, 0
      %vm350 = vcmp.eq.s32.totalorder %v347, 1
      %vm351 = vcmp.eq.s32.totalorder %v348, 1
      %vm352 = vcmp.eq.s32.totalorder %v349, 1
      %vm353 = vmpackc.low %vm351, %vm350
      %vm354 = vmpackc.low %vm352, %vm352
      %v355 = vsel %vm353, 0, %v340
      %v356 = vsel %vm354, 0, %v341
      %v357 = vsel %vm353, 0, %v342
      %v358 = vsel %vm354, 0, %v343
      %s359 = scalar_lea.vmem %s219, 288
      %v360 = vld [vmem:[%s359] sm:$0xff]
      %v361 = vld [vmem:[%s359 + $0x8] sm:$0xf]
      %v362 = vld [vmem:[%s359 + $0xc] sm:$0xff]
      %v363 = vld [vmem:[%s359 + $0x14] sm:$0xf]
      %s364 = scalar_lea.vmem %s219, 312
      %v365 = vld [vmem:[%s364] sm:$0xff]
      %v366 = vld [vmem:[%s364 + $0x8] sm:$0xf]
      %v367 = vld [vmem:[%s364 + $0xc] sm:$0xff]
      %v368 = vld [vmem:[%s364 + $0x14] sm:$0xf]
      %s369 = scalar_lea.vmem %s219, 72
      %v370 = vld [vmem:[%s369] sm:$0xff]
      %v371 = vld [vmem:[%s369 + $0x8] sm:$0xf]
      %v372 = vld [vmem:[%s369 + $0xc] sm:$0xff]
      %v373 = vld [vmem:[%s369 + $0x14] sm:$0xf]
      %v374 = vsel %vm353, 0, %v370
      %v375 = vsel %vm354, 0, %v371
      %v376 = vsel %vm353, 0, %v372
      %v377 = vsel %vm354, 0, %v373
      %v378 = vld [vmem:[%s219] sm:$0xff]
      %v379 = vld [vmem:[%s219 + $0x8] sm:$0xf]
      %v380 = vld [vmem:[%s219 + $0xc] sm:$0xff]
      %v381 = vld [vmem:[%s219 + $0x14] sm:$0xf]
      %s382 = scalar_lea.vmem %s219, 24
      %v383 = vld [vmem:[%s382] sm:$0xff]
      %v384 = vld [vmem:[%s382 + $0x8] sm:$0xf]
      %v385 = vld [vmem:[%s382 + $0xc] sm:$0xff]
      %v386 = vld [vmem:[%s382 + $0x14] sm:$0xf]
      %s387 = scalar_lea.vmem %s219, 168
      %v388 = vld [vmem:[%s387] sm:$0xff]
      %v389 = vld [vmem:[%s387 + $0x8] sm:$0xf]
      %v390 = vld [vmem:[%s387 + $0xc] sm:$0xff]
      %v391 = vld [vmem:[%s387 + $0x14] sm:$0xf]
      %v392 = vsel %vm353, 0, %v388
      %v393 = vsel %vm354, 0, %v389
      %v394 = vsel %vm353, 0, %v390
      %v395 = vsel %vm354, 0, %v391
      %s396 = scalar_lea.vmem %s219, 96
      %v397 = vld [vmem:[%s396] sm:$0xff]
      %v398 = vld [vmem:[%s396 + $0x8] sm:$0xf]
      %v399 = vld [vmem:[%s396 + $0xc] sm:$0xff]
      %v400 = vld [vmem:[%s396 + $0x14] sm:$0xf]
      %s401 = scalar_lea.vmem %s219, 120
      %v402 = vld [vmem:[%s401] sm:$0xff]
      %v403 = vld [vmem:[%s401 + $0x8] sm:$0xf]
      %v404 = vld [vmem:[%s401 + $0xc] sm:$0xff]
      %v405 = vld [vmem:[%s401 + $0x14] sm:$0xf]
      %v410 = vunpack.c.l.b16 %v355
      %v411 = vunpack.c.h.b16 %v355
      %v412 = vunpack.c.l.b16 %v356
      %v413 = vunpack.c.l.b16 %v357
      %v414 = vunpack.c.h.b16 %v357
      %v415 = vunpack.c.l.b16 %v358
      %v416 = vpack.c.b16 %v413, %v410
      %v417 = vpack.c.b16 %v414, %v411
      %v418 = vpack.c.b16 %v415, %v412
      %v423 = vunpack.c.l.b16 %v360
      %v424 = vunpack.c.h.b16 %v360
      %v425 = vunpack.c.l.b16 %v361
      %v426 = vunpack.c.l.b16 %v362
      %v427 = vunpack.c.h.b16 %v362
      %v428 = vunpack.c.l.b16 %v363
      %v429 = vpack.c.b16 %v426, %v423
      %v430 = vpack.c.b16 %v427, %v424
      %v431 = vpack.c.b16 %v428, %v425
      %432 = vrot.lane.b32.xlu0 %v429, 127
      %v433 = vpop.permute.xlu0 %432
      %434 = vrot.lane.b32.xlu0 %v430, 127
      %v435 = vpop.permute.xlu0 %434
      %436 = vrot.lane.b32.xlu0 %v431, 127
      %v437 = vpop.permute.xlu0 %436
      %vm438 = vcmask 1039360
      %v439 = vsel %vm438, %v433, %v435
      %v440 = vsel %vm438, %v435, %v437
      %v445 = vunpack.c.l.b16 %v365
      %v446 = vunpack.c.h.b16 %v365
      %v447 = vunpack.c.l.b16 %v366
      %v448 = vunpack.c.l.b16 %v367
      %v449 = vunpack.c.h.b16 %v367
      %v450 = vunpack.c.l.b16 %v368
      %v451 = vpack.c.b16 %v448, %v445
      %v452 = vpack.c.b16 %v449, %v446
      %v453 = vpack.c.b16 %v450, %v447
      %454 = vrot.lane.b32.xlu0 %v451, 127
      %v455 = vpop.permute.xlu0 %454
      %456 = vrot.lane.b32.xlu0 %v452, 127
      %v457 = vpop.permute.xlu0 %456
      %458 = vrot.lane.b32.xlu0 %v453, 127
      %v459 = vpop.permute.xlu0 %458
      %v460 = vsel %vm438, %v455, %v457
      %v461 = vsel %vm438, %v457, %v459
      %v466 = vunpack.c.l.b16 %v374
      %v467 = vunpack.c.h.b16 %v374
      %v468 = vunpack.c.l.b16 %v375
      %v469 = vunpack.c.l.b16 %v376
      %v470 = vunpack.c.h.b16 %v376
      %v471 = vunpack.c.l.b16 %v377
      %v472 = vpack.c.b16 %v469, %v466
      %v473 = vpack.c.b16 %v470, %v467
      %v474 = vpack.c.b16 %v471, %v468
      %475 = vrot.lane.b32.xlu0 %v472, 112
      %v476 = vpop.permute.xlu0 %475
      %477 = vrot.lane.b32.xlu0 %v473, 112
      %v478 = vpop.permute.xlu0 %477
      %479 = vrot.lane.b32.xlu0 %v474, 112
      %v480 = vpop.permute.xlu0 %479
      %vm481 = vcmask 916480
      %v482 = vsel %vm481, %v476, %v478
      %v483 = vsel %vm481, %v478, %v480
      %v488 = vunpack.c.l.b16 %v378
      %v489 = vunpack.c.h.b16 %v378
      %v490 = vunpack.c.l.b16 %v379
      %v491 = vunpack.c.l.b16 %v380
      %v492 = vunpack.c.h.b16 %v380
      %v493 = vunpack.c.l.b16 %v381
      %v494 = vpack.c.b16 %v491, %v488
      %v495 = vpack.c.b16 %v492, %v489
      %v496 = vpack.c.b16 %v493, %v490
      %497 = vrot.lane.b32.xlu0 %v494, 111
      %v498 = vpop.permute.xlu0 %497
      %499 = vrot.lane.b32.xlu0 %v495, 111
      %v500 = vpop.permute.xlu0 %499
      %501 = vrot.lane.b32.xlu0 %v496, 111
      %v502 = vpop.permute.xlu0 %501
      %vm503 = vcmask 908288
      %v504 = vsel %vm503, %v498, %v500
      %v505 = vsel %vm503, %v500, %v502
      %v510 = vunpack.c.l.b16 %v383
      %v511 = vunpack.c.h.b16 %v383
      %v512 = vunpack.c.l.b16 %v384
      %v513 = vunpack.c.l.b16 %v385
      %v514 = vunpack.c.h.b16 %v385
      %v515 = vunpack.c.l.b16 %v386
      %v516 = vpack.c.b16 %v513, %v510
      %v517 = vpack.c.b16 %v514, %v511
      %v518 = vpack.c.b16 %v515, %v512
      %519 = vrot.lane.b32.xlu0 %v516, 111
      %v520 = vpop.permute.xlu0 %519
      %521 = vrot.lane.b32.xlu0 %v517, 111
      %v522 = vpop.permute.xlu0 %521
      %523 = vrot.lane.b32.xlu0 %v518, 111
      %v524 = vpop.permute.xlu0 %523
      %v525 = vsel %vm503, %v520, %v522
      %v526 = vsel %vm503, %v522, %v524
      %v531 = vunpack.c.l.b16 %v392
      %v532 = vunpack.c.h.b16 %v392
      %v533 = vunpack.c.l.b16 %v393
      %v534 = vunpack.c.l.b16 %v394
      %v535 = vunpack.c.h.b16 %v394
      %v536 = vunpack.c.l.b16 %v395
      %v537 = vpack.c.b16 %v534, %v531
      %v538 = vpack.c.b16 %v535, %v532
      %v539 = vpack.c.b16 %v536, %v533
      %540 = vrot.lane.b32.xlu0 %v537, 112
      %v541 = vpop.permute.xlu0 %540
      %542 = vrot.lane.b32.xlu0 %v538, 112
      %v543 = vpop.permute.xlu0 %542
      %544 = vrot.lane.b32.xlu0 %v539, 112
      %v545 = vpop.permute.xlu0 %544
      %v546 = vsel %vm481, %v541, %v543
      %v547 = vsel %vm481, %v543, %v545
      %v552 = vunpack.c.l.b16 %v397
      %v553 = vunpack.c.h.b16 %v397
      %v554 = vunpack.c.l.b16 %v398
      %v555 = vunpack.c.l.b16 %v399
      %v556 = vunpack.c.h.b16 %v399
      %v557 = vunpack.c.l.b16 %v400
      %v558 = vpack.c.b16 %v555, %v552
      %v559 = vpack.c.b16 %v556, %v553
      %v560 = vpack.c.b16 %v557, %v554
      %561 = vrot.lane.b32.xlu0 %v558, 111
      %v562 = vpop.permute.xlu0 %561
      %563 = vrot.lane.b32.xlu0 %v559, 111
      %v564 = vpop.permute.xlu0 %563
      %565 = vrot.lane.b32.xlu0 %v560, 111
      %v566 = vpop.permute.xlu0 %565
      %v567 = vsel %vm503, %v562, %v564
      %v568 = vsel %vm503, %v564, %v566
      %v573 = vunpack.c.l.b16 %v402
      %v574 = vunpack.c.h.b16 %v402
      %v575 = vunpack.c.l.b16 %v403
      %v576 = vunpack.c.l.b16 %v404
      %v577 = vunpack.c.h.b16 %v404
      %v578 = vunpack.c.l.b16 %v405
      %v579 = vpack.c.b16 %v576, %v573
      %v580 = vpack.c.b16 %v577, %v574
      %v581 = vpack.c.b16 %v578, %v575
      %582 = vrot.lane.b32.xlu0 %v579, 111
      %v583 = vpop.permute.xlu0 %582
      %584 = vrot.lane.b32.xlu0 %v580, 111
      %v585 = vpop.permute.xlu0 %584
      %586 = vrot.lane.b32.xlu0 %v581, 111
      %v587 = vpop.permute.xlu0 %586
      %v588 = vsel %vm503, %v583, %v585
      %v589 = vsel %vm503, %v585, %v587
      %s590 = scalar_lea.vmem %s219, 336
      %v591 = vld [vmem:[%s590] sm:$0xff]
      %v592 = vld [vmem:[%s590 + $0x8] sm:$0xf]
      %v593 = vld [vmem:[%s590 + $0xc] sm:$0xff]
      %v594 = vld [vmem:[%s590 + $0x14] sm:$0xf]
      %s595 = scalar_lea.vmem %s219, 48
      %v596 = vld [vmem:[%s595] sm:$0xff]
      %v597 = vld [vmem:[%s595 + $0x8] sm:$0xf]
      %v598 = vld [vmem:[%s595 + $0xc] sm:$0xff]
      %v599 = vld [vmem:[%s595 + $0x14] sm:$0xf]
      %s600 = scalar_lea.vmem %s219, 144
      %v601 = vld [vmem:[%s600] sm:$0xff]
      %v602 = vld [vmem:[%s600 + $0x8] sm:$0xf]
      %v603 = vld [vmem:[%s600 + $0xc] sm:$0xff]
      %v604 = vld [vmem:[%s600 + $0x14] sm:$0xf]
      %v609 = vunpack.c.l.b16 %v591
      %v610 = vunpack.c.h.b16 %v591
      %v611 = vunpack.c.l.b16 %v592
      %v612 = vunpack.c.l.b16 %v593
      %v613 = vunpack.c.h.b16 %v593
      %v614 = vunpack.c.l.b16 %v594
      %v615 = vpack.c.b16 %v612, %v609
      %v616 = vpack.c.b16 %v613, %v610
      %v617 = vpack.c.b16 %v614, %v611
      %618 = vrot.lane.b32.xlu0 %v494, 112
      %v619 = vpop.permute.xlu0 %618
      %620 = vrot.lane.b32.xlu0 %v495, 112
      %v621 = vpop.permute.xlu0 %620
      %622 = vrot.lane.b32.xlu0 %v496, 112
      %v623 = vpop.permute.xlu0 %622
      %v624 = vsel %vm481, %v619, %v621
      %v625 = vsel %vm481, %v621, %v623
      %626 = vrot.lane.b32.xlu0 %v516, 112
      %v627 = vpop.permute.xlu0 %626
      %628 = vrot.lane.b32.xlu0 %v517, 112
      %v629 = vpop.permute.xlu0 %628
      %630 = vrot.lane.b32.xlu0 %v518, 112
      %v631 = vpop.permute.xlu0 %630
      %v632 = vsel %vm481, %v627, %v629
      %v633 = vsel %vm481, %v629, %v631
      %v638 = vunpack.c.l.b16 %v596
      %v639 = vunpack.c.h.b16 %v596
      %v640 = vunpack.c.l.b16 %v597
      %v641 = vunpack.c.l.b16 %v598
      %v642 = vunpack.c.h.b16 %v598
      %v643 = vunpack.c.l.b16 %v599
      %v644 = vpack.c.b16 %v641, %v638
      %v645 = vpack.c.b16 %v642, %v639
      %v646 = vpack.c.b16 %v643, %v640
      %647 = vrot.lane.b32.xlu0 %v644, 112
      %v648 = vpop.permute.xlu0 %647
      %649 = vrot.lane.b32.xlu0 %v645, 112
      %v650 = vpop.permute.xlu0 %649
      %651 = vrot.lane.b32.xlu0 %v646, 112
      %v652 = vpop.permute.xlu0 %651
      %v653 = vsel %vm481, %v648, %v650
      %v654 = vsel %vm481, %v650, %v652
      %655 = vrot.lane.b32.xlu0 %v558, 112
      %v656 = vpop.permute.xlu0 %655
      %657 = vrot.lane.b32.xlu0 %v559, 112
      %v658 = vpop.permute.xlu0 %657
      %659 = vrot.lane.b32.xlu0 %v560, 112
      %v660 = vpop.permute.xlu0 %659
      %v661 = vsel %vm481, %v656, %v658
      %v662 = vsel %vm481, %v658, %v660
      %663 = vrot.lane.b32.xlu0 %v579, 112
      %v664 = vpop.permute.xlu0 %663
      %665 = vrot.lane.b32.xlu0 %v580, 112
      %v666 = vpop.permute.xlu0 %665
      %667 = vrot.lane.b32.xlu0 %v581, 112
      %v668 = vpop.permute.xlu0 %667
      %v669 = vsel %vm481, %v664, %v666
      %v670 = vsel %vm481, %v666, %v668
      %v675 = vunpack.c.l.b16 %v601
      %v676 = vunpack.c.h.b16 %v601
      %v677 = vunpack.c.l.b16 %v602
      %v678 = vunpack.c.l.b16 %v603
      %v679 = vunpack.c.h.b16 %v603
      %v680 = vunpack.c.l.b16 %v604
      %v681 = vpack.c.b16 %v678, %v675
      %v682 = vpack.c.b16 %v679, %v676
      %v683 = vpack.c.b16 %v680, %v677
      %684 = vrot.lane.b32.xlu0 %v681, 112
      %v685 = vpop.permute.xlu0 %684
      %686 = vrot.lane.b32.xlu0 %v682, 112
      %v687 = vpop.permute.xlu0 %686
      %688 = vrot.lane.b32.xlu0 %v683, 112
      %v689 = vpop.permute.xlu0 %688
      %v690 = vsel %vm481, %v685, %v687
      %v691 = vsel %vm481, %v687, %v689
      %s692 = scalar_lea.vmem %s219, 264
      %v693 = vld [vmem:[%s692] sm:$0xff]
      %v694 = vld [vmem:[%s692 + $0x8] sm:$0xf]
      %v695 = vld [vmem:[%s692 + $0xc] sm:$0xff]
      %v696 = vld [vmem:[%s692 + $0x14] sm:$0xf]
      %v697 = vsel %vm353, 0, %v693
      %v698 = vsel %vm354, 0, %v694
      %v699 = vsel %vm353, 0, %v695
      %v700 = vsel %vm354, 0, %v696
      %s701 = scalar_lea.vmem %s219, 192
      %v702 = vld [vmem:[%s701] sm:$0xff]
      %v703 = vld [vmem:[%s701 + $0x8] sm:$0xf]
      %v704 = vld [vmem:[%s701 + $0xc] sm:$0xff]
      %v705 = vld [vmem:[%s701 + $0x14] sm:$0xf]
      %s706 = scalar_lea.vmem %s219, 216
      %v707 = vld [vmem:[%s706] sm:$0xff]
      %v708 = vld [vmem:[%s706 + $0x8] sm:$0xf]
      %v709 = vld [vmem:[%s706 + $0xc] sm:$0xff]
      %v710 = vld [vmem:[%s706 + $0x14] sm:$0xf]
      %711 = vrot.lane.b32.xlu0 %v494, 127
      %v712 = vpop.permute.xlu0 %711
      %713 = vrot.lane.b32.xlu0 %v495, 127
      %v714 = vpop.permute.xlu0 %713
      %715 = vrot.lane.b32.xlu0 %v496, 127
      %v716 = vpop.permute.xlu0 %715
      %v717 = vsel %vm438, %v712, %v714
      %v718 = vsel %vm438, %v714, %v716
      %719 = vrot.lane.b32.xlu0 %v516, 127
      %v720 = vpop.permute.xlu0 %719
      %721 = vrot.lane.b32.xlu0 %v517, 127
      %v722 = vpop.permute.xlu0 %721
      %723 = vrot.lane.b32.xlu0 %v518, 127
      %v724 = vpop.permute.xlu0 %723
      %v725 = vsel %vm438, %v720, %v722
      %v726 = vsel %vm438, %v722, %v724
      %727 = vrot.lane.b32.xlu0 %v558, 127
      %v728 = vpop.permute.xlu0 %727
      %729 = vrot.lane.b32.xlu0 %v559, 127
      %v730 = vpop.permute.xlu0 %729
      %731 = vrot.lane.b32.xlu0 %v560, 127
      %v732 = vpop.permute.xlu0 %731
      %v733 = vsel %vm438, %v728, %v730
      %v734 = vsel %vm438, %v730, %v732
      %735 = vrot.lane.b32.xlu0 %v579, 127
      %v736 = vpop.permute.xlu0 %735
      %737 = vrot.lane.b32.xlu0 %v580, 127
      %v738 = vpop.permute.xlu0 %737
      %739 = vrot.lane.b32.xlu0 %v581, 127
      %v740 = vpop.permute.xlu0 %739
      %v741 = vsel %vm438, %v736, %v738
      %v742 = vsel %vm438, %v738, %v740
      %v747 = vunpack.c.l.b16 %v697
      %v748 = vunpack.c.h.b16 %v697
      %v749 = vunpack.c.l.b16 %v698
      %v750 = vunpack.c.l.b16 %v699
      %v751 = vunpack.c.h.b16 %v699
      %v752 = vunpack.c.l.b16 %v700
      %v753 = vpack.c.b16 %v750, %v747
      %v754 = vpack.c.b16 %v751, %v748
      %v755 = vpack.c.b16 %v752, %v749
      %v760 = vunpack.c.l.b16 %v702
      %v761 = vunpack.c.h.b16 %v702
      %v762 = vunpack.c.l.b16 %v703
      %v763 = vunpack.c.l.b16 %v704
      %v764 = vunpack.c.h.b16 %v704
      %v765 = vunpack.c.l.b16 %v705
      %v766 = vpack.c.b16 %v763, %v760
      %v767 = vpack.c.b16 %v764, %v761
      %v768 = vpack.c.b16 %v765, %v762
      %769 = vrot.lane.b32.xlu0 %v766, 127
      %v770 = vpop.permute.xlu0 %769
      %771 = vrot.lane.b32.xlu0 %v767, 127
      %v772 = vpop.permute.xlu0 %771
      %773 = vrot.lane.b32.xlu0 %v768, 127
      %v774 = vpop.permute.xlu0 %773
      %v775 = vsel %vm438, %v770, %v772
      %v776 = vsel %vm438, %v772, %v774
      %v781 = vunpack.c.l.b16 %v707
      %v782 = vunpack.c.h.b16 %v707
      %v783 = vunpack.c.l.b16 %v708
      %v784 = vunpack.c.l.b16 %v709
      %v785 = vunpack.c.h.b16 %v709
      %v786 = vunpack.c.l.b16 %v710
      %v787 = vpack.c.b16 %v784, %v781
      %v788 = vpack.c.b16 %v785, %v782
      %v789 = vpack.c.b16 %v786, %v783
      %790 = vrot.lane.b32.xlu0 %v787, 127
      %v791 = vpop.permute.xlu0 %790
      %792 = vrot.lane.b32.xlu0 %v788, 127
      %v793 = vpop.permute.xlu0 %792
      %794 = vrot.lane.b32.xlu0 %v789, 127
      %v795 = vpop.permute.xlu0 %794
      %v796 = vsel %vm438, %v791, %v793
      %v797 = vsel %vm438, %v793, %v795
      %s798 = scalar_lea.vmem %s219, 240
      %v799 = vld [vmem:[%s798] sm:$0xff]
      %v800 = vld [vmem:[%s798 + $0x8] sm:$0xf]
      %v801 = vld [vmem:[%s798 + $0xc] sm:$0xff]
      %v802 = vld [vmem:[%s798 + $0x14] sm:$0xf]
      %v807 = vunpack.c.l.b16 %v799
      %v808 = vunpack.c.h.b16 %v799
      %v809 = vunpack.c.l.b16 %v800
      %v810 = vunpack.c.l.b16 %v801
      %v811 = vunpack.c.h.b16 %v801
      %v812 = vunpack.c.l.b16 %v802
      %v813 = vpack.c.b16 %v810, %v807
      %v814 = vpack.c.b16 %v811, %v808
      %v815 = vpack.c.b16 %v812, %v809
      %v820 = vunpack.c.l.b16 %v340
      %v821 = vunpack.c.h.b16 %v340
      %v822 = vunpack.c.l.b16 %v341
      %v823 = vunpack.c.l.b16 %v342
      %v824 = vunpack.c.h.b16 %v342
      %v825 = vunpack.c.l.b16 %v343
      %v826 = vpack.c.b16 %v823, %v820
      %v827 = vpack.c.b16 %v824, %v821
      %v828 = vpack.c.b16 %v825, %v822
      %v833 = vunpack.c.l.b16 %v370
      %v834 = vunpack.c.h.b16 %v370
      %v835 = vunpack.c.l.b16 %v371
      %v836 = vunpack.c.l.b16 %v372
      %v837 = vunpack.c.h.b16 %v372
      %v838 = vunpack.c.l.b16 %v373
      %v839 = vpack.c.b16 %v836, %v833
      %v840 = vpack.c.b16 %v837, %v834
      %v841 = vpack.c.b16 %v838, %v835
      %842 = vrot.lane.b32.xlu0 %v839, 112
      %v843 = vpop.permute.xlu0 %842
      %844 = vrot.lane.b32.xlu0 %v840, 112
      %v845 = vpop.permute.xlu0 %844
      %846 = vrot.lane.b32.xlu0 %v841, 112
      %v847 = vpop.permute.xlu0 %846
      %v848 = vsel %vm481, %v843, %v845
      %v849 = vsel %vm481, %v845, %v847
      %v854 = vunpack.c.l.b16 %v388
      %v855 = vunpack.c.h.b16 %v388
      %v856 = vunpack.c.l.b16 %v389
      %v857 = vunpack.c.l.b16 %v390
      %v858 = vunpack.c.h.b16 %v390
      %v859 = vunpack.c.l.b16 %v391
      %v860 = vpack.c.b16 %v857, %v854
      %v861 = vpack.c.b16 %v858, %v855
      %v862 = vpack.c.b16 %v859, %v856
      %863 = vrot.lane.b32.xlu0 %v860, 112
      %v864 = vpop.permute.xlu0 %863
      %865 = vrot.lane.b32.xlu0 %v861, 112
      %v866 = vpop.permute.xlu0 %865
      %867 = vrot.lane.b32.xlu0 %v862, 112
      %v868 = vpop.permute.xlu0 %867
      %v869 = vsel %vm481, %v864, %v866
      %v870 = vsel %vm481, %v866, %v868
      %vm871 = vcmp.eq.s32.totalorder %v284, 0
      %vm872 = vcmp.eq.s32.totalorder %v285, 0
      %vm873 = vcmp.eq.s32.totalorder %v286, 0
      %v874 = vsel %vm871, 1, 0
      %v875 = vsel %vm872, 1, 0
      %v876 = vsel %vm873, 1, 0
      %vm877 = vcmp.eq.s32.totalorder %v874, 1
      %vm878 = vcmp.eq.s32.totalorder %v875, 1
      %vm879 = vcmp.eq.s32.totalorder %v876, 1
      %vm880 = vmpackc.low %vm878, %vm877
      %vm881 = vmpackc.low %vm879, %vm879
      %v882 = vsel %vm880, 0, %v360
      %v883 = vsel %vm881, 0, %v361
      %v884 = vsel %vm880, 0, %v362
      %v885 = vsel %vm881, 0, %v363
      %v886 = vsel %vm880, 0, %v378
      %v887 = vsel %vm881, 0, %v379
      %v888 = vsel %vm880, 0, %v380
      %v889 = vsel %vm881, 0, %v381
      %v890 = vsel %vm880, 0, %v397
      %v891 = vsel %vm881, 0, %v398
      %v892 = vsel %vm880, 0, %v399
      %v893 = vsel %vm881, 0, %v400
      %v898 = vunpack.c.l.b16 %v882
      %v899 = vunpack.c.h.b16 %v882
      %v900 = vunpack.c.l.b16 %v883
      %v901 = vunpack.c.l.b16 %v884
      %v902 = vunpack.c.h.b16 %v884
      %v903 = vunpack.c.l.b16 %v885
      %v904 = vpack.c.b16 %v901, %v898
      %v905 = vpack.c.b16 %v902, %v899
      %v906 = vpack.c.b16 %v903, %v900
      %907 = vrot.lane.b32.xlu0 %v904, 127
      %v908 = vpop.permute.xlu0 %907
      %909 = vrot.lane.b32.xlu0 %v905, 127
      %v910 = vpop.permute.xlu0 %909
      %911 = vrot.lane.b32.xlu0 %v906, 127
      %v912 = vpop.permute.xlu0 %911
      %v913 = vsel %vm438, %v908, %v910
      %v914 = vsel %vm438, %v910, %v912
      %v919 = vunpack.c.l.b16 %v886
      %v920 = vunpack.c.h.b16 %v886
      %v921 = vunpack.c.l.b16 %v887
      %v922 = vunpack.c.l.b16 %v888
      %v923 = vunpack.c.h.b16 %v888
      %v924 = vunpack.c.l.b16 %v889
      %v925 = vpack.c.b16 %v922, %v919
      %v926 = vpack.c.b16 %v923, %v920
      %v927 = vpack.c.b16 %v924, %v921
      %928 = vrot.lane.b32.xlu0 %v925, 111
      %v929 = vpop.permute.xlu0 %928
      %930 = vrot.lane.b32.xlu0 %v926, 111
      %v931 = vpop.permute.xlu0 %930
      %932 = vrot.lane.b32.xlu0 %v927, 111
      %v933 = vpop.permute.xlu0 %932
      %v934 = vsel %vm503, %v929, %v931
      %v935 = vsel %vm503, %v931, %v933
      %v940 = vunpack.c.l.b16 %v890
      %v941 = vunpack.c.h.b16 %v890
      %v942 = vunpack.c.l.b16 %v891
      %v943 = vunpack.c.l.b16 %v892
      %v944 = vunpack.c.h.b16 %v892
      %v945 = vunpack.c.l.b16 %v893
      %v946 = vpack.c.b16 %v943, %v940
      %v947 = vpack.c.b16 %v944, %v941
      %v948 = vpack.c.b16 %v945, %v942
      %949 = vrot.lane.b32.xlu0 %v946, 111
      %v950 = vpop.permute.xlu0 %949
      %951 = vrot.lane.b32.xlu0 %v947, 111
      %v952 = vpop.permute.xlu0 %951
      %953 = vrot.lane.b32.xlu0 %v948, 111
      %v954 = vpop.permute.xlu0 %953
      %v955 = vsel %vm503, %v950, %v952
      %v956 = vsel %vm503, %v952, %v954
      %v961 = vunpack.c.l.b16 %v693
      %v962 = vunpack.c.h.b16 %v693
      %v963 = vunpack.c.l.b16 %v694
      %v964 = vunpack.c.l.b16 %v695
      %v965 = vunpack.c.h.b16 %v695
      %v966 = vunpack.c.l.b16 %v696
      %v967 = vpack.c.b16 %v964, %v961
      %v968 = vpack.c.b16 %v965, %v962
      %v969 = vpack.c.b16 %v966, %v963
      %v970 = vsel %vm880, 0, %v702
      %v971 = vsel %vm881, 0, %v703
      %v972 = vsel %vm880, 0, %v704
      %v973 = vsel %vm881, 0, %v705
      %974 = vrot.lane.b32.xlu0 %v925, 127
      %v975 = vpop.permute.xlu0 %974
      %976 = vrot.lane.b32.xlu0 %v926, 127
      %v977 = vpop.permute.xlu0 %976
      %978 = vrot.lane.b32.xlu0 %v927, 127
      %v979 = vpop.permute.xlu0 %978
      %v980 = vsel %vm438, %v975, %v977
      %v981 = vsel %vm438, %v977, %v979
      %982 = vrot.lane.b32.xlu0 %v946, 127
      %v983 = vpop.permute.xlu0 %982
      %984 = vrot.lane.b32.xlu0 %v947, 127
      %v985 = vpop.permute.xlu0 %984
      %986 = vrot.lane.b32.xlu0 %v948, 127
      %v987 = vpop.permute.xlu0 %986
      %v988 = vsel %vm438, %v983, %v985
      %v989 = vsel %vm438, %v985, %v987
      %v994 = vunpack.c.l.b16 %v970
      %v995 = vunpack.c.h.b16 %v970
      %v996 = vunpack.c.l.b16 %v971
      %v997 = vunpack.c.l.b16 %v972
      %v998 = vunpack.c.h.b16 %v972
      %v999 = vunpack.c.l.b16 %v973
      %v1000 = vpack.c.b16 %v997, %v994
      %v1001 = vpack.c.b16 %v998, %v995
      %v1002 = vpack.c.b16 %v999, %v996
      %1003 = vrot.lane.b32.xlu0 %v1000, 127
      %v1004 = vpop.permute.xlu0 %1003
      %1005 = vrot.lane.b32.xlu0 %v1001, 127
      %v1006 = vpop.permute.xlu0 %1005
      %1007 = vrot.lane.b32.xlu0 %v1002, 127
      %v1008 = vpop.permute.xlu0 %1007
      %v1009 = vsel %vm438, %v1004, %v1006
      %v1010 = vsel %vm438, %v1006, %v1008
      %1011 = vrot.lane.b32.xlu0 %v416, 81
      %v1012 = vpop.permute.xlu0 %1011
      %1013 = vrot.lane.b32.xlu0 %v417, 81
      %v1014 = vpop.permute.xlu0 %1013
      %1015 = vrot.lane.b32.xlu0 %v418, 81
      %v1016 = vpop.permute.xlu0 %1015
      %1017 = vrot.lane.b32.xlu0 %v439, 81
      %v1018 = vpop.permute.xlu0 %1017
      %1019 = vrot.lane.b32.xlu0 %v440, 81
      %v1020 = vpop.permute.xlu0 %1019
      %1021 = vrot.lane.b32.xlu0 %v437, 81
      %v1022 = vpop.permute.xlu0 %1021
      %1023 = vrot.lane.b32.xlu0 %v460, 81
      %v1024 = vpop.permute.xlu0 %1023
      %1025 = vrot.lane.b32.xlu0 %v461, 81
      %v1026 = vpop.permute.xlu0 %1025
      %1027 = vrot.lane.b32.xlu0 %v459, 81
      %v1028 = vpop.permute.xlu0 %1027
      %1029 = vrot.lane.b32.xlu0 %v482, 81
      %v1030 = vpop.permute.xlu0 %1029
      %1031 = vrot.lane.b32.xlu0 %v483, 81
      %v1032 = vpop.permute.xlu0 %1031
      %1033 = vrot.lane.b32.xlu0 %v480, 81
      %v1034 = vpop.permute.xlu0 %1033
      %1035 = vrot.lane.b32.xlu0 %v504, 81
      %v1036 = vpop.permute.xlu0 %1035
      %1037 = vrot.lane.b32.xlu0 %v505, 81
      %v1038 = vpop.permute.xlu0 %1037
      %1039 = vrot.lane.b32.xlu0 %v502, 81
      %v1040 = vpop.permute.xlu0 %1039
      %1041 = vrot.lane.b32.xlu0 %v525, 81
      %v1042 = vpop.permute.xlu0 %1041
      %1043 = vrot.lane.b32.xlu0 %v526, 81
      %v1044 = vpop.permute.xlu0 %1043
      %1045 = vrot.lane.b32.xlu0 %v524, 81
      %v1046 = vpop.permute.xlu0 %1045
      %1047 = vrot.lane.b32.xlu0 %v546, 81
      %v1048 = vpop.permute.xlu0 %1047
      %1049 = vrot.lane.b32.xlu0 %v547, 81
      %v1050 = vpop.permute.xlu0 %1049
      %1051 = vrot.lane.b32.xlu0 %v545, 81
      %v1052 = vpop.permute.xlu0 %1051
      %1053 = vrot.lane.b32.xlu0 %v567, 81
      %v1054 = vpop.permute.xlu0 %1053
      %1055 = vrot.lane.b32.xlu0 %v568, 81
      %v1056 = vpop.permute.xlu0 %1055
      %1057 = vrot.lane.b32.xlu0 %v566, 81
      %v1058 = vpop.permute.xlu0 %1057
      %1059 = vrot.lane.b32.xlu0 %v588, 81
      %v1060 = vpop.permute.xlu0 %1059
      %1061 = vrot.lane.b32.xlu0 %v589, 81
      %v1062 = vpop.permute.xlu0 %1061
      %1063 = vrot.lane.b32.xlu0 %v587, 81
      %v1064 = vpop.permute.xlu0 %1063
      %vm1065 = vcmask 662528
      %v1066 = vsel %vm1065, %v1012, %v1014
      %v1067 = vsel %vm1065, %v1014, %v1016
      %v1068 = vsel %vm1065, %v1018, %v1020
      %v1069 = vsel %vm1065, %v1020, %v1022
      %v1070 = vsel %vm1065, %v1024, %v1026
      %v1071 = vsel %vm1065, %v1026, %v1028
      %v1072 = vsel %vm1065, %v1030, %v1032
      %v1073 = vsel %vm1065, %v1032, %v1034
      %v1074 = vsel %vm1065, %v1036, %v1038
      %v1075 = vsel %vm1065, %v1038, %v1040
      %v1076 = vsel %vm1065, %v1042, %v1044
      %v1077 = vsel %vm1065, %v1044, %v1046
      %v1078 = vsel %vm1065, %v1048, %v1050
      %v1079 = vsel %vm1065, %v1050, %v1052
      %v1080 = vsel %vm1065, %v1054, %v1056
      %v1081 = vsel %vm1065, %v1056, %v1058
      %v1082 = vsel %vm1065, %v1060, %v1062
      %v1083 = vsel %vm1065, %v1062, %v1064
      %1102 = vrot.lane.b32.xlu0 %v429, 80
      %v1103 = vpop.permute.xlu0 %1102
      %1104 = vrot.lane.b32.xlu0 %v430, 80
      %v1105 = vpop.permute.xlu0 %1104
      %1106 = vrot.lane.b32.xlu0 %v431, 80
      %v1107 = vpop.permute.xlu0 %1106
      %1108 = vrot.lane.b32.xlu0 %v451, 80
      %v1109 = vpop.permute.xlu0 %1108
      %1110 = vrot.lane.b32.xlu0 %v452, 80
      %v1111 = vpop.permute.xlu0 %1110
      %1112 = vrot.lane.b32.xlu0 %v453, 80
      %v1113 = vpop.permute.xlu0 %1112
      %1114 = vrot.lane.b32.xlu0 %v615, 80
      %v1115 = vpop.permute.xlu0 %1114
      %1116 = vrot.lane.b32.xlu0 %v616, 80
      %v1117 = vpop.permute.xlu0 %1116
      %1118 = vrot.lane.b32.xlu0 %v617, 80
      %v1119 = vpop.permute.xlu0 %1118
      %1120 = vrot.lane.b32.xlu0 %v624, 80
      %v1121 = vpop.permute.xlu0 %1120
      %1122 = vrot.lane.b32.xlu0 %v625, 80
      %v1123 = vpop.permute.xlu0 %1122
      %1124 = vrot.lane.b32.xlu0 %v623, 80
      %v1125 = vpop.permute.xlu0 %1124
      %1126 = vrot.lane.b32.xlu0 %v632, 80
      %v1127 = vpop.permute.xlu0 %1126
      %1128 = vrot.lane.b32.xlu0 %v633, 80
      %v1129 = vpop.permute.xlu0 %1128
      %1130 = vrot.lane.b32.xlu0 %v631, 80
      %v1131 = vpop.permute.xlu0 %1130
      %1132 = vrot.lane.b32.xlu0 %v653, 80
      %v1133 = vpop.permute.xlu0 %1132
      %1134 = vrot.lane.b32.xlu0 %v654, 80
      %v1135 = vpop.permute.xlu0 %1134
      %1136 = vrot.lane.b32.xlu0 %v652, 80
      %v1137 = vpop.permute.xlu0 %1136
      %1138 = vrot.lane.b32.xlu0 %v661, 80
      %v1139 = vpop.permute.xlu0 %1138
      %1140 = vrot.lane.b32.xlu0 %v662, 80
      %v1141 = vpop.permute.xlu0 %1140
      %1142 = vrot.lane.b32.xlu0 %v660, 80
      %v1143 = vpop.permute.xlu0 %1142
      %1144 = vrot.lane.b32.xlu0 %v669, 80
      %v1145 = vpop.permute.xlu0 %1144
      %1146 = vrot.lane.b32.xlu0 %v670, 80
      %v1147 = vpop.permute.xlu0 %1146
      %1148 = vrot.lane.b32.xlu0 %v668, 80
      %v1149 = vpop.permute.xlu0 %1148
      %1150 = vrot.lane.b32.xlu0 %v690, 80
      %v1151 = vpop.permute.xlu0 %1150
      %1152 = vrot.lane.b32.xlu0 %v691, 80
      %v1153 = vpop.permute.xlu0 %1152
      %1154 = vrot.lane.b32.xlu0 %v689, 80
      %v1155 = vpop.permute.xlu0 %1154
      %vm1156 = vcmask 654336
      %v1157 = vsel %vm1156, %v1103, %v1105
      %v1158 = vsel %vm1156, %v1105, %v1107
      %v1159 = vsel %vm1156, %v1109, %v1111
      %v1160 = vsel %vm1156, %v1111, %v1113
      %v1161 = vsel %vm1156, %v1115, %v1117
      %v1162 = vsel %vm1156, %v1117, %v1119
      %v1163 = vsel %vm1156, %v1121, %v1123
      %v1164 = vsel %vm1156, %v1123, %v1125
      %v1165 = vsel %vm1156, %v1127, %v1129
      %v1166 = vsel %vm1156, %v1129, %v1131
      %v1167 = vsel %vm1156, %v1133, %v1135
      %v1168 = vsel %vm1156, %v1135, %v1137
      %v1169 = vsel %vm1156, %v1139, %v1141
      %v1170 = vsel %vm1156, %v1141, %v1143
      %v1171 = vsel %vm1156, %v1145, %v1147
      %v1172 = vsel %vm1156, %v1147, %v1149
      %v1173 = vsel %vm1156, %v1151, %v1153
      %v1174 = vsel %vm1156, %v1153, %v1155
      %1193 = vrot.lane.b32.xlu0 %v472, 65
      %v1194 = vpop.permute.xlu0 %1193
      %1195 = vrot.lane.b32.xlu0 %v473, 65
      %v1196 = vpop.permute.xlu0 %1195
      %1197 = vrot.lane.b32.xlu0 %v474, 65
      %v1198 = vpop.permute.xlu0 %1197
      %1199 = vrot.lane.b32.xlu0 %v717, 65
      %v1200 = vpop.permute.xlu0 %1199
      %1201 = vrot.lane.b32.xlu0 %v718, 65
      %v1202 = vpop.permute.xlu0 %1201
      %1203 = vrot.lane.b32.xlu0 %v716, 65
      %v1204 = vpop.permute.xlu0 %1203
      %1205 = vrot.lane.b32.xlu0 %v725, 65
      %v1206 = vpop.permute.xlu0 %1205
      %1207 = vrot.lane.b32.xlu0 %v726, 65
      %v1208 = vpop.permute.xlu0 %1207
      %1209 = vrot.lane.b32.xlu0 %v724, 65
      %v1210 = vpop.permute.xlu0 %1209
      %1211 = vrot.lane.b32.xlu0 %v537, 65
      %v1212 = vpop.permute.xlu0 %1211
      %1213 = vrot.lane.b32.xlu0 %v538, 65
      %v1214 = vpop.permute.xlu0 %1213
      %1215 = vrot.lane.b32.xlu0 %v539, 65
      %v1216 = vpop.permute.xlu0 %1215
      %1217 = vrot.lane.b32.xlu0 %v733, 65
      %v1218 = vpop.permute.xlu0 %1217
      %1219 = vrot.lane.b32.xlu0 %v734, 65
      %v1220 = vpop.permute.xlu0 %1219
      %1221 = vrot.lane.b32.xlu0 %v732, 65
      %v1222 = vpop.permute.xlu0 %1221
      %1223 = vrot.lane.b32.xlu0 %v741, 65
      %v1224 = vpop.permute.xlu0 %1223
      %1225 = vrot.lane.b32.xlu0 %v742, 65
      %v1226 = vpop.permute.xlu0 %1225
      %1227 = vrot.lane.b32.xlu0 %v740, 65
      %v1228 = vpop.permute.xlu0 %1227
      %1229 = vrot.lane.b32.xlu0 %v753, 65
      %v1230 = vpop.permute.xlu0 %1229
      %1231 = vrot.lane.b32.xlu0 %v754, 65
      %v1232 = vpop.permute.xlu0 %1231
      %1233 = vrot.lane.b32.xlu0 %v755, 65
      %v1234 = vpop.permute.xlu0 %1233
      %1235 = vrot.lane.b32.xlu0 %v775, 65
      %v1236 = vpop.permute.xlu0 %1235
      %1237 = vrot.lane.b32.xlu0 %v776, 65
      %v1238 = vpop.permute.xlu0 %1237
      %1239 = vrot.lane.b32.xlu0 %v774, 65
      %v1240 = vpop.permute.xlu0 %1239
      %1241 = vrot.lane.b32.xlu0 %v796, 65
      %v1242 = vpop.permute.xlu0 %1241
      %1243 = vrot.lane.b32.xlu0 %v797, 65
      %v1244 = vpop.permute.xlu0 %1243
      %1245 = vrot.lane.b32.xlu0 %v795, 65
      %v1246 = vpop.permute.xlu0 %1245
      %vm1247 = vcmask 531456
      %v1248 = vsel %vm1247, %v1194, %v1196
      %v1249 = vsel %vm1247, %v1196, %v1198
      %v1250 = vsel %vm1247, %v1200, %v1202
      %v1251 = vsel %vm1247, %v1202, %v1204
      %v1252 = vsel %vm1247, %v1206, %v1208
      %v1253 = vsel %vm1247, %v1208, %v1210
      %v1254 = vsel %vm1247, %v1212, %v1214
      %v1255 = vsel %vm1247, %v1214, %v1216
      %v1256 = vsel %vm1247, %v1218, %v1220
      %v1257 = vsel %vm1247, %v1220, %v1222
      %v1258 = vsel %vm1247, %v1224, %v1226
      %v1259 = vsel %vm1247, %v1226, %v1228
      %v1260 = vsel %vm1247, %v1230, %v1232
      %v1261 = vsel %vm1247, %v1232, %v1234
      %v1262 = vsel %vm1247, %v1236, %v1238
      %v1263 = vsel %vm1247, %v1238, %v1240
      %v1264 = vsel %vm1247, %v1242, %v1244
      %v1265 = vsel %vm1247, %v1244, %v1246
      %1284 = vrot.lane.b32.xlu0 %v494, 64
      %v1285 = vpop.permute.xlu0 %1284
      %1286 = vrot.lane.b32.xlu0 %v495, 64
      %v1287 = vpop.permute.xlu0 %1286
      %1288 = vrot.lane.b32.xlu0 %v496, 64
      %v1289 = vpop.permute.xlu0 %1288
      %1290 = vrot.lane.b32.xlu0 %v516, 64
      %v1291 = vpop.permute.xlu0 %1290
      %1292 = vrot.lane.b32.xlu0 %v517, 64
      %v1293 = vpop.permute.xlu0 %1292
      %1294 = vrot.lane.b32.xlu0 %v518, 64
      %v1295 = vpop.permute.xlu0 %1294
      %1296 = vrot.lane.b32.xlu0 %v644, 64
      %v1297 = vpop.permute.xlu0 %1296
      %1298 = vrot.lane.b32.xlu0 %v645, 64
      %v1299 = vpop.permute.xlu0 %1298
      %1300 = vrot.lane.b32.xlu0 %v646, 64
      %v1301 = vpop.permute.xlu0 %1300
      %1302 = vrot.lane.b32.xlu0 %v558, 64
      %v1303 = vpop.permute.xlu0 %1302
      %1304 = vrot.lane.b32.xlu0 %v559, 64
      %v1305 = vpop.permute.xlu0 %1304
      %1306 = vrot.lane.b32.xlu0 %v560, 64
      %v1307 = vpop.permute.xlu0 %1306
      %1308 = vrot.lane.b32.xlu0 %v579, 64
      %v1309 = vpop.permute.xlu0 %1308
      %1310 = vrot.lane.b32.xlu0 %v580, 64
      %v1311 = vpop.permute.xlu0 %1310
      %1312 = vrot.lane.b32.xlu0 %v581, 64
      %v1313 = vpop.permute.xlu0 %1312
      %1314 = vrot.lane.b32.xlu0 %v681, 64
      %v1315 = vpop.permute.xlu0 %1314
      %1316 = vrot.lane.b32.xlu0 %v682, 64
      %v1317 = vpop.permute.xlu0 %1316
      %1318 = vrot.lane.b32.xlu0 %v683, 64
      %v1319 = vpop.permute.xlu0 %1318
      %1320 = vrot.lane.b32.xlu0 %v766, 64
      %v1321 = vpop.permute.xlu0 %1320
      %1322 = vrot.lane.b32.xlu0 %v767, 64
      %v1323 = vpop.permute.xlu0 %1322
      %1324 = vrot.lane.b32.xlu0 %v768, 64
      %v1325 = vpop.permute.xlu0 %1324
      %1326 = vrot.lane.b32.xlu0 %v787, 64
      %v1327 = vpop.permute.xlu0 %1326
      %1328 = vrot.lane.b32.xlu0 %v788, 64
      %v1329 = vpop.permute.xlu0 %1328
      %1330 = vrot.lane.b32.xlu0 %v789, 64
      %v1331 = vpop.permute.xlu0 %1330
      %1332 = vrot.lane.b32.xlu0 %v813, 64
      %v1333 = vpop.permute.xlu0 %1332
      %1334 = vrot.lane.b32.xlu0 %v814, 64
      %v1335 = vpop.permute.xlu0 %1334
      %1336 = vrot.lane.b32.xlu0 %v815, 64
      %v1337 = vpop.permute.xlu0 %1336
      %vm1338 = vcmask 523264
      %v1339 = vsel %vm1338, %v1285, %v1287
      %v1340 = vsel %vm1338, %v1287, %v1289
      %v1341 = vsel %vm1338, %v1291, %v1293
      %v1342 = vsel %vm1338, %v1293, %v1295
      %v1343 = vsel %vm1338, %v1297, %v1299
      %v1344 = vsel %vm1338, %v1299, %v1301
      %v1345 = vsel %vm1338, %v1303, %v1305
      %v1346 = vsel %vm1338, %v1305, %v1307
      %v1347 = vsel %vm1338, %v1309, %v1311
      %v1348 = vsel %vm1338, %v1311, %v1313
      %v1349 = vsel %vm1338, %v1315, %v1317
      %v1350 = vsel %vm1338, %v1317, %v1319
      %v1351 = vsel %vm1338, %v1321, %v1323
      %v1352 = vsel %vm1338, %v1323, %v1325
      %v1353 = vsel %vm1338, %v1327, %v1329
      %v1354 = vsel %vm1338, %v1329, %v1331
      %v1355 = vsel %vm1338, %v1333, %v1335
      %v1356 = vsel %vm1338, %v1335, %v1337
      %1375 = vrot.lane.b32.xlu0 %v826, 80
      %v1376 = vpop.permute.xlu0 %1375
      %1377 = vrot.lane.b32.xlu0 %v827, 80
      %v1378 = vpop.permute.xlu0 %1377
      %1379 = vrot.lane.b32.xlu0 %v828, 80
      %v1380 = vpop.permute.xlu0 %1379
      %1381 = vrot.lane.b32.xlu0 %v848, 80
      %v1382 = vpop.permute.xlu0 %1381
      %1383 = vrot.lane.b32.xlu0 %v849, 80
      %v1384 = vpop.permute.xlu0 %1383
      %1385 = vrot.lane.b32.xlu0 %v847, 80
      %v1386 = vpop.permute.xlu0 %1385
      %1387 = vrot.lane.b32.xlu0 %v869, 80
      %v1388 = vpop.permute.xlu0 %1387
      %1389 = vrot.lane.b32.xlu0 %v870, 80
      %v1390 = vpop.permute.xlu0 %1389
      %1391 = vrot.lane.b32.xlu0 %v868, 80
      %v1392 = vpop.permute.xlu0 %1391
      %v1393 = vsel %vm1156, %v1376, %v1378
      %v1394 = vsel %vm1156, %v1378, %v1380
      %v1395 = vsel %vm1156, %v1382, %v1384
      %v1396 = vsel %vm1156, %v1384, %v1386
      %v1397 = vsel %vm1156, %v1388, %v1390
      %v1398 = vsel %vm1156, %v1390, %v1392
      %1405 = vrot.lane.b32.xlu0 %v913, 80
      %v1406 = vpop.permute.xlu0 %1405
      %1407 = vrot.lane.b32.xlu0 %v914, 80
      %v1408 = vpop.permute.xlu0 %1407
      %1409 = vrot.lane.b32.xlu0 %v912, 80
      %v1410 = vpop.permute.xlu0 %1409
      %1411 = vrot.lane.b32.xlu0 %v934, 80
      %v1412 = vpop.permute.xlu0 %1411
      %1413 = vrot.lane.b32.xlu0 %v935, 80
      %v1414 = vpop.permute.xlu0 %1413
      %1415 = vrot.lane.b32.xlu0 %v933, 80
      %v1416 = vpop.permute.xlu0 %1415
      %1417 = vrot.lane.b32.xlu0 %v955, 80
      %v1418 = vpop.permute.xlu0 %1417
      %1419 = vrot.lane.b32.xlu0 %v956, 80
      %v1420 = vpop.permute.xlu0 %1419
      %1421 = vrot.lane.b32.xlu0 %v954, 80
      %v1422 = vpop.permute.xlu0 %1421
      %v1423 = vsel %vm1156, %v1406, %v1408
      %v1424 = vsel %vm1156, %v1408, %v1410
      %v1425 = vsel %vm1156, %v1412, %v1414
      %v1426 = vsel %vm1156, %v1414, %v1416
      %v1427 = vsel %vm1156, %v1418, %v1420
      %v1428 = vsel %vm1156, %v1420, %v1422
      %1435 = vrot.lane.b32.xlu0 %v839, 64
      %v1436 = vpop.permute.xlu0 %1435
      %1437 = vrot.lane.b32.xlu0 %v840, 64
      %v1438 = vpop.permute.xlu0 %1437
      %1439 = vrot.lane.b32.xlu0 %v841, 64
      %v1440 = vpop.permute.xlu0 %1439
      %1441 = vrot.lane.b32.xlu0 %v860, 64
      %v1442 = vpop.permute.xlu0 %1441
      %1443 = vrot.lane.b32.xlu0 %v861, 64
      %v1444 = vpop.permute.xlu0 %1443
      %1445 = vrot.lane.b32.xlu0 %v862, 64
      %v1446 = vpop.permute.xlu0 %1445
      %1447 = vrot.lane.b32.xlu0 %v967, 64
      %v1448 = vpop.permute.xlu0 %1447
      %1449 = vrot.lane.b32.xlu0 %v968, 64
      %v1450 = vpop.permute.xlu0 %1449
      %1451 = vrot.lane.b32.xlu0 %v969, 64
      %v1452 = vpop.permute.xlu0 %1451
      %v1453 = vsel %vm1338, %v1436, %v1438
      %v1454 = vsel %vm1338, %v1438, %v1440
      %v1455 = vsel %vm1338, %v1442, %v1444
      %v1456 = vsel %vm1338, %v1444, %v1446
      %v1457 = vsel %vm1338, %v1448, %v1450
      %v1458 = vsel %vm1338, %v1450, %v1452
      %1465 = vrot.lane.b32.xlu0 %v980, 64
      %v1466 = vpop.permute.xlu0 %1465
      %1467 = vrot.lane.b32.xlu0 %v981, 64
      %v1468 = vpop.permute.xlu0 %1467
      %1469 = vrot.lane.b32.xlu0 %v979, 64
      %v1470 = vpop.permute.xlu0 %1469
      %1471 = vrot.lane.b32.xlu0 %v988, 64
      %v1472 = vpop.permute.xlu0 %1471
      %1473 = vrot.lane.b32.xlu0 %v989, 64
      %v1474 = vpop.permute.xlu0 %1473
      %1475 = vrot.lane.b32.xlu0 %v987, 64
      %v1476 = vpop.permute.xlu0 %1475
      %1477 = vrot.lane.b32.xlu0 %v1009, 64
      %v1478 = vpop.permute.xlu0 %1477
      %1479 = vrot.lane.b32.xlu0 %v1010, 64
      %v1480 = vpop.permute.xlu0 %1479
      %1481 = vrot.lane.b32.xlu0 %v1008, 64
      %v1482 = vpop.permute.xlu0 %1481
      %v1483 = vsel %vm1338, %v1466, %v1468
      %v1484 = vsel %vm1338, %v1468, %v1470
      %v1485 = vsel %vm1338, %v1472, %v1474
      %v1486 = vsel %vm1338, %v1474, %v1476
      %v1487 = vsel %vm1338, %v1478, %v1480
      %v1488 = vsel %vm1338, %v1480, %v1482
      %1495 = vrot.lane.b32.xlu0 %v416, 65
      %v1496 = vpop.permute.xlu0 %1495
      %1497 = vrot.lane.b32.xlu0 %v417, 65
      %v1498 = vpop.permute.xlu0 %1497
      %1499 = vrot.lane.b32.xlu0 %v418, 65
      %v1500 = vpop.permute.xlu0 %1499
      %1501 = vrot.lane.b32.xlu0 %v439, 65
      %v1502 = vpop.permute.xlu0 %1501
      %1503 = vrot.lane.b32.xlu0 %v440, 65
      %v1504 = vpop.permute.xlu0 %1503
      %1505 = vrot.lane.b32.xlu0 %v437, 65
      %v1506 = vpop.permute.xlu0 %1505
      %1507 = vrot.lane.b32.xlu0 %v460, 65
      %v1508 = vpop.permute.xlu0 %1507
      %1509 = vrot.lane.b32.xlu0 %v461, 65
      %v1510 = vpop.permute.xlu0 %1509
      %1511 = vrot.lane.b32.xlu0 %v459, 65
      %v1512 = vpop.permute.xlu0 %1511
      %v1513 = vsel %vm1247, %v1496, %v1498
      %v1514 = vsel %vm1247, %v1498, %v1500
      %v1515 = vsel %vm1247, %v1502, %v1504
      %v1516 = vsel %vm1247, %v1504, %v1506
      %v1517 = vsel %vm1247, %v1508, %v1510
      %v1518 = vsel %vm1247, %v1510, %v1512
      %1525 = vrot.lane.b32.xlu0 %v429, 64
      %v1526 = vpop.permute.xlu0 %1525
      %1527 = vrot.lane.b32.xlu0 %v430, 64
      %v1528 = vpop.permute.xlu0 %1527
      %1529 = vrot.lane.b32.xlu0 %v431, 64
      %v1530 = vpop.permute.xlu0 %1529
      %1531 = vrot.lane.b32.xlu0 %v451, 64
      %v1532 = vpop.permute.xlu0 %1531
      %1533 = vrot.lane.b32.xlu0 %v452, 64
      %v1534 = vpop.permute.xlu0 %1533
      %1535 = vrot.lane.b32.xlu0 %v453, 64
      %v1536 = vpop.permute.xlu0 %1535
      %1537 = vrot.lane.b32.xlu0 %v615, 64
      %v1538 = vpop.permute.xlu0 %1537
      %1539 = vrot.lane.b32.xlu0 %v616, 64
      %v1540 = vpop.permute.xlu0 %1539
      %1541 = vrot.lane.b32.xlu0 %v617, 64
      %v1542 = vpop.permute.xlu0 %1541
      %v1543 = vsel %vm1338, %v1526, %v1528
      %v1544 = vsel %vm1338, %v1528, %v1530
      %v1545 = vsel %vm1338, %v1532, %v1534
      %v1546 = vsel %vm1338, %v1534, %v1536
      %v1547 = vsel %vm1338, %v1538, %v1540
      %v1548 = vsel %vm1338, %v1540, %v1542
      %1555 = vrot.lane.b32.xlu0 %v482, 65
      %v1556 = vpop.permute.xlu0 %1555
      %1557 = vrot.lane.b32.xlu0 %v483, 65
      %v1558 = vpop.permute.xlu0 %1557
      %1559 = vrot.lane.b32.xlu0 %v480, 65
      %v1560 = vpop.permute.xlu0 %1559
      %1561 = vrot.lane.b32.xlu0 %v504, 65
      %v1562 = vpop.permute.xlu0 %1561
      %1563 = vrot.lane.b32.xlu0 %v505, 65
      %v1564 = vpop.permute.xlu0 %1563
      %1565 = vrot.lane.b32.xlu0 %v502, 65
      %v1566 = vpop.permute.xlu0 %1565
      %1567 = vrot.lane.b32.xlu0 %v525, 65
      %v1568 = vpop.permute.xlu0 %1567
      %1569 = vrot.lane.b32.xlu0 %v526, 65
      %v1570 = vpop.permute.xlu0 %1569
      %1571 = vrot.lane.b32.xlu0 %v524, 65
      %v1572 = vpop.permute.xlu0 %1571
      %v1573 = vsel %vm1247, %v1556, %v1558
      %v1574 = vsel %vm1247, %v1558, %v1560
      %v1575 = vsel %vm1247, %v1562, %v1564
      %v1576 = vsel %vm1247, %v1564, %v1566
      %v1577 = vsel %vm1247, %v1568, %v1570
      %v1578 = vsel %vm1247, %v1570, %v1572
      %1585 = vrot.lane.b32.xlu0 %v624, 64
      %v1586 = vpop.permute.xlu0 %1585
      %1587 = vrot.lane.b32.xlu0 %v625, 64
      %v1588 = vpop.permute.xlu0 %1587
      %1589 = vrot.lane.b32.xlu0 %v623, 64
      %v1590 = vpop.permute.xlu0 %1589
      %1591 = vrot.lane.b32.xlu0 %v632, 64
      %v1592 = vpop.permute.xlu0 %1591
      %1593 = vrot.lane.b32.xlu0 %v633, 64
      %v1594 = vpop.permute.xlu0 %1593
      %1595 = vrot.lane.b32.xlu0 %v631, 64
      %v1596 = vpop.permute.xlu0 %1595
      %1597 = vrot.lane.b32.xlu0 %v653, 64
      %v1598 = vpop.permute.xlu0 %1597
      %1599 = vrot.lane.b32.xlu0 %v654, 64
      %v1600 = vpop.permute.xlu0 %1599
      %1601 = vrot.lane.b32.xlu0 %v652, 64
      %v1602 = vpop.permute.xlu0 %1601
      %v1603 = vsel %vm1338, %v1586, %v1588
      %v1604 = vsel %vm1338, %v1588, %v1590
      %v1605 = vsel %vm1338, %v1592, %v1594
      %v1606 = vsel %vm1338, %v1594, %v1596
      %v1607 = vsel %vm1338, %v1598, %v1600
      %v1608 = vsel %vm1338, %v1600, %v1602
      %1615 = vrot.lane.b32.xlu0 %v826, 64
      %v1616 = vpop.permute.xlu0 %1615
      %1617 = vrot.lane.b32.xlu0 %v827, 64
      %v1618 = vpop.permute.xlu0 %1617
      %1619 = vrot.lane.b32.xlu0 %v828, 64
      %v1620 = vpop.permute.xlu0 %1619
      %v1621 = vsel %vm1338, %v1616, %v1618
      %v1622 = vsel %vm1338, %v1618, %v1620
      %1625 = vrot.lane.b32.xlu0 %v913, 64
      %v1626 = vpop.permute.xlu0 %1625
      %1627 = vrot.lane.b32.xlu0 %v914, 64
      %v1628 = vpop.permute.xlu0 %1627
      %1629 = vrot.lane.b32.xlu0 %v912, 64
      %v1630 = vpop.permute.xlu0 %1629
      %v1631 = vsel %vm1338, %v1626, %v1628
      %v1632 = vsel %vm1338, %v1628, %v1630
      %1635 = vrot.lane.b32.xlu0 %v848, 64
      %v1636 = vpop.permute.xlu0 %1635
      %1637 = vrot.lane.b32.xlu0 %v849, 64
      %v1638 = vpop.permute.xlu0 %1637
      %1639 = vrot.lane.b32.xlu0 %v847, 64
      %v1640 = vpop.permute.xlu0 %1639
      %v1641 = vsel %vm1338, %v1636, %v1638
      %v1642 = vsel %vm1338, %v1638, %v1640
      %1645 = vrot.lane.b32.xlu0 %v934, 64
      %v1646 = vpop.permute.xlu0 %1645
      %1647 = vrot.lane.b32.xlu0 %v935, 64
      %v1648 = vpop.permute.xlu0 %1647
      %1649 = vrot.lane.b32.xlu0 %v933, 64
      %v1650 = vpop.permute.xlu0 %1649
      %v1651 = vsel %vm1338, %v1646, %v1648
      %v1652 = vsel %vm1338, %v1648, %v1650
      %v1655 = vld [vmem:[%s1] sm:$0xff]
      %v1656 = vld [vmem:[%s1 + $0x8] sm:$0xff]
      %v1659 = vunpack.c.l.b16 %v1655
      %v1660 = vunpack.c.h.b16 %v1655
      %v1661 = vunpack.c.l.b16 %v1656
      %v1662 = vunpack.c.h.b16 %v1656
      %v1663 = vpack.c.b16 %v1661, %v1659
      %v1664 = vpack.c.b16 %v1662, %v1660
      %vm1666 = vcmask 130048
      %v1668 = vsel %vm1666, %v1664, 0
      %1670 = vmatprep.subr.bf16.mxu0 %v1067
      %1671 = vmatpush1.bf16.msra.mxu0 %v1066
      %1672 = vmatprep.subr.bf16.mxu0 %v1069
      %1673 = vmatpush1.bf16.msra.mxu0 %v1068
      %1674 = vmatprep.subr.bf16.mxu0 %v1071
      %1675 = vmatpush1.bf16.msra.mxu0 %v1070
      %1676 = vmatprep.subr.bf16.mxu0 %v1073
      %1677 = vmatpush1.bf16.msra.mxu0 %v1072
      %1678 = vmatprep.subr.bf16.mxu0 %v1075
      %1679 = vmatpush1.bf16.msra.mxu0 %v1074
      %1680 = vmatprep.subr.bf16.mxu0 %v1077
      %1681 = vmatpush1.bf16.msra.mxu0 %v1076
      %1682 = vmatprep.subr.bf16.mxu0 %v1079
      %1683 = vmatpush1.bf16.msra.mxu0 %v1078
      %1684 = vmatprep.subr.bf16.mxu0 %v1081
      %1685 = vmatpush1.bf16.msra.mxu0 %v1080
      %1686 = vmatprep.subr.bf16.mxu0 %v1083
      %1687 = vmatpush1.bf16.msra.mxu0 %v1082
      %1688 = vmatprep.subr.bf16.mxu0 0
      %1689 = vmatpush1.bf16.msra.mxu0 0
      %1690 = vmatprep.subr.bf16.mxu0 0
      %1691 = vmatpush1.bf16.msra.mxu0 0
      %1692 = vmatprep.subr.bf16.mxu0 0
      %1693 = vmatpush1.bf16.msra.mxu0 0
      %1694 = vmatprep.subr.bf16.mxu0 0
      %1695 = vmatpush1.bf16.msra.mxu0 0
      %1696 = vmatprep.subr.bf16.mxu0 0
      %1697 = vmatpush1.bf16.msra.mxu0 0
      %1698 = vmatprep.subr.bf16.mxu0 0
      %1699 = vmatpush1.bf16.msra.mxu0 0
      %1700 = vmatprep.subr.bf16.mxu0 0
      %1701 = vmatpush1.bf16.msra.mxu0 0
      %1702 = vmatprep.mubr.bf16.mxu0 %v1668
      %1703 = vmatmul.mubr.bf16.gmra.mrb[0].mxu0 %v1663
      %v1704 = vpop.f32.mrb[0].mxu0
      %v1705 = vadd.f32 0.0, %v1704
      %v1706 = vpop.f32.mrb[0].mxu0
      %v1707 = vadd.f32 0.0, %v1706
      %v1708 = vpop.f32.mrb[0].mxu0
      %v1709 = vadd.f32 0.0, %v1708
      %v1710 = vpop.f32.mrb[0].mxu0
      %v1711 = vadd.f32 0.0, %v1710
      %1712 = vdwg.mxu0
      %1713 = vmatprep.subr.bf16.mxu0 %v1158
      %1714 = vmatpush1.bf16.msra.mxu0 %v1157
      %1715 = vmatprep.subr.bf16.mxu0 %v1160
      %1716 = vmatpush1.bf16.msra.mxu0 %v1159
      %1717 = vmatprep.subr.bf16.mxu0 %v1162
      %1718 = vmatpush1.bf16.msra.mxu0 %v1161
      %1719 = vmatprep.subr.bf16.mxu0 %v1164
      %1720 = vmatpush1.bf16.msra.mxu0 %v1163
      %1721 = vmatprep.subr.bf16.mxu0 %v1166
      %1722 = vmatpush1.bf16.msra.mxu0 %v1165
      %1723 = vmatprep.subr.bf16.mxu0 %v1168
      %1724 = vmatpush1.bf16.msra.mxu0 %v1167
      %1725 = vmatprep.subr.bf16.mxu0 %v1170
      %1726 = vmatpush1.bf16.msra.mxu0 %v1169
      %1727 = vmatprep.subr.bf16.mxu0 %v1172
      %1728 = vmatpush1.bf16.msra.mxu0 %v1171
      %1729 = vmatprep.subr.bf16.mxu0 %v1174
      %1730 = vmatpush1.bf16.msra.mxu0 %v1173
      %1731 = vmatprep.subr.bf16.mxu0 0
      %1732 = vmatpush1.bf16.msra.mxu0 0
      %1733 = vmatprep.subr.bf16.mxu0 0
      %1734 = vmatpush1.bf16.msra.mxu0 0
      %1735 = vmatprep.subr.bf16.mxu0 0
      %1736 = vmatpush1.bf16.msra.mxu0 0
      %1737 = vmatprep.subr.bf16.mxu0 0
      %1738 = vmatpush1.bf16.msra.mxu0 0
      %1739 = vmatprep.subr.bf16.mxu0 0
      %1740 = vmatpush1.bf16.msra.mxu0 0
      %1741 = vmatprep.subr.bf16.mxu0 0
      %1742 = vmatpush1.bf16.msra.mxu0 0
      %1743 = vmatprep.subr.bf16.mxu0 0
      %1744 = vmatpush1.bf16.msra.mxu0 0
      %1745 = vmatprep.mubr.bf16.mxu0 %v1668
      %1746 = vmatmul.mubr.bf16.gmra.mrb[0].mxu0 %v1663
      %v1747 = vpop.f32.mrb[0].mxu0
      %v1748 = vadd.f32 0.0, %v1747
      %v1749 = vpop.f32.mrb[0].mxu0
      %v1750 = vadd.f32 0.0, %v1749
      %v1751 = vpop.f32.mrb[0].mxu0
      %v1752 = vadd.f32 0.0, %v1751
      %v1753 = vpop.f32.mrb[0].mxu0
      %v1754 = vadd.f32 0.0, %v1753
      %1755 = vdwg.mxu0
      %1756 = vmatprep.subr.bf16.mxu0 %v1249
      %1757 = vmatpush1.bf16.msra.mxu0 %v1248
      %1758 = vmatprep.subr.bf16.mxu0 %v1251
      %1759 = vmatpush1.bf16.msra.mxu0 %v1250
      %1760 = vmatprep.subr.bf16.mxu0 %v1253
      %1761 = vmatpush1.bf16.msra.mxu0 %v1252
      %1762 = vmatprep.subr.bf16.mxu0 %v1255
      %1763 = vmatpush1.bf16.msra.mxu0 %v1254
      %1764 = vmatprep.subr.bf16.mxu0 %v1257
      %1765 = vmatpush1.bf16.msra.mxu0 %v1256
      %1766 = vmatprep.subr.bf16.mxu0 %v1259
      %1767 = vmatpush1.bf16.msra.mxu0 %v1258
      %1768 = vmatprep.subr.bf16.mxu0 %v1261
      %1769 = vmatpush1.bf16.msra.mxu0 %v1260
      %1770 = vmatprep.subr.bf16.mxu0 %v1263
      %1771 = vmatpush1.bf16.msra.mxu0 %v1262
      %1772 = vmatprep.subr.bf16.mxu0 %v1265
      %1773 = vmatpush1.bf16.msra.mxu0 %v1264
      %1774 = vmatprep.subr.bf16.mxu0 0
      %1775 = vmatpush1.bf16.msra.mxu0 0
      %1776 = vmatprep.subr.bf16.mxu0 0
      %1777 = vmatpush1.bf16.msra.mxu0 0
      %1778 = vmatprep.subr.bf16.mxu0 0
      %1779 = vmatpush1.bf16.msra.mxu0 0
      %1780 = vmatprep.subr.bf16.mxu0 0
      %1781 = vmatpush1.bf16.msra.mxu0 0
      %1782 = vmatprep.subr.bf16.mxu0 0
      %1783 = vmatpush1.bf16.msra.mxu0 0
      %1784 = vmatprep.subr.bf16.mxu0 0
      %1785 = vmatpush1.bf16.msra.mxu0 0
      %1786 = vmatprep.subr.bf16.mxu0 0
      %1787 = vmatpush1.bf16.msra.mxu0 0
      %1788 = vmatprep.mubr.bf16.mxu0 %v1668
      %1789 = vmatmul.mubr.bf16.gmra.mrb[0].mxu0 %v1663
      %v1790 = vpop.f32.mrb[0].mxu0
      %v1791 = vadd.f32 0.0, %v1790
      %v1792 = vpop.f32.mrb[0].mxu0
      %v1793 = vadd.f32 0.0, %v1792
      %v1794 = vpop.f32.mrb[0].mxu0
      %v1795 = vadd.f32 0.0, %v1794
      %v1796 = vpop.f32.mrb[0].mxu0
      %v1797 = vadd.f32 0.0, %v1796
      %1798 = vdwg.mxu0
      %1799 = vmatprep.subr.bf16.mxu0 %v1340
      %1800 = vmatpush1.bf16.msra.mxu0 %v1339
      %1801 = vmatprep.subr.bf16.mxu0 %v1342
      %1802 = vmatpush1.bf16.msra.mxu0 %v1341
      %1803 = vmatprep.subr.bf16.mxu0 %v1344
      %1804 = vmatpush1.bf16.msra.mxu0 %v1343
      %1805 = vmatprep.subr.bf16.mxu0 %v1346
      %1806 = vmatpush1.bf16.msra.mxu0 %v1345
      %1807 = vmatprep.subr.bf16.mxu0 %v1348
      %1808 = vmatpush1.bf16.msra.mxu0 %v1347
      %1809 = vmatprep.subr.bf16.mxu0 %v1350
      %1810 = vmatpush1.bf16.msra.mxu0 %v1349
      %1811 = vmatprep.subr.bf16.mxu0 %v1352
      %1812 = vmatpush1.bf16.msra.mxu0 %v1351
      %1813 = vmatprep.subr.bf16.mxu0 %v1354
      %1814 = vmatpush1.bf16.msra.mxu0 %v1353
      %1815 = vmatprep.subr.bf16.mxu0 %v1356
      %1816 = vmatpush1.bf16.msra.mxu0 %v1355
      %1817 = vmatprep.subr.bf16.mxu0 0
      %1818 = vmatpush1.bf16.msra.mxu0 0
      %1819 = vmatprep.subr.bf16.mxu0 0
      %1820 = vmatpush1.bf16.msra.mxu0 0
      %1821 = vmatprep.subr.bf16.mxu0 0
      %1822 = vmatpush1.bf16.msra.mxu0 0
      %1823 = vmatprep.subr.bf16.mxu0 0
      %1824 = vmatpush1.bf16.msra.mxu0 0
      %1825 = vmatprep.subr.bf16.mxu0 0
      %1826 = vmatpush1.bf16.msra.mxu0 0
      %1827 = vmatprep.subr.bf16.mxu0 0
      %1828 = vmatpush1.bf16.msra.mxu0 0
      %1829 = vmatprep.subr.bf16.mxu0 0
      %1830 = vmatpush1.bf16.msra.mxu0 0
      %1831 = vmatprep.mubr.bf16.mxu0 %v1668
      %1832 = vmatmul.mubr.bf16.gmra.mrb[0].mxu0 %v1663
      %v1833 = vpop.f32.mrb[0].mxu0
      %v1834 = vadd.f32 0.0, %v1833
      %v1835 = vpop.f32.mrb[0].mxu0
      %v1836 = vadd.f32 0.0, %v1835
      %v1837 = vpop.f32.mrb[0].mxu0
      %v1838 = vadd.f32 0.0, %v1837
      %v1839 = vpop.f32.mrb[0].mxu0
      %v1840 = vadd.f32 0.0, %v1839
      %1841 = vdwg.mxu0
      %1842 = vmatprep.subr.bf16.mxu0 %v1160
      %1843 = vmatpush1.bf16.msra.mxu0 %v1159
      %1844 = vmatprep.subr.bf16.mxu0 %v1162
      %1845 = vmatpush1.bf16.msra.mxu0 %v1161
      %1846 = vmatprep.subr.bf16.mxu0 %v1394
      %1847 = vmatpush1.bf16.msra.mxu0 %v1393
      %1848 = vmatprep.subr.bf16.mxu0 %v1166
      %1849 = vmatpush1.bf16.msra.mxu0 %v1165
      %1850 = vmatprep.subr.bf16.mxu0 %v1168
      %1851 = vmatpush1.bf16.msra.mxu0 %v1167
      %1852 = vmatprep.subr.bf16.mxu0 %v1396
      %1853 = vmatpush1.bf16.msra.mxu0 %v1395
      %1854 = vmatprep.subr.bf16.mxu0 %v1172
      %1855 = vmatpush1.bf16.msra.mxu0 %v1171
      %1856 = vmatprep.subr.bf16.mxu0 %v1174
      %1857 = vmatpush1.bf16.msra.mxu0 %v1173
      %1858 = vmatprep.subr.bf16.mxu0 %v1398
      %1859 = vmatpush1.bf16.msra.mxu0 %v1397
      %1860 = vmatprep.subr.bf16.mxu0 0
      %1861 = vmatpush1.bf16.msra.mxu0 0
      %1862 = vmatprep.subr.bf16.mxu0 0
      %1863 = vmatpush1.bf16.msra.mxu0 0
      %1864 = vmatprep.subr.bf16.mxu0 0
      %1865 = vmatpush1.bf16.msra.mxu0 0
      %1866 = vmatprep.subr.bf16.mxu0 0
      %1867 = vmatpush1.bf16.msra.mxu0 0
      %1868 = vmatprep.subr.bf16.mxu0 0
      %1869 = vmatpush1.bf16.msra.mxu0 0
      %1870 = vmatprep.subr.bf16.mxu0 0
      %1871 = vmatpush1.bf16.msra.mxu0 0
      %1872 = vmatprep.subr.bf16.mxu0 0
      %1873 = vmatpush1.bf16.msra.mxu0 0
      %1874 = vmatprep.mubr.bf16.mxu0 %v1668
      %1875 = vmatmul.mubr.bf16.gmra.mrb[0].mxu0 %v1663
      %v1876 = vpop.f32.mrb[0].mxu0
      %v1877 = vadd.f32 0.0, %v1876
      %v1878 = vpop.f32.mrb[0].mxu0
      %v1879 = vadd.f32 0.0, %v1878
      %v1880 = vpop.f32.mrb[0].mxu0
      %v1881 = vadd.f32 0.0, %v1880
      %v1882 = vpop.f32.mrb[0].mxu0
      %v1883 = vadd.f32 0.0, %v1882
      %1884 = vdwg.mxu0
      %1885 = vmatprep.subr.bf16.mxu0 %v1162
      %1886 = vmatpush1.bf16.msra.mxu0 %v1161
      %1887 = vmatprep.subr.bf16.mxu0 %v1394
      %1888 = vmatpush1.bf16.msra.mxu0 %v1393
      %1889 = vmatprep.subr.bf16.mxu0 %v1424
      %1890 = vmatpush1.bf16.msra.mxu0 %v1423
      %1891 = vmatprep.subr.bf16.mxu0 %v1168
      %1892 = vmatpush1.bf16.msra.mxu0 %v1167
      %1893 = vmatprep.subr.bf16.mxu0 %v1396
      %1894 = vmatpush1.bf16.msra.mxu0 %v1395
      %1895 = vmatprep.subr.bf16.mxu0 %v1426
      %1896 = vmatpush1.bf16.msra.mxu0 %v1425
      %1897 = vmatprep.subr.bf16.mxu0 %v1174
      %1898 = vmatpush1.bf16.msra.mxu0 %v1173
      %1899 = vmatprep.subr.bf16.mxu0 %v1398
      %1900 = vmatpush1.bf16.msra.mxu0 %v1397
      %1901 = vmatprep.subr.bf16.mxu0 %v1428
      %1902 = vmatpush1.bf16.msra.mxu0 %v1427
      %1903 = vmatprep.subr.bf16.mxu0 0
      %1904 = vmatpush1.bf16.msra.mxu0 0
      %1905 = vmatprep.subr.bf16.mxu0 0
      %1906 = vmatpush1.bf16.msra.mxu0 0
      %1907 = vmatprep.subr.bf16.mxu0 0
      %1908 = vmatpush1.bf16.msra.mxu0 0
      %1909 = vmatprep.subr.bf16.mxu0 0
      %1910 = vmatpush1.bf16.msra.mxu0 0
      %1911 = vmatprep.subr.bf16.mxu0 0
      %1912 = vmatpush1.bf16.msra.mxu0 0
      %1913 = vmatprep.subr.bf16.mxu0 0
      %1914 = vmatpush1.bf16.msra.mxu0 0
      %1915 = vmatprep.subr.bf16.mxu0 0
      %1916 = vmatpush1.bf16.msra.mxu0 0
      %1917 = vmatprep.mubr.bf16.mxu0 %v1668
      %1918 = vmatmul.mubr.bf16.gmra.mrb[0].mxu0 %v1663
      %v1919 = vpop.f32.mrb[0].mxu0
      %v1920 = vadd.f32 0.0, %v1919
      %v1921 = vpop.f32.mrb[0].mxu0
      %v1922 = vadd.f32 0.0, %v1921
      %v1923 = vpop.f32.mrb[0].mxu0
      %v1924 = vadd.f32 0.0, %v1923
      %v1925 = vpop.f32.mrb[0].mxu0
      %v1926 = vadd.f32 0.0, %v1925
      %1927 = vdwg.mxu0
      %1928 = vmatprep.subr.bf16.mxu0 %v1342
      %1929 = vmatpush1.bf16.msra.mxu0 %v1341
      %1930 = vmatprep.subr.bf16.mxu0 %v1344
      %1931 = vmatpush1.bf16.msra.mxu0 %v1343
      %1932 = vmatprep.subr.bf16.mxu0 %v1454
      %1933 = vmatpush1.bf16.msra.mxu0 %v1453
      %1934 = vmatprep.subr.bf16.mxu0 %v1348
      %1935 = vmatpush1.bf16.msra.mxu0 %v1347
      %1936 = vmatprep.subr.bf16.mxu0 %v1350
      %1937 = vmatpush1.bf16.msra.mxu0 %v1349
      %1938 = vmatprep.subr.bf16.mxu0 %v1456
      %1939 = vmatpush1.bf16.msra.mxu0 %v1455
      %1940 = vmatprep.subr.bf16.mxu0 %v1354
      %1941 = vmatpush1.bf16.msra.mxu0 %v1353
      %1942 = vmatprep.subr.bf16.mxu0 %v1356
      %1943 = vmatpush1.bf16.msra.mxu0 %v1355
      %1944 = vmatprep.subr.bf16.mxu0 %v1458
      %1945 = vmatpush1.bf16.msra.mxu0 %v1457
      %1946 = vmatprep.subr.bf16.mxu0 0
      %1947 = vmatpush1.bf16.msra.mxu0 0
      %1948 = vmatprep.subr.bf16.mxu0 0
      %1949 = vmatpush1.bf16.msra.mxu0 0
      %1950 = vmatprep.subr.bf16.mxu0 0
      %1951 = vmatpush1.bf16.msra.mxu0 0
      %1952 = vmatprep.subr.bf16.mxu0 0
      %1953 = vmatpush1.bf16.msra.mxu0 0
      %1954 = vmatprep.subr.bf16.mxu0 0
      %1955 = vmatpush1.bf16.msra.mxu0 0
      %1956 = vmatprep.subr.bf16.mxu0 0
      %1957 = vmatpush1.bf16.msra.mxu0 0
      %1958 = vmatprep.subr.bf16.mxu0 0
      %1959 = vmatpush1.bf16.msra.mxu0 0
      %1960 = vmatprep.mubr.bf16.mxu0 %v1668
      %1961 = vmatmul.mubr.bf16.gmra.mrb[0].mxu0 %v1663
      %v1962 = vpop.f32.mrb[0].mxu0
      %v1963 = vadd.f32 0.0, %v1962
      %v1964 = vpop.f32.mrb[0].mxu0
      %v1965 = vadd.f32 0.0, %v1964
      %v1966 = vpop.f32.mrb[0].mxu0
      %v1967 = vadd.f32 0.0, %v1966
      %v1968 = vpop.f32.mrb[0].mxu0
      %v1969 = vadd.f32 0.0, %v1968
      %1970 = vdwg.mxu0
      %1971 = vmatprep.subr.bf16.mxu0 %v1344
      %1972 = vmatpush1.bf16.msra.mxu0 %v1343
      %1973 = vmatprep.subr.bf16.mxu0 %v1454
      %1974 = vmatpush1.bf16.msra.mxu0 %v1453
      %1975 = vmatprep.subr.bf16.mxu0 %v1484
      %1976 = vmatpush1.bf16.msra.mxu0 %v1483
      %1977 = vmatprep.subr.bf16.mxu0 %v1350
      %1978 = vmatpush1.bf16.msra.mxu0 %v1349
      %1979 = vmatprep.subr.bf16.mxu0 %v1456
      %1980 = vmatpush1.bf16.msra.mxu0 %v1455
      %1981 = vmatprep.subr.bf16.mxu0 %v1486
      %1982 = vmatpush1.bf16.msra.mxu0 %v1485
      %1983 = vmatprep.subr.bf16.mxu0 %v1356
      %1984 = vmatpush1.bf16.msra.mxu0 %v1355
      %1985 = vmatprep.subr.bf16.mxu0 %v1458
      %1986 = vmatpush1.bf16.msra.mxu0 %v1457
      %1987 = vmatprep.subr.bf16.mxu0 %v1488
      %1988 = vmatpush1.bf16.msra.mxu0 %v1487
      %1989 = vmatprep.subr.bf16.mxu0 0
      %1990 = vmatpush1.bf16.msra.mxu0 0
      %1991 = vmatprep.subr.bf16.mxu0 0
      %1992 = vmatpush1.bf16.msra.mxu0 0
      %1993 = vmatprep.subr.bf16.mxu0 0
      %1994 = vmatpush1.bf16.msra.mxu0 0
      %1995 = vmatprep.subr.bf16.mxu0 0
      %1996 = vmatpush1.bf16.msra.mxu0 0
      %1997 = vmatprep.subr.bf16.mxu0 0
      %1998 = vmatpush1.bf16.msra.mxu0 0
      %1999 = vmatprep.subr.bf16.mxu0 0
      %2000 = vmatpush1.bf16.msra.mxu0 0
      %2001 = vmatprep.subr.bf16.mxu0 0
      %2002 = vmatpush1.bf16.msra.mxu0 0
      %2003 = vmatprep.mubr.bf16.mxu0 %v1668
      %2004 = vmatmul.mubr.bf16.gmra.mrb[0].mxu0 %v1663
      %v2005 = vpop.f32.mrb[0].mxu0
      %v2006 = vadd.f32 0.0, %v2005
      %v2007 = vpop.f32.mrb[0].mxu0
      %v2008 = vadd.f32 0.0, %v2007
      %v2009 = vpop.f32.mrb[0].mxu0
      %v2010 = vadd.f32 0.0, %v2009
      %v2011 = vpop.f32.mrb[0].mxu0
      %v2012 = vadd.f32 0.0, %v2011
      %2013 = vdwg.mxu0
      %2014 = vmatprep.subr.bf16.mxu0 %v1255
      %2015 = vmatpush1.bf16.msra.mxu0 %v1254
      %2016 = vmatprep.subr.bf16.mxu0 %v1257
      %2017 = vmatpush1.bf16.msra.mxu0 %v1256
      %2018 = vmatprep.subr.bf16.mxu0 %v1259
      %2019 = vmatpush1.bf16.msra.mxu0 %v1258
      %2020 = vmatprep.subr.bf16.mxu0 %v1261
      %2021 = vmatpush1.bf16.msra.mxu0 %v1260
      %2022 = vmatprep.subr.bf16.mxu0 %v1263
      %2023 = vmatpush1.bf16.msra.mxu0 %v1262
      %2024 = vmatprep.subr.bf16.mxu0 %v1265
      %2025 = vmatpush1.bf16.msra.mxu0 %v1264
      %2026 = vmatprep.subr.bf16.mxu0 %v1514
      %2027 = vmatpush1.bf16.msra.mxu0 %v1513
      %2028 = vmatprep.subr.bf16.mxu0 %v1516
      %2029 = vmatpush1.bf16.msra.mxu0 %v1515
      %2030 = vmatprep.subr.bf16.mxu0 %v1518
      %2031 = vmatpush1.bf16.msra.mxu0 %v1517
      %2032 = vmatprep.subr.bf16.mxu0 0
      %2033 = vmatpush1.bf16.msra.mxu0 0
      %2034 = vmatprep.subr.bf16.mxu0 0
      %2035 = vmatpush1.bf16.msra.mxu0 0
      %2036 = vmatprep.subr.bf16.mxu0 0
      %2037 = vmatpush1.bf16.msra.mxu0 0
      %2038 = vmatprep.subr.bf16.mxu0 0
      %2039 = vmatpush1.bf16.msra.mxu0 0
      %2040 = vmatprep.subr.bf16.mxu0 0
      %2041 = vmatpush1.bf16.msra.mxu0 0
      %2042 = vmatprep.subr.bf16.mxu0 0
      %2043 = vmatpush1.bf16.msra.mxu0 0
      %2044 = vmatprep.subr.bf16.mxu0 0
      %2045 = vmatpush1.bf16.msra.mxu0 0
      %2046 = vmatprep.mubr.bf16.mxu0 %v1668
      %2047 = vmatmul.mubr.bf16.gmra.mrb[0].mxu0 %v1663
      %v2048 = vpop.f32.mrb[0].mxu0
      %v2049 = vadd.f32 0.0, %v2048
      %v2050 = vpop.f32.mrb[0].mxu0
      %v2051 = vadd.f32 0.0, %v2050
      %v2052 = vpop.f32.mrb[0].mxu0
      %v2053 = vadd.f32 0.0, %v2052
      %v2054 = vpop.f32.mrb[0].mxu0
      %v2055 = vadd.f32 0.0, %v2054
      %2056 = vdwg.mxu0
      %2057 = vmatprep.subr.bf16.mxu0 %v1346
      %2058 = vmatpush1.bf16.msra.mxu0 %v1345
      %2059 = vmatprep.subr.bf16.mxu0 %v1348
      %2060 = vmatpush1.bf16.msra.mxu0 %v1347
      %2061 = vmatprep.subr.bf16.mxu0 %v1350
      %2062 = vmatpush1.bf16.msra.mxu0 %v1349
      %2063 = vmatprep.subr.bf16.mxu0 %v1352
      %2064 = vmatpush1.bf16.msra.mxu0 %v1351
      %2065 = vmatprep.subr.bf16.mxu0 %v1354
      %2066 = vmatpush1.bf16.msra.mxu0 %v1353
      %2067 = vmatprep.subr.bf16.mxu0 %v1356
      %2068 = vmatpush1.bf16.msra.mxu0 %v1355
      %2069 = vmatprep.subr.bf16.mxu0 %v1544
      %2070 = vmatpush1.bf16.msra.mxu0 %v1543
      %2071 = vmatprep.subr.bf16.mxu0 %v1546
      %2072 = vmatpush1.bf16.msra.mxu0 %v1545
      %2073 = vmatprep.subr.bf16.mxu0 %v1548
      %2074 = vmatpush1.bf16.msra.mxu0 %v1547
      %2075 = vmatprep.subr.bf16.mxu0 0
      %2076 = vmatpush1.bf16.msra.mxu0 0
      %2077 = vmatprep.subr.bf16.mxu0 0
      %2078 = vmatpush1.bf16.msra.mxu0 0
      %2079 = vmatprep.subr.bf16.mxu0 0
      %2080 = vmatpush1.bf16.msra.mxu0 0
      %2081 = vmatprep.subr.bf16.mxu0 0
      %2082 = vmatpush1.bf16.msra.mxu0 0
      %2083 = vmatprep.subr.bf16.mxu0 0
      %2084 = vmatpush1.bf16.msra.mxu0 0
      %2085 = vmatprep.subr.bf16.mxu0 0
      %2086 = vmatpush1.bf16.msra.mxu0 0
      %2087 = vmatprep.subr.bf16.mxu0 0
      %2088 = vmatpush1.bf16.msra.mxu0 0
      %2089 = vmatprep.mubr.bf16.mxu0 %v1668
      %2090 = vmatmul.mubr.bf16.gmra.mrb[0].mxu0 %v1663
      %v2091 = vpop.f32.mrb[0].mxu0
      %v2092 = vadd.f32 0.0, %v2091
      %v2093 = vpop.f32.mrb[0].mxu0
      %v2094 = vadd.f32 0.0, %v2093
      %v2095 = vpop.f32.mrb[0].mxu0
      %v2096 = vadd.f32 0.0, %v2095
      %v2097 = vpop.f32.mrb[0].mxu0
      %v2098 = vadd.f32 0.0, %v2097
      %2099 = vdwg.mxu0
      %2100 = vmatprep.subr.bf16.mxu0 %v1261
      %2101 = vmatpush1.bf16.msra.mxu0 %v1260
      %2102 = vmatprep.subr.bf16.mxu0 %v1263
      %2103 = vmatpush1.bf16.msra.mxu0 %v1262
      %2104 = vmatprep.subr.bf16.mxu0 %v1265
      %2105 = vmatpush1.bf16.msra.mxu0 %v1264
      %2106 = vmatprep.subr.bf16.mxu0 %v1514
      %2107 = vmatpush1.bf16.msra.mxu0 %v1513
      %2108 = vmatprep.subr.bf16.mxu0 %v1516
      %2109 = vmatpush1.bf16.msra.mxu0 %v1515
      %2110 = vmatprep.subr.bf16.mxu0 %v1518
      %2111 = vmatpush1.bf16.msra.mxu0 %v1517
      %2112 = vmatprep.subr.bf16.mxu0 %v1574
      %2113 = vmatpush1.bf16.msra.mxu0 %v1573
      %2114 = vmatprep.subr.bf16.mxu0 %v1576
      %2115 = vmatpush1.bf16.msra.mxu0 %v1575
      %2116 = vmatprep.subr.bf16.mxu0 %v1578
      %2117 = vmatpush1.bf16.msra.mxu0 %v1577
      %2118 = vmatprep.subr.bf16.mxu0 0
      %2119 = vmatpush1.bf16.msra.mxu0 0
      %2120 = vmatprep.subr.bf16.mxu0 0
      %2121 = vmatpush1.bf16.msra.mxu0 0
      %2122 = vmatprep.subr.bf16.mxu0 0
      %2123 = vmatpush1.bf16.msra.mxu0 0
      %2124 = vmatprep.subr.bf16.mxu0 0
      %2125 = vmatpush1.bf16.msra.mxu0 0
      %2126 = vmatprep.subr.bf16.mxu0 0
      %2127 = vmatpush1.bf16.msra.mxu0 0
      %2128 = vmatprep.subr.bf16.mxu0 0
      %2129 = vmatpush1.bf16.msra.mxu0 0
      %2130 = vmatprep.subr.bf16.mxu0 0
      %2131 = vmatpush1.bf16.msra.mxu0 0
      %2132 = vmatprep.mubr.bf16.mxu0 %v1668
      %2133 = vmatmul.mubr.bf16.gmra.mrb[0].mxu0 %v1663
      %v2134 = vpop.f32.mrb[0].mxu0
      %v2135 = vadd.f32 0.0, %v2134
      %v2136 = vpop.f32.mrb[0].mxu0
      %v2137 = vadd.f32 0.0, %v2136
      %v2138 = vpop.f32.mrb[0].mxu0
      %v2139 = vadd.f32 0.0, %v2138
      %v2140 = vpop.f32.mrb[0].mxu0
      %v2141 = vadd.f32 0.0, %v2140
      %2142 = vdwg.mxu0
      %2143 = vmatprep.subr.bf16.mxu0 %v1352
      %2144 = vmatpush1.bf16.msra.mxu0 %v1351
      %2145 = vmatprep.subr.bf16.mxu0 %v1354
      %2146 = vmatpush1.bf16.msra.mxu0 %v1353
      %2147 = vmatprep.subr.bf16.mxu0 %v1356
      %2148 = vmatpush1.bf16.msra.mxu0 %v1355
      %2149 = vmatprep.subr.bf16.mxu0 %v1544
      %2150 = vmatpush1.bf16.msra.mxu0 %v1543
      %2151 = vmatprep.subr.bf16.mxu0 %v1546
      %2152 = vmatpush1.bf16.msra.mxu0 %v1545
      %2153 = vmatprep.subr.bf16.mxu0 %v1548
      %2154 = vmatpush1.bf16.msra.mxu0 %v1547
      %2155 = vmatprep.subr.bf16.mxu0 %v1604
      %2156 = vmatpush1.bf16.msra.mxu0 %v1603
      %2157 = vmatprep.subr.bf16.mxu0 %v1606
      %2158 = vmatpush1.bf16.msra.mxu0 %v1605
      %2159 = vmatprep.subr.bf16.mxu0 %v1608
      %2160 = vmatpush1.bf16.msra.mxu0 %v1607
      %2161 = vmatprep.subr.bf16.mxu0 0
      %2162 = vmatpush1.bf16.msra.mxu0 0
      %2163 = vmatprep.subr.bf16.mxu0 0
      %2164 = vmatpush1.bf16.msra.mxu0 0
      %2165 = vmatprep.subr.bf16.mxu0 0
      %2166 = vmatpush1.bf16.msra.mxu0 0
      %2167 = vmatprep.subr.bf16.mxu0 0
      %2168 = vmatpush1.bf16.msra.mxu0 0
      %2169 = vmatprep.subr.bf16.mxu0 0
      %2170 = vmatpush1.bf16.msra.mxu0 0
      %2171 = vmatprep.subr.bf16.mxu0 0
      %2172 = vmatpush1.bf16.msra.mxu0 0
      %2173 = vmatprep.subr.bf16.mxu0 0
      %2174 = vmatpush1.bf16.msra.mxu0 0
      %2175 = vmatprep.mubr.bf16.mxu0 %v1668
      %2176 = vmatmul.mubr.bf16.gmra.mrb[0].mxu0 %v1663
      %v2177 = vpop.f32.mrb[0].mxu0
      %v2178 = vadd.f32 0.0, %v2177
      %v2179 = vpop.f32.mrb[0].mxu0
      %v2180 = vadd.f32 0.0, %v2179
      %v2181 = vpop.f32.mrb[0].mxu0
      %v2182 = vadd.f32 0.0, %v2181
      %v2183 = vpop.f32.mrb[0].mxu0
      %v2184 = vadd.f32 0.0, %v2183
      %2185 = vdwg.mxu0
      %2186 = vmatprep.subr.bf16.mxu0 %v1348
      %2187 = vmatpush1.bf16.msra.mxu0 %v1347
      %2188 = vmatprep.subr.bf16.mxu0 %v1350
      %2189 = vmatpush1.bf16.msra.mxu0 %v1349
      %2190 = vmatprep.subr.bf16.mxu0 %v1456
      %2191 = vmatpush1.bf16.msra.mxu0 %v1455
      %2192 = vmatprep.subr.bf16.mxu0 %v1354
      %2193 = vmatpush1.bf16.msra.mxu0 %v1353
      %2194 = vmatprep.subr.bf16.mxu0 %v1356
      %2195 = vmatpush1.bf16.msra.mxu0 %v1355
      %2196 = vmatprep.subr.bf16.mxu0 %v1458
      %2197 = vmatpush1.bf16.msra.mxu0 %v1457
      %2198 = vmatprep.subr.bf16.mxu0 %v1546
      %2199 = vmatpush1.bf16.msra.mxu0 %v1545
      %2200 = vmatprep.subr.bf16.mxu0 %v1548
      %2201 = vmatpush1.bf16.msra.mxu0 %v1547
      %2202 = vmatprep.subr.bf16.mxu0 %v1622
      %2203 = vmatpush1.bf16.msra.mxu0 %v1621
      %2204 = vmatprep.subr.bf16.mxu0 0
      %2205 = vmatpush1.bf16.msra.mxu0 0
      %2206 = vmatprep.subr.bf16.mxu0 0
      %2207 = vmatpush1.bf16.msra.mxu0 0
      %2208 = vmatprep.subr.bf16.mxu0 0
      %2209 = vmatpush1.bf16.msra.mxu0 0
      %2210 = vmatprep.subr.bf16.mxu0 0
      %2211 = vmatpush1.bf16.msra.mxu0 0
      %2212 = vmatprep.subr.bf16.mxu0 0
      %2213 = vmatpush1.bf16.msra.mxu0 0
      %2214 = vmatprep.subr.bf16.mxu0 0
      %2215 = vmatpush1.bf16.msra.mxu0 0
      %2216 = vmatprep.subr.bf16.mxu0 0
      %2217 = vmatpush1.bf16.msra.mxu0 0
      %2218 = vmatprep.mubr.bf16.mxu0 %v1668
      %2219 = vmatmul.mubr.bf16.gmra.mrb[0].mxu0 %v1663
      %v2220 = vpop.f32.mrb[0].mxu0
      %v2221 = vadd.f32 0.0, %v2220
      %v2222 = vpop.f32.mrb[0].mxu0
      %v2223 = vadd.f32 0.0, %v2222
      %v2224 = vpop.f32.mrb[0].mxu0
      %v2225 = vadd.f32 0.0, %v2224
      %v2226 = vpop.f32.mrb[0].mxu0
      %v2227 = vadd.f32 0.0, %v2226
      %2228 = vdwg.mxu0
      %2229 = vmatprep.subr.bf16.mxu0 %v1350
      %2230 = vmatpush1.bf16.msra.mxu0 %v1349
      %2231 = vmatprep.subr.bf16.mxu0 %v1456
      %2232 = vmatpush1.bf16.msra.mxu0 %v1455
      %2233 = vmatprep.subr.bf16.mxu0 %v1486
      %2234 = vmatpush1.bf16.msra.mxu0 %v1485
      %2235 = vmatprep.subr.bf16.mxu0 %v1356
      %2236 = vmatpush1.bf16.msra.mxu0 %v1355
      %2237 = vmatprep.subr.bf16.mxu0 %v1458
      %2238 = vmatpush1.bf16.msra.mxu0 %v1457
      %2239 = vmatprep.subr.bf16.mxu0 %v1488
      %2240 = vmatpush1.bf16.msra.mxu0 %v1487
      %2241 = vmatprep.subr.bf16.mxu0 %v1548
      %2242 = vmatpush1.bf16.msra.mxu0 %v1547
      %2243 = vmatprep.subr.bf16.mxu0 %v1622
      %2244 = vmatpush1.bf16.msra.mxu0 %v1621
      %2245 = vmatprep.subr.bf16.mxu0 %v1632
      %2246 = vmatpush1.bf16.msra.mxu0 %v1631
      %2247 = vmatprep.subr.bf16.mxu0 0
      %2248 = vmatpush1.bf16.msra.mxu0 0
      %2249 = vmatprep.subr.bf16.mxu0 0
      %2250 = vmatpush1.bf16.msra.mxu0 0
      %2251 = vmatprep.subr.bf16.mxu0 0
      %2252 = vmatpush1.bf16.msra.mxu0 0
      %2253 = vmatprep.subr.bf16.mxu0 0
      %2254 = vmatpush1.bf16.msra.mxu0 0
      %2255 = vmatprep.subr.bf16.mxu0 0
      %2256 = vmatpush1.bf16.msra.mxu0 0
      %2257 = vmatprep.subr.bf16.mxu0 0
      %2258 = vmatpush1.bf16.msra.mxu0 0
      %2259 = vmatprep.subr.bf16.mxu0 0
      %2260 = vmatpush1.bf16.msra.mxu0 0
      %2261 = vmatprep.mubr.bf16.mxu0 %v1668
      %2262 = vmatmul.mubr.bf16.gmra.mrb[0].mxu0 %v1663
      %v2263 = vpop.f32.mrb[0].mxu0
      %v2264 = vadd.f32 0.0, %v2263
      %v2265 = vpop.f32.mrb[0].mxu0
      %v2266 = vadd.f32 0.0, %v2265
      %v2267 = vpop.f32.mrb[0].mxu0
      %v2268 = vadd.f32 0.0, %v2267
      %v2269 = vpop.f32.mrb[0].mxu0
      %v2270 = vadd.f32 0.0, %v2269
      %2271 = vdwg.mxu0
      %2272 = vmatprep.subr.bf16.mxu0 %v1354
      %2273 = vmatpush1.bf16.msra.mxu0 %v1353
      %2274 = vmatprep.subr.bf16.mxu0 %v1356
      %2275 = vmatpush1.bf16.msra.mxu0 %v1355
      %2276 = vmatprep.subr.bf16.mxu0 %v1458
      %2277 = vmatpush1.bf16.msra.mxu0 %v1457
      %2278 = vmatprep.subr.bf16.mxu0 %v1546
      %2279 = vmatpush1.bf16.msra.mxu0 %v1545
      %2280 = vmatprep.subr.bf16.mxu0 %v1548
      %2281 = vmatpush1.bf16.msra.mxu0 %v1547
      %2282 = vmatprep.subr.bf16.mxu0 %v1622
      %2283 = vmatpush1.bf16.msra.mxu0 %v1621
      %2284 = vmatprep.subr.bf16.mxu0 %v1606
      %2285 = vmatpush1.bf16.msra.mxu0 %v1605
      %2286 = vmatprep.subr.bf16.mxu0 %v1608
      %2287 = vmatpush1.bf16.msra.mxu0 %v1607
      %2288 = vmatprep.subr.bf16.mxu0 %v1642
      %2289 = vmatpush1.bf16.msra.mxu0 %v1641
      %2290 = vmatprep.subr.bf16.mxu0 0
      %2291 = vmatpush1.bf16.msra.mxu0 0
      %2292 = vmatprep.subr.bf16.mxu0 0
      %2293 = vmatpush1.bf16.msra.mxu0 0
      %2294 = vmatprep.subr.bf16.mxu0 0
      %2295 = vmatpush1.bf16.msra.mxu0 0
      %2296 = vmatprep.subr.bf16.mxu0 0
      %2297 = vmatpush1.bf16.msra.mxu0 0
      %2298 = vmatprep.subr.bf16.mxu0 0
      %2299 = vmatpush1.bf16.msra.mxu0 0
      %2300 = vmatprep.subr.bf16.mxu0 0
      %2301 = vmatpush1.bf16.msra.mxu0 0
      %2302 = vmatprep.subr.bf16.mxu0 0
      %2303 = vmatpush1.bf16.msra.mxu0 0
      %2304 = vmatprep.mubr.bf16.mxu0 %v1668
      %2305 = vmatmul.mubr.bf16.gmra.mrb[0].mxu0 %v1663
      %v2306 = vpop.f32.mrb[0].mxu0
      %v2307 = vadd.f32 0.0, %v2306
      %v2308 = vpop.f32.mrb[0].mxu0
      %v2309 = vadd.f32 0.0, %v2308
      %v2310 = vpop.f32.mrb[0].mxu0
      %v2311 = vadd.f32 0.0, %v2310
      %v2312 = vpop.f32.mrb[0].mxu0
      %v2313 = vadd.f32 0.0, %v2312
      %2314 = vdwg.mxu0
      %2315 = vmatprep.subr.bf16.mxu0 %v1356
      %2316 = vmatpush1.bf16.msra.mxu0 %v1355
      %2317 = vmatprep.subr.bf16.mxu0 %v1458
      %2318 = vmatpush1.bf16.msra.mxu0 %v1457
      %2319 = vmatprep.subr.bf16.mxu0 %v1488
      %2320 = vmatpush1.bf16.msra.mxu0 %v1487
      %2321 = vmatprep.subr.bf16.mxu0 %v1548
      %2322 = vmatpush1.bf16.msra.mxu0 %v1547
      %2323 = vmatprep.subr.bf16.mxu0 %v1622
      %2324 = vmatpush1.bf16.msra.mxu0 %v1621
      %2325 = vmatprep.subr.bf16.mxu0 %v1632
      %2326 = vmatpush1.bf16.msra.mxu0 %v1631
      %2327 = vmatprep.subr.bf16.mxu0 %v1608
      %2328 = vmatpush1.bf16.msra.mxu0 %v1607
      %2329 = vmatprep.subr.bf16.mxu0 %v1642
      %2330 = vmatpush1.bf16.msra.mxu0 %v1641
      %2331 = vmatprep.subr.bf16.mxu0 %v1652
      %2332 = vmatpush1.bf16.msra.mxu0 %v1651
      %2333 = vmatprep.subr.bf16.mxu0 0
      %2334 = vmatpush1.bf16.msra.mxu0 0
      %2335 = vmatprep.subr.bf16.mxu0 0
      %2336 = vmatpush1.bf16.msra.mxu0 0
      %2337 = vmatprep.subr.bf16.mxu0 0
      %2338 = vmatpush1.bf16.msra.mxu0 0
      %2339 = vmatprep.subr.bf16.mxu0 0
      %2340 = vmatpush1.bf16.msra.mxu0 0
      %2341 = vmatprep.subr.bf16.mxu0 0
      %2342 = vmatpush1.bf16.msra.mxu0 0
      %2343 = vmatprep.subr.bf16.mxu0 0
      %2344 = vmatpush1.bf16.msra.mxu0 0
      %2345 = vmatprep.subr.bf16.mxu0 0
      %2346 = vmatpush1.bf16.msra.mxu0 0
      %2347 = vmatprep.mubr.bf16.mxu0 %v1668
      %2348 = vmatmul.mubr.bf16.gmra.mrb[0].mxu0 %v1663
      %v2349 = vpop.f32.mrb[0].mxu0
      %v2350 = vadd.f32 0.0, %v2349
      %v2351 = vpop.f32.mrb[0].mxu0
      %v2352 = vadd.f32 0.0, %v2351
      %v2353 = vpop.f32.mrb[0].mxu0
      %v2354 = vadd.f32 0.0, %v2353
      %v2355 = vpop.f32.mrb[0].mxu0
      %v2356 = vadd.f32 0.0, %v2355
      %2357 = vdwg.mxu0
      %v2358 = vmax.f32 %v1705, %v1748
      %v2359 = vmax.f32 %v1707, %v1750
      %v2360 = vmax.f32 %v1709, %v1752
      %v2361 = vmax.f32 %v1711, %v1754
      %v2362 = vmax.f32 %v2358, %v1791
      %v2363 = vmax.f32 %v2359, %v1793
      %v2364 = vmax.f32 %v2360, %v1795
      %v2365 = vmax.f32 %v2361, %v1797
      %v2366 = vmax.f32 %v2362, %v1834
      %v2367 = vmax.f32 %v2363, %v1836
      %v2368 = vmax.f32 %v2364, %v1838
      %v2369 = vmax.f32 %v2365, %v1840
      %v2370 = vld [vmem:[%s2] sm:$0xff]
      %v2371 = vld [vmem:[%s2 + $0x8] sm:$0xff]
      %2373 = vset.pattern.permute.xlu0 0
      %2374 = vperm.xlu0 %2373, %v2370
      %v2375 = vpop.permute.xlu0 %2374
      %2378 = vset.pattern.permute.xlu0 0
      %2379 = vperm.xlu0 %2378, %v2371
      %v2380 = vpop.permute.xlu0 %2379
      %v2382 = vadd.f32 %v2366, %v2375
      %v2383 = vadd.f32 %v2367, %v2375
      %v2384 = vadd.f32 %v2368, %v2380
      %v2385 = vadd.f32 %v2369, %v2380
      %v2386 = vmax.f32 %v2382, 0.0
      %v2387 = vmax.f32 %v2383, 0.0
      %v2388 = vmax.f32 %v2384, 0.0
      %v2389 = vmax.f32 %v2385, 0.0
      %v2390 = vpack.c.bf16 %v2388, %v2386
      %v2391 = vpack.c.bf16 %v2389, %v2387
      %2392 = vst [vmem:[#allocation2 + $0x8] sm:$0xff] %v2390
      %2393 = vst [vmem:[#allocation2 + $0x10] sm:$0xff] %v2391
      %v2394 = vmax.f32 %v1877, %v1920
      %v2395 = vmax.f32 %v1879, %v1922
      %v2396 = vmax.f32 %v1881, %v1924
      %v2397 = vmax.f32 %v1883, %v1926
      %v2398 = vmax.f32 %v2394, %v1963
      %v2399 = vmax.f32 %v2395, %v1965
      %v2400 = vmax.f32 %v2396, %v1967
      %v2401 = vmax.f32 %v2397, %v1969
      %v2402 = vmax.f32 %v2398, %v2006
      %v2403 = vmax.f32 %v2399, %v2008
      %v2404 = vmax.f32 %v2400, %v2010
      %v2405 = vmax.f32 %v2401, %v2012
      %v2406 = vld [vmem:[%s2] sm:$0xff]
      %v2407 = vld [vmem:[%s2 + $0x8] sm:$0xff]
      %2409 = vset.pattern.permute.xlu0 0
      %2410 = vperm.xlu0 %2409, %v2406
      %v2411 = vpop.permute.xlu0 %2410
      %2414 = vset.pattern.permute.xlu0 0
      %2415 = vperm.xlu0 %2414, %v2407
      %v2416 = vpop.permute.xlu0 %2415
      %v2418 = vadd.f32 %v2402, %v2411
      %v2419 = vadd.f32 %v2403, %v2411
      %v2420 = vadd.f32 %v2404, %v2416
      %v2421 = vadd.f32 %v2405, %v2416
      %v2422 = vmax.f32 %v2418, 0.0
      %v2423 = vmax.f32 %v2419, 0.0
      %v2424 = vmax.f32 %v2420, 0.0
      %v2425 = vmax.f32 %v2421, 0.0
      %v2426 = vpack.c.bf16 %v2424, %v2422
      %v2427 = vpack.c.bf16 %v2425, %v2423
      %s2428 = scalar_lea.vmem [#allocation2], 32
      %2429 = vst [vmem:[%s2428 + $0x8] sm:$0xff] %v2426
      %2430 = vst [vmem:[%s2428 + $0x10] sm:$0xff] %v2427
      %v2431 = vmax.f32 %v2049, %v2092
      %v2432 = vmax.f32 %v2051, %v2094
      %v2433 = vmax.f32 %v2053, %v2096
      %v2434 = vmax.f32 %v2055, %v2098
      %v2435 = vmax.f32 %v2431, %v2135
      %v2436 = vmax.f32 %v2432, %v2137
      %v2437 = vmax.f32 %v2433, %v2139
      %v2438 = vmax.f32 %v2434, %v2141
      %v2439 = vmax.f32 %v2435, %v2178
      %v2440 = vmax.f32 %v2436, %v2180
      %v2441 = vmax.f32 %v2437, %v2182
      %v2442 = vmax.f32 %v2438, %v2184
      %v2443 = vld [vmem:[%s2] sm:$0xff]
      %v2444 = vld [vmem:[%s2 + $0x8] sm:$0xff]
      %2446 = vset.pattern.permute.xlu0 0
      %2447 = vperm.xlu0 %2446, %v2443
      %v2448 = vpop.permute.xlu0 %2447
      %2451 = vset.pattern.permute.xlu0 0
      %2452 = vperm.xlu0 %2451, %v2444
      %v2453 = vpop.permute.xlu0 %2452
      %v2455 = vadd.f32 %v2439, %v2448
      %v2456 = vadd.f32 %v2440, %v2448
      %v2457 = vadd.f32 %v2441, %v2453
      %v2458 = vadd.f32 %v2442, %v2453
      %v2459 = vmax.f32 %v2455, 0.0
      %v2460 = vmax.f32 %v2456, 0.0
      %v2461 = vmax.f32 %v2457, 0.0
      %v2462 = vmax.f32 %v2458, 0.0
      %v2463 = vpack.c.bf16 %v2461, %v2459
      %v2464 = vpack.c.bf16 %v2462, %v2460
      %s2465 = scalar_lea.vmem [#allocation2], 64
      %2466 = vst [vmem:[%s2465 + $0x8] sm:$0xff] %v2463
      %2467 = vst [vmem:[%s2465 + $0x10] sm:$0xff] %v2464
      %v2468 = vmax.f32 %v2221, %v2264
      %v2469 = vmax.f32 %v2223, %v2266
      %v2470 = vmax.f32 %v2225, %v2268
      %v2471 = vmax.f32 %v2227, %v2270
      %v2472 = vmax.f32 %v2468, %v2307
      %v2473 = vmax.f32 %v2469, %v2309
      %v2474 = vmax.f32 %v2470, %v2311
      %v2475 = vmax.f32 %v2471, %v2313
      %v2476 = vmax.f32 %v2472, %v2350
      %v2477 = vmax.f32 %v2473, %v2352
      %v2478 = vmax.f32 %v2474, %v2354
      %v2479 = vmax.f32 %v2475, %v2356
      %v2480 = vld [vmem:[%s2] sm:$0xff]
      %v2481 = vld [vmem:[%s2 + $0x8] sm:$0xff]
      %2483 = vset.pattern.permute.xlu0 0
      %2484 = vperm.xlu0 %2483, %v2480
      %v2485 = vpop.permute.xlu0 %2484
      %2488 = vset.pattern.permute.xlu0 0
      %2489 = vperm.xlu0 %2488, %v2481
      %v2490 = vpop.permute.xlu0 %2489
      %v2492 = vadd.f32 %v2476, %v2485
      %v2493 = vadd.f32 %v2477, %v2485
      %v2494 = vadd.f32 %v2478, %v2490
      %v2495 = vadd.f32 %v2479, %v2490
      %v2496 = vmax.f32 %v2492, 0.0
      %v2497 = vmax.f32 %v2493, 0.0
      %v2498 = vmax.f32 %v2494, 0.0
      %v2499 = vmax.f32 %v2495, 0.0
      %v2500 = vpack.c.bf16 %v2498, %v2496
      %v2501 = vpack.c.bf16 %v2499, %v2497
      %s2502 = scalar_lea.vmem [#allocation2], 96
      %2503 = vst [vmem:[%s2502 + $0x8] sm:$0xff] %v2500
      %2504 = vst [vmem:[%s2502 + $0x10] sm:$0xff] %v2501
      %v2505 = vld [vmem:[%s2502] sm:$0xff]
      %v2506 = vld [vmem:[%s2502 + $0x8] sm:$0xff]
      %v2507 = vld [vmem:[%s2502 + $0x10] sm:$0xff]
      %vm2508 = vcmp.eq.s32.totalorder %v335, 15
      %vm2509 = vcmp.eq.s32.totalorder %v336, 15
      %vm2510 = vcmp.eq.s32.totalorder %v337, 15
      %vm2511 = vcmp.eq.s32.totalorder %v338, 15
      %v2512 = vsel %vm2508, 1, 0
      %v2513 = vsel %vm2509, 1, 0
      %v2514 = vsel %vm2510, 1, 0
      %v2515 = vsel %vm2511, 1, 0
      %vm2516 = vcmp.eq.s32.totalorder %v2512, 1
      %vm2517 = vcmp.eq.s32.totalorder %v2513, 1
      %vm2518 = vcmp.eq.s32.totalorder %v2514, 1
      %vm2519 = vcmp.eq.s32.totalorder %v2515, 1
      %vm2520 = vmpackc.low %vm2517, %vm2516
      %vm2521 = vmpackc.low %vm2519, %vm2518
      %v2522 = vsel %vm2520, 65537, 0
      %v2523 = vsel %vm2521, 65537, 0
      %v2524 = vlaneseq
      %v2525 = vshrl.u32 %v2524, 7
      %v2526 = vsub.s32 0, %v2525
      %v2527 = vrot.slane %v2522, %v2526
      %v2528 = vlaneseq
      %v2529 = vshrl.u32 %v2528, 7
      %v2530 = vsub.s32 4, %v2529
      %v2531 = vrot.slane %v2522, %v2530
      %v2532 = vlaneseq
      %v2533 = vshrl.u32 %v2532, 7
      %v2534 = vsub.s32 0, %v2533
      %v2535 = vrot.slane %v2523, %v2534
      %vm2536 = vcmp.ne.s16.totalorder %v2527, 0
      %vm2537 = vcmp.ne.s16.totalorder %v2531, 0
      %vm2538 = vcmp.ne.s16.totalorder %v2535, 0
      %v2539 = vsel %vm2536, 0, %v2505
      %v2540 = vsel %vm2537, 0, %v2506
      %v2541 = vsel %vm2538, 0, %v2507
      %v2542 = vld [vmem:[%s2465] sm:$0xff]
      %v2543 = vld [vmem:[%s2465 + $0x8] sm:$0xff]
      %v2544 = vld [vmem:[%s2465 + $0x10] sm:$0xff]
      %v2545 = vld [vmem:[%s2465 + $0x18] sm:$0xff]
      %v2546 = vld [vmem:[%s2428] sm:$0xff]
      %v2547 = vld [vmem:[%s2428 + $0x8] sm:$0xff]
      %v2548 = vld [vmem:[%s2428 + $0x10] sm:$0xff]
      %v2549 = vld [vmem:[%s2428 + $0x18] sm:$0xff]
      %v2550 = vlaneseq
      %v2551 = vshrl.u32 %v2550, 7
      %v2552 = vsub.s32 4, %v2551
      %v2553 = vrot.slane %v2523, %v2552
      %vm2554 = vcmp.ne.s16.totalorder %v2553, 0
      %v2555 = vsel %vm2536, 0, %v2546
      %v2556 = vsel %vm2537, 0, %v2547
      %v2557 = vsel %vm2538, 0, %v2548
      %v2558 = vsel %vm2554, 0, %v2549
      %v2559 = vld [vmem:[#allocation2 + $0x8] sm:$0xff]
      %v2560 = vld [vmem:[#allocation2 + $0x10] sm:$0xff]
      %v2561 = vld [vmem:[#allocation2 + $0x18] sm:$0xff]
      %2565 = vrot.lane.b32.xlu0 %v2542, 127
      %v2566 = vpop.permute.xlu0 %2565
      %2567 = vrot.lane.b32.xlu0 %v2543, 127
      %v2568 = vpop.permute.xlu0 %2567
      %2569 = vrot.lane.b32.xlu0 %v2544, 127
      %v2570 = vpop.permute.xlu0 %2569
      %v2571 = vsel %vm438, %v2566, %v2568
      %v2572 = vsel %vm438, %v2568, %v2570
      %2576 = vrot.lane.b32.xlu0 %v2505, 127
      %v2577 = vpop.permute.xlu0 %2576
      %2578 = vrot.lane.b32.xlu0 %v2506, 127
      %v2579 = vpop.permute.xlu0 %2578
      %2580 = vrot.lane.b32.xlu0 %v2507, 127
      %v2581 = vpop.permute.xlu0 %2580
      %v2582 = vsel %vm438, %v2577, %v2579
      %v2583 = vsel %vm438, %v2579, %v2581
      %2587 = vrot.lane.b32.xlu0 %v2555, 112
      %v2588 = vpop.permute.xlu0 %2587
      %2589 = vrot.lane.b32.xlu0 %v2556, 112
      %v2590 = vpop.permute.xlu0 %2589
      %2591 = vrot.lane.b32.xlu0 %v2557, 112
      %v2592 = vpop.permute.xlu0 %2591
      %v2593 = vsel %vm481, %v2588, %v2590
      %v2594 = vsel %vm481, %v2590, %v2592
      %2597 = vrot.lane.b32.xlu0 %v2559, 111
      %v2598 = vpop.permute.xlu0 %2597
      %2599 = vrot.lane.b32.xlu0 %v2560, 111
      %v2600 = vpop.permute.xlu0 %2599
      %v2601 = vsel %vm503, %v2598, %v2600
      %2604 = vrot.lane.b32.xlu0 %v2547, 111
      %v2605 = vpop.permute.xlu0 %2604
      %2606 = vrot.lane.b32.xlu0 %v2548, 111
      %v2607 = vpop.permute.xlu0 %2606
      %v2608 = vsel %vm503, %v2605, %v2607
      %2612 = vrot.lane.b32.xlu0 %v2539, 112
      %v2613 = vpop.permute.xlu0 %2612
      %2614 = vrot.lane.b32.xlu0 %v2540, 112
      %v2615 = vpop.permute.xlu0 %2614
      %2616 = vrot.lane.b32.xlu0 %v2541, 112
      %v2617 = vpop.permute.xlu0 %2616
      %v2618 = vsel %vm481, %v2613, %v2615
      %v2619 = vsel %vm481, %v2615, %v2617
      %2620 = vrot.lane.b32.xlu0 %v2543, 111
      %v2621 = vpop.permute.xlu0 %2620
      %2622 = vrot.lane.b32.xlu0 %v2544, 111
      %v2623 = vpop.permute.xlu0 %2622
      %v2624 = vsel %vm503, %v2621, %v2623
      %2625 = vrot.lane.b32.xlu0 %v2506, 111
      %v2626 = vpop.permute.xlu0 %2625
      %2627 = vrot.lane.b32.xlu0 %v2507, 111
      %v2628 = vpop.permute.xlu0 %2627
      %v2629 = vsel %vm503, %v2626, %v2628
      %vm2630 = vcmp.eq.s32.totalorder %v335, 0
      %vm2631 = vcmp.eq.s32.totalorder %v336, 0
      %vm2632 = vcmp.eq.s32.totalorder %v337, 0
      %vm2633 = vcmp.eq.s32.totalorder %v338, 0
      %v2634 = vsel %vm2630, 1, 0
      %v2635 = vsel %vm2631, 1, 0
      %v2636 = vsel %vm2632, 1, 0
      %v2637 = vsel %vm2633, 1, 0
      %vm2638 = vcmp.eq.s32.totalorder %v2634, 1
      %vm2639 = vcmp.eq.s32.totalorder %v2635, 1
      %vm2640 = vcmp.eq.s32.totalorder %v2636, 1
      %vm2641 = vcmp.eq.s32.totalorder %v2637, 1
      %vm2642 = vmpackc.low %vm2639, %vm2638
      %vm2643 = vmpackc.low %vm2641, %vm2640
      %v2644 = vsel %vm2642, 65537, 0
      %v2645 = vsel %vm2643, 65537, 0
      %v2646 = vlaneseq
      %v2647 = vshrl.u32 %v2646, 7
      %v2648 = vsub.s32 0, %v2647
      %v2649 = vrot.slane %v2644, %v2648
      %v2650 = vlaneseq
      %v2651 = vshrl.u32 %v2650, 7
      %v2652 = vsub.s32 4, %v2651
      %v2653 = vrot.slane %v2644, %v2652
      %v2654 = vlaneseq
      %v2655 = vshrl.u32 %v2654, 7
      %v2656 = vsub.s32 0, %v2655
      %v2657 = vrot.slane %v2645, %v2656
      %v2658 = vlaneseq
      %v2659 = vshrl.u32 %v2658, 7
      %v2660 = vsub.s32 4, %v2659
      %v2661 = vrot.slane %v2645, %v2660
      %vm2662 = vcmp.ne.s16.totalorder %v2649, 0
      %vm2663 = vcmp.ne.s16.totalorder %v2653, 0
      %vm2664 = vcmp.ne.s16.totalorder %v2657, 0
      %vm2665 = vcmp.ne.s16.totalorder %v2661, 0
      %v2666 = vsel %vm2662, 0, %v2542
      %v2667 = vsel %vm2663, 0, %v2543
      %v2668 = vsel %vm2664, 0, %v2544
      %v2669 = vsel %vm2665, 0, %v2545
      %v2670 = vsel %vm2663, 0, %v2559
      %v2671 = vsel %vm2664, 0, %v2560
      %v2672 = vsel %vm2665, 0, %v2561
      %2676 = vrot.lane.b32.xlu0 %v2666, 127
      %v2677 = vpop.permute.xlu0 %2676
      %2678 = vrot.lane.b32.xlu0 %v2667, 127
      %v2679 = vpop.permute.xlu0 %2678
      %2680 = vrot.lane.b32.xlu0 %v2668, 127
      %v2681 = vpop.permute.xlu0 %2680
      %v2682 = vsel %vm438, %v2677, %v2679
      %v2683 = vsel %vm438, %v2679, %v2681
      %2684 = vrot.lane.b32.xlu0 %v2559, 112
      %v2685 = vpop.permute.xlu0 %2684
      %2686 = vrot.lane.b32.xlu0 %v2560, 112
      %v2687 = vpop.permute.xlu0 %2686
      %v2688 = vsel %vm481, %v2685, %v2687
      %2689 = vrot.lane.b32.xlu0 %v2547, 112
      %v2690 = vpop.permute.xlu0 %2689
      %2691 = vrot.lane.b32.xlu0 %v2548, 112
      %v2692 = vpop.permute.xlu0 %2691
      %v2693 = vsel %vm481, %v2690, %v2692
      %2697 = vrot.lane.b32.xlu0 %v2670, 111
      %v2698 = vpop.permute.xlu0 %2697
      %2699 = vrot.lane.b32.xlu0 %v2671, 111
      %v2700 = vpop.permute.xlu0 %2699
      %2701 = vrot.lane.b32.xlu0 %v2672, 111
      %v2702 = vpop.permute.xlu0 %2701
      %v2703 = vsel %vm503, %v2698, %v2700
      %v2704 = vsel %vm503, %v2700, %v2702
      %2705 = vrot.lane.b32.xlu0 %v2543, 112
      %v2706 = vpop.permute.xlu0 %2705
      %2707 = vrot.lane.b32.xlu0 %v2544, 112
      %v2708 = vpop.permute.xlu0 %2707
      %v2709 = vsel %vm481, %v2706, %v2708
      %2710 = vrot.lane.b32.xlu0 %v2506, 112
      %v2711 = vpop.permute.xlu0 %2710
      %2712 = vrot.lane.b32.xlu0 %v2507, 112
      %v2713 = vpop.permute.xlu0 %2712
      %v2714 = vsel %vm481, %v2711, %v2713
      %2716 = vrot.lane.b32.xlu0 %v2667, 111
      %v2717 = vpop.permute.xlu0 %2716
      %2718 = vrot.lane.b32.xlu0 %v2668, 111
      %v2719 = vpop.permute.xlu0 %2718
      %2720 = vrot.lane.b32.xlu0 %v2669, 111
      %v2721 = vpop.permute.xlu0 %2720
      %v2722 = vsel %vm503, %v2717, %v2719
      %v2723 = vsel %vm503, %v2719, %v2721
      %2724 = vrot.lane.b32.xlu0 %v2559, 127
      %v2725 = vpop.permute.xlu0 %2724
      %2726 = vrot.lane.b32.xlu0 %v2560, 127
      %v2727 = vpop.permute.xlu0 %2726
      %v2728 = vsel %vm438, %v2725, %v2727
      %2729 = vrot.lane.b32.xlu0 %v2547, 127
      %v2730 = vpop.permute.xlu0 %2729
      %2731 = vrot.lane.b32.xlu0 %v2548, 127
      %v2732 = vpop.permute.xlu0 %2731
      %v2733 = vsel %vm438, %v2730, %v2732
      %2735 = vrot.lane.b32.xlu0 %v2558, 112
      %v2736 = vpop.permute.xlu0 %2735
      %v2737 = vsel %vm481, %v2592, %v2736
      %2739 = vrot.lane.b32.xlu0 %v2561, 111
      %v2740 = vpop.permute.xlu0 %2739
      %v2741 = vsel %vm503, %v2600, %v2740
      %2743 = vrot.lane.b32.xlu0 %v2549, 111
      %v2744 = vpop.permute.xlu0 %2743
      %v2745 = vsel %vm503, %v2607, %v2744
      %2746 = vrot.lane.b32.xlu0 %v2670, 127
      %v2747 = vpop.permute.xlu0 %2746
      %2748 = vrot.lane.b32.xlu0 %v2671, 127
      %v2749 = vpop.permute.xlu0 %2748
      %2750 = vrot.lane.b32.xlu0 %v2672, 127
      %v2751 = vpop.permute.xlu0 %2750
      %v2752 = vsel %vm438, %v2747, %v2749
      %v2753 = vsel %vm438, %v2749, %v2751
      %2756 = vrot.lane.b32.xlu0 %v2669, 127
      %v2757 = vpop.permute.xlu0 %2756
      %v2758 = vsel %vm438, %v2681, %v2757
      %2761 = vrot.lane.b32.xlu0 %v2561, 112
      %v2762 = vpop.permute.xlu0 %2761
      %v2763 = vsel %vm481, %v2687, %v2762
      %2766 = vrot.lane.b32.xlu0 %v2549, 112
      %v2767 = vpop.permute.xlu0 %2766
      %v2768 = vsel %vm481, %v2692, %v2767
      %2773 = vrot.lane.b32.xlu0 %v2539, 17
      %v2774 = vpop.permute.xlu0 %2773
      %2775 = vrot.lane.b32.xlu0 %v2540, 17
      %v2776 = vpop.permute.xlu0 %2775
      %2777 = vrot.lane.b32.xlu0 %v2541, 17
      %v2778 = vpop.permute.xlu0 %2777
      %2779 = vrot.lane.b32.xlu0 %v2571, 17
      %v2780 = vpop.permute.xlu0 %2779
      %2781 = vrot.lane.b32.xlu0 %v2572, 17
      %v2782 = vpop.permute.xlu0 %2781
      %2783 = vrot.lane.b32.xlu0 %v2570, 17
      %v2784 = vpop.permute.xlu0 %2783
      %2785 = vrot.lane.b32.xlu0 %v2582, 17
      %v2786 = vpop.permute.xlu0 %2785
      %2787 = vrot.lane.b32.xlu0 %v2583, 17
      %v2788 = vpop.permute.xlu0 %2787
      %2789 = vrot.lane.b32.xlu0 %v2581, 17
      %v2790 = vpop.permute.xlu0 %2789
      %2791 = vrot.lane.b32.xlu0 %v2593, 17
      %v2792 = vpop.permute.xlu0 %2791
      %2793 = vrot.lane.b32.xlu0 %v2594, 17
      %v2794 = vpop.permute.xlu0 %2793
      %2795 = vrot.lane.b32.xlu0 %v2592, 17
      %v2796 = vpop.permute.xlu0 %2795
      %2797 = vrot.lane.b32.xlu0 %v2598, 17
      %v2798 = vpop.permute.xlu0 %2797
      %2799 = vrot.lane.b32.xlu0 %v2601, 17
      %v2800 = vpop.permute.xlu0 %2799
      %2801 = vrot.lane.b32.xlu0 %v2600, 17
      %v2802 = vpop.permute.xlu0 %2801
      %2803 = vrot.lane.b32.xlu0 %v2605, 17
      %v2804 = vpop.permute.xlu0 %2803
      %2805 = vrot.lane.b32.xlu0 %v2608, 17
      %v2806 = vpop.permute.xlu0 %2805
      %2807 = vrot.lane.b32.xlu0 %v2607, 17
      %v2808 = vpop.permute.xlu0 %2807
      %2809 = vrot.lane.b32.xlu0 %v2618, 17
      %v2810 = vpop.permute.xlu0 %2809
      %2811 = vrot.lane.b32.xlu0 %v2619, 17
      %v2812 = vpop.permute.xlu0 %2811
      %2813 = vrot.lane.b32.xlu0 %v2617, 17
      %v2814 = vpop.permute.xlu0 %2813
      %2815 = vrot.lane.b32.xlu0 %v2621, 17
      %v2816 = vpop.permute.xlu0 %2815
      %2817 = vrot.lane.b32.xlu0 %v2624, 17
      %v2818 = vpop.permute.xlu0 %2817
      %2819 = vrot.lane.b32.xlu0 %v2623, 17
      %v2820 = vpop.permute.xlu0 %2819
      %2821 = vrot.lane.b32.xlu0 %v2626, 17
      %v2822 = vpop.permute.xlu0 %2821
      %2823 = vrot.lane.b32.xlu0 %v2629, 17
      %v2824 = vpop.permute.xlu0 %2823
      %2825 = vrot.lane.b32.xlu0 %v2628, 17
      %v2826 = vpop.permute.xlu0 %2825
      %vm2827 = vcmask 138240
      %v2828 = vsel %vm2827, %v2774, %v2776
      %v2829 = vsel %vm2827, %v2776, %v2778
      %v2830 = vsel %vm2827, %v2780, %v2782
      %v2831 = vsel %vm2827, %v2782, %v2784
      %v2832 = vsel %vm2827, %v2786, %v2788
      %v2833 = vsel %vm2827, %v2788, %v2790
      %v2834 = vsel %vm2827, %v2792, %v2794
      %v2835 = vsel %vm2827, %v2794, %v2796
      %v2836 = vsel %vm2827, %v2798, %v2800
      %v2837 = vsel %vm2827, %v2800, %v2802
      %v2838 = vsel %vm2827, %v2804, %v2806
      %v2839 = vsel %vm2827, %v2806, %v2808
      %v2840 = vsel %vm2827, %v2810, %v2812
      %v2841 = vsel %vm2827, %v2812, %v2814
      %v2842 = vsel %vm2827, %v2816, %v2818
      %v2843 = vsel %vm2827, %v2818, %v2820
      %v2844 = vsel %vm2827, %v2822, %v2824
      %v2845 = vsel %vm2827, %v2824, %v2826
      %2864 = vrot.lane.b32.xlu0 %v2542, 16
      %v2865 = vpop.permute.xlu0 %2864
      %2866 = vrot.lane.b32.xlu0 %v2543, 16
      %v2867 = vpop.permute.xlu0 %2866
      %2868 = vrot.lane.b32.xlu0 %v2544, 16
      %v2869 = vpop.permute.xlu0 %2868
      %2870 = vrot.lane.b32.xlu0 %v2505, 16
      %v2871 = vpop.permute.xlu0 %2870
      %2872 = vrot.lane.b32.xlu0 %v2506, 16
      %v2873 = vpop.permute.xlu0 %2872
      %2874 = vrot.lane.b32.xlu0 %v2507, 16
      %v2875 = vpop.permute.xlu0 %2874
      %2876 = vrot.lane.b32.xlu0 %v2682, 16
      %v2877 = vpop.permute.xlu0 %2876
      %2878 = vrot.lane.b32.xlu0 %v2683, 16
      %v2879 = vpop.permute.xlu0 %2878
      %2880 = vrot.lane.b32.xlu0 %v2681, 16
      %v2881 = vpop.permute.xlu0 %2880
      %2882 = vrot.lane.b32.xlu0 %v2685, 16
      %v2883 = vpop.permute.xlu0 %2882
      %2884 = vrot.lane.b32.xlu0 %v2688, 16
      %v2885 = vpop.permute.xlu0 %2884
      %2886 = vrot.lane.b32.xlu0 %v2687, 16
      %v2887 = vpop.permute.xlu0 %2886
      %2888 = vrot.lane.b32.xlu0 %v2690, 16
      %v2889 = vpop.permute.xlu0 %2888
      %2890 = vrot.lane.b32.xlu0 %v2693, 16
      %v2891 = vpop.permute.xlu0 %2890
      %2892 = vrot.lane.b32.xlu0 %v2692, 16
      %v2893 = vpop.permute.xlu0 %2892
      %2894 = vrot.lane.b32.xlu0 %v2698, 16
      %v2895 = vpop.permute.xlu0 %2894
      %2896 = vrot.lane.b32.xlu0 %v2703, 16
      %v2897 = vpop.permute.xlu0 %2896
      %2898 = vrot.lane.b32.xlu0 %v2704, 16
      %v2899 = vpop.permute.xlu0 %2898
      %2900 = vrot.lane.b32.xlu0 %v2706, 16
      %v2901 = vpop.permute.xlu0 %2900
      %2902 = vrot.lane.b32.xlu0 %v2709, 16
      %v2903 = vpop.permute.xlu0 %2902
      %2904 = vrot.lane.b32.xlu0 %v2708, 16
      %v2905 = vpop.permute.xlu0 %2904
      %2906 = vrot.lane.b32.xlu0 %v2711, 16
      %v2907 = vpop.permute.xlu0 %2906
      %2908 = vrot.lane.b32.xlu0 %v2714, 16
      %v2909 = vpop.permute.xlu0 %2908
      %2910 = vrot.lane.b32.xlu0 %v2713, 16
      %v2911 = vpop.permute.xlu0 %2910
      %2912 = vrot.lane.b32.xlu0 %v2717, 16
      %v2913 = vpop.permute.xlu0 %2912
      %2914 = vrot.lane.b32.xlu0 %v2722, 16
      %v2915 = vpop.permute.xlu0 %2914
      %2916 = vrot.lane.b32.xlu0 %v2723, 16
      %v2917 = vpop.permute.xlu0 %2916
      %vm2918 = vcmask 130048
      %v2919 = vsel %vm2918, %v2865, %v2867
      %v2920 = vsel %vm2918, %v2867, %v2869
      %v2921 = vsel %vm2918, %v2871, %v2873
      %v2922 = vsel %vm2918, %v2873, %v2875
      %v2923 = vsel %vm2918, %v2877, %v2879
      %v2924 = vsel %vm2918, %v2879, %v2881
      %v2925 = vsel %vm2918, %v2883, %v2885
      %v2926 = vsel %vm2918, %v2885, %v2887
      %v2927 = vsel %vm2918, %v2889, %v2891
      %v2928 = vsel %vm2918, %v2891, %v2893
      %v2929 = vsel %vm2918, %v2895, %v2897
      %v2930 = vsel %vm2918, %v2897, %v2899
      %v2931 = vsel %vm2918, %v2901, %v2903
      %v2932 = vsel %vm2918, %v2903, %v2905
      %v2933 = vsel %vm2918, %v2907, %v2909
      %v2934 = vsel %vm2918, %v2909, %v2911
      %v2935 = vsel %vm2918, %v2913, %v2915
      %v2936 = vsel %vm2918, %v2915, %v2917
      %2955 = vrot.lane.b32.xlu0 %v2555, 1
      %v2956 = vpop.permute.xlu0 %2955
      %2957 = vrot.lane.b32.xlu0 %v2556, 1
      %v2958 = vpop.permute.xlu0 %2957
      %2959 = vrot.lane.b32.xlu0 %v2557, 1
      %v2960 = vpop.permute.xlu0 %2959
      %2961 = vrot.lane.b32.xlu0 %v2725, 1
      %v2962 = vpop.permute.xlu0 %2961
      %2963 = vrot.lane.b32.xlu0 %v2728, 1
      %v2964 = vpop.permute.xlu0 %2963
      %2965 = vrot.lane.b32.xlu0 %v2727, 1
      %v2966 = vpop.permute.xlu0 %2965
      %2967 = vrot.lane.b32.xlu0 %v2730, 1
      %v2968 = vpop.permute.xlu0 %2967
      %2969 = vrot.lane.b32.xlu0 %v2733, 1
      %v2970 = vpop.permute.xlu0 %2969
      %2971 = vrot.lane.b32.xlu0 %v2732, 1
      %v2972 = vpop.permute.xlu0 %2971
      %2973 = vrot.lane.b32.xlu0 %v2539, 1
      %v2974 = vpop.permute.xlu0 %2973
      %2975 = vrot.lane.b32.xlu0 %v2540, 1
      %v2976 = vpop.permute.xlu0 %2975
      %2977 = vrot.lane.b32.xlu0 %v2541, 1
      %v2978 = vpop.permute.xlu0 %2977
      %2979 = vrot.lane.b32.xlu0 %v2568, 1
      %v2980 = vpop.permute.xlu0 %2979
      %2981 = vrot.lane.b32.xlu0 %v2572, 1
      %v2982 = vpop.permute.xlu0 %2981
      %2983 = vrot.lane.b32.xlu0 %v2570, 1
      %v2984 = vpop.permute.xlu0 %2983
      %2985 = vrot.lane.b32.xlu0 %v2579, 1
      %v2986 = vpop.permute.xlu0 %2985
      %2987 = vrot.lane.b32.xlu0 %v2583, 1
      %v2988 = vpop.permute.xlu0 %2987
      %2989 = vrot.lane.b32.xlu0 %v2581, 1
      %v2990 = vpop.permute.xlu0 %2989
      %2991 = vrot.lane.b32.xlu0 %v2590, 1
      %v2992 = vpop.permute.xlu0 %2991
      %2993 = vrot.lane.b32.xlu0 %v2594, 1
      %v2994 = vpop.permute.xlu0 %2993
      %2995 = vrot.lane.b32.xlu0 %v2737, 1
      %v2996 = vpop.permute.xlu0 %2995
      %2997 = vrot.lane.b32.xlu0 %v2598, 1
      %v2998 = vpop.permute.xlu0 %2997
      %2999 = vrot.lane.b32.xlu0 %v2601, 1
      %v3000 = vpop.permute.xlu0 %2999
      %3001 = vrot.lane.b32.xlu0 %v2741, 1
      %v3002 = vpop.permute.xlu0 %3001
      %3003 = vrot.lane.b32.xlu0 %v2605, 1
      %v3004 = vpop.permute.xlu0 %3003
      %3005 = vrot.lane.b32.xlu0 %v2608, 1
      %v3006 = vpop.permute.xlu0 %3005
      %3007 = vrot.lane.b32.xlu0 %v2745, 1
      %v3008 = vpop.permute.xlu0 %3007
      %vm3009 = vcmask 7168
      %v3010 = vsel %vm3009, %v2956, %v2958
      %v3011 = vsel %vm3009, %v2958, %v2960
      %v3012 = vsel %vm3009, %v2962, %v2964
      %v3013 = vsel %vm3009, %v2964, %v2966
      %v3014 = vsel %vm3009, %v2968, %v2970
      %v3015 = vsel %vm3009, %v2970, %v2972
      %v3016 = vsel %vm3009, %v2974, %v2976
      %v3017 = vsel %vm3009, %v2976, %v2978
      %v3018 = vsel %vm3009, %v2980, %v2982
      %v3019 = vsel %vm3009, %v2982, %v2984
      %v3020 = vsel %vm3009, %v2986, %v2988
      %v3021 = vsel %vm3009, %v2988, %v2990
      %v3022 = vsel %vm3009, %v2992, %v2994
      %v3023 = vsel %vm3009, %v2994, %v2996
      %v3024 = vsel %vm3009, %v2998, %v3000
      %v3025 = vsel %vm3009, %v3000, %v3002
      %v3026 = vsel %vm3009, %v3004, %v3006
      %v3027 = vsel %vm3009, %v3006, %v3008
      %v3046 = vld [vmem:[%s3] sm:$0xff]
      %v3047 = vld [vmem:[%s3 + $0x8] sm:$0xff]
      %v3048 = vld [vmem:[%s3 + $0x10] sm:$0xff]
      %v3049 = vld [vmem:[%s3 + $0x18] sm:$0xff]
      %v3054 = vunpack.c.l.b16 %v3046
      %v3055 = vunpack.c.h.b16 %v3046
      %v3056 = vunpack.c.l.b16 %v3047
      %v3057 = vunpack.c.h.b16 %v3047
      %v3058 = vunpack.c.l.b16 %v3048
      %v3059 = vunpack.c.h.b16 %v3048
      %v3060 = vunpack.c.l.b16 %v3049
      %v3061 = vunpack.c.h.b16 %v3049
      %v3062 = vpack.c.b16 %v3056, %v3054
      %v3063 = vpack.c.b16 %v3057, %v3055
      %v3064 = vpack.c.b16 %v3060, %v3058
      %v3065 = vpack.c.b16 %v3061, %v3059
      %v3069 = vsel %vm1666, %v3063, 0
      %v3072 = vsel %vm1666, %v3065, 0
      %3074 = vmatprep.subr.bf16.mxu0 %v2829
      %3075 = vmatpush1.bf16.msra.mxu0 %v2828
      %3076 = vmatprep.subr.bf16.mxu0 %v2831
      %3077 = vmatpush1.bf16.msra.mxu0 %v2830
      %3078 = vmatprep.subr.bf16.mxu0 %v2833
      %3079 = vmatpush1.bf16.msra.mxu0 %v2832
      %3080 = vmatprep.subr.bf16.mxu0 %v2835
      %3081 = vmatpush1.bf16.msra.mxu0 %v2834
      %3082 = vmatprep.subr.bf16.mxu0 %v2837
      %3083 = vmatpush1.bf16.msra.mxu0 %v2836
      %3084 = vmatprep.subr.bf16.mxu0 %v2839
      %3085 = vmatpush1.bf16.msra.mxu0 %v2838
      %3086 = vmatprep.subr.bf16.mxu0 %v2841
      %3087 = vmatpush1.bf16.msra.mxu0 %v2840
      %3088 = vmatprep.subr.bf16.mxu0 %v2843
      %3089 = vmatpush1.bf16.msra.mxu0 %v2842
      %3090 = vmatprep.subr.bf16.mxu0 %v2845
      %3091 = vmatpush1.bf16.msra.mxu0 %v2844
      %3092 = vmatprep.subr.bf16.mxu0 0
      %3093 = vmatpush1.bf16.msra.mxu0 0
      %3094 = vmatprep.subr.bf16.mxu0 0
      %3095 = vmatpush1.bf16.msra.mxu0 0
      %3096 = vmatprep.subr.bf16.mxu0 0
      %3097 = vmatpush1.bf16.msra.mxu0 0
      %3098 = vmatprep.subr.bf16.mxu0 0
      %3099 = vmatpush1.bf16.msra.mxu0 0
      %3100 = vmatprep.subr.bf16.mxu0 0
      %3101 = vmatpush1.bf16.msra.mxu0 0
      %3102 = vmatprep.subr.bf16.mxu0 0
      %3103 = vmatpush1.bf16.msra.mxu0 0
      %3104 = vmatprep.subr.bf16.mxu0 0
      %3105 = vmatpush1.bf16.msra.mxu0 0
      %3106 = vmatprep.mubr.bf16.mxu0 %v3069
      %3107 = vmatmul.mubr.bf16.gmra.mrb[0].mxu0 %v3062
      %v3108 = vpop.f32.mrb[0].mxu0
      %v3109 = vadd.f32 0.0, %v3108
      %v3110 = vpop.f32.mrb[0].mxu0
      %v3111 = vadd.f32 0.0, %v3110
      %v3112 = vpop.f32.mrb[0].mxu0
      %v3113 = vadd.f32 0.0, %v3112
      %v3114 = vpop.f32.mrb[0].mxu0
      %v3115 = vadd.f32 0.0, %v3114
      %3116 = vmatprep.mubr.bf16.mxu0 %v3072
      %3117 = vmatmul.mubr.bf16.gmra.mrb[0].mxu0 %v3064
      %v3118 = vpop.f32.mrb[0].mxu0
      %v3119 = vadd.f32 0.0, %v3118
      %v3120 = vpop.f32.mrb[0].mxu0
      %v3121 = vadd.f32 0.0, %v3120
      %v3122 = vpop.f32.mrb[0].mxu0
      %v3123 = vadd.f32 0.0, %v3122
      %v3124 = vpop.f32.mrb[0].mxu0
      %v3125 = vadd.f32 0.0, %v3124
      %3126 = vdwg.mxu0
      %3127 = vmatprep.subr.bf16.mxu0 %v2920
      %3128 = vmatpush1.bf16.msra.mxu0 %v2919
      %3129 = vmatprep.subr.bf16.mxu0 %v2922
      %3130 = vmatpush1.bf16.msra.mxu0 %v2921
      %3131 = vmatprep.subr.bf16.mxu0 %v2924
      %3132 = vmatpush1.bf16.msra.mxu0 %v2923
      %3133 = vmatprep.subr.bf16.mxu0 %v2926
      %3134 = vmatpush1.bf16.msra.mxu0 %v2925
      %3135 = vmatprep.subr.bf16.mxu0 %v2928
      %3136 = vmatpush1.bf16.msra.mxu0 %v2927
      %3137 = vmatprep.subr.bf16.mxu0 %v2930
      %3138 = vmatpush1.bf16.msra.mxu0 %v2929
      %3139 = vmatprep.subr.bf16.mxu0 %v2932
      %3140 = vmatpush1.bf16.msra.mxu0 %v2931
      %3141 = vmatprep.subr.bf16.mxu0 %v2934
      %3142 = vmatpush1.bf16.msra.mxu0 %v2933
      %3143 = vmatprep.subr.bf16.mxu0 %v2936
      %3144 = vmatpush1.bf16.msra.mxu0 %v2935
      %3145 = vmatprep.subr.bf16.mxu0 0
      %3146 = vmatpush1.bf16.msra.mxu0 0
      %3147 = vmatprep.subr.bf16.mxu0 0
      %3148 = vmatpush1.bf16.msra.mxu0 0
      %3149 = vmatprep.subr.bf16.mxu0 0
      %3150 = vmatpush1.bf16.msra.mxu0 0
      %3151 = vmatprep.subr.bf16.mxu0 0
      %3152 = vmatpush1.bf16.msra.mxu0 0
      %3153 = vmatprep.subr.bf16.mxu0 0
      %3154 = vmatpush1.bf16.msra.mxu0 0
      %3155 = vmatprep.subr.bf16.mxu0 0
      %3156 = vmatpush1.bf16.msra.mxu0 0
      %3157 = vmatprep.subr.bf16.mxu0 0
      %3158 = vmatpush1.bf16.msra.mxu0 0
      %3159 = vmatprep.mubr.bf16.mxu0 %v3069
      %3160 = vmatmul.mubr.bf16.gmra.mrb[0].mxu0 %v3062
      %v3161 = vpop.f32.mrb[0].mxu0
      %v3162 = vadd.f32 0.0, %v3161
      %v3163 = vpop.f32.mrb[0].mxu0
      %v3164 = vadd.f32 0.0, %v3163
      %v3165 = vpop.f32.mrb[0].mxu0
      %v3166 = vadd.f32 0.0, %v3165
      %v3167 = vpop.f32.mrb[0].mxu0
      %v3168 = vadd.f32 0.0, %v3167
      %3169 = vmatprep.mubr.bf16.mxu0 %v3072
      %3170 = vmatmul.mubr.bf16.gmra.mrb[0].mxu0 %v3064
      %v3171 = vpop.f32.mrb[0].mxu0
      %v3172 = vadd.f32 0.0, %v3171
      %v3173 = vpop.f32.mrb[0].mxu0
      %v3174 = vadd.f32 0.0, %v3173
      %v3175 = vpop.f32.mrb[0].mxu0
      %v3176 = vadd.f32 0.0, %v3175
      %v3177 = vpop.f32.mrb[0].mxu0
      %v3178 = vadd.f32 0.0, %v3177
      %3179 = vdwg.mxu0
      %3180 = vmatprep.subr.bf16.mxu0 %v3011
      %3181 = vmatpush1.bf16.msra.mxu0 %v3010
      %3182 = vmatprep.subr.bf16.mxu0 %v3013
      %3183 = vmatpush1.bf16.msra.mxu0 %v3012
      %3184 = vmatprep.subr.bf16.mxu0 %v3015
      %3185 = vmatpush1.bf16.msra.mxu0 %v3014
      %3186 = vmatprep.subr.bf16.mxu0 %v3017
      %3187 = vmatpush1.bf16.msra.mxu0 %v3016
      %3188 = vmatprep.subr.bf16.mxu0 %v3019
      %3189 = vmatpush1.bf16.msra.mxu0 %v3018
      %3190 = vmatprep.subr.bf16.mxu0 %v3021
      %3191 = vmatpush1.bf16.msra.mxu0 %v3020
      %3192 = vmatprep.subr.bf16.mxu0 %v3023
      %3193 = vmatpush1.bf16.msra.mxu0 %v3022
      %3194 = vmatprep.subr.bf16.mxu0 %v3025
      %3195 = vmatpush1.bf16.msra.mxu0 %v3024
      %3196 = vmatprep.subr.bf16.mxu0 %v3027
      %3197 = vmatpush1.bf16.msra.mxu0 %v3026
      %3198 = vmatprep.subr.bf16.mxu0 0
      %3199 = vmatpush1.bf16.msra.mxu0 0
      %3200 = vmatprep.subr.bf16.mxu0 0
      %3201 = vmatpush1.bf16.msra.mxu0 0
      %3202 = vmatprep.subr.bf16.mxu0 0
      %3203 = vmatpush1.bf16.msra.mxu0 0
      %3204 = vmatprep.subr.bf16.mxu0 0
      %3205 = vmatpush1.bf16.msra.mxu0 0
      %3206 = vmatprep.subr.bf16.mxu0 0
      %3207 = vmatpush1.bf16.msra.mxu0 0
      %3208 = vmatprep.subr.bf16.mxu0 0
      %3209 = vmatpush1.bf16.msra.mxu0 0
      %3210 = vmatprep.subr.bf16.mxu0 0
      %3211 = vmatpush1.bf16.msra.mxu0 0
      %3212 = vmatprep.mubr.bf16.mxu0 %v3069
      %3213 = vmatmul.mubr.bf16.gmra.mrb[0].mxu0 %v3062
      %v3214 = vpop.f32.mrb[0].mxu0
      %v3215 = vadd.f32 0.0, %v3214
      %v3216 = vpop.f32.mrb[0].mxu0
      %v3217 = vadd.f32 0.0, %v3216
      %v3218 = vpop.f32.mrb[0].mxu0
      %v3219 = vadd.f32 0.0, %v3218
      %v3220 = vpop.f32.mrb[0].mxu0
      %v3221 = vadd.f32 0.0, %v3220
      %3222 = vmatprep.mubr.bf16.mxu0 %v3072
      %3223 = vmatmul.mubr.bf16.gmra.mrb[0].mxu0 %v3064
      %v3224 = vpop.f32.mrb[0].mxu0
      %v3225 = vadd.f32 0.0, %v3224
      %v3226 = vpop.f32.mrb[0].mxu0
      %v3227 = vadd.f32 0.0, %v3226
      %v3228 = vpop.f32.mrb[0].mxu0
      %v3229 = vadd.f32 0.0, %v3228
      %v3230 = vpop.f32.mrb[0].mxu0
      %v3231 = vadd.f32 0.0, %v3230
      %3232 = vdwg.mxu0
      %3233 = vmatprep.subr.bf16.mxu0 %v2560
      %3234 = vmatpush1.bf16.msra.mxu0 %v2559
      %3235 = vmatprep.subr.bf16.mxu0 %v2548
      %3236 = vmatpush1.bf16.msra.mxu0 %v2547
      %3237 = vmatprep.subr.bf16.mxu0 %v2753
      %3238 = vmatpush1.bf16.msra.mxu0 %v2752
      %3239 = vmatprep.subr.bf16.mxu0 %v2544
      %3240 = vmatpush1.bf16.msra.mxu0 %v2543
      %3241 = vmatprep.subr.bf16.mxu0 %v2507
      %3242 = vmatpush1.bf16.msra.mxu0 %v2506
      %3243 = vmatprep.subr.bf16.mxu0 %v2758
      %3244 = vmatpush1.bf16.msra.mxu0 %v2683
      %3245 = vmatprep.subr.bf16.mxu0 %v2763
      %3246 = vmatpush1.bf16.msra.mxu0 %v2688
      %3247 = vmatprep.subr.bf16.mxu0 %v2768
      %3248 = vmatpush1.bf16.msra.mxu0 %v2693
      %3249 = vmatprep.subr.bf16.mxu0 %v2704
      %3250 = vmatpush1.bf16.msra.mxu0 %v2703
      %3251 = vmatprep.subr.bf16.mxu0 0
      %3252 = vmatpush1.bf16.msra.mxu0 0
      %3253 = vmatprep.subr.bf16.mxu0 0
      %3254 = vmatpush1.bf16.msra.mxu0 0
      %3255 = vmatprep.subr.bf16.mxu0 0
      %3256 = vmatpush1.bf16.msra.mxu0 0
      %3257 = vmatprep.subr.bf16.mxu0 0
      %3258 = vmatpush1.bf16.msra.mxu0 0
      %3259 = vmatprep.subr.bf16.mxu0 0
      %3260 = vmatpush1.bf16.msra.mxu0 0
      %3261 = vmatprep.subr.bf16.mxu0 0
      %3262 = vmatpush1.bf16.msra.mxu0 0
      %3263 = vmatprep.subr.bf16.mxu0 0
      %3264 = vmatpush1.bf16.msra.mxu0 0
      %3265 = vmatprep.mubr.bf16.mxu0 %v3069
      %3266 = vmatmul.mubr.bf16.gmra.mrb[0].mxu0 %v3062
      %v3267 = vpop.f32.mrb[0].mxu0
      %v3268 = vadd.f32 0.0, %v3267
      %v3269 = vpop.f32.mrb[0].mxu0
      %v3270 = vadd.f32 0.0, %v3269
      %v3271 = vpop.f32.mrb[0].mxu0
      %v3272 = vadd.f32 0.0, %v3271
      %v3273 = vpop.f32.mrb[0].mxu0
      %v3274 = vadd.f32 0.0, %v3273
      %3275 = vmatprep.mubr.bf16.mxu0 %v3072
      %3276 = vmatmul.mubr.bf16.gmra.mrb[0].mxu0 %v3064
      %v3277 = vpop.f32.mrb[0].mxu0
      %v3278 = vadd.f32 0.0, %v3277
      %v3279 = vpop.f32.mrb[0].mxu0
      %v3280 = vadd.f32 0.0, %v3279
      %v3281 = vpop.f32.mrb[0].mxu0
      %v3282 = vadd.f32 0.0, %v3281
      %v3283 = vpop.f32.mrb[0].mxu0
      %v3284 = vadd.f32 0.0, %v3283
      %3285 = vdwg.mxu0
      %v3286 = vmax.f32 %v3109, %v3162
      %v3287 = vmax.f32 %v3111, %v3164
      %v3288 = vmax.f32 %v3113, %v3166
      %v3289 = vmax.f32 %v3115, %v3168
      %v3290 = vmax.f32 %v3119, %v3172
      %v3291 = vmax.f32 %v3121, %v3174
      %v3292 = vmax.f32 %v3123, %v3176
      %v3293 = vmax.f32 %v3125, %v3178
      %v3294 = vmax.f32 %v3286, %v3215
      %v3295 = vmax.f32 %v3287, %v3217
      %v3296 = vmax.f32 %v3288, %v3219
      %v3297 = vmax.f32 %v3289, %v3221
      %v3298 = vmax.f32 %v3290, %v3225
      %v3299 = vmax.f32 %v3291, %v3227
      %v3300 = vmax.f32 %v3292, %v3229
      %v3301 = vmax.f32 %v3293, %v3231
      %v3302 = vmax.f32 %v3294, %v3268
      %v3303 = vmax.f32 %v3295, %v3270
      %v3304 = vmax.f32 %v3296, %v3272
      %v3305 = vmax.f32 %v3297, %v3274
      %v3306 = vmax.f32 %v3298, %v3278
      %v3307 = vmax.f32 %v3299, %v3280
      %v3308 = vmax.f32 %v3300, %v3282
      %v3309 = vmax.f32 %v3301, %v3284
      %v3310 = vld [vmem:[%s4] sm:$0xff]
      %v3311 = vld [vmem:[%s4 + $0x8] sm:$0xff]
      %v3312 = vld [vmem:[%s4 + $0x10] sm:$0xff]
      %v3313 = vld [vmem:[%s4 + $0x18] sm:$0xff]
      %3315 = vset.pattern.permute.xlu0 0
      %3316 = vperm.xlu0 %3315, %v3310
      %v3317 = vpop.permute.xlu0 %3316
      %3320 = vset.pattern.permute.xlu0 0
      %3321 = vperm.xlu0 %3320, %v3311
      %v3322 = vpop.permute.xlu0 %3321
      %3325 = vset.pattern.permute.xlu0 0
      %3326 = vperm.xlu0 %3325, %v3312
      %v3327 = vpop.permute.xlu0 %3326
      %3330 = vset.pattern.permute.xlu0 0
      %3331 = vperm.xlu0 %3330, %v3313
      %v3332 = vpop.permute.xlu0 %3331
      %v3334 = vadd.f32 %v3302, %v3317
      %v3335 = vadd.f32 %v3303, %v3317
      %v3336 = vadd.f32 %v3304, %v3322
      %v3337 = vadd.f32 %v3305, %v3322
      %v3338 = vadd.f32 %v3306, %v3327
      %v3339 = vadd.f32 %v3307, %v3327
      %v3340 = vadd.f32 %v3308, %v3332
      %v3341 = vadd.f32 %v3309, %v3332
      %v3342 = vmax.f32 %v3334, 0.0
      %v3343 = vmax.f32 %v3335, 0.0
      %v3344 = vmax.f32 %v3336, 0.0
      %v3345 = vmax.f32 %v3337, 0.0
      %v3346 = vmax.f32 %v3338, 0.0
      %v3347 = vmax.f32 %v3339, 0.0
      %v3348 = vmax.f32 %v3340, 0.0
      %v3349 = vmax.f32 %v3341, 0.0
      %v3350 = vpack.c.bf16 %v3344, %v3342
      %v3351 = vpack.c.bf16 %v3345, %v3343
      %v3352 = vpack.c.bf16 %v3348, %v3346
      %v3353 = vpack.c.bf16 %v3349, %v3347
      %v3358 = vunpack.c.l.b16 %v3350
      %v3359 = vunpack.c.l.b16 %v3351
      %v3360 = vunpack.c.h.b16 %v3350
      %v3361 = vunpack.c.h.b16 %v3351
      %v3362 = vunpack.c.l.b16 %v3352
      %v3363 = vunpack.c.l.b16 %v3353
      %v3364 = vunpack.c.h.b16 %v3352
      %v3365 = vunpack.c.h.b16 %v3353
      %v3366 = vpack.c.b16 %v3359, %v3358
      %v3367 = vpack.c.b16 %v3361, %v3360
      %v3368 = vpack.c.b16 %v3363, %v3362
      %v3369 = vpack.c.b16 %v3365, %v3364
      %3374 = vst [vmem:[%s224] sm:$0xff] %v3366
      %3375 = vst [vmem:[%s224 + $0x8] sm:$0xff] %v3367
      %3376 = vst [vmem:[%s224 + $0x10] sm:$0xff] %v3368
      %3377 = vst [vmem:[%s224 + $0x18] sm:$0xff] %v3369
      %p3378 = scmp.lt.s32.totalorder %s16, 1
      %s3379 = scalar_select %p3378, %s16, 1
      %s3380 = smul.addr %s3379, 8
      %s3381 = smul.addr %s3380, 4
      %s3382 = scalar_lea.vmem %s5, %s3381
      // Predicated region
      $region41: #{simple_cnn_forward.2} parent=39 // pred_check
        %p3383 = pneg %p144
      $region42: #{simple_cnn_forward.2} parent=39 // pred_check_branch
        %3385 = sbr.rel (%p3383) target = $region44
      $region43: #{simple_cnn_forward.2} parent=39 // pred_region
        _
      $region44: #{simple_cnn_forward.2} parent=39 // pred_fallthru
        _
    $region40: #{simple_cnn_forward.2} parent=5 // pred_fallthru
      _
    %p3386 = scmp.le.s32.totalorder 2, %s11
    // Predicated region
    $region45: #{simple_cnn_forward.2} parent=5 // pred_check
      %p3387 = pneg %p3386
    $region46: #{simple_cnn_forward.2} parent=5 // pred_check_branch
      %3389 = sbr.rel (%p3387) target = $region48
    $region47: #{simple_cnn_forward.2} parent=5 // pred_region
      %s3390 = ssub.s32 %s11, 2
      // Predicated region
      $region49: #{simple_cnn_forward.2} parent=47 // pred_check
        %p3391 = pneg %p150
      $region50: #{simple_cnn_forward.2} parent=47 // pred_check_branch
        %3393 = sbr.rel (%p3391) target = $region52
      $region51: #{simple_cnn_forward.2} parent=47 // pred_region
        %p3394 = scmp.lt.s32.totalorder %s17, 1
        %s3395 = scalar_select %p3394, %s17, 1
        %s3396 = smul.addr %s3395, 8
        %s3397 = smul.addr %s3396, 4
        %s3398 = scalar_lea.vmem %s5, %s3397
      $region52: #{simple_cnn_forward.2} parent=47 // pred_fallthru
        _
    $region48: #{simple_cnn_forward.2} parent=5 // pred_fallthru
      _
  $region6: #{simple_cnn_forward.2} parent=0 // loop_footer
    %s15 = sadd.s32 1, %s11
  $region7: #{simple_cnn_forward.2} parent=0 // loop_footer_branch
    %10 = sbr.rel target = $region3
  $region8: #{simple_cnn_forward.2} parent=0 // loop_exit
    _

// kernel: simple_cnn_forward.3
$region0: #{simple_cnn_forward.3}
  #allocation0 [shape = 'u32[]', space=smem, size = 0x4, offset = 0x4, fixed_abs, tag = 'smem constant byte address 0x4 - core index']
  #allocation1 [shape = 'u32[144,128]{1,0:T(1,128)}', space=vmem, size = 0x12000, scoped, tag = 'internal scratch']
  %s0 = inlined_call_operand.vmem [shape: bf16[2,8192], index: 0, kind: input, shape index: {}]
  %s1 = inlined_call_operand.vmem [shape: bf16[8192,64], index: 1, kind: input, shape index: {}]
  %s2 = inlined_call_operand.vmem [shape: f32[1,64], index: 2, kind: input, shape index: {}]
  %s3 = inlined_call_operand.vmem [shape: f32[64,3], index: 3, kind: input, shape index: {}]
  %s4 = inlined_call_operand.vmem [shape: f32[1,3], index: 4, kind: input, shape index: {}]
  %s5 = inlined_call_operand.hbm [shape: f32[2,3], index: 5, kind: output, shape index: {}]
  %s6 = sld [smem:[#allocation0]]
  $region30: #{simple_cnn_forward.3} parent=0
    _
  %s8 = ssub.s32 1, %s6
  %s9 = scalar_select 0, %s8, %s6
  $region1: #{simple_cnn_forward.3} parent=0
    #allocation2 [shape = 'u8[1024]{0}', space=vmem, size = 0x400, scoped, tag = 'output window, operand 0, single buffered']
    #allocation3 [shape = 's32[1]{0}', space=sflag, size = 0x4, scoped, tag = 'scoped memory for simple_cnn_forward.3']
    %10 = vsyncpa [#allocation3], 0
    // Predicated region
    $region2: #{simple_cnn_forward.3} parent=1 // pred_check
      _
    $region3: #{simple_cnn_forward.3} parent=1 // pred_check_branch
      %12 = sbr.rel (0) target = $region5
    $region4: #{simple_cnn_forward.3} parent=1 // pred_region
      _
    $region5: #{simple_cnn_forward.3} parent=1 // pred_fallthru
      _
    // Predicated region
    $region6: #{simple_cnn_forward.3} parent=1 // pred_check
      _
    $region7: #{simple_cnn_forward.3} parent=1 // pred_check_branch
      %14 = sbr.rel (0) target = $region9
    $region8: #{simple_cnn_forward.3} parent=1 // pred_region
      _
    $region9: #{simple_cnn_forward.3} parent=1 // pred_fallthru
      _
    // Predicated region
    $region10: #{simple_cnn_forward.3} parent=1 // pred_check
      _
    $region11: #{simple_cnn_forward.3} parent=1 // pred_check_branch
      %16 = sbr.rel (0) target = $region13
    $region12: #{simple_cnn_forward.3} parent=1 // pred_region
      _
    $region13: #{simple_cnn_forward.3} parent=1 // pred_fallthru
      _
    // Predicated region
    $region14: #{simple_cnn_forward.3} parent=1 // pred_check
      _
    $region15: #{simple_cnn_forward.3} parent=1 // pred_check_branch
      %18 = sbr.rel (0) target = $region17
    $region16: #{simple_cnn_forward.3} parent=1 // pred_region
      _
    $region17: #{simple_cnn_forward.3} parent=1 // pred_fallthru
      _
    // Predicated region
    $region18: #{simple_cnn_forward.3} parent=1 // pred_check
      _
    $region19: #{simple_cnn_forward.3} parent=1 // pred_check_branch
      %20 = sbr.rel (0) target = $region21
    $region20: #{simple_cnn_forward.3} parent=1 // pred_region
      _
    $region21: #{simple_cnn_forward.3} parent=1 // pred_fallthru
      _
    %v22 = vld [vmem:[%s0] sm:$0xff]
    %v23 = vld [vmem:[%s0 + $0x8] sm:$0xff]
    %v24 = vld [vmem:[%s0 + $0x10] sm:$0xff]
    %v25 = vld [vmem:[%s0 + $0x18] sm:$0xff]
    %v26 = vld [vmem:[%s0 + $0x20] sm:$0xff]
    %v27 = vld [vmem:[%s0 + $0x28] sm:$0xff]
    %v28 = vld [vmem:[%s0 + $0x30] sm:$0xff]
    %v29 = vld [vmem:[%s0 + $0x38] sm:$0xff]
    %v30 = vld [vmem:[%s1] sm:$0xf]
    %v31 = vld [vmem:[%s1 + $0x4] sm:$0xf]
    %v32 = vld [vmem:[%s1 + $0x8] sm:$0xf]
    %v33 = vld [vmem:[%s1 + $0xc] sm:$0xf]
    %v34 = vld [vmem:[%s1 + $0x10] sm:$0xf]
    %v35 = vld [vmem:[%s1 + $0x14] sm:$0xf]
    %v36 = vld [vmem:[%s1 + $0x18] sm:$0xf]
    %v37 = vld [vmem:[%s1 + $0x1c] sm:$0xf]
    %v38 = vld [vmem:[%s1 + $0x20] sm:$0xf]
    %v39 = vld [vmem:[%s1 + $0x24] sm:$0xf]
    %v40 = vld [vmem:[%s1 + $0x28] sm:$0xf]
    %v41 = vld [vmem:[%s1 + $0x2c] sm:$0xf]
    %v42 = vld [vmem:[%s1 + $0x30] sm:$0xf]
    %v43 = vld [vmem:[%s1 + $0x34] sm:$0xf]
    %v44 = vld [vmem:[%s1 + $0x38] sm:$0xf]
    %v45 = vld [vmem:[%s1 + $0x3c] sm:$0xf]
    %v46 = vld [vmem:[%s1 + $0x40] sm:$0xf]
    %v47 = vld [vmem:[%s1 + $0x44] sm:$0xf]
    %v48 = vld [vmem:[%s1 + $0x48] sm:$0xf]
    %v49 = vld [vmem:[%s1 + $0x4c] sm:$0xf]
    %v50 = vld [vmem:[%s1 + $0x50] sm:$0xf]
    %v51 = vld [vmem:[%s1 + $0x54] sm:$0xf]
    %v52 = vld [vmem:[%s1 + $0x58] sm:$0xf]
    %v53 = vld [vmem:[%s1 + $0x5c] sm:$0xf]
    %v54 = vld [vmem:[%s1 + $0x60] sm:$0xf]
    %v55 = vld [vmem:[%s1 + $0x64] sm:$0xf]
    %v56 = vld [vmem:[%s1 + $0x68] sm:$0xf]
    %v57 = vld [vmem:[%s1 + $0x6c] sm:$0xf]
    %v58 = vld [vmem:[%s1 + $0x70] sm:$0xf]
    %v59 = vld [vmem:[%s1 + $0x74] sm:$0xf]
    %v60 = vld [vmem:[%s1 + $0x78] sm:$0xf]
    %v61 = vld [vmem:[%s1 + $0x7c] sm:$0xf]
    %v62 = vld [vmem:[%s1 + $0x80] sm:$0xf]
    %v63 = vld [vmem:[%s1 + $0x84] sm:$0xf]
    %v64 = vld [vmem:[%s1 + $0x88] sm:$0xf]
    %v65 = vld [vmem:[%s1 + $0x8c] sm:$0xf]
    %v66 = vld [vmem:[%s1 + $0x90] sm:$0xf]
    %v67 = vld [vmem:[%s1 + $0x94] sm:$0xf]
    %v68 = vld [vmem:[%s1 + $0x98] sm:$0xf]
    %v69 = vld [vmem:[%s1 + $0x9c] sm:$0xf]
    %v70 = vld [vmem:[%s1 + $0xa0] sm:$0xf]
    %v71 = vld [vmem:[%s1 + $0xa4] sm:$0xf]
    %v72 = vld [vmem:[%s1 + $0xa8] sm:$0xf]
    %v73 = vld [vmem:[%s1 + $0xac] sm:$0xf]
    %v74 = vld [vmem:[%s1 + $0xb0] sm:$0xf]
    %v75 = vld [vmem:[%s1 + $0xb4] sm:$0xf]
    %v76 = vld [vmem:[%s1 + $0xb8] sm:$0xf]
    %v77 = vld [vmem:[%s1 + $0xbc] sm:$0xf]
    %v78 = vld [vmem:[%s1 + $0xc0] sm:$0xf]
    %v79 = vld [vmem:[%s1 + $0xc4] sm:$0xf]
    %v80 = vld [vmem:[%s1 + $0xc8] sm:$0xf]
    %v81 = vld [vmem:[%s1 + $0xcc] sm:$0xf]
    %v82 = vld [vmem:[%s1 + $0xd0] sm:$0xf]
    %v83 = vld [vmem:[%s1 + $0xd4] sm:$0xf]
    %v84 = vld [vmem:[%s1 + $0xd8] sm:$0xf]
    %v85 = vld [vmem:[%s1 + $0xdc] sm:$0xf]
    %v86 = vld [vmem:[%s1 + $0xe0] sm:$0xf]
    %v87 = vld [vmem:[%s1 + $0xe4] sm:$0xf]
    %v88 = vld [vmem:[%s1 + $0xe8] sm:$0xf]
    %v89 = vld [vmem:[%s1 + $0xec] sm:$0xf]
    %v90 = vld [vmem:[%s1 + $0xf0] sm:$0xf]
    %v91 = vld [vmem:[%s1 + $0xf4] sm:$0xf]
    %v92 = vld [vmem:[%s1 + $0xf8] sm:$0xf]
    %v93 = vld [vmem:[%s1 + $0xfc] sm:$0xf]
    %v94 = vld [vmem:[%s1 + $0x100] sm:$0xf]
    %v95 = vld [vmem:[%s1 + $0x104] sm:$0xf]
    %v96 = vld [vmem:[%s1 + $0x108] sm:$0xf]
    %v97 = vld [vmem:[%s1 + $0x10c] sm:$0xf]
    %v98 = vld [vmem:[%s1 + $0x110] sm:$0xf]
    %v99 = vld [vmem:[%s1 + $0x114] sm:$0xf]
    %v100 = vld [vmem:[%s1 + $0x118] sm:$0xf]
    %v101 = vld [vmem:[%s1 + $0x11c] sm:$0xf]
    %v102 = vld [vmem:[%s1 + $0x120] sm:$0xf]
    %v103 = vld [vmem:[%s1 + $0x124] sm:$0xf]
    %v104 = vld [vmem:[%s1 + $0x128] sm:$0xf]
    %v105 = vld [vmem:[%s1 + $0x12c] sm:$0xf]
    %v106 = vld [vmem:[%s1 + $0x130] sm:$0xf]
    %v107 = vld [vmem:[%s1 + $0x134] sm:$0xf]
    %v108 = vld [vmem:[%s1 + $0x138] sm:$0xf]
    %v109 = vld [vmem:[%s1 + $0x13c] sm:$0xf]
    %v110 = vld [vmem:[%s1 + $0x140] sm:$0xf]
    %v111 = vld [vmem:[%s1 + $0x144] sm:$0xf]
    %v112 = vld [vmem:[%s1 + $0x148] sm:$0xf]
    %v113 = vld [vmem:[%s1 + $0x14c] sm:$0xf]
    %v114 = vld [vmem:[%s1 + $0x150] sm:$0xf]
    %v115 = vld [vmem:[%s1 + $0x154] sm:$0xf]
    %v116 = vld [vmem:[%s1 + $0x158] sm:$0xf]
    %v117 = vld [vmem:[%s1 + $0x15c] sm:$0xf]
    %v118 = vld [vmem:[%s1 + $0x160] sm:$0xf]
    %v119 = vld [vmem:[%s1 + $0x164] sm:$0xf]
    %v120 = vld [vmem:[%s1 + $0x168] sm:$0xf]
    %v121 = vld [vmem:[%s1 + $0x16c] sm:$0xf]
    %v122 = vld [vmem:[%s1 + $0x170] sm:$0xf]
    %v123 = vld [vmem:[%s1 + $0x174] sm:$0xf]
    %v124 = vld [vmem:[%s1 + $0x178] sm:$0xf]
    %v125 = vld [vmem:[%s1 + $0x17c] sm:$0xf]
    %v126 = vld [vmem:[%s1 + $0x180] sm:$0xf]
    %v127 = vld [vmem:[%s1 + $0x184] sm:$0xf]
    %v128 = vld [vmem:[%s1 + $0x188] sm:$0xf]
    %v129 = vld [vmem:[%s1 + $0x18c] sm:$0xf]
    %v130 = vld [vmem:[%s1 + $0x190] sm:$0xf]
    %v131 = vld [vmem:[%s1 + $0x194] sm:$0xf]
    %v132 = vld [vmem:[%s1 + $0x198] sm:$0xf]
    %v133 = vld [vmem:[%s1 + $0x19c] sm:$0xf]
    %v134 = vld [vmem:[%s1 + $0x1a0] sm:$0xf]
    %v135 = vld [vmem:[%s1 + $0x1a4] sm:$0xf]
    %v136 = vld [vmem:[%s1 + $0x1a8] sm:$0xf]
    %v137 = vld [vmem:[%s1 + $0x1ac] sm:$0xf]
    %v138 = vld [vmem:[%s1 + $0x1b0] sm:$0xf]
    %v139 = vld [vmem:[%s1 + $0x1b4] sm:$0xf]
    %v140 = vld [vmem:[%s1 + $0x1b8] sm:$0xf]
    %v141 = vld [vmem:[%s1 + $0x1bc] sm:$0xf]
    %v142 = vld [vmem:[%s1 + $0x1c0] sm:$0xf]
    %v143 = vld [vmem:[%s1 + $0x1c4] sm:$0xf]
    %v144 = vld [vmem:[%s1 + $0x1c8] sm:$0xf]
    %v145 = vld [vmem:[%s1 + $0x1cc] sm:$0xf]
    %v146 = vld [vmem:[%s1 + $0x1d0] sm:$0xf]
    %v147 = vld [vmem:[%s1 + $0x1d4] sm:$0xf]
    %v148 = vld [vmem:[%s1 + $0x1d8] sm:$0xf]
    %v149 = vld [vmem:[%s1 + $0x1dc] sm:$0xf]
    %v150 = vld [vmem:[%s1 + $0x1e0] sm:$0xf]
    %v151 = vld [vmem:[%s1 + $0x1e4] sm:$0xf]
    %v152 = vld [vmem:[%s1 + $0x1e8] sm:$0xf]
    %v153 = vld [vmem:[%s1 + $0x1ec] sm:$0xf]
    %v154 = vld [vmem:[%s1 + $0x1f0] sm:$0xf]
    %v155 = vld [vmem:[%s1 + $0x1f4] sm:$0xf]
    %v156 = vld [vmem:[%s1 + $0x1f8] sm:$0xf]
    %v157 = vld [vmem:[%s1 + $0x1fc] sm:$0xf]
    %v158 = vld [vmem:[%s1 + $0x200] sm:$0xf]
    %v159 = vld [vmem:[%s1 + $0x204] sm:$0xf]
    %v160 = vld [vmem:[%s1 + $0x208] sm:$0xf]
    %v161 = vld [vmem:[%s1 + $0x20c] sm:$0xf]
    %v162 = vld [vmem:[%s1 + $0x210] sm:$0xf]
    %v163 = vld [vmem:[%s1 + $0x214] sm:$0xf]
    %v164 = vld [vmem:[%s1 + $0x218] sm:$0xf]
    %v165 = vld [vmem:[%s1 + $0x21c] sm:$0xf]
    %v166 = vld [vmem:[%s1 + $0x220] sm:$0xf]
    %v167 = vld [vmem:[%s1 + $0x224] sm:$0xf]
    %v168 = vld [vmem:[%s1 + $0x228] sm:$0xf]
    %v169 = vld [vmem:[%s1 + $0x22c] sm:$0xf]
    %v170 = vld [vmem:[%s1 + $0x230] sm:$0xf]
    %v171 = vld [vmem:[%s1 + $0x234] sm:$0xf]
    %v172 = vld [vmem:[%s1 + $0x238] sm:$0xf]
    %v173 = vld [vmem:[%s1 + $0x23c] sm:$0xf]
    %v174 = vld [vmem:[%s1 + $0x240] sm:$0xf]
    %v175 = vld [vmem:[%s1 + $0x244] sm:$0xf]
    %v176 = vld [vmem:[%s1 + $0x248] sm:$0xf]
    %v177 = vld [vmem:[%s1 + $0x24c] sm:$0xf]
    %v178 = vld [vmem:[%s1 + $0x250] sm:$0xf]
    %v179 = vld [vmem:[%s1 + $0x254] sm:$0xf]
    %v180 = vld [vmem:[%s1 + $0x258] sm:$0xf]
    %v181 = vld [vmem:[%s1 + $0x25c] sm:$0xf]
    %v182 = vld [vmem:[%s1 + $0x260] sm:$0xf]
    %v183 = vld [vmem:[%s1 + $0x264] sm:$0xf]
    %v184 = vld [vmem:[%s1 + $0x268] sm:$0xf]
    %v185 = vld [vmem:[%s1 + $0x26c] sm:$0xf]
    %v186 = vld [vmem:[%s1 + $0x270] sm:$0xf]
    %v187 = vld [vmem:[%s1 + $0x274] sm:$0xf]
    %v188 = vld [vmem:[%s1 + $0x278] sm:$0xf]
    %v189 = vld [vmem:[%s1 + $0x27c] sm:$0xf]
    %v190 = vld [vmem:[%s1 + $0x280] sm:$0xf]
    %v191 = vld [vmem:[%s1 + $0x284] sm:$0xf]
    %v192 = vld [vmem:[%s1 + $0x288] sm:$0xf]
    %v193 = vld [vmem:[%s1 + $0x28c] sm:$0xf]
    %v194 = vld [vmem:[%s1 + $0x290] sm:$0xf]
    %v195 = vld [vmem:[%s1 + $0x294] sm:$0xf]
    %v196 = vld [vmem:[%s1 + $0x298] sm:$0xf]
    %v197 = vld [vmem:[%s1 + $0x29c] sm:$0xf]
    %v198 = vld [vmem:[%s1 + $0x2a0] sm:$0xf]
    %v199 = vld [vmem:[%s1 + $0x2a4] sm:$0xf]
    %v200 = vld [vmem:[%s1 + $0x2a8] sm:$0xf]
    %v201 = vld [vmem:[%s1 + $0x2ac] sm:$0xf]
    %v202 = vld [vmem:[%s1 + $0x2b0] sm:$0xf]
    %v203 = vld [vmem:[%s1 + $0x2b4] sm:$0xf]
    %v204 = vld [vmem:[%s1 + $0x2b8] sm:$0xf]
    %v205 = vld [vmem:[%s1 + $0x2bc] sm:$0xf]
    %v206 = vld [vmem:[%s1 + $0x2c0] sm:$0xf]
    %v207 = vld [vmem:[%s1 + $0x2c4] sm:$0xf]
    %v208 = vld [vmem:[%s1 + $0x2c8] sm:$0xf]
    %v209 = vld [vmem:[%s1 + $0x2cc] sm:$0xf]
    %v210 = vld [vmem:[%s1 + $0x2d0] sm:$0xf]
    %v211 = vld [vmem:[%s1 + $0x2d4] sm:$0xf]
    %v212 = vld [vmem:[%s1 + $0x2d8] sm:$0xf]
    %v213 = vld [vmem:[%s1 + $0x2dc] sm:$0xf]
    %v214 = vld [vmem:[%s1 + $0x2e0] sm:$0xf]
    %v215 = vld [vmem:[%s1 + $0x2e4] sm:$0xf]
    %v216 = vld [vmem:[%s1 + $0x2e8] sm:$0xf]
    %v217 = vld [vmem:[%s1 + $0x2ec] sm:$0xf]
    %v218 = vld [vmem:[%s1 + $0x2f0] sm:$0xf]
    %v219 = vld [vmem:[%s1 + $0x2f4] sm:$0xf]
    %v220 = vld [vmem:[%s1 + $0x2f8] sm:$0xf]
    %v221 = vld [vmem:[%s1 + $0x2fc] sm:$0xf]
    %v222 = vld [vmem:[%s1 + $0x300] sm:$0xf]
    %v223 = vld [vmem:[%s1 + $0x304] sm:$0xf]
    %v224 = vld [vmem:[%s1 + $0x308] sm:$0xf]
    %v225 = vld [vmem:[%s1 + $0x30c] sm:$0xf]
    %v226 = vld [vmem:[%s1 + $0x310] sm:$0xf]
    %v227 = vld [vmem:[%s1 + $0x314] sm:$0xf]
    %v228 = vld [vmem:[%s1 + $0x318] sm:$0xf]
    %v229 = vld [vmem:[%s1 + $0x31c] sm:$0xf]
    %v230 = vld [vmem:[%s1 + $0x320] sm:$0xf]
    %v231 = vld [vmem:[%s1 + $0x324] sm:$0xf]
    %v232 = vld [vmem:[%s1 + $0x328] sm:$0xf]
    %v233 = vld [vmem:[%s1 + $0x32c] sm:$0xf]
    %v234 = vld [vmem:[%s1 + $0x330] sm:$0xf]
    %v235 = vld [vmem:[%s1 + $0x334] sm:$0xf]
    %v236 = vld [vmem:[%s1 + $0x338] sm:$0xf]
    %v237 = vld [vmem:[%s1 + $0x33c] sm:$0xf]
    %v238 = vld [vmem:[%s1 + $0x340] sm:$0xf]
    %v239 = vld [vmem:[%s1 + $0x344] sm:$0xf]
    %v240 = vld [vmem:[%s1 + $0x348] sm:$0xf]
    %v241 = vld [vmem:[%s1 + $0x34c] sm:$0xf]
    %v242 = vld [vmem:[%s1 + $0x350] sm:$0xf]
    %v243 = vld [vmem:[%s1 + $0x354] sm:$0xf]
    %v244 = vld [vmem:[%s1 + $0x358] sm:$0xf]
    %v245 = vld [vmem:[%s1 + $0x35c] sm:$0xf]
    %v246 = vld [vmem:[%s1 + $0x360] sm:$0xf]
    %v247 = vld [vmem:[%s1 + $0x364] sm:$0xf]
    %v248 = vld [vmem:[%s1 + $0x368] sm:$0xf]
    %v249 = vld [vmem:[%s1 + $0x36c] sm:$0xf]
    %v250 = vld [vmem:[%s1 + $0x370] sm:$0xf]
    %v251 = vld [vmem:[%s1 + $0x374] sm:$0xf]
    %v252 = vld [vmem:[%s1 + $0x378] sm:$0xf]
    %v253 = vld [vmem:[%s1 + $0x37c] sm:$0xf]
    %v254 = vld [vmem:[%s1 + $0x380] sm:$0xf]
    %v255 = vld [vmem:[%s1 + $0x384] sm:$0xf]
    %v256 = vld [vmem:[%s1 + $0x388] sm:$0xf]
    %v257 = vld [vmem:[%s1 + $0x38c] sm:$0xf]
    %v258 = vld [vmem:[%s1 + $0x390] sm:$0xf]
    %v259 = vld [vmem:[%s1 + $0x394] sm:$0xf]
    %v260 = vld [vmem:[%s1 + $0x398] sm:$0xf]
    %v261 = vld [vmem:[%s1 + $0x39c] sm:$0xf]
    %v262 = vld [vmem:[%s1 + $0x3a0] sm:$0xf]
    %v263 = vld [vmem:[%s1 + $0x3a4] sm:$0xf]
    %v264 = vld [vmem:[%s1 + $0x3a8] sm:$0xf]
    %v265 = vld [vmem:[%s1 + $0x3ac] sm:$0xf]
    %v266 = vld [vmem:[%s1 + $0x3b0] sm:$0xf]
    %v267 = vld [vmem:[%s1 + $0x3b4] sm:$0xf]
    %v268 = vld [vmem:[%s1 + $0x3b8] sm:$0xf]
    %v269 = vld [vmem:[%s1 + $0x3bc] sm:$0xf]
    %v270 = vld [vmem:[%s1 + $0x3c0] sm:$0xf]
    %v271 = vld [vmem:[%s1 + $0x3c4] sm:$0xf]
    %v272 = vld [vmem:[%s1 + $0x3c8] sm:$0xf]
    %v273 = vld [vmem:[%s1 + $0x3cc] sm:$0xf]
    %v274 = vld [vmem:[%s1 + $0x3d0] sm:$0xf]
    %v275 = vld [vmem:[%s1 + $0x3d4] sm:$0xf]
    %v276 = vld [vmem:[%s1 + $0x3d8] sm:$0xf]
    %v277 = vld [vmem:[%s1 + $0x3dc] sm:$0xf]
    %v278 = vld [vmem:[%s1 + $0x3e0] sm:$0xf]
    %v279 = vld [vmem:[%s1 + $0x3e4] sm:$0xf]
    %v280 = vld [vmem:[%s1 + $0x3e8] sm:$0xf]
    %v281 = vld [vmem:[%s1 + $0x3ec] sm:$0xf]
    %v282 = vld [vmem:[%s1 + $0x3f0] sm:$0xf]
    %v283 = vld [vmem:[%s1 + $0x3f4] sm:$0xf]
    %v284 = vld [vmem:[%s1 + $0x3f8] sm:$0xf]
    %v285 = vld [vmem:[%s1 + $0x3fc] sm:$0xf]
    %v286 = vld [vmem:[%s1 + $0x400] sm:$0xf]
    %v287 = vld [vmem:[%s1 + $0x404] sm:$0xf]
    %v288 = vld [vmem:[%s1 + $0x408] sm:$0xf]
    %v289 = vld [vmem:[%s1 + $0x40c] sm:$0xf]
    %v290 = vld [vmem:[%s1 + $0x410] sm:$0xf]
    %v291 = vld [vmem:[%s1 + $0x414] sm:$0xf]
    %v292 = vld [vmem:[%s1 + $0x418] sm:$0xf]
    %v293 = vld [vmem:[%s1 + $0x41c] sm:$0xf]
    %v294 = vld [vmem:[%s1 + $0x420] sm:$0xf]
    %v295 = vld [vmem:[%s1 + $0x424] sm:$0xf]
    %v296 = vld [vmem:[%s1 + $0x428] sm:$0xf]
    %v297 = vld [vmem:[%s1 + $0x42c] sm:$0xf]
    %v298 = vld [vmem:[%s1 + $0x430] sm:$0xf]
    %v299 = vld [vmem:[%s1 + $0x434] sm:$0xf]
    %v300 = vld [vmem:[%s1 + $0x438] sm:$0xf]
    %v301 = vld [vmem:[%s1 + $0x43c] sm:$0xf]
    %v302 = vld [vmem:[%s1 + $0x440] sm:$0xf]
    %v303 = vld [vmem:[%s1 + $0x444] sm:$0xf]
    %v304 = vld [vmem:[%s1 + $0x448] sm:$0xf]
    %v305 = vld [vmem:[%s1 + $0x44c] sm:$0xf]
    %v306 = vld [vmem:[%s1 + $0x450] sm:$0xf]
    %v307 = vld [vmem:[%s1 + $0x454] sm:$0xf]
    %v308 = vld [vmem:[%s1 + $0x458] sm:$0xf]
    %v309 = vld [vmem:[%s1 + $0x45c] sm:$0xf]
    %v310 = vld [vmem:[%s1 + $0x460] sm:$0xf]
    %v311 = vld [vmem:[%s1 + $0x464] sm:$0xf]
    %v312 = vld [vmem:[%s1 + $0x468] sm:$0xf]
    %v313 = vld [vmem:[%s1 + $0x46c] sm:$0xf]
    %v314 = vld [vmem:[%s1 + $0x470] sm:$0xf]
    %v315 = vld [vmem:[%s1 + $0x474] sm:$0xf]
    %v316 = vld [vmem:[%s1 + $0x478] sm:$0xf]
    %v317 = vld [vmem:[%s1 + $0x47c] sm:$0xf]
    %v318 = vld [vmem:[%s1 + $0x480] sm:$0xf]
    %v319 = vld [vmem:[%s1 + $0x484] sm:$0xf]
    %v320 = vld [vmem:[%s1 + $0x488] sm:$0xf]
    %v321 = vld [vmem:[%s1 + $0x48c] sm:$0xf]
    %v322 = vld [vmem:[%s1 + $0x490] sm:$0xf]
    %v323 = vld [vmem:[%s1 + $0x494] sm:$0xf]
    %v324 = vld [vmem:[%s1 + $0x498] sm:$0xf]
    %v325 = vld [vmem:[%s1 + $0x49c] sm:$0xf]
    %v326 = vld [vmem:[%s1 + $0x4a0] sm:$0xf]
    %v327 = vld [vmem:[%s1 + $0x4a4] sm:$0xf]
    %v328 = vld [vmem:[%s1 + $0x4a8] sm:$0xf]
    %v329 = vld [vmem:[%s1 + $0x4ac] sm:$0xf]
    %v330 = vld [vmem:[%s1 + $0x4b0] sm:$0xf]
    %v331 = vld [vmem:[%s1 + $0x4b4] sm:$0xf]
    %v332 = vld [vmem:[%s1 + $0x4b8] sm:$0xf]
    %v333 = vld [vmem:[%s1 + $0x4bc] sm:$0xf]
    %v334 = vld [vmem:[%s1 + $0x4c0] sm:$0xf]
    %v335 = vld [vmem:[%s1 + $0x4c4] sm:$0xf]
    %v336 = vld [vmem:[%s1 + $0x4c8] sm:$0xf]
    %v337 = vld [vmem:[%s1 + $0x4cc] sm:$0xf]
    %v338 = vld [vmem:[%s1 + $0x4d0] sm:$0xf]
    %v339 = vld [vmem:[%s1 + $0x4d4] sm:$0xf]
    %v340 = vld [vmem:[%s1 + $0x4d8] sm:$0xf]
    %v341 = vld [vmem:[%s1 + $0x4dc] sm:$0xf]
    %v342 = vld [vmem:[%s1 + $0x4e0] sm:$0xf]
    %v343 = vld [vmem:[%s1 + $0x4e4] sm:$0xf]
    %v344 = vld [vmem:[%s1 + $0x4e8] sm:$0xf]
    %v345 = vld [vmem:[%s1 + $0x4ec] sm:$0xf]
    %v346 = vld [vmem:[%s1 + $0x4f0] sm:$0xf]
    %v347 = vld [vmem:[%s1 + $0x4f4] sm:$0xf]
    %v348 = vld [vmem:[%s1 + $0x4f8] sm:$0xf]
    %v349 = vld [vmem:[%s1 + $0x4fc] sm:$0xf]
    %v350 = vld [vmem:[%s1 + $0x500] sm:$0xf]
    %v351 = vld [vmem:[%s1 + $0x504] sm:$0xf]
    %v352 = vld [vmem:[%s1 + $0x508] sm:$0xf]
    %v353 = vld [vmem:[%s1 + $0x50c] sm:$0xf]
    %v354 = vld [vmem:[%s1 + $0x510] sm:$0xf]
    %v355 = vld [vmem:[%s1 + $0x514] sm:$0xf]
    %v356 = vld [vmem:[%s1 + $0x518] sm:$0xf]
    %v357 = vld [vmem:[%s1 + $0x51c] sm:$0xf]
    %v358 = vld [vmem:[%s1 + $0x520] sm:$0xf]
    %v359 = vld [vmem:[%s1 + $0x524] sm:$0xf]
    %v360 = vld [vmem:[%s1 + $0x528] sm:$0xf]
    %v361 = vld [vmem:[%s1 + $0x52c] sm:$0xf]
    %v362 = vld [vmem:[%s1 + $0x530] sm:$0xf]
    %v363 = vld [vmem:[%s1 + $0x534] sm:$0xf]
    %v364 = vld [vmem:[%s1 + $0x538] sm:$0xf]
    %v365 = vld [vmem:[%s1 + $0x53c] sm:$0xf]
    %v366 = vld [vmem:[%s1 + $0x540] sm:$0xf]
    %v367 = vld [vmem:[%s1 + $0x544] sm:$0xf]
    %v368 = vld [vmem:[%s1 + $0x548] sm:$0xf]
    %v369 = vld [vmem:[%s1 + $0x54c] sm:$0xf]
    %v370 = vld [vmem:[%s1 + $0x550] sm:$0xf]
    %v371 = vld [vmem:[%s1 + $0x554] sm:$0xf]
    %v372 = vld [vmem:[%s1 + $0x558] sm:$0xf]
    %v373 = vld [vmem:[%s1 + $0x55c] sm:$0xf]
    %v374 = vld [vmem:[%s1 + $0x560] sm:$0xf]
    %v375 = vld [vmem:[%s1 + $0x564] sm:$0xf]
    %v376 = vld [vmem:[%s1 + $0x568] sm:$0xf]
    %v377 = vld [vmem:[%s1 + $0x56c] sm:$0xf]
    %v378 = vld [vmem:[%s1 + $0x570] sm:$0xf]
    %v379 = vld [vmem:[%s1 + $0x574] sm:$0xf]
    %v380 = vld [vmem:[%s1 + $0x578] sm:$0xf]
    %v381 = vld [vmem:[%s1 + $0x57c] sm:$0xf]
    %v382 = vld [vmem:[%s1 + $0x580] sm:$0xf]
    %v383 = vld [vmem:[%s1 + $0x584] sm:$0xf]
    %v384 = vld [vmem:[%s1 + $0x588] sm:$0xf]
    %v385 = vld [vmem:[%s1 + $0x58c] sm:$0xf]
    %v386 = vld [vmem:[%s1 + $0x590] sm:$0xf]
    %v387 = vld [vmem:[%s1 + $0x594] sm:$0xf]
    %v388 = vld [vmem:[%s1 + $0x598] sm:$0xf]
    %v389 = vld [vmem:[%s1 + $0x59c] sm:$0xf]
    %v390 = vld [vmem:[%s1 + $0x5a0] sm:$0xf]
    %v391 = vld [vmem:[%s1 + $0x5a4] sm:$0xf]
    %v392 = vld [vmem:[%s1 + $0x5a8] sm:$0xf]
    %v393 = vld [vmem:[%s1 + $0x5ac] sm:$0xf]
    %v394 = vld [vmem:[%s1 + $0x5b0] sm:$0xf]
    %v395 = vld [vmem:[%s1 + $0x5b4] sm:$0xf]
    %v396 = vld [vmem:[%s1 + $0x5b8] sm:$0xf]
    %v397 = vld [vmem:[%s1 + $0x5bc] sm:$0xf]
    %v398 = vld [vmem:[%s1 + $0x5c0] sm:$0xf]
    %v399 = vld [vmem:[%s1 + $0x5c4] sm:$0xf]
    %v400 = vld [vmem:[%s1 + $0x5c8] sm:$0xf]
    %v401 = vld [vmem:[%s1 + $0x5cc] sm:$0xf]
    %v402 = vld [vmem:[%s1 + $0x5d0] sm:$0xf]
    %v403 = vld [vmem:[%s1 + $0x5d4] sm:$0xf]
    %v404 = vld [vmem:[%s1 + $0x5d8] sm:$0xf]
    %v405 = vld [vmem:[%s1 + $0x5dc] sm:$0xf]
    %v406 = vld [vmem:[%s1 + $0x5e0] sm:$0xf]
    %v407 = vld [vmem:[%s1 + $0x5e4] sm:$0xf]
    %v408 = vld [vmem:[%s1 + $0x5e8] sm:$0xf]
    %v409 = vld [vmem:[%s1 + $0x5ec] sm:$0xf]
    %v410 = vld [vmem:[%s1 + $0x5f0] sm:$0xf]
    %v411 = vld [vmem:[%s1 + $0x5f4] sm:$0xf]
    %v412 = vld [vmem:[%s1 + $0x5f8] sm:$0xf]
    %v413 = vld [vmem:[%s1 + $0x5fc] sm:$0xf]
    %v414 = vld [vmem:[%s1 + $0x600] sm:$0xf]
    %v415 = vld [vmem:[%s1 + $0x604] sm:$0xf]
    %v416 = vld [vmem:[%s1 + $0x608] sm:$0xf]
    %v417 = vld [vmem:[%s1 + $0x60c] sm:$0xf]
    %v418 = vld [vmem:[%s1 + $0x610] sm:$0xf]
    %v419 = vld [vmem:[%s1 + $0x614] sm:$0xf]
    %v420 = vld [vmem:[%s1 + $0x618] sm:$0xf]
    %v421 = vld [vmem:[%s1 + $0x61c] sm:$0xf]
    %v422 = vld [vmem:[%s1 + $0x620] sm:$0xf]
    %v423 = vld [vmem:[%s1 + $0x624] sm:$0xf]
    %v424 = vld [vmem:[%s1 + $0x628] sm:$0xf]
    %v425 = vld [vmem:[%s1 + $0x62c] sm:$0xf]
    %v426 = vld [vmem:[%s1 + $0x630] sm:$0xf]
    %v427 = vld [vmem:[%s1 + $0x634] sm:$0xf]
    %v428 = vld [vmem:[%s1 + $0x638] sm:$0xf]
    %v429 = vld [vmem:[%s1 + $0x63c] sm:$0xf]
    %v430 = vld [vmem:[%s1 + $0x640] sm:$0xf]
    %v431 = vld [vmem:[%s1 + $0x644] sm:$0xf]
    %v432 = vld [vmem:[%s1 + $0x648] sm:$0xf]
    %v433 = vld [vmem:[%s1 + $0x64c] sm:$0xf]
    %v434 = vld [vmem:[%s1 + $0x650] sm:$0xf]
    %v435 = vld [vmem:[%s1 + $0x654] sm:$0xf]
    %v436 = vld [vmem:[%s1 + $0x658] sm:$0xf]
    %v437 = vld [vmem:[%s1 + $0x65c] sm:$0xf]
    %v438 = vld [vmem:[%s1 + $0x660] sm:$0xf]
    %v439 = vld [vmem:[%s1 + $0x664] sm:$0xf]
    %v440 = vld [vmem:[%s1 + $0x668] sm:$0xf]
    %v441 = vld [vmem:[%s1 + $0x66c] sm:$0xf]
    %v442 = vld [vmem:[%s1 + $0x670] sm:$0xf]
    %v443 = vld [vmem:[%s1 + $0x674] sm:$0xf]
    %v444 = vld [vmem:[%s1 + $0x678] sm:$0xf]
    %v445 = vld [vmem:[%s1 + $0x67c] sm:$0xf]
    %v446 = vld [vmem:[%s1 + $0x680] sm:$0xf]
    %v447 = vld [vmem:[%s1 + $0x684] sm:$0xf]
    %v448 = vld [vmem:[%s1 + $0x688] sm:$0xf]
    %v449 = vld [vmem:[%s1 + $0x68c] sm:$0xf]
    %v450 = vld [vmem:[%s1 + $0x690] sm:$0xf]
    %v451 = vld [vmem:[%s1 + $0x694] sm:$0xf]
    %v452 = vld [vmem:[%s1 + $0x698] sm:$0xf]
    %v453 = vld [vmem:[%s1 + $0x69c] sm:$0xf]
    %v454 = vld [vmem:[%s1 + $0x6a0] sm:$0xf]
    %v455 = vld [vmem:[%s1 + $0x6a4] sm:$0xf]
    %v456 = vld [vmem:[%s1 + $0x6a8] sm:$0xf]
    %v457 = vld [vmem:[%s1 + $0x6ac] sm:$0xf]
    %v458 = vld [vmem:[%s1 + $0x6b0] sm:$0xf]
    %v459 = vld [vmem:[%s1 + $0x6b4] sm:$0xf]
    %v460 = vld [vmem:[%s1 + $0x6b8] sm:$0xf]
    %v461 = vld [vmem:[%s1 + $0x6bc] sm:$0xf]
    %v462 = vld [vmem:[%s1 + $0x6c0] sm:$0xf]
    %v463 = vld [vmem:[%s1 + $0x6c4] sm:$0xf]
    %v464 = vld [vmem:[%s1 + $0x6c8] sm:$0xf]
    %v465 = vld [vmem:[%s1 + $0x6cc] sm:$0xf]
    %v466 = vld [vmem:[%s1 + $0x6d0] sm:$0xf]
    %v467 = vld [vmem:[%s1 + $0x6d4] sm:$0xf]
    %v468 = vld [vmem:[%s1 + $0x6d8] sm:$0xf]
    %v469 = vld [vmem:[%s1 + $0x6dc] sm:$0xf]
    %v470 = vld [vmem:[%s1 + $0x6e0] sm:$0xf]
    %v471 = vld [vmem:[%s1 + $0x6e4] sm:$0xf]
    %v472 = vld [vmem:[%s1 + $0x6e8] sm:$0xf]
    %v473 = vld [vmem:[%s1 + $0x6ec] sm:$0xf]
    %v474 = vld [vmem:[%s1 + $0x6f0] sm:$0xf]
    %v475 = vld [vmem:[%s1 + $0x6f4] sm:$0xf]
    %v476 = vld [vmem:[%s1 + $0x6f8] sm:$0xf]
    %v477 = vld [vmem:[%s1 + $0x6fc] sm:$0xf]
    %v478 = vld [vmem:[%s1 + $0x700] sm:$0xf]
    %v479 = vld [vmem:[%s1 + $0x704] sm:$0xf]
    %v480 = vld [vmem:[%s1 + $0x708] sm:$0xf]
    %v481 = vld [vmem:[%s1 + $0x70c] sm:$0xf]
    %v482 = vld [vmem:[%s1 + $0x710] sm:$0xf]
    %v483 = vld [vmem:[%s1 + $0x714] sm:$0xf]
    %v484 = vld [vmem:[%s1 + $0x718] sm:$0xf]
    %v485 = vld [vmem:[%s1 + $0x71c] sm:$0xf]
    %v486 = vld [vmem:[%s1 + $0x720] sm:$0xf]
    %v487 = vld [vmem:[%s1 + $0x724] sm:$0xf]
    %v488 = vld [vmem:[%s1 + $0x728] sm:$0xf]
    %v489 = vld [vmem:[%s1 + $0x72c] sm:$0xf]
    %v490 = vld [vmem:[%s1 + $0x730] sm:$0xf]
    %v491 = vld [vmem:[%s1 + $0x734] sm:$0xf]
    %v492 = vld [vmem:[%s1 + $0x738] sm:$0xf]
    %v493 = vld [vmem:[%s1 + $0x73c] sm:$0xf]
    %v494 = vld [vmem:[%s1 + $0x740] sm:$0xf]
    %v495 = vld [vmem:[%s1 + $0x744] sm:$0xf]
    %v496 = vld [vmem:[%s1 + $0x748] sm:$0xf]
    %v497 = vld [vmem:[%s1 + $0x74c] sm:$0xf]
    %v498 = vld [vmem:[%s1 + $0x750] sm:$0xf]
    %v499 = vld [vmem:[%s1 + $0x754] sm:$0xf]
    %v500 = vld [vmem:[%s1 + $0x758] sm:$0xf]
    %v501 = vld [vmem:[%s1 + $0x75c] sm:$0xf]
    %v502 = vld [vmem:[%s1 + $0x760] sm:$0xf]
    %v503 = vld [vmem:[%s1 + $0x764] sm:$0xf]
    %v504 = vld [vmem:[%s1 + $0x768] sm:$0xf]
    %v505 = vld [vmem:[%s1 + $0x76c] sm:$0xf]
    %v506 = vld [vmem:[%s1 + $0x770] sm:$0xf]
    %v507 = vld [vmem:[%s1 + $0x774] sm:$0xf]
    %v508 = vld [vmem:[%s1 + $0x778] sm:$0xf]
    %v509 = vld [vmem:[%s1 + $0x77c] sm:$0xf]
    %v510 = vld [vmem:[%s1 + $0x780] sm:$0xf]
    %v511 = vld [vmem:[%s1 + $0x784] sm:$0xf]
    %v512 = vld [vmem:[%s1 + $0x788] sm:$0xf]
    %v513 = vld [vmem:[%s1 + $0x78c] sm:$0xf]
    %v514 = vld [vmem:[%s1 + $0x790] sm:$0xf]
    %v515 = vld [vmem:[%s1 + $0x794] sm:$0xf]
    %v516 = vld [vmem:[%s1 + $0x798] sm:$0xf]
    %v517 = vld [vmem:[%s1 + $0x79c] sm:$0xf]
    %v518 = vld [vmem:[%s1 + $0x7a0] sm:$0xf]
    %v519 = vld [vmem:[%s1 + $0x7a4] sm:$0xf]
    %v520 = vld [vmem:[%s1 + $0x7a8] sm:$0xf]
    %v521 = vld [vmem:[%s1 + $0x7ac] sm:$0xf]
    %v522 = vld [vmem:[%s1 + $0x7b0] sm:$0xf]
    %v523 = vld [vmem:[%s1 + $0x7b4] sm:$0xf]
    %v524 = vld [vmem:[%s1 + $0x7b8] sm:$0xf]
    %v525 = vld [vmem:[%s1 + $0x7bc] sm:$0xf]
    %v526 = vld [vmem:[%s1 + $0x7c0] sm:$0xf]
    %v527 = vld [vmem:[%s1 + $0x7c4] sm:$0xf]
    %v528 = vld [vmem:[%s1 + $0x7c8] sm:$0xf]
    %v529 = vld [vmem:[%s1 + $0x7cc] sm:$0xf]
    %v530 = vld [vmem:[%s1 + $0x7d0] sm:$0xf]
    %v531 = vld [vmem:[%s1 + $0x7d4] sm:$0xf]
    %v532 = vld [vmem:[%s1 + $0x7d8] sm:$0xf]
    %v533 = vld [vmem:[%s1 + $0x7dc] sm:$0xf]
    %v534 = vld [vmem:[%s1 + $0x7e0] sm:$0xf]
    %v535 = vld [vmem:[%s1 + $0x7e4] sm:$0xf]
    %v536 = vld [vmem:[%s1 + $0x7e8] sm:$0xf]
    %v537 = vld [vmem:[%s1 + $0x7ec] sm:$0xf]
    %v538 = vld [vmem:[%s1 + $0x7f0] sm:$0xf]
    %v539 = vld [vmem:[%s1 + $0x7f4] sm:$0xf]
    %v540 = vld [vmem:[%s1 + $0x7f8] sm:$0xf]
    %v541 = vld [vmem:[%s1 + $0x7fc] sm:$0xf]
    %v542 = vld [vmem:[%s1 + $0x800] sm:$0xf]
    %v543 = vld [vmem:[%s1 + $0x804] sm:$0xf]
    %v544 = vld [vmem:[%s1 + $0x808] sm:$0xf]
    %v545 = vld [vmem:[%s1 + $0x80c] sm:$0xf]
    %v546 = vld [vmem:[%s1 + $0x810] sm:$0xf]
    %v547 = vld [vmem:[%s1 + $0x814] sm:$0xf]
    %v548 = vld [vmem:[%s1 + $0x818] sm:$0xf]
    %v549 = vld [vmem:[%s1 + $0x81c] sm:$0xf]
    %v550 = vld [vmem:[%s1 + $0x820] sm:$0xf]
    %v551 = vld [vmem:[%s1 + $0x824] sm:$0xf]
    %v552 = vld [vmem:[%s1 + $0x828] sm:$0xf]
    %v553 = vld [vmem:[%s1 + $0x82c] sm:$0xf]
    %v554 = vld [vmem:[%s1 + $0x830] sm:$0xf]
    %v555 = vld [vmem:[%s1 + $0x834] sm:$0xf]
    %v556 = vld [vmem:[%s1 + $0x838] sm:$0xf]
    %v557 = vld [vmem:[%s1 + $0x83c] sm:$0xf]
    %v558 = vld [vmem:[%s1 + $0x840] sm:$0xf]
    %v559 = vld [vmem:[%s1 + $0x844] sm:$0xf]
    %v560 = vld [vmem:[%s1 + $0x848] sm:$0xf]
    %v561 = vld [vmem:[%s1 + $0x84c] sm:$0xf]
    %v562 = vld [vmem:[%s1 + $0x850] sm:$0xf]
    %v563 = vld [vmem:[%s1 + $0x854] sm:$0xf]
    %v564 = vld [vmem:[%s1 + $0x858] sm:$0xf]
    %v565 = vld [vmem:[%s1 + $0x85c] sm:$0xf]
    %v566 = vld [vmem:[%s1 + $0x860] sm:$0xf]
    %v567 = vld [vmem:[%s1 + $0x864] sm:$0xf]
    %v568 = vld [vmem:[%s1 + $0x868] sm:$0xf]
    %v569 = vld [vmem:[%s1 + $0x86c] sm:$0xf]
    %v570 = vld [vmem:[%s1 + $0x870] sm:$0xf]
    %v571 = vld [vmem:[%s1 + $0x874] sm:$0xf]
    %v572 = vld [vmem:[%s1 + $0x878] sm:$0xf]
    %v573 = vld [vmem:[%s1 + $0x87c] sm:$0xf]
    %v574 = vld [vmem:[%s1 + $0x880] sm:$0xf]
    %v575 = vld [vmem:[%s1 + $0x884] sm:$0xf]
    %v576 = vld [vmem:[%s1 + $0x888] sm:$0xf]
    %v577 = vld [vmem:[%s1 + $0x88c] sm:$0xf]
    %v578 = vld [vmem:[%s1 + $0x890] sm:$0xf]
    %v579 = vld [vmem:[%s1 + $0x894] sm:$0xf]
    %v580 = vld [vmem:[%s1 + $0x898] sm:$0xf]
    %v581 = vld [vmem:[%s1 + $0x89c] sm:$0xf]
    %v582 = vld [vmem:[%s1 + $0x8a0] sm:$0xf]
    %v583 = vld [vmem:[%s1 + $0x8a4] sm:$0xf]
    %v584 = vld [vmem:[%s1 + $0x8a8] sm:$0xf]
    %v585 = vld [vmem:[%s1 + $0x8ac] sm:$0xf]
    %v586 = vld [vmem:[%s1 + $0x8b0] sm:$0xf]
    %v587 = vld [vmem:[%s1 + $0x8b4] sm:$0xf]
    %v588 = vld [vmem:[%s1 + $0x8b8] sm:$0xf]
    %v589 = vld [vmem:[%s1 + $0x8bc] sm:$0xf]
    %v590 = vld [vmem:[%s1 + $0x8c0] sm:$0xf]
    %v591 = vld [vmem:[%s1 + $0x8c4] sm:$0xf]
    %v592 = vld [vmem:[%s1 + $0x8c8] sm:$0xf]
    %v593 = vld [vmem:[%s1 + $0x8cc] sm:$0xf]
    %v594 = vld [vmem:[%s1 + $0x8d0] sm:$0xf]
    %v595 = vld [vmem:[%s1 + $0x8d4] sm:$0xf]
    %v596 = vld [vmem:[%s1 + $0x8d8] sm:$0xf]
    %v597 = vld [vmem:[%s1 + $0x8dc] sm:$0xf]
    %v598 = vld [vmem:[%s1 + $0x8e0] sm:$0xf]
    %v599 = vld [vmem:[%s1 + $0x8e4] sm:$0xf]
    %v600 = vld [vmem:[%s1 + $0x8e8] sm:$0xf]
    %v601 = vld [vmem:[%s1 + $0x8ec] sm:$0xf]
    %v602 = vld [vmem:[%s1 + $0x8f0] sm:$0xf]
    %v603 = vld [vmem:[%s1 + $0x8f4] sm:$0xf]
    %v604 = vld [vmem:[%s1 + $0x8f8] sm:$0xf]
    %v605 = vld [vmem:[%s1 + $0x8fc] sm:$0xf]
    %v606 = vld [vmem:[%s1 + $0x900] sm:$0xf]
    %v607 = vld [vmem:[%s1 + $0x904] sm:$0xf]
    %v608 = vld [vmem:[%s1 + $0x908] sm:$0xf]
    %v609 = vld [vmem:[%s1 + $0x90c] sm:$0xf]
    %v610 = vld [vmem:[%s1 + $0x910] sm:$0xf]
    %v611 = vld [vmem:[%s1 + $0x914] sm:$0xf]
    %v612 = vld [vmem:[%s1 + $0x918] sm:$0xf]
    %v613 = vld [vmem:[%s1 + $0x91c] sm:$0xf]
    %v614 = vld [vmem:[%s1 + $0x920] sm:$0xf]
    %v615 = vld [vmem:[%s1 + $0x924] sm:$0xf]
    %v616 = vld [vmem:[%s1 + $0x928] sm:$0xf]
    %v617 = vld [vmem:[%s1 + $0x92c] sm:$0xf]
    %v618 = vld [vmem:[%s1 + $0x930] sm:$0xf]
    %v619 = vld [vmem:[%s1 + $0x934] sm:$0xf]
    %v620 = vld [vmem:[%s1 + $0x938] sm:$0xf]
    %v621 = vld [vmem:[%s1 + $0x93c] sm:$0xf]
    %v622 = vld [vmem:[%s1 + $0x940] sm:$0xf]
    %v623 = vld [vmem:[%s1 + $0x944] sm:$0xf]
    %v624 = vld [vmem:[%s1 + $0x948] sm:$0xf]
    %v625 = vld [vmem:[%s1 + $0x94c] sm:$0xf]
    %v626 = vld [vmem:[%s1 + $0x950] sm:$0xf]
    %v627 = vld [vmem:[%s1 + $0x954] sm:$0xf]
    %v628 = vld [vmem:[%s1 + $0x958] sm:$0xf]
    %v629 = vld [vmem:[%s1 + $0x95c] sm:$0xf]
    %v630 = vld [vmem:[%s1 + $0x960] sm:$0xf]
    %v631 = vld [vmem:[%s1 + $0x964] sm:$0xf]
    %v632 = vld [vmem:[%s1 + $0x968] sm:$0xf]
    %v633 = vld [vmem:[%s1 + $0x96c] sm:$0xf]
    %v634 = vld [vmem:[%s1 + $0x970] sm:$0xf]
    %v635 = vld [vmem:[%s1 + $0x974] sm:$0xf]
    %v636 = vld [vmem:[%s1 + $0x978] sm:$0xf]
    %v637 = vld [vmem:[%s1 + $0x97c] sm:$0xf]
    %v638 = vld [vmem:[%s1 + $0x980] sm:$0xf]
    %v639 = vld [vmem:[%s1 + $0x984] sm:$0xf]
    %v640 = vld [vmem:[%s1 + $0x988] sm:$0xf]
    %v641 = vld [vmem:[%s1 + $0x98c] sm:$0xf]
    %v642 = vld [vmem:[%s1 + $0x990] sm:$0xf]
    %v643 = vld [vmem:[%s1 + $0x994] sm:$0xf]
    %v644 = vld [vmem:[%s1 + $0x998] sm:$0xf]
    %v645 = vld [vmem:[%s1 + $0x99c] sm:$0xf]
    %v646 = vld [vmem:[%s1 + $0x9a0] sm:$0xf]
    %v647 = vld [vmem:[%s1 + $0x9a4] sm:$0xf]
    %v648 = vld [vmem:[%s1 + $0x9a8] sm:$0xf]
    %v649 = vld [vmem:[%s1 + $0x9ac] sm:$0xf]
    %v650 = vld [vmem:[%s1 + $0x9b0] sm:$0xf]
    %v651 = vld [vmem:[%s1 + $0x9b4] sm:$0xf]
    %v652 = vld [vmem:[%s1 + $0x9b8] sm:$0xf]
    %v653 = vld [vmem:[%s1 + $0x9bc] sm:$0xf]
    %v654 = vld [vmem:[%s1 + $0x9c0] sm:$0xf]
    %v655 = vld [vmem:[%s1 + $0x9c4] sm:$0xf]
    %v656 = vld [vmem:[%s1 + $0x9c8] sm:$0xf]
    %v657 = vld [vmem:[%s1 + $0x9cc] sm:$0xf]
    %v658 = vld [vmem:[%s1 + $0x9d0] sm:$0xf]
    %v659 = vld [vmem:[%s1 + $0x9d4] sm:$0xf]
    %v660 = vld [vmem:[%s1 + $0x9d8] sm:$0xf]
    %v661 = vld [vmem:[%s1 + $0x9dc] sm:$0xf]
    %v662 = vld [vmem:[%s1 + $0x9e0] sm:$0xf]
    %v663 = vld [vmem:[%s1 + $0x9e4] sm:$0xf]
    %v664 = vld [vmem:[%s1 + $0x9e8] sm:$0xf]
    %v665 = vld [vmem:[%s1 + $0x9ec] sm:$0xf]
    %v666 = vld [vmem:[%s1 + $0x9f0] sm:$0xf]
    %v667 = vld [vmem:[%s1 + $0x9f4] sm:$0xf]
    %v668 = vld [vmem:[%s1 + $0x9f8] sm:$0xf]
    %v669 = vld [vmem:[%s1 + $0x9fc] sm:$0xf]
    %v670 = vld [vmem:[%s1 + $0xa00] sm:$0xf]
    %v671 = vld [vmem:[%s1 + $0xa04] sm:$0xf]
    %v672 = vld [vmem:[%s1 + $0xa08] sm:$0xf]
    %v673 = vld [vmem:[%s1 + $0xa0c] sm:$0xf]
    %v674 = vld [vmem:[%s1 + $0xa10] sm:$0xf]
    %v675 = vld [vmem:[%s1 + $0xa14] sm:$0xf]
    %v676 = vld [vmem:[%s1 + $0xa18] sm:$0xf]
    %v677 = vld [vmem:[%s1 + $0xa1c] sm:$0xf]
    %v678 = vld [vmem:[%s1 + $0xa20] sm:$0xf]
    %v679 = vld [vmem:[%s1 + $0xa24] sm:$0xf]
    %v680 = vld [vmem:[%s1 + $0xa28] sm:$0xf]
    %v681 = vld [vmem:[%s1 + $0xa2c] sm:$0xf]
    %v682 = vld [vmem:[%s1 + $0xa30] sm:$0xf]
    %v683 = vld [vmem:[%s1 + $0xa34] sm:$0xf]
    %v684 = vld [vmem:[%s1 + $0xa38] sm:$0xf]
    %v685 = vld [vmem:[%s1 + $0xa3c] sm:$0xf]
    %v686 = vld [vmem:[%s1 + $0xa40] sm:$0xf]
    %v687 = vld [vmem:[%s1 + $0xa44] sm:$0xf]
    %v688 = vld [vmem:[%s1 + $0xa48] sm:$0xf]
    %v689 = vld [vmem:[%s1 + $0xa4c] sm:$0xf]
    %v690 = vld [vmem:[%s1 + $0xa50] sm:$0xf]
    %v691 = vld [vmem:[%s1 + $0xa54] sm:$0xf]
    %v692 = vld [vmem:[%s1 + $0xa58] sm:$0xf]
    %v693 = vld [vmem:[%s1 + $0xa5c] sm:$0xf]
    %v694 = vld [vmem:[%s1 + $0xa60] sm:$0xf]
    %v695 = vld [vmem:[%s1 + $0xa64] sm:$0xf]
    %v696 = vld [vmem:[%s1 + $0xa68] sm:$0xf]
    %v697 = vld [vmem:[%s1 + $0xa6c] sm:$0xf]
    %v698 = vld [vmem:[%s1 + $0xa70] sm:$0xf]
    %v699 = vld [vmem:[%s1 + $0xa74] sm:$0xf]
    %v700 = vld [vmem:[%s1 + $0xa78] sm:$0xf]
    %v701 = vld [vmem:[%s1 + $0xa7c] sm:$0xf]
    %v702 = vld [vmem:[%s1 + $0xa80] sm:$0xf]
    %v703 = vld [vmem:[%s1 + $0xa84] sm:$0xf]
    %v704 = vld [vmem:[%s1 + $0xa88] sm:$0xf]
    %v705 = vld [vmem:[%s1 + $0xa8c] sm:$0xf]
    %v706 = vld [vmem:[%s1 + $0xa90] sm:$0xf]
    %v707 = vld [vmem:[%s1 + $0xa94] sm:$0xf]
    %v708 = vld [vmem:[%s1 + $0xa98] sm:$0xf]
    %v709 = vld [vmem:[%s1 + $0xa9c] sm:$0xf]
    %v710 = vld [vmem:[%s1 + $0xaa0] sm:$0xf]
    %v711 = vld [vmem:[%s1 + $0xaa4] sm:$0xf]
    %v712 = vld [vmem:[%s1 + $0xaa8] sm:$0xf]
    %v713 = vld [vmem:[%s1 + $0xaac] sm:$0xf]
    %v714 = vld [vmem:[%s1 + $0xab0] sm:$0xf]
    %v715 = vld [vmem:[%s1 + $0xab4] sm:$0xf]
    %v716 = vld [vmem:[%s1 + $0xab8] sm:$0xf]
    %v717 = vld [vmem:[%s1 + $0xabc] sm:$0xf]
    %v718 = vld [vmem:[%s1 + $0xac0] sm:$0xf]
    %v719 = vld [vmem:[%s1 + $0xac4] sm:$0xf]
    %v720 = vld [vmem:[%s1 + $0xac8] sm:$0xf]
    %v721 = vld [vmem:[%s1 + $0xacc] sm:$0xf]
    %v722 = vld [vmem:[%s1 + $0xad0] sm:$0xf]
    %v723 = vld [vmem:[%s1 + $0xad4] sm:$0xf]
    %v724 = vld [vmem:[%s1 + $0xad8] sm:$0xf]
    %v725 = vld [vmem:[%s1 + $0xadc] sm:$0xf]
    %v726 = vld [vmem:[%s1 + $0xae0] sm:$0xf]
    %v727 = vld [vmem:[%s1 + $0xae4] sm:$0xf]
    %v728 = vld [vmem:[%s1 + $0xae8] sm:$0xf]
    %v729 = vld [vmem:[%s1 + $0xaec] sm:$0xf]
    %v730 = vld [vmem:[%s1 + $0xaf0] sm:$0xf]
    %v731 = vld [vmem:[%s1 + $0xaf4] sm:$0xf]
    %v732 = vld [vmem:[%s1 + $0xaf8] sm:$0xf]
    %v733 = vld [vmem:[%s1 + $0xafc] sm:$0xf]
    %v734 = vld [vmem:[%s1 + $0xb00] sm:$0xf]
    %v735 = vld [vmem:[%s1 + $0xb04] sm:$0xf]
    %v736 = vld [vmem:[%s1 + $0xb08] sm:$0xf]
    %v737 = vld [vmem:[%s1 + $0xb0c] sm:$0xf]
    %v738 = vld [vmem:[%s1 + $0xb10] sm:$0xf]
    %v739 = vld [vmem:[%s1 + $0xb14] sm:$0xf]
    %v740 = vld [vmem:[%s1 + $0xb18] sm:$0xf]
    %v741 = vld [vmem:[%s1 + $0xb1c] sm:$0xf]
    %v742 = vld [vmem:[%s1 + $0xb20] sm:$0xf]
    %v743 = vld [vmem:[%s1 + $0xb24] sm:$0xf]
    %v744 = vld [vmem:[%s1 + $0xb28] sm:$0xf]
    %v745 = vld [vmem:[%s1 + $0xb2c] sm:$0xf]
    %v746 = vld [vmem:[%s1 + $0xb30] sm:$0xf]
    %v747 = vld [vmem:[%s1 + $0xb34] sm:$0xf]
    %v748 = vld [vmem:[%s1 + $0xb38] sm:$0xf]
    %v749 = vld [vmem:[%s1 + $0xb3c] sm:$0xf]
    %v750 = vld [vmem:[%s1 + $0xb40] sm:$0xf]
    %v751 = vld [vmem:[%s1 + $0xb44] sm:$0xf]
    %v752 = vld [vmem:[%s1 + $0xb48] sm:$0xf]
    %v753 = vld [vmem:[%s1 + $0xb4c] sm:$0xf]
    %v754 = vld [vmem:[%s1 + $0xb50] sm:$0xf]
    %v755 = vld [vmem:[%s1 + $0xb54] sm:$0xf]
    %v756 = vld [vmem:[%s1 + $0xb58] sm:$0xf]
    %v757 = vld [vmem:[%s1 + $0xb5c] sm:$0xf]
    %v758 = vld [vmem:[%s1 + $0xb60] sm:$0xf]
    %v759 = vld [vmem:[%s1 + $0xb64] sm:$0xf]
    %v760 = vld [vmem:[%s1 + $0xb68] sm:$0xf]
    %v761 = vld [vmem:[%s1 + $0xb6c] sm:$0xf]
    %v762 = vld [vmem:[%s1 + $0xb70] sm:$0xf]
    %v763 = vld [vmem:[%s1 + $0xb74] sm:$0xf]
    %v764 = vld [vmem:[%s1 + $0xb78] sm:$0xf]
    %v765 = vld [vmem:[%s1 + $0xb7c] sm:$0xf]
    %v766 = vld [vmem:[%s1 + $0xb80] sm:$0xf]
    %v767 = vld [vmem:[%s1 + $0xb84] sm:$0xf]
    %v768 = vld [vmem:[%s1 + $0xb88] sm:$0xf]
    %v769 = vld [vmem:[%s1 + $0xb8c] sm:$0xf]
    %v770 = vld [vmem:[%s1 + $0xb90] sm:$0xf]
    %v771 = vld [vmem:[%s1 + $0xb94] sm:$0xf]
    %v772 = vld [vmem:[%s1 + $0xb98] sm:$0xf]
    %v773 = vld [vmem:[%s1 + $0xb9c] sm:$0xf]
    %v774 = vld [vmem:[%s1 + $0xba0] sm:$0xf]
    %v775 = vld [vmem:[%s1 + $0xba4] sm:$0xf]
    %v776 = vld [vmem:[%s1 + $0xba8] sm:$0xf]
    %v777 = vld [vmem:[%s1 + $0xbac] sm:$0xf]
    %v778 = vld [vmem:[%s1 + $0xbb0] sm:$0xf]
    %v779 = vld [vmem:[%s1 + $0xbb4] sm:$0xf]
    %v780 = vld [vmem:[%s1 + $0xbb8] sm:$0xf]
    %v781 = vld [vmem:[%s1 + $0xbbc] sm:$0xf]
    %v782 = vld [vmem:[%s1 + $0xbc0] sm:$0xf]
    %v783 = vld [vmem:[%s1 + $0xbc4] sm:$0xf]
    %v784 = vld [vmem:[%s1 + $0xbc8] sm:$0xf]
    %v785 = vld [vmem:[%s1 + $0xbcc] sm:$0xf]
    %v786 = vld [vmem:[%s1 + $0xbd0] sm:$0xf]
    %v787 = vld [vmem:[%s1 + $0xbd4] sm:$0xf]
    %v788 = vld [vmem:[%s1 + $0xbd8] sm:$0xf]
    %v789 = vld [vmem:[%s1 + $0xbdc] sm:$0xf]
    %v790 = vld [vmem:[%s1 + $0xbe0] sm:$0xf]
    %v791 = vld [vmem:[%s1 + $0xbe4] sm:$0xf]
    %v792 = vld [vmem:[%s1 + $0xbe8] sm:$0xf]
    %v793 = vld [vmem:[%s1 + $0xbec] sm:$0xf]
    %v794 = vld [vmem:[%s1 + $0xbf0] sm:$0xf]
    %v795 = vld [vmem:[%s1 + $0xbf4] sm:$0xf]
    %v796 = vld [vmem:[%s1 + $0xbf8] sm:$0xf]
    %v797 = vld [vmem:[%s1 + $0xbfc] sm:$0xf]
    %v798 = vld [vmem:[%s1 + $0xc00] sm:$0xf]
    %v799 = vld [vmem:[%s1 + $0xc04] sm:$0xf]
    %v800 = vld [vmem:[%s1 + $0xc08] sm:$0xf]
    %v801 = vld [vmem:[%s1 + $0xc0c] sm:$0xf]
    %v802 = vld [vmem:[%s1 + $0xc10] sm:$0xf]
    %v803 = vld [vmem:[%s1 + $0xc14] sm:$0xf]
    %v804 = vld [vmem:[%s1 + $0xc18] sm:$0xf]
    %v805 = vld [vmem:[%s1 + $0xc1c] sm:$0xf]
    %v806 = vld [vmem:[%s1 + $0xc20] sm:$0xf]
    %v807 = vld [vmem:[%s1 + $0xc24] sm:$0xf]
    %v808 = vld [vmem:[%s1 + $0xc28] sm:$0xf]
    %v809 = vld [vmem:[%s1 + $0xc2c] sm:$0xf]
    %v810 = vld [vmem:[%s1 + $0xc30] sm:$0xf]
    %v811 = vld [vmem:[%s1 + $0xc34] sm:$0xf]
    %v812 = vld [vmem:[%s1 + $0xc38] sm:$0xf]
    %v813 = vld [vmem:[%s1 + $0xc3c] sm:$0xf]
    %v814 = vld [vmem:[%s1 + $0xc40] sm:$0xf]
    %v815 = vld [vmem:[%s1 + $0xc44] sm:$0xf]
    %v816 = vld [vmem:[%s1 + $0xc48] sm:$0xf]
    %v817 = vld [vmem:[%s1 + $0xc4c] sm:$0xf]
    %v818 = vld [vmem:[%s1 + $0xc50] sm:$0xf]
    %v819 = vld [vmem:[%s1 + $0xc54] sm:$0xf]
    %v820 = vld [vmem:[%s1 + $0xc58] sm:$0xf]
    %v821 = vld [vmem:[%s1 + $0xc5c] sm:$0xf]
    %v822 = vld [vmem:[%s1 + $0xc60] sm:$0xf]
    %v823 = vld [vmem:[%s1 + $0xc64] sm:$0xf]
    %v824 = vld [vmem:[%s1 + $0xc68] sm:$0xf]
    %v825 = vld [vmem:[%s1 + $0xc6c] sm:$0xf]
    %v826 = vld [vmem:[%s1 + $0xc70] sm:$0xf]
    %v827 = vld [vmem:[%s1 + $0xc74] sm:$0xf]
    %v828 = vld [vmem:[%s1 + $0xc78] sm:$0xf]
    %v829 = vld [vmem:[%s1 + $0xc7c] sm:$0xf]
    %v830 = vld [vmem:[%s1 + $0xc80] sm:$0xf]
    %v831 = vld [vmem:[%s1 + $0xc84] sm:$0xf]
    %v832 = vld [vmem:[%s1 + $0xc88] sm:$0xf]
    %v833 = vld [vmem:[%s1 + $0xc8c] sm:$0xf]
    %v834 = vld [vmem:[%s1 + $0xc90] sm:$0xf]
    %v835 = vld [vmem:[%s1 + $0xc94] sm:$0xf]
    %v836 = vld [vmem:[%s1 + $0xc98] sm:$0xf]
    %v837 = vld [vmem:[%s1 + $0xc9c] sm:$0xf]
    %v838 = vld [vmem:[%s1 + $0xca0] sm:$0xf]
    %v839 = vld [vmem:[%s1 + $0xca4] sm:$0xf]
    %v840 = vld [vmem:[%s1 + $0xca8] sm:$0xf]
    %v841 = vld [vmem:[%s1 + $0xcac] sm:$0xf]
    %v842 = vld [vmem:[%s1 + $0xcb0] sm:$0xf]
    %v843 = vld [vmem:[%s1 + $0xcb4] sm:$0xf]
    %v844 = vld [vmem:[%s1 + $0xcb8] sm:$0xf]
    %v845 = vld [vmem:[%s1 + $0xcbc] sm:$0xf]
    %v846 = vld [vmem:[%s1 + $0xcc0] sm:$0xf]
    %v847 = vld [vmem:[%s1 + $0xcc4] sm:$0xf]
    %v848 = vld [vmem:[%s1 + $0xcc8] sm:$0xf]
    %v849 = vld [vmem:[%s1 + $0xccc] sm:$0xf]
    %v850 = vld [vmem:[%s1 + $0xcd0] sm:$0xf]
    %v851 = vld [vmem:[%s1 + $0xcd4] sm:$0xf]
    %v852 = vld [vmem:[%s1 + $0xcd8] sm:$0xf]
    %v853 = vld [vmem:[%s1 + $0xcdc] sm:$0xf]
    %v854 = vld [vmem:[%s1 + $0xce0] sm:$0xf]
    %v855 = vld [vmem:[%s1 + $0xce4] sm:$0xf]
    %v856 = vld [vmem:[%s1 + $0xce8] sm:$0xf]
    %v857 = vld [vmem:[%s1 + $0xcec] sm:$0xf]
    %v858 = vld [vmem:[%s1 + $0xcf0] sm:$0xf]
    %v859 = vld [vmem:[%s1 + $0xcf4] sm:$0xf]
    %v860 = vld [vmem:[%s1 + $0xcf8] sm:$0xf]
    %v861 = vld [vmem:[%s1 + $0xcfc] sm:$0xf]
    %v862 = vld [vmem:[%s1 + $0xd00] sm:$0xf]
    %v863 = vld [vmem:[%s1 + $0xd04] sm:$0xf]
    %v864 = vld [vmem:[%s1 + $0xd08] sm:$0xf]
    %v865 = vld [vmem:[%s1 + $0xd0c] sm:$0xf]
    %v866 = vld [vmem:[%s1 + $0xd10] sm:$0xf]
    %v867 = vld [vmem:[%s1 + $0xd14] sm:$0xf]
    %v868 = vld [vmem:[%s1 + $0xd18] sm:$0xf]
    %v869 = vld [vmem:[%s1 + $0xd1c] sm:$0xf]
    %v870 = vld [vmem:[%s1 + $0xd20] sm:$0xf]
    %v871 = vld [vmem:[%s1 + $0xd24] sm:$0xf]
    %v872 = vld [vmem:[%s1 + $0xd28] sm:$0xf]
    %v873 = vld [vmem:[%s1 + $0xd2c] sm:$0xf]
    %v874 = vld [vmem:[%s1 + $0xd30] sm:$0xf]
    %v875 = vld [vmem:[%s1 + $0xd34] sm:$0xf]
    %v876 = vld [vmem:[%s1 + $0xd38] sm:$0xf]
    %v877 = vld [vmem:[%s1 + $0xd3c] sm:$0xf]
    %v878 = vld [vmem:[%s1 + $0xd40] sm:$0xf]
    %v879 = vld [vmem:[%s1 + $0xd44] sm:$0xf]
    %v880 = vld [vmem:[%s1 + $0xd48] sm:$0xf]
    %v881 = vld [vmem:[%s1 + $0xd4c] sm:$0xf]
    %v882 = vld [vmem:[%s1 + $0xd50] sm:$0xf]
    %v883 = vld [vmem:[%s1 + $0xd54] sm:$0xf]
    %v884 = vld [vmem:[%s1 + $0xd58] sm:$0xf]
    %v885 = vld [vmem:[%s1 + $0xd5c] sm:$0xf]
    %v886 = vld [vmem:[%s1 + $0xd60] sm:$0xf]
    %v887 = vld [vmem:[%s1 + $0xd64] sm:$0xf]
    %v888 = vld [vmem:[%s1 + $0xd68] sm:$0xf]
    %v889 = vld [vmem:[%s1 + $0xd6c] sm:$0xf]
    %v890 = vld [vmem:[%s1 + $0xd70] sm:$0xf]
    %v891 = vld [vmem:[%s1 + $0xd74] sm:$0xf]
    %v892 = vld [vmem:[%s1 + $0xd78] sm:$0xf]
    %v893 = vld [vmem:[%s1 + $0xd7c] sm:$0xf]
    %v894 = vld [vmem:[%s1 + $0xd80] sm:$0xf]
    %v895 = vld [vmem:[%s1 + $0xd84] sm:$0xf]
    %v896 = vld [vmem:[%s1 + $0xd88] sm:$0xf]
    %v897 = vld [vmem:[%s1 + $0xd8c] sm:$0xf]
    %v898 = vld [vmem:[%s1 + $0xd90] sm:$0xf]
    %v899 = vld [vmem:[%s1 + $0xd94] sm:$0xf]
    %v900 = vld [vmem:[%s1 + $0xd98] sm:$0xf]
    %v901 = vld [vmem:[%s1 + $0xd9c] sm:$0xf]
    %v902 = vld [vmem:[%s1 + $0xda0] sm:$0xf]
    %v903 = vld [vmem:[%s1 + $0xda4] sm:$0xf]
    %v904 = vld [vmem:[%s1 + $0xda8] sm:$0xf]
    %v905 = vld [vmem:[%s1 + $0xdac] sm:$0xf]
    %v906 = vld [vmem:[%s1 + $0xdb0] sm:$0xf]
    %v907 = vld [vmem:[%s1 + $0xdb4] sm:$0xf]
    %v908 = vld [vmem:[%s1 + $0xdb8] sm:$0xf]
    %v909 = vld [vmem:[%s1 + $0xdbc] sm:$0xf]
    %v910 = vld [vmem:[%s1 + $0xdc0] sm:$0xf]
    %v911 = vld [vmem:[%s1 + $0xdc4] sm:$0xf]
    %v912 = vld [vmem:[%s1 + $0xdc8] sm:$0xf]
    %v913 = vld [vmem:[%s1 + $0xdcc] sm:$0xf]
    %v914 = vld [vmem:[%s1 + $0xdd0] sm:$0xf]
    %v915 = vld [vmem:[%s1 + $0xdd4] sm:$0xf]
    %v916 = vld [vmem:[%s1 + $0xdd8] sm:$0xf]
    %v917 = vld [vmem:[%s1 + $0xddc] sm:$0xf]
    %v918 = vld [vmem:[%s1 + $0xde0] sm:$0xf]
    %v919 = vld [vmem:[%s1 + $0xde4] sm:$0xf]
    %v920 = vld [vmem:[%s1 + $0xde8] sm:$0xf]
    %v921 = vld [vmem:[%s1 + $0xdec] sm:$0xf]
    %v922 = vld [vmem:[%s1 + $0xdf0] sm:$0xf]
    %v923 = vld [vmem:[%s1 + $0xdf4] sm:$0xf]
    %v924 = vld [vmem:[%s1 + $0xdf8] sm:$0xf]
    %v925 = vld [vmem:[%s1 + $0xdfc] sm:$0xf]
    %v926 = vld [vmem:[%s1 + $0xe00] sm:$0xf]
    %v927 = vld [vmem:[%s1 + $0xe04] sm:$0xf]
    %v928 = vld [vmem:[%s1 + $0xe08] sm:$0xf]
    %v929 = vld [vmem:[%s1 + $0xe0c] sm:$0xf]
    %v930 = vld [vmem:[%s1 + $0xe10] sm:$0xf]
    %v931 = vld [vmem:[%s1 + $0xe14] sm:$0xf]
    %v932 = vld [vmem:[%s1 + $0xe18] sm:$0xf]
    %v933 = vld [vmem:[%s1 + $0xe1c] sm:$0xf]
    %v934 = vld [vmem:[%s1 + $0xe20] sm:$0xf]
    %v935 = vld [vmem:[%s1 + $0xe24] sm:$0xf]
    %v936 = vld [vmem:[%s1 + $0xe28] sm:$0xf]
    %v937 = vld [vmem:[%s1 + $0xe2c] sm:$0xf]
    %v938 = vld [vmem:[%s1 + $0xe30] sm:$0xf]
    %v939 = vld [vmem:[%s1 + $0xe34] sm:$0xf]
    %v940 = vld [vmem:[%s1 + $0xe38] sm:$0xf]
    %v941 = vld [vmem:[%s1 + $0xe3c] sm:$0xf]
    %v942 = vld [vmem:[%s1 + $0xe40] sm:$0xf]
    %v943 = vld [vmem:[%s1 + $0xe44] sm:$0xf]
    %v944 = vld [vmem:[%s1 + $0xe48] sm:$0xf]
    %v945 = vld [vmem:[%s1 + $0xe4c] sm:$0xf]
    %v946 = vld [vmem:[%s1 + $0xe50] sm:$0xf]
    %v947 = vld [vmem:[%s1 + $0xe54] sm:$0xf]
    %v948 = vld [vmem:[%s1 + $0xe58] sm:$0xf]
    %v949 = vld [vmem:[%s1 + $0xe5c] sm:$0xf]
    %v950 = vld [vmem:[%s1 + $0xe60] sm:$0xf]
    %v951 = vld [vmem:[%s1 + $0xe64] sm:$0xf]
    %v952 = vld [vmem:[%s1 + $0xe68] sm:$0xf]
    %v953 = vld [vmem:[%s1 + $0xe6c] sm:$0xf]
    %v954 = vld [vmem:[%s1 + $0xe70] sm:$0xf]
    %v955 = vld [vmem:[%s1 + $0xe74] sm:$0xf]
    %v956 = vld [vmem:[%s1 + $0xe78] sm:$0xf]
    %v957 = vld [vmem:[%s1 + $0xe7c] sm:$0xf]
    %v958 = vld [vmem:[%s1 + $0xe80] sm:$0xf]
    %v959 = vld [vmem:[%s1 + $0xe84] sm:$0xf]
    %v960 = vld [vmem:[%s1 + $0xe88] sm:$0xf]
    %v961 = vld [vmem:[%s1 + $0xe8c] sm:$0xf]
    %v962 = vld [vmem:[%s1 + $0xe90] sm:$0xf]
    %v963 = vld [vmem:[%s1 + $0xe94] sm:$0xf]
    %v964 = vld [vmem:[%s1 + $0xe98] sm:$0xf]
    %v965 = vld [vmem:[%s1 + $0xe9c] sm:$0xf]
    %v966 = vld [vmem:[%s1 + $0xea0] sm:$0xf]
    %v967 = vld [vmem:[%s1 + $0xea4] sm:$0xf]
    %v968 = vld [vmem:[%s1 + $0xea8] sm:$0xf]
    %v969 = vld [vmem:[%s1 + $0xeac] sm:$0xf]
    %v970 = vld [vmem:[%s1 + $0xeb0] sm:$0xf]
    %v971 = vld [vmem:[%s1 + $0xeb4] sm:$0xf]
    %v972 = vld [vmem:[%s1 + $0xeb8] sm:$0xf]
    %v973 = vld [vmem:[%s1 + $0xebc] sm:$0xf]
    %v974 = vld [vmem:[%s1 + $0xec0] sm:$0xf]
    %v975 = vld [vmem:[%s1 + $0xec4] sm:$0xf]
    %v976 = vld [vmem:[%s1 + $0xec8] sm:$0xf]
    %v977 = vld [vmem:[%s1 + $0xecc] sm:$0xf]
    %v978 = vld [vmem:[%s1 + $0xed0] sm:$0xf]
    %v979 = vld [vmem:[%s1 + $0xed4] sm:$0xf]
    %v980 = vld [vmem:[%s1 + $0xed8] sm:$0xf]
    %v981 = vld [vmem:[%s1 + $0xedc] sm:$0xf]
    %v982 = vld [vmem:[%s1 + $0xee0] sm:$0xf]
    %v983 = vld [vmem:[%s1 + $0xee4] sm:$0xf]
    %v984 = vld [vmem:[%s1 + $0xee8] sm:$0xf]
    %v985 = vld [vmem:[%s1 + $0xeec] sm:$0xf]
    %v986 = vld [vmem:[%s1 + $0xef0] sm:$0xf]
    %v987 = vld [vmem:[%s1 + $0xef4] sm:$0xf]
    %v988 = vld [vmem:[%s1 + $0xef8] sm:$0xf]
    %v989 = vld [vmem:[%s1 + $0xefc] sm:$0xf]
    %v990 = vld [vmem:[%s1 + $0xf00] sm:$0xf]
    %v991 = vld [vmem:[%s1 + $0xf04] sm:$0xf]
    %v992 = vld [vmem:[%s1 + $0xf08] sm:$0xf]
    %v993 = vld [vmem:[%s1 + $0xf0c] sm:$0xf]
    %v994 = vld [vmem:[%s1 + $0xf10] sm:$0xf]
    %v995 = vld [vmem:[%s1 + $0xf14] sm:$0xf]
    %v996 = vld [vmem:[%s1 + $0xf18] sm:$0xf]
    %v997 = vld [vmem:[%s1 + $0xf1c] sm:$0xf]
    %v998 = vld [vmem:[%s1 + $0xf20] sm:$0xf]
    %v999 = vld [vmem:[%s1 + $0xf24] sm:$0xf]
    %v1000 = vld [vmem:[%s1 + $0xf28] sm:$0xf]
    %v1001 = vld [vmem:[%s1 + $0xf2c] sm:$0xf]
    %v1002 = vld [vmem:[%s1 + $0xf30] sm:$0xf]
    %v1003 = vld [vmem:[%s1 + $0xf34] sm:$0xf]
    %v1004 = vld [vmem:[%s1 + $0xf38] sm:$0xf]
    %v1005 = vld [vmem:[%s1 + $0xf3c] sm:$0xf]
    %v1006 = vld [vmem:[%s1 + $0xf40] sm:$0xf]
    %v1007 = vld [vmem:[%s1 + $0xf44] sm:$0xf]
    %v1008 = vld [vmem:[%s1 + $0xf48] sm:$0xf]
    %v1009 = vld [vmem:[%s1 + $0xf4c] sm:$0xf]
    %v1010 = vld [vmem:[%s1 + $0xf50] sm:$0xf]
    %v1011 = vld [vmem:[%s1 + $0xf54] sm:$0xf]
    %v1012 = vld [vmem:[%s1 + $0xf58] sm:$0xf]
    %v1013 = vld [vmem:[%s1 + $0xf5c] sm:$0xf]
    %v1014 = vld [vmem:[%s1 + $0xf60] sm:$0xf]
    %v1015 = vld [vmem:[%s1 + $0xf64] sm:$0xf]
    %v1016 = vld [vmem:[%s1 + $0xf68] sm:$0xf]
    %v1017 = vld [vmem:[%s1 + $0xf6c] sm:$0xf]
    %v1018 = vld [vmem:[%s1 + $0xf70] sm:$0xf]
    %v1019 = vld [vmem:[%s1 + $0xf74] sm:$0xf]
    %v1020 = vld [vmem:[%s1 + $0xf78] sm:$0xf]
    %v1021 = vld [vmem:[%s1 + $0xf7c] sm:$0xf]
    %v1022 = vld [vmem:[%s1 + $0xf80] sm:$0xf]
    %v1023 = vld [vmem:[%s1 + $0xf84] sm:$0xf]
    %v1024 = vld [vmem:[%s1 + $0xf88] sm:$0xf]
    %v1025 = vld [vmem:[%s1 + $0xf8c] sm:$0xf]
    %v1026 = vld [vmem:[%s1 + $0xf90] sm:$0xf]
    %v1027 = vld [vmem:[%s1 + $0xf94] sm:$0xf]
    %v1028 = vld [vmem:[%s1 + $0xf98] sm:$0xf]
    %v1029 = vld [vmem:[%s1 + $0xf9c] sm:$0xf]
    %v1030 = vld [vmem:[%s1 + $0xfa0] sm:$0xf]
    %v1031 = vld [vmem:[%s1 + $0xfa4] sm:$0xf]
    %v1032 = vld [vmem:[%s1 + $0xfa8] sm:$0xf]
    %v1033 = vld [vmem:[%s1 + $0xfac] sm:$0xf]
    %v1034 = vld [vmem:[%s1 + $0xfb0] sm:$0xf]
    %v1035 = vld [vmem:[%s1 + $0xfb4] sm:$0xf]
    %v1036 = vld [vmem:[%s1 + $0xfb8] sm:$0xf]
    %v1037 = vld [vmem:[%s1 + $0xfbc] sm:$0xf]
    %v1038 = vld [vmem:[%s1 + $0xfc0] sm:$0xf]
    %v1039 = vld [vmem:[%s1 + $0xfc4] sm:$0xf]
    %v1040 = vld [vmem:[%s1 + $0xfc8] sm:$0xf]
    %v1041 = vld [vmem:[%s1 + $0xfcc] sm:$0xf]
    %v1042 = vld [vmem:[%s1 + $0xfd0] sm:$0xf]
    %v1043 = vld [vmem:[%s1 + $0xfd4] sm:$0xf]
    %v1044 = vld [vmem:[%s1 + $0xfd8] sm:$0xf]
    %v1045 = vld [vmem:[%s1 + $0xfdc] sm:$0xf]
    %v1046 = vld [vmem:[%s1 + $0xfe0] sm:$0xf]
    %v1047 = vld [vmem:[%s1 + $0xfe4] sm:$0xf]
    %v1048 = vld [vmem:[%s1 + $0xfe8] sm:$0xf]
    %v1049 = vld [vmem:[%s1 + $0xfec] sm:$0xf]
    %v1050 = vld [vmem:[%s1 + $0xff0] sm:$0xf]
    %v1051 = vld [vmem:[%s1 + $0xff4] sm:$0xf]
    %v1052 = vld [vmem:[%s1 + $0xff8] sm:$0xf]
    %v1053 = vld [vmem:[%s1 + $0xffc] sm:$0xf]
    %v1054 = vld [vmem:[%s2] sm:$0x1]
    %v1056 = vlaneseq
    %v1057 = vshrl.u32 %v1056, 7
    %v1058 = vsub.s32 0, %v1057
    %v1059 = vrot.slane %v1054, %v1058
    %v1069 = vcombine.high %v22, %v22
    %v1071 = vunpack.c.l.s4 1966171168
    %v1072 = vunpack.c.0.s8 %v1071
    %v1073 = vlaneseq
    %v1074 = vshrl.u32 %v1073, 7
    %v1075 = vsub.s32 %v1072, %v1074
    %v1076 = vrot.slane %v22, %v1075
    %v1078 = vunpack.c.l.s4 1966171168
    %v1079 = vunpack.c.0.s8 %v1078
    %v1080 = vlaneseq
    %v1081 = vshrl.u32 %v1080, 7
    %v1082 = vsub.s32 %v1079, %v1081
    %v1083 = vrot.slane %v1069, %v1082
    %v1084 = vcombine.high %v1076, %v1076
    %v1085 = vcombine.high %v1083, %v1083
    %v1087 = vunpack.c.l.s4 1966171168
    %v1088 = vunpack.c.0.s8 %v1087
    %v1089 = vlaneseq
    %v1090 = vshrl.u32 %v1089, 7
    %v1091 = vsub.s32 %v1088, %v1090
    %v1092 = vrot.slane %v1076, %v1091
    %v1094 = vunpack.c.l.s4 1966171168
    %v1095 = vunpack.c.0.s8 %v1094
    %v1096 = vlaneseq
    %v1097 = vshrl.u32 %v1096, 7
    %v1098 = vsub.s32 %v1095, %v1097
    %v1099 = vrot.slane %v1083, %v1098
    %v1101 = vunpack.c.l.s4 1966171168
    %v1102 = vunpack.c.0.s8 %v1101
    %v1103 = vlaneseq
    %v1104 = vshrl.u32 %v1103, 7
    %v1105 = vsub.s32 %v1102, %v1104
    %v1106 = vrot.slane %v1084, %v1105
    %v1108 = vunpack.c.l.s4 1966171168
    %v1109 = vunpack.c.0.s8 %v1108
    %v1110 = vlaneseq
    %v1111 = vshrl.u32 %v1110, 7
    %v1112 = vsub.s32 %v1109, %v1111
    %v1113 = vrot.slane %v1085, %v1112
    %v1114 = vcombine.high %v1092, %v1092
    %v1115 = vcombine.high %v1099, %v1099
    %v1116 = vcombine.high %v1106, %v1106
    %v1117 = vcombine.high %v1113, %v1113
    %v1118 = vcombine.high %v23, %v23
    %v1120 = vunpack.c.l.s4 1966171168
    %v1121 = vunpack.c.0.s8 %v1120
    %v1122 = vlaneseq
    %v1123 = vshrl.u32 %v1122, 7
    %v1124 = vsub.s32 %v1121, %v1123
    %v1125 = vrot.slane %v23, %v1124
    %v1127 = vunpack.c.l.s4 1966171168
    %v1128 = vunpack.c.0.s8 %v1127
    %v1129 = vlaneseq
    %v1130 = vshrl.u32 %v1129, 7
    %v1131 = vsub.s32 %v1128, %v1130
    %v1132 = vrot.slane %v1118, %v1131
    %v1133 = vcombine.high %v1125, %v1125
    %v1134 = vcombine.high %v1132, %v1132
    %v1136 = vunpack.c.l.s4 1966171168
    %v1137 = vunpack.c.0.s8 %v1136
    %v1138 = vlaneseq
    %v1139 = vshrl.u32 %v1138, 7
    %v1140 = vsub.s32 %v1137, %v1139
    %v1141 = vrot.slane %v1125, %v1140
    %v1143 = vunpack.c.l.s4 1966171168
    %v1144 = vunpack.c.0.s8 %v1143
    %v1145 = vlaneseq
    %v1146 = vshrl.u32 %v1145, 7
    %v1147 = vsub.s32 %v1144, %v1146
    %v1148 = vrot.slane %v1132, %v1147
    %v1150 = vunpack.c.l.s4 1966171168
    %v1151 = vunpack.c.0.s8 %v1150
    %v1152 = vlaneseq
    %v1153 = vshrl.u32 %v1152, 7
    %v1154 = vsub.s32 %v1151, %v1153
    %v1155 = vrot.slane %v1133, %v1154
    %v1157 = vunpack.c.l.s4 1966171168
    %v1158 = vunpack.c.0.s8 %v1157
    %v1159 = vlaneseq
    %v1160 = vshrl.u32 %v1159, 7
    %v1161 = vsub.s32 %v1158, %v1160
    %v1162 = vrot.slane %v1134, %v1161
    %v1163 = vcombine.high %v1141, %v1141
    %v1164 = vcombine.high %v1148, %v1148
    %v1165 = vcombine.high %v1155, %v1155
    %v1166 = vcombine.high %v1162, %v1162
    %v1167 = vcombine.high %v24, %v24
    %v1169 = vunpack.c.l.s4 1966171168
    %v1170 = vunpack.c.0.s8 %v1169
    %v1171 = vlaneseq
    %v1172 = vshrl.u32 %v1171, 7
    %v1173 = vsub.s32 %v1170, %v1172
    %v1174 = vrot.slane %v24, %v1173
    %v1176 = vunpack.c.l.s4 1966171168
    %v1177 = vunpack.c.0.s8 %v1176
    %v1178 = vlaneseq
    %v1179 = vshrl.u32 %v1178, 7
    %v1180 = vsub.s32 %v1177, %v1179
    %v1181 = vrot.slane %v1167, %v1180
    %v1182 = vcombine.high %v1174, %v1174
    %v1183 = vcombine.high %v1181, %v1181
    %v1185 = vunpack.c.l.s4 1966171168
    %v1186 = vunpack.c.0.s8 %v1185
    %v1187 = vlaneseq
    %v1188 = vshrl.u32 %v1187, 7
    %v1189 = vsub.s32 %v1186, %v1188
    %v1190 = vrot.slane %v1174, %v1189
    %v1192 = vunpack.c.l.s4 1966171168
    %v1193 = vunpack.c.0.s8 %v1192
    %v1194 = vlaneseq
    %v1195 = vshrl.u32 %v1194, 7
    %v1196 = vsub.s32 %v1193, %v1195
    %v1197 = vrot.slane %v1181, %v1196
    %v1199 = vunpack.c.l.s4 1966171168
    %v1200 = vunpack.c.0.s8 %v1199
    %v1201 = vlaneseq
    %v1202 = vshrl.u32 %v1201, 7
    %v1203 = vsub.s32 %v1200, %v1202
    %v1204 = vrot.slane %v1182, %v1203
    %v1206 = vunpack.c.l.s4 1966171168
    %v1207 = vunpack.c.0.s8 %v1206
    %v1208 = vlaneseq
    %v1209 = vshrl.u32 %v1208, 7
    %v1210 = vsub.s32 %v1207, %v1209
    %v1211 = vrot.slane %v1183, %v1210
    %v1212 = vcombine.high %v1190, %v1190
    %v1213 = vcombine.high %v1197, %v1197
    %v1214 = vcombine.high %v1204, %v1204
    %v1215 = vcombine.high %v1211, %v1211
    %v1216 = vcombine.high %v25, %v25
    %v1218 = vunpack.c.l.s4 1966171168
    %v1219 = vunpack.c.0.s8 %v1218
    %v1220 = vlaneseq
    %v1221 = vshrl.u32 %v1220, 7
    %v1222 = vsub.s32 %v1219, %v1221
    %v1223 = vrot.slane %v25, %v1222
    %v1225 = vunpack.c.l.s4 1966171168
    %v1226 = vunpack.c.0.s8 %v1225
    %v1227 = vlaneseq
    %v1228 = vshrl.u32 %v1227, 7
    %v1229 = vsub.s32 %v1226, %v1228
    %v1230 = vrot.slane %v1216, %v1229
    %v1231 = vcombine.high %v1223, %v1223
    %v1232 = vcombine.high %v1230, %v1230
    %v1234 = vunpack.c.l.s4 1966171168
    %v1235 = vunpack.c.0.s8 %v1234
    %v1236 = vlaneseq
    %v1237 = vshrl.u32 %v1236, 7
    %v1238 = vsub.s32 %v1235, %v1237
    %v1239 = vrot.slane %v1223, %v1238
    %v1241 = vunpack.c.l.s4 1966171168
    %v1242 = vunpack.c.0.s8 %v1241
    %v1243 = vlaneseq
    %v1244 = vshrl.u32 %v1243, 7
    %v1245 = vsub.s32 %v1242, %v1244
    %v1246 = vrot.slane %v1230, %v1245
    %v1248 = vunpack.c.l.s4 1966171168
    %v1249 = vunpack.c.0.s8 %v1248
    %v1250 = vlaneseq
    %v1251 = vshrl.u32 %v1250, 7
    %v1252 = vsub.s32 %v1249, %v1251
    %v1253 = vrot.slane %v1231, %v1252
    %v1255 = vunpack.c.l.s4 1966171168
    %v1256 = vunpack.c.0.s8 %v1255
    %v1257 = vlaneseq
    %v1258 = vshrl.u32 %v1257, 7
    %v1259 = vsub.s32 %v1256, %v1258
    %v1260 = vrot.slane %v1232, %v1259
    %v1261 = vcombine.high %v1239, %v1239
    %v1262 = vcombine.high %v1246, %v1246
    %v1263 = vcombine.high %v1253, %v1253
    %v1264 = vcombine.high %v1260, %v1260
    %v1265 = vcombine.high %v26, %v26
    %v1267 = vunpack.c.l.s4 1966171168
    %v1268 = vunpack.c.0.s8 %v1267
    %v1269 = vlaneseq
    %v1270 = vshrl.u32 %v1269, 7
    %v1271 = vsub.s32 %v1268, %v1270
    %v1272 = vrot.slane %v26, %v1271
    %v1274 = vunpack.c.l.s4 1966171168
    %v1275 = vunpack.c.0.s8 %v1274
    %v1276 = vlaneseq
    %v1277 = vshrl.u32 %v1276, 7
    %v1278 = vsub.s32 %v1275, %v1277
    %v1279 = vrot.slane %v1265, %v1278
    %v1280 = vcombine.high %v1272, %v1272
    %v1281 = vcombine.high %v1279, %v1279
    %v1283 = vunpack.c.l.s4 1966171168
    %v1284 = vunpack.c.0.s8 %v1283
    %v1285 = vlaneseq
    %v1286 = vshrl.u32 %v1285, 7
    %v1287 = vsub.s32 %v1284, %v1286
    %v1288 = vrot.slane %v1272, %v1287
    %v1290 = vunpack.c.l.s4 1966171168
    %v1291 = vunpack.c.0.s8 %v1290
    %v1292 = vlaneseq
    %v1293 = vshrl.u32 %v1292, 7
    %v1294 = vsub.s32 %v1291, %v1293
    %v1295 = vrot.slane %v1279, %v1294
    %v1297 = vunpack.c.l.s4 1966171168
    %v1298 = vunpack.c.0.s8 %v1297
    %v1299 = vlaneseq
    %v1300 = vshrl.u32 %v1299, 7
    %v1301 = vsub.s32 %v1298, %v1300
    %v1302 = vrot.slane %v1280, %v1301
    %v1304 = vunpack.c.l.s4 1966171168
    %v1305 = vunpack.c.0.s8 %v1304
    %v1306 = vlaneseq
    %v1307 = vshrl.u32 %v1306, 7
    %v1308 = vsub.s32 %v1305, %v1307
    %v1309 = vrot.slane %v1281, %v1308
    %v1310 = vcombine.high %v1288, %v1288
    %v1311 = vcombine.high %v1295, %v1295
    %v1312 = vcombine.high %v1302, %v1302
    %v1313 = vcombine.high %v1309, %v1309
    %v1314 = vcombine.high %v27, %v27
    %v1316 = vunpack.c.l.s4 1966171168
    %v1317 = vunpack.c.0.s8 %v1316
    %v1318 = vlaneseq
    %v1319 = vshrl.u32 %v1318, 7
    %v1320 = vsub.s32 %v1317, %v1319
    %v1321 = vrot.slane %v27, %v1320
    %v1323 = vunpack.c.l.s4 1966171168
    %v1324 = vunpack.c.0.s8 %v1323
    %v1325 = vlaneseq
    %v1326 = vshrl.u32 %v1325, 7
    %v1327 = vsub.s32 %v1324, %v1326
    %v1328 = vrot.slane %v1314, %v1327
    %v1329 = vcombine.high %v1321, %v1321
    %v1330 = vcombine.high %v1328, %v1328
    %v1332 = vunpack.c.l.s4 1966171168
    %v1333 = vunpack.c.0.s8 %v1332
    %v1334 = vlaneseq
    %v1335 = vshrl.u32 %v1334, 7
    %v1336 = vsub.s32 %v1333, %v1335
    %v1337 = vrot.slane %v1321, %v1336
    %v1339 = vunpack.c.l.s4 1966171168
    %v1340 = vunpack.c.0.s8 %v1339
    %v1341 = vlaneseq
    %v1342 = vshrl.u32 %v1341, 7
    %v1343 = vsub.s32 %v1340, %v1342
    %v1344 = vrot.slane %v1328, %v1343
    %v1346 = vunpack.c.l.s4 1966171168
    %v1347 = vunpack.c.0.s8 %v1346
    %v1348 = vlaneseq
    %v1349 = vshrl.u32 %v1348, 7
    %v1350 = vsub.s32 %v1347, %v1349
    %v1351 = vrot.slane %v1329, %v1350
    %v1353 = vunpack.c.l.s4 1966171168
    %v1354 = vunpack.c.0.s8 %v1353
    %v1355 = vlaneseq
    %v1356 = vshrl.u32 %v1355, 7
    %v1357 = vsub.s32 %v1354, %v1356
    %v1358 = vrot.slane %v1330, %v1357
    %v1359 = vcombine.high %v1337, %v1337
    %v1360 = vcombine.high %v1344, %v1344
    %v1361 = vcombine.high %v1351, %v1351
    %v1362 = vcombine.high %v1358, %v1358
    %v1363 = vcombine.high %v28, %v28
    %v1365 = vunpack.c.l.s4 1966171168
    %v1366 = vunpack.c.0.s8 %v1365
    %v1367 = vlaneseq
    %v1368 = vshrl.u32 %v1367, 7
    %v1369 = vsub.s32 %v1366, %v1368
    %v1370 = vrot.slane %v28, %v1369
    %v1372 = vunpack.c.l.s4 1966171168
    %v1373 = vunpack.c.0.s8 %v1372
    %v1374 = vlaneseq
    %v1375 = vshrl.u32 %v1374, 7
    %v1376 = vsub.s32 %v1373, %v1375
    %v1377 = vrot.slane %v1363, %v1376
    %v1378 = vcombine.high %v1370, %v1370
    %v1379 = vcombine.high %v1377, %v1377
    %v1381 = vunpack.c.l.s4 1966171168
    %v1382 = vunpack.c.0.s8 %v1381
    %v1383 = vlaneseq
    %v1384 = vshrl.u32 %v1383, 7
    %v1385 = vsub.s32 %v1382, %v1384
    %v1386 = vrot.slane %v1370, %v1385
    %v1388 = vunpack.c.l.s4 1966171168
    %v1389 = vunpack.c.0.s8 %v1388
    %v1390 = vlaneseq
    %v1391 = vshrl.u32 %v1390, 7
    %v1392 = vsub.s32 %v1389, %v1391
    %v1393 = vrot.slane %v1377, %v1392
    %v1395 = vunpack.c.l.s4 1966171168
    %v1396 = vunpack.c.0.s8 %v1395
    %v1397 = vlaneseq
    %v1398 = vshrl.u32 %v1397, 7
    %v1399 = vsub.s32 %v1396, %v1398
    %v1400 = vrot.slane %v1378, %v1399
    %v1402 = vunpack.c.l.s4 1966171168
    %v1403 = vunpack.c.0.s8 %v1402
    %v1404 = vlaneseq
    %v1405 = vshrl.u32 %v1404, 7
    %v1406 = vsub.s32 %v1403, %v1405
    %v1407 = vrot.slane %v1379, %v1406
    %v1408 = vcombine.high %v1386, %v1386
    %v1409 = vcombine.high %v1393, %v1393
    %v1410 = vcombine.high %v1400, %v1400
    %v1411 = vcombine.high %v1407, %v1407
    %v1412 = vcombine.high %v29, %v29
    %v1414 = vunpack.c.l.s4 1966171168
    %v1415 = vunpack.c.0.s8 %v1414
    %v1416 = vlaneseq
    %v1417 = vshrl.u32 %v1416, 7
    %v1418 = vsub.s32 %v1415, %v1417
    %v1419 = vrot.slane %v29, %v1418
    %v1421 = vunpack.c.l.s4 1966171168
    %v1422 = vunpack.c.0.s8 %v1421
    %v1423 = vlaneseq
    %v1424 = vshrl.u32 %v1423, 7
    %v1425 = vsub.s32 %v1422, %v1424
    %v1426 = vrot.slane %v1412, %v1425
    %v1427 = vcombine.high %v1419, %v1419
    %v1428 = vcombine.high %v1426, %v1426
    %v1430 = vunpack.c.l.s4 1966171168
    %v1431 = vunpack.c.0.s8 %v1430
    %v1432 = vlaneseq
    %v1433 = vshrl.u32 %v1432, 7
    %v1434 = vsub.s32 %v1431, %v1433
    %v1435 = vrot.slane %v1419, %v1434
    %v1437 = vunpack.c.l.s4 1966171168
    %v1438 = vunpack.c.0.s8 %v1437
    %v1439 = vlaneseq
    %v1440 = vshrl.u32 %v1439, 7
    %v1441 = vsub.s32 %v1438, %v1440
    %v1442 = vrot.slane %v1426, %v1441
    %v1444 = vunpack.c.l.s4 1966171168
    %v1445 = vunpack.c.0.s8 %v1444
    %v1446 = vlaneseq
    %v1447 = vshrl.u32 %v1446, 7
    %v1448 = vsub.s32 %v1445, %v1447
    %v1449 = vrot.slane %v1427, %v1448
    %v1451 = vunpack.c.l.s4 1966171168
    %v1452 = vunpack.c.0.s8 %v1451
    %v1453 = vlaneseq
    %v1454 = vshrl.u32 %v1453, 7
    %v1455 = vsub.s32 %v1452, %v1454
    %v1456 = vrot.slane %v1428, %v1455
    %v1457 = vcombine.high %v1435, %v1435
    %v1458 = vcombine.high %v1442, %v1442
    %v1459 = vcombine.high %v1449, %v1449
    %v1460 = vcombine.high %v1456, %v1456
    %v2549 = vunpack.c.l.b16 %v30
    %v2550 = vunpack.c.l.b16 %v31
    %v2551 = vunpack.c.l.b16 %v32
    %v2552 = vunpack.c.l.b16 %v33
    %v2553 = vunpack.c.l.b16 %v34
    %v2554 = vunpack.c.l.b16 %v35
    %v2555 = vunpack.c.l.b16 %v36
    %v2556 = vunpack.c.l.b16 %v37
    %v2557 = vunpack.c.l.b16 %v38
    %v2558 = vunpack.c.l.b16 %v39
    %v2559 = vunpack.c.l.b16 %v40
    %v2560 = vunpack.c.l.b16 %v41
    %v2561 = vunpack.c.l.b16 %v42
    %v2562 = vunpack.c.l.b16 %v43
    %v2563 = vunpack.c.l.b16 %v44
    %v2564 = vunpack.c.l.b16 %v45
    %v2565 = vunpack.c.l.b16 %v46
    %v2566 = vunpack.c.l.b16 %v47
    %v2567 = vunpack.c.l.b16 %v48
    %v2568 = vunpack.c.l.b16 %v49
    %v2569 = vunpack.c.l.b16 %v50
    %v2570 = vunpack.c.l.b16 %v51
    %v2571 = vunpack.c.l.b16 %v52
    %v2572 = vunpack.c.l.b16 %v53
    %v2573 = vunpack.c.l.b16 %v54
    %v2574 = vunpack.c.l.b16 %v55
    %v2575 = vunpack.c.l.b16 %v56
    %v2576 = vunpack.c.l.b16 %v57
    %v2577 = vunpack.c.l.b16 %v58
    %v2578 = vunpack.c.l.b16 %v59
    %v2579 = vunpack.c.l.b16 %v60
    %v2580 = vunpack.c.l.b16 %v61
    %v2581 = vunpack.c.l.b16 %v62
    %v2582 = vunpack.c.l.b16 %v63
    %v2583 = vunpack.c.l.b16 %v64
    %v2584 = vunpack.c.l.b16 %v65
    %v2585 = vunpack.c.l.b16 %v66
    %v2586 = vunpack.c.l.b16 %v67
    %v2587 = vunpack.c.l.b16 %v68
    %v2588 = vunpack.c.l.b16 %v69
    %v2589 = vunpack.c.l.b16 %v70
    %v2590 = vunpack.c.l.b16 %v71
    %v2591 = vunpack.c.l.b16 %v72
    %v2592 = vunpack.c.l.b16 %v73
    %v2593 = vunpack.c.l.b16 %v74
    %v2594 = vunpack.c.l.b16 %v75
    %v2595 = vunpack.c.l.b16 %v76
    %v2596 = vunpack.c.l.b16 %v77
    %v2597 = vunpack.c.l.b16 %v78
    %v2598 = vunpack.c.l.b16 %v79
    %v2599 = vunpack.c.l.b16 %v80
    %v2600 = vunpack.c.l.b16 %v81
    %v2601 = vunpack.c.l.b16 %v82
    %v2602 = vunpack.c.l.b16 %v83
    %v2603 = vunpack.c.l.b16 %v84
    %v2604 = vunpack.c.l.b16 %v85
    %v2605 = vunpack.c.l.b16 %v86
    %v2606 = vunpack.c.l.b16 %v87
    %v2607 = vunpack.c.l.b16 %v88
    %v2608 = vunpack.c.l.b16 %v89
    %v2609 = vunpack.c.l.b16 %v90
    %v2610 = vunpack.c.l.b16 %v91
    %v2611 = vunpack.c.l.b16 %v92
    %v2612 = vunpack.c.l.b16 %v93
    %v2613 = vunpack.c.l.b16 %v94
    %v2614 = vunpack.c.l.b16 %v95
    %v2615 = vunpack.c.l.b16 %v96
    %v2616 = vunpack.c.l.b16 %v97
    %v2617 = vunpack.c.l.b16 %v98
    %v2618 = vunpack.c.l.b16 %v99
    %v2619 = vunpack.c.l.b16 %v100
    %v2620 = vunpack.c.l.b16 %v101
    %v2621 = vunpack.c.l.b16 %v102
    %v2622 = vunpack.c.l.b16 %v103
    %v2623 = vunpack.c.l.b16 %v104
    %v2624 = vunpack.c.l.b16 %v105
    %v2625 = vunpack.c.l.b16 %v106
    %v2626 = vunpack.c.l.b16 %v107
    %v2627 = vunpack.c.l.b16 %v108
    %v2628 = vunpack.c.l.b16 %v109
    %v2629 = vunpack.c.l.b16 %v110
    %v2630 = vunpack.c.l.b16 %v111
    %v2631 = vunpack.c.l.b16 %v112
    %v2632 = vunpack.c.l.b16 %v113
    %v2633 = vunpack.c.l.b16 %v114
    %v2634 = vunpack.c.l.b16 %v115
    %v2635 = vunpack.c.l.b16 %v116
    %v2636 = vunpack.c.l.b16 %v117
    %v2637 = vunpack.c.l.b16 %v118
    %v2638 = vunpack.c.l.b16 %v119
    %v2639 = vunpack.c.l.b16 %v120
    %v2640 = vunpack.c.l.b16 %v121
    %v2641 = vunpack.c.l.b16 %v122
    %v2642 = vunpack.c.l.b16 %v123
    %v2643 = vunpack.c.l.b16 %v124
    %v2644 = vunpack.c.l.b16 %v125
    %v2645 = vunpack.c.l.b16 %v126
    %v2646 = vunpack.c.l.b16 %v127
    %v2647 = vunpack.c.l.b16 %v128
    %v2648 = vunpack.c.l.b16 %v129
    %v2649 = vunpack.c.l.b16 %v130
    %v2650 = vunpack.c.l.b16 %v131
    %v2651 = vunpack.c.l.b16 %v132
    %v2652 = vunpack.c.l.b16 %v133
    %v2653 = vunpack.c.l.b16 %v134
    %v2654 = vunpack.c.l.b16 %v135
    %v2655 = vunpack.c.l.b16 %v136
    %v2656 = vunpack.c.l.b16 %v137
    %v2657 = vunpack.c.l.b16 %v138
    %v2658 = vunpack.c.l.b16 %v139
    %v2659 = vunpack.c.l.b16 %v140
    %v2660 = vunpack.c.l.b16 %v141
    %v2661 = vunpack.c.l.b16 %v142
    %v2662 = vunpack.c.l.b16 %v143
    %v2663 = vunpack.c.l.b16 %v144
    %v2664 = vunpack.c.l.b16 %v145
    %v2665 = vunpack.c.l.b16 %v146
    %v2666 = vunpack.c.l.b16 %v147
    %v2667 = vunpack.c.l.b16 %v148
    %v2668 = vunpack.c.l.b16 %v149
    %v2669 = vunpack.c.l.b16 %v150
    %v2670 = vunpack.c.l.b16 %v151
    %v2671 = vunpack.c.l.b16 %v152
    %v2672 = vunpack.c.l.b16 %v153
    %v2673 = vunpack.c.l.b16 %v154
    %v2674 = vunpack.c.l.b16 %v155
    %v2675 = vunpack.c.l.b16 %v156
    %v2676 = vunpack.c.l.b16 %v157
    %v2677 = vunpack.c.l.b16 %v158
    %v2678 = vunpack.c.l.b16 %v159
    %v2679 = vunpack.c.l.b16 %v160
    %v2680 = vunpack.c.l.b16 %v161
    %v2681 = vunpack.c.l.b16 %v162
    %v2682 = vunpack.c.l.b16 %v163
    %v2683 = vunpack.c.l.b16 %v164
    %v2684 = vunpack.c.l.b16 %v165
    %v2685 = vunpack.c.l.b16 %v166
    %v2686 = vunpack.c.l.b16 %v167
    %v2687 = vunpack.c.l.b16 %v168
    %v2688 = vunpack.c.l.b16 %v169
    %v2689 = vunpack.c.l.b16 %v170
    %v2690 = vunpack.c.l.b16 %v171
    %v2691 = vunpack.c.l.b16 %v172
    %v2692 = vunpack.c.l.b16 %v173
    %v2693 = vunpack.c.l.b16 %v174
    %v2694 = vunpack.c.l.b16 %v175
    %v2695 = vunpack.c.l.b16 %v176
    %v2696 = vunpack.c.l.b16 %v177
    %v2697 = vunpack.c.l.b16 %v178
    %v2698 = vunpack.c.l.b16 %v179
    %v2699 = vunpack.c.l.b16 %v180
    %v2700 = vunpack.c.l.b16 %v181
    %v2701 = vunpack.c.l.b16 %v182
    %v2702 = vunpack.c.l.b16 %v183
    %v2703 = vunpack.c.l.b16 %v184
    %v2704 = vunpack.c.l.b16 %v185
    %v2705 = vunpack.c.l.b16 %v186
    %v2706 = vunpack.c.l.b16 %v187
    %v2707 = vunpack.c.l.b16 %v188
    %v2708 = vunpack.c.l.b16 %v189
    %v2709 = vunpack.c.l.b16 %v190
    %v2710 = vunpack.c.l.b16 %v191
    %v2711 = vunpack.c.l.b16 %v192
    %v2712 = vunpack.c.l.b16 %v193
    %v2713 = vunpack.c.l.b16 %v194
    %v2714 = vunpack.c.l.b16 %v195
    %v2715 = vunpack.c.l.b16 %v196
    %v2716 = vunpack.c.l.b16 %v197
    %v2717 = vunpack.c.l.b16 %v198
    %v2718 = vunpack.c.l.b16 %v199
    %v2719 = vunpack.c.l.b16 %v200
    %v2720 = vunpack.c.l.b16 %v201
    %v2721 = vunpack.c.l.b16 %v202
    %v2722 = vunpack.c.l.b16 %v203
    %v2723 = vunpack.c.l.b16 %v204
    %v2724 = vunpack.c.l.b16 %v205
    %v2725 = vunpack.c.l.b16 %v206
    %v2726 = vunpack.c.l.b16 %v207
    %v2727 = vunpack.c.l.b16 %v208
    %v2728 = vunpack.c.l.b16 %v209
    %v2729 = vunpack.c.l.b16 %v210
    %v2730 = vunpack.c.l.b16 %v211
    %v2731 = vunpack.c.l.b16 %v212
    %v2732 = vunpack.c.l.b16 %v213
    %v2733 = vunpack.c.l.b16 %v214
    %v2734 = vunpack.c.l.b16 %v215
    %v2735 = vunpack.c.l.b16 %v216
    %v2736 = vunpack.c.l.b16 %v217
    %v2737 = vunpack.c.l.b16 %v218
    %v2738 = vunpack.c.l.b16 %v219
    %v2739 = vunpack.c.l.b16 %v220
    %v2740 = vunpack.c.l.b16 %v221
    %v2741 = vunpack.c.l.b16 %v222
    %v2742 = vunpack.c.l.b16 %v223
    %v2743 = vunpack.c.l.b16 %v224
    %v2744 = vunpack.c.l.b16 %v225
    %v2745 = vunpack.c.l.b16 %v226
    %v2746 = vunpack.c.l.b16 %v227
    %v2747 = vunpack.c.l.b16 %v228
    %v2748 = vunpack.c.l.b16 %v229
    %v2749 = vunpack.c.l.b16 %v230
    %v2750 = vunpack.c.l.b16 %v231
    %v2751 = vunpack.c.l.b16 %v232
    %v2752 = vunpack.c.l.b16 %v233
    %v2753 = vunpack.c.l.b16 %v234
    %v2754 = vunpack.c.l.b16 %v235
    %v2755 = vunpack.c.l.b16 %v236
    %v2756 = vunpack.c.l.b16 %v237
    %v2757 = vunpack.c.l.b16 %v238
    %v2758 = vunpack.c.l.b16 %v239
    %v2759 = vunpack.c.l.b16 %v240
    %v2760 = vunpack.c.l.b16 %v241
    %v2761 = vunpack.c.l.b16 %v242
    %v2762 = vunpack.c.l.b16 %v243
    %v2763 = vunpack.c.l.b16 %v244
    %v2764 = vunpack.c.l.b16 %v245
    %v2765 = vunpack.c.l.b16 %v246
    %v2766 = vunpack.c.l.b16 %v247
    %v2767 = vunpack.c.l.b16 %v248
    %v2768 = vunpack.c.l.b16 %v249
    %v2769 = vunpack.c.l.b16 %v250
    %v2770 = vunpack.c.l.b16 %v251
    %v2771 = vunpack.c.l.b16 %v252
    %v2772 = vunpack.c.l.b16 %v253
    %v2773 = vunpack.c.l.b16 %v254
    %v2774 = vunpack.c.l.b16 %v255
    %v2775 = vunpack.c.l.b16 %v256
    %v2776 = vunpack.c.l.b16 %v257
    %v2777 = vunpack.c.l.b16 %v258
    %v2778 = vunpack.c.l.b16 %v259
    %v2779 = vunpack.c.l.b16 %v260
    %v2780 = vunpack.c.l.b16 %v261
    %v2781 = vunpack.c.l.b16 %v262
    %v2782 = vunpack.c.l.b16 %v263
    %v2783 = vunpack.c.l.b16 %v264
    %v2784 = vunpack.c.l.b16 %v265
    %v2785 = vunpack.c.l.b16 %v266
    %v2786 = vunpack.c.l.b16 %v267
    %v2787 = vunpack.c.l.b16 %v268
    %v2788 = vunpack.c.l.b16 %v269
    %v2789 = vunpack.c.l.b16 %v270
    %v2790 = vunpack.c.l.b16 %v271
    %v2791 = vunpack.c.l.b16 %v272
    %v2792 = vunpack.c.l.b16 %v273
    %v2793 = vunpack.c.l.b16 %v274
    %v2794 = vunpack.c.l.b16 %v275
    %v2795 = vunpack.c.l.b16 %v276
    %v2796 = vunpack.c.l.b16 %v277
    %v2797 = vunpack.c.l.b16 %v278
    %v2798 = vunpack.c.l.b16 %v279
    %v2799 = vunpack.c.l.b16 %v280
    %v2800 = vunpack.c.l.b16 %v281
    %v2801 = vunpack.c.l.b16 %v282
    %v2802 = vunpack.c.l.b16 %v283
    %v2803 = vunpack.c.l.b16 %v284
    %v2804 = vunpack.c.l.b16 %v285
    %v2805 = vunpack.c.l.b16 %v286
    %v2806 = vunpack.c.l.b16 %v287
    %v2807 = vunpack.c.l.b16 %v288
    %v2808 = vunpack.c.l.b16 %v289
    %v2809 = vunpack.c.l.b16 %v290
    %v2810 = vunpack.c.l.b16 %v291
    %v2811 = vunpack.c.l.b16 %v292
    %v2812 = vunpack.c.l.b16 %v293
    %v2813 = vunpack.c.l.b16 %v294
    %v2814 = vunpack.c.l.b16 %v295
    %v2815 = vunpack.c.l.b16 %v296
    %v2816 = vunpack.c.l.b16 %v297
    %v2817 = vunpack.c.l.b16 %v298
    %v2818 = vunpack.c.l.b16 %v299
    %v2819 = vunpack.c.l.b16 %v300
    %v2820 = vunpack.c.l.b16 %v301
    %v2821 = vunpack.c.l.b16 %v302
    %v2822 = vunpack.c.l.b16 %v303
    %v2823 = vunpack.c.l.b16 %v304
    %v2824 = vunpack.c.l.b16 %v305
    %v2825 = vunpack.c.l.b16 %v306
    %v2826 = vunpack.c.l.b16 %v307
    %v2827 = vunpack.c.l.b16 %v308
    %v2828 = vunpack.c.l.b16 %v309
    %v2829 = vunpack.c.l.b16 %v310
    %v2830 = vunpack.c.l.b16 %v311
    %v2831 = vunpack.c.l.b16 %v312
    %v2832 = vunpack.c.l.b16 %v313
    %v2833 = vunpack.c.l.b16 %v314
    %v2834 = vunpack.c.l.b16 %v315
    %v2835 = vunpack.c.l.b16 %v316
    %v2836 = vunpack.c.l.b16 %v317
    %v2837 = vunpack.c.l.b16 %v318
    %v2838 = vunpack.c.l.b16 %v319
    %v2839 = vunpack.c.l.b16 %v320
    %v2840 = vunpack.c.l.b16 %v321
    %v2841 = vunpack.c.l.b16 %v322
    %v2842 = vunpack.c.l.b16 %v323
    %v2843 = vunpack.c.l.b16 %v324
    %v2844 = vunpack.c.l.b16 %v325
    %v2845 = vunpack.c.l.b16 %v326
    %v2846 = vunpack.c.l.b16 %v327
    %v2847 = vunpack.c.l.b16 %v328
    %v2848 = vunpack.c.l.b16 %v329
    %v2849 = vunpack.c.l.b16 %v330
    %v2850 = vunpack.c.l.b16 %v331
    %v2851 = vunpack.c.l.b16 %v332
    %v2852 = vunpack.c.l.b16 %v333
    %v2853 = vunpack.c.l.b16 %v334
    %v2854 = vunpack.c.l.b16 %v335
    %v2855 = vunpack.c.l.b16 %v336
    %v2856 = vunpack.c.l.b16 %v337
    %v2857 = vunpack.c.l.b16 %v338
    %v2858 = vunpack.c.l.b16 %v339
    %v2859 = vunpack.c.l.b16 %v340
    %v2860 = vunpack.c.l.b16 %v341
    %v2861 = vunpack.c.l.b16 %v342
    %v2862 = vunpack.c.l.b16 %v343
    %v2863 = vunpack.c.l.b16 %v344
    %v2864 = vunpack.c.l.b16 %v345
    %v2865 = vunpack.c.l.b16 %v346
    %v2866 = vunpack.c.l.b16 %v347
    %v2867 = vunpack.c.l.b16 %v348
    %v2868 = vunpack.c.l.b16 %v349
    %v2869 = vunpack.c.l.b16 %v350
    %v2870 = vunpack.c.l.b16 %v351
    %v2871 = vunpack.c.l.b16 %v352
    %v2872 = vunpack.c.l.b16 %v353
    %v2873 = vunpack.c.l.b16 %v354
    %v2874 = vunpack.c.l.b16 %v355
    %v2875 = vunpack.c.l.b16 %v356
    %v2876 = vunpack.c.l.b16 %v357
    %v2877 = vunpack.c.l.b16 %v358
    %v2878 = vunpack.c.l.b16 %v359
    %v2879 = vunpack.c.l.b16 %v360
    %v2880 = vunpack.c.l.b16 %v361
    %v2881 = vunpack.c.l.b16 %v362
    %v2882 = vunpack.c.l.b16 %v363
    %v2883 = vunpack.c.l.b16 %v364
    %v2884 = vunpack.c.l.b16 %v365
    %v2885 = vunpack.c.l.b16 %v366
    %v2886 = vunpack.c.l.b16 %v367
    %v2887 = vunpack.c.l.b16 %v368
    %v2888 = vunpack.c.l.b16 %v369
    %v2889 = vunpack.c.l.b16 %v370
    %v2890 = vunpack.c.l.b16 %v371
    %v2891 = vunpack.c.l.b16 %v372
    %v2892 = vunpack.c.l.b16 %v373
    %v2893 = vunpack.c.l.b16 %v374
    %v2894 = vunpack.c.l.b16 %v375
    %v2895 = vunpack.c.l.b16 %v376
    %v2896 = vunpack.c.l.b16 %v377
    %v2897 = vunpack.c.l.b16 %v378
    %v2898 = vunpack.c.l.b16 %v379
    %v2899 = vunpack.c.l.b16 %v380
    %v2900 = vunpack.c.l.b16 %v381
    %v2901 = vunpack.c.l.b16 %v382
    %v2902 = vunpack.c.l.b16 %v383
    %v2903 = vunpack.c.l.b16 %v384
    %v2904 = vunpack.c.l.b16 %v385
    %v2905 = vunpack.c.l.b16 %v386
    %v2906 = vunpack.c.l.b16 %v387
    %v2907 = vunpack.c.l.b16 %v388
    %v2908 = vunpack.c.l.b16 %v389
    %v2909 = vunpack.c.l.b16 %v390
    %v2910 = vunpack.c.l.b16 %v391
    %v2911 = vunpack.c.l.b16 %v392
    %v2912 = vunpack.c.l.b16 %v393
    %v2913 = vunpack.c.l.b16 %v394
    %v2914 = vunpack.c.l.b16 %v395
    %v2915 = vunpack.c.l.b16 %v396
    %v2916 = vunpack.c.l.b16 %v397
    %v2917 = vunpack.c.l.b16 %v398
    %v2918 = vunpack.c.l.b16 %v399
    %v2919 = vunpack.c.l.b16 %v400
    %v2920 = vunpack.c.l.b16 %v401
    %v2921 = vunpack.c.l.b16 %v402
    %v2922 = vunpack.c.l.b16 %v403
    %v2923 = vunpack.c.l.b16 %v404
    %v2924 = vunpack.c.l.b16 %v405
    %v2925 = vunpack.c.l.b16 %v406
    %v2926 = vunpack.c.l.b16 %v407
    %v2927 = vunpack.c.l.b16 %v408
    %v2928 = vunpack.c.l.b16 %v409
    %v2929 = vunpack.c.l.b16 %v410
    %v2930 = vunpack.c.l.b16 %v411
    %v2931 = vunpack.c.l.b16 %v412
    %v2932 = vunpack.c.l.b16 %v413
    %v2933 = vunpack.c.l.b16 %v414
    %v2934 = vunpack.c.l.b16 %v415
    %v2935 = vunpack.c.l.b16 %v416
    %v2936 = vunpack.c.l.b16 %v417
    %v2937 = vunpack.c.l.b16 %v418
    %v2938 = vunpack.c.l.b16 %v419
    %v2939 = vunpack.c.l.b16 %v420
    %v2940 = vunpack.c.l.b16 %v421
    %v2941 = vunpack.c.l.b16 %v422
    %v2942 = vunpack.c.l.b16 %v423
    %v2943 = vunpack.c.l.b16 %v424
    %v2944 = vunpack.c.l.b16 %v425
    %v2945 = vunpack.c.l.b16 %v426
    %v2946 = vunpack.c.l.b16 %v427
    %v2947 = vunpack.c.l.b16 %v428
    %v2948 = vunpack.c.l.b16 %v429
    %v2949 = vunpack.c.l.b16 %v430
    %v2950 = vunpack.c.l.b16 %v431
    %v2951 = vunpack.c.l.b16 %v432
    %v2952 = vunpack.c.l.b16 %v433
    %v2953 = vunpack.c.l.b16 %v434
    %v2954 = vunpack.c.l.b16 %v435
    %v2955 = vunpack.c.l.b16 %v436
    %v2956 = vunpack.c.l.b16 %v437
    %v2957 = vunpack.c.l.b16 %v438
    %v2958 = vunpack.c.l.b16 %v439
    %v2959 = vunpack.c.l.b16 %v440
    %v2960 = vunpack.c.l.b16 %v441
    %v2961 = vunpack.c.l.b16 %v442
    %v2962 = vunpack.c.l.b16 %v443
    %v2963 = vunpack.c.l.b16 %v444
    %v2964 = vunpack.c.l.b16 %v445
    %v2965 = vunpack.c.l.b16 %v446
    %v2966 = vunpack.c.l.b16 %v447
    %v2967 = vunpack.c.l.b16 %v448
    %v2968 = vunpack.c.l.b16 %v449
    %v2969 = vunpack.c.l.b16 %v450
    %v2970 = vunpack.c.l.b16 %v451
    %v2971 = vunpack.c.l.b16 %v452
    %v2972 = vunpack.c.l.b16 %v453
    %v2973 = vunpack.c.l.b16 %v454
    %v2974 = vunpack.c.l.b16 %v455
    %v2975 = vunpack.c.l.b16 %v456
    %v2976 = vunpack.c.l.b16 %v457
    %v2977 = vunpack.c.l.b16 %v458
    %v2978 = vunpack.c.l.b16 %v459
    %v2979 = vunpack.c.l.b16 %v460
    %v2980 = vunpack.c.l.b16 %v461
    %v2981 = vunpack.c.l.b16 %v462
    %v2982 = vunpack.c.l.b16 %v463
    %v2983 = vunpack.c.l.b16 %v464
    %v2984 = vunpack.c.l.b16 %v465
    %v2985 = vunpack.c.l.b16 %v466
    %v2986 = vunpack.c.l.b16 %v467
    %v2987 = vunpack.c.l.b16 %v468
    %v2988 = vunpack.c.l.b16 %v469
    %v2989 = vunpack.c.l.b16 %v470
    %v2990 = vunpack.c.l.b16 %v471
    %v2991 = vunpack.c.l.b16 %v472
    %v2992 = vunpack.c.l.b16 %v473
    %v2993 = vunpack.c.l.b16 %v474
    %v2994 = vunpack.c.l.b16 %v475
    %v2995 = vunpack.c.l.b16 %v476
    %v2996 = vunpack.c.l.b16 %v477
    %v2997 = vunpack.c.l.b16 %v478
    %v2998 = vunpack.c.l.b16 %v479
    %v2999 = vunpack.c.l.b16 %v480
    %v3000 = vunpack.c.l.b16 %v481
    %v3001 = vunpack.c.l.b16 %v482
    %v3002 = vunpack.c.l.b16 %v483
    %v3003 = vunpack.c.l.b16 %v484
    %v3004 = vunpack.c.l.b16 %v485
    %v3005 = vunpack.c.l.b16 %v486
    %v3006 = vunpack.c.l.b16 %v487
    %v3007 = vunpack.c.l.b16 %v488
    %v3008 = vunpack.c.l.b16 %v489
    %v3009 = vunpack.c.l.b16 %v490
    %v3010 = vunpack.c.l.b16 %v491
    %v3011 = vunpack.c.l.b16 %v492
    %v3012 = vunpack.c.l.b16 %v493
    %v3013 = vunpack.c.l.b16 %v494
    %v3014 = vunpack.c.l.b16 %v495
    %v3015 = vunpack.c.l.b16 %v496
    %v3016 = vunpack.c.l.b16 %v497
    %v3017 = vunpack.c.l.b16 %v498
    %v3018 = vunpack.c.l.b16 %v499
    %v3019 = vunpack.c.l.b16 %v500
    %v3020 = vunpack.c.l.b16 %v501
    %v3021 = vunpack.c.l.b16 %v502
    %v3022 = vunpack.c.l.b16 %v503
    %v3023 = vunpack.c.l.b16 %v504
    %v3024 = vunpack.c.l.b16 %v505
    %v3025 = vunpack.c.l.b16 %v506
    %v3026 = vunpack.c.l.b16 %v507
    %v3027 = vunpack.c.l.b16 %v508
    %v3028 = vunpack.c.l.b16 %v509
    %v3029 = vunpack.c.l.b16 %v510
    %v3030 = vunpack.c.l.b16 %v511
    %v3031 = vunpack.c.l.b16 %v512
    %v3032 = vunpack.c.l.b16 %v513
    %v3033 = vunpack.c.l.b16 %v514
    %v3034 = vunpack.c.l.b16 %v515
    %v3035 = vunpack.c.l.b16 %v516
    %v3036 = vunpack.c.l.b16 %v517
    %v3037 = vunpack.c.l.b16 %v518
    %v3038 = vunpack.c.l.b16 %v519
    %v3039 = vunpack.c.l.b16 %v520
    %v3040 = vunpack.c.l.b16 %v521
    %v3041 = vunpack.c.l.b16 %v522
    %v3042 = vunpack.c.l.b16 %v523
    %v3043 = vunpack.c.l.b16 %v524
    %v3044 = vunpack.c.l.b16 %v525
    %v3045 = vunpack.c.l.b16 %v526
    %v3046 = vunpack.c.l.b16 %v527
    %v3047 = vunpack.c.l.b16 %v528
    %v3048 = vunpack.c.l.b16 %v529
    %v3049 = vunpack.c.l.b16 %v530
    %v3050 = vunpack.c.l.b16 %v531
    %v3051 = vunpack.c.l.b16 %v532
    %v3052 = vunpack.c.l.b16 %v533
    %v3053 = vunpack.c.l.b16 %v534
    %v3054 = vunpack.c.l.b16 %v535
    %v3055 = vunpack.c.l.b16 %v536
    %v3056 = vunpack.c.l.b16 %v537
    %v3057 = vunpack.c.l.b16 %v538
    %v3058 = vunpack.c.l.b16 %v539
    %v3059 = vunpack.c.l.b16 %v540
    %v3060 = vunpack.c.l.b16 %v541
    %v3061 = vunpack.c.l.b16 %v542
    %v3062 = vunpack.c.l.b16 %v543
    %v3063 = vunpack.c.l.b16 %v544
    %v3064 = vunpack.c.l.b16 %v545
    %v3065 = vunpack.c.l.b16 %v546
    %v3066 = vunpack.c.l.b16 %v547
    %v3067 = vunpack.c.l.b16 %v548
    %v3068 = vunpack.c.l.b16 %v549
    %v3069 = vunpack.c.l.b16 %v550
    %v3070 = vunpack.c.l.b16 %v551
    %v3071 = vunpack.c.l.b16 %v552
    %v3072 = vunpack.c.l.b16 %v553
    %v3073 = vunpack.c.l.b16 %v554
    %v3074 = vunpack.c.l.b16 %v555
    %v3075 = vunpack.c.l.b16 %v556
    %v3076 = vunpack.c.l.b16 %v557
    %v3077 = vunpack.c.l.b16 %v558
    %v3078 = vunpack.c.l.b16 %v559
    %v3079 = vunpack.c.l.b16 %v560
    %v3080 = vunpack.c.l.b16 %v561
    %v3081 = vunpack.c.l.b16 %v562
    %v3082 = vunpack.c.l.b16 %v563
    %v3083 = vunpack.c.l.b16 %v564
    %v3084 = vunpack.c.l.b16 %v565
    %v3085 = vunpack.c.l.b16 %v566
    %v3086 = vunpack.c.l.b16 %v567
    %v3087 = vunpack.c.l.b16 %v568
    %v3088 = vunpack.c.l.b16 %v569
    %v3089 = vunpack.c.l.b16 %v570
    %v3090 = vunpack.c.l.b16 %v571
    %v3091 = vunpack.c.l.b16 %v572
    %v3092 = vunpack.c.l.b16 %v573
    %v3093 = vunpack.c.l.b16 %v574
    %v3094 = vunpack.c.l.b16 %v575
    %v3095 = vunpack.c.l.b16 %v576
    %v3096 = vunpack.c.l.b16 %v577
    %v3097 = vunpack.c.l.b16 %v578
    %v3098 = vunpack.c.l.b16 %v579
    %v3099 = vunpack.c.l.b16 %v580
    %v3100 = vunpack.c.l.b16 %v581
    %v3101 = vunpack.c.l.b16 %v582
    %v3102 = vunpack.c.l.b16 %v583
    %v3103 = vunpack.c.l.b16 %v584
    %v3104 = vunpack.c.l.b16 %v585
    %v3105 = vunpack.c.l.b16 %v586
    %v3106 = vunpack.c.l.b16 %v587
    %v3107 = vunpack.c.l.b16 %v588
    %v3108 = vunpack.c.l.b16 %v589
    %v3109 = vunpack.c.l.b16 %v590
    %v3110 = vunpack.c.l.b16 %v591
    %v3111 = vunpack.c.l.b16 %v592
    %v3112 = vunpack.c.l.b16 %v593
    %v3113 = vunpack.c.l.b16 %v594
    %v3114 = vunpack.c.l.b16 %v595
    %v3115 = vunpack.c.l.b16 %v596
    %v3116 = vunpack.c.l.b16 %v597
    %v3117 = vunpack.c.l.b16 %v598
    %v3118 = vunpack.c.l.b16 %v599
    %v3119 = vunpack.c.l.b16 %v600
    %v3120 = vunpack.c.l.b16 %v601
    %v3121 = vunpack.c.l.b16 %v602
    %v3122 = vunpack.c.l.b16 %v603
    %v3123 = vunpack.c.l.b16 %v604
    %v3124 = vunpack.c.l.b16 %v605
    %v3125 = vunpack.c.l.b16 %v606
    %v3126 = vunpack.c.l.b16 %v607
    %v3127 = vunpack.c.l.b16 %v608
    %v3128 = vunpack.c.l.b16 %v609
    %v3129 = vunpack.c.l.b16 %v610
    %v3130 = vunpack.c.l.b16 %v611
    %v3131 = vunpack.c.l.b16 %v612
    %v3132 = vunpack.c.l.b16 %v613
    %v3133 = vunpack.c.l.b16 %v614
    %v3134 = vunpack.c.l.b16 %v615
    %v3135 = vunpack.c.l.b16 %v616
    %v3136 = vunpack.c.l.b16 %v617
    %v3137 = vunpack.c.l.b16 %v618
    %v3138 = vunpack.c.l.b16 %v619
    %v3139 = vunpack.c.l.b16 %v620
    %v3140 = vunpack.c.l.b16 %v621
    %v3141 = vunpack.c.l.b16 %v622
    %v3142 = vunpack.c.l.b16 %v623
    %v3143 = vunpack.c.l.b16 %v624
    %v3144 = vunpack.c.l.b16 %v625
    %v3145 = vunpack.c.l.b16 %v626
    %v3146 = vunpack.c.l.b16 %v627
    %v3147 = vunpack.c.l.b16 %v628
    %v3148 = vunpack.c.l.b16 %v629
    %v3149 = vunpack.c.l.b16 %v630
    %v3150 = vunpack.c.l.b16 %v631
    %v3151 = vunpack.c.l.b16 %v632
    %v3152 = vunpack.c.l.b16 %v633
    %v3153 = vunpack.c.l.b16 %v634
    %v3154 = vunpack.c.l.b16 %v635
    %v3155 = vunpack.c.l.b16 %v636
    %v3156 = vunpack.c.l.b16 %v637
    %v3157 = vunpack.c.l.b16 %v638
    %v3158 = vunpack.c.l.b16 %v639
    %v3159 = vunpack.c.l.b16 %v640
    %v3160 = vunpack.c.l.b16 %v641
    %v3161 = vunpack.c.l.b16 %v642
    %v3162 = vunpack.c.l.b16 %v643
    %v3163 = vunpack.c.l.b16 %v644
    %v3164 = vunpack.c.l.b16 %v645
    %v3165 = vunpack.c.l.b16 %v646
    %v3166 = vunpack.c.l.b16 %v647
    %v3167 = vunpack.c.l.b16 %v648
    %v3168 = vunpack.c.l.b16 %v649
    %v3169 = vunpack.c.l.b16 %v650
    %v3170 = vunpack.c.l.b16 %v651
    %v3171 = vunpack.c.l.b16 %v652
    %v3172 = vunpack.c.l.b16 %v653
    %v3173 = vunpack.c.l.b16 %v654
    %v3174 = vunpack.c.l.b16 %v655
    %v3175 = vunpack.c.l.b16 %v656
    %v3176 = vunpack.c.l.b16 %v657
    %v3177 = vunpack.c.l.b16 %v658
    %v3178 = vunpack.c.l.b16 %v659
    %v3179 = vunpack.c.l.b16 %v660
    %v3180 = vunpack.c.l.b16 %v661
    %v3181 = vunpack.c.l.b16 %v662
    %v3182 = vunpack.c.l.b16 %v663
    %v3183 = vunpack.c.l.b16 %v664
    %v3184 = vunpack.c.l.b16 %v665
    %v3185 = vunpack.c.l.b16 %v666
    %v3186 = vunpack.c.l.b16 %v667
    %v3187 = vunpack.c.l.b16 %v668
    %v3188 = vunpack.c.l.b16 %v669
    %v3189 = vunpack.c.l.b16 %v670
    %v3190 = vunpack.c.l.b16 %v671
    %v3191 = vunpack.c.l.b16 %v672
    %v3192 = vunpack.c.l.b16 %v673
    %v3193 = vunpack.c.l.b16 %v674
    %v3194 = vunpack.c.l.b16 %v675
    %v3195 = vunpack.c.l.b16 %v676
    %v3196 = vunpack.c.l.b16 %v677
    %v3197 = vunpack.c.l.b16 %v678
    %v3198 = vunpack.c.l.b16 %v679
    %v3199 = vunpack.c.l.b16 %v680
    %v3200 = vunpack.c.l.b16 %v681
    %v3201 = vunpack.c.l.b16 %v682
    %v3202 = vunpack.c.l.b16 %v683
    %v3203 = vunpack.c.l.b16 %v684
    %v3204 = vunpack.c.l.b16 %v685
    %v3205 = vunpack.c.l.b16 %v686
    %v3206 = vunpack.c.l.b16 %v687
    %v3207 = vunpack.c.l.b16 %v688
    %v3208 = vunpack.c.l.b16 %v689
    %v3209 = vunpack.c.l.b16 %v690
    %v3210 = vunpack.c.l.b16 %v691
    %v3211 = vunpack.c.l.b16 %v692
    %v3212 = vunpack.c.l.b16 %v693
    %v3213 = vunpack.c.l.b16 %v694
    %v3214 = vunpack.c.l.b16 %v695
    %v3215 = vunpack.c.l.b16 %v696
    %v3216 = vunpack.c.l.b16 %v697
    %v3217 = vunpack.c.l.b16 %v698
    %v3218 = vunpack.c.l.b16 %v699
    %v3219 = vunpack.c.l.b16 %v700
    %v3220 = vunpack.c.l.b16 %v701
    %v3221 = vunpack.c.l.b16 %v702
    %v3222 = vunpack.c.l.b16 %v703
    %v3223 = vunpack.c.l.b16 %v704
    %v3224 = vunpack.c.l.b16 %v705
    %v3225 = vunpack.c.l.b16 %v706
    %v3226 = vunpack.c.l.b16 %v707
    %v3227 = vunpack.c.l.b16 %v708
    %v3228 = vunpack.c.l.b16 %v709
    %v3229 = vunpack.c.l.b16 %v710
    %v3230 = vunpack.c.l.b16 %v711
    %v3231 = vunpack.c.l.b16 %v712
    %v3232 = vunpack.c.l.b16 %v713
    %v3233 = vunpack.c.l.b16 %v714
    %v3234 = vunpack.c.l.b16 %v715
    %v3235 = vunpack.c.l.b16 %v716
    %v3236 = vunpack.c.l.b16 %v717
    %v3237 = vunpack.c.l.b16 %v718
    %v3238 = vunpack.c.l.b16 %v719
    %v3239 = vunpack.c.l.b16 %v720
    %v3240 = vunpack.c.l.b16 %v721
    %v3241 = vunpack.c.l.b16 %v722
    %v3242 = vunpack.c.l.b16 %v723
    %v3243 = vunpack.c.l.b16 %v724
    %v3244 = vunpack.c.l.b16 %v725
    %v3245 = vunpack.c.l.b16 %v726
    %v3246 = vunpack.c.l.b16 %v727
    %v3247 = vunpack.c.l.b16 %v728
    %v3248 = vunpack.c.l.b16 %v729
    %v3249 = vunpack.c.l.b16 %v730
    %v3250 = vunpack.c.l.b16 %v731
    %v3251 = vunpack.c.l.b16 %v732
    %v3252 = vunpack.c.l.b16 %v733
    %v3253 = vunpack.c.l.b16 %v734
    %v3254 = vunpack.c.l.b16 %v735
    %v3255 = vunpack.c.l.b16 %v736
    %v3256 = vunpack.c.l.b16 %v737
    %v3257 = vunpack.c.l.b16 %v738
    %v3258 = vunpack.c.l.b16 %v739
    %v3259 = vunpack.c.l.b16 %v740
    %v3260 = vunpack.c.l.b16 %v741
    %v3261 = vunpack.c.l.b16 %v742
    %v3262 = vunpack.c.l.b16 %v743
    %v3263 = vunpack.c.l.b16 %v744
    %v3264 = vunpack.c.l.b16 %v745
    %v3265 = vunpack.c.l.b16 %v746
    %v3266 = vunpack.c.l.b16 %v747
    %v3267 = vunpack.c.l.b16 %v748
    %v3268 = vunpack.c.l.b16 %v749
    %v3269 = vunpack.c.l.b16 %v750
    %v3270 = vunpack.c.l.b16 %v751
    %v3271 = vunpack.c.l.b16 %v752
    %v3272 = vunpack.c.l.b16 %v753
    %v3273 = vunpack.c.l.b16 %v754
    %v3274 = vunpack.c.l.b16 %v755
    %v3275 = vunpack.c.l.b16 %v756
    %v3276 = vunpack.c.l.b16 %v757
    %v3277 = vunpack.c.l.b16 %v758
    %v3278 = vunpack.c.l.b16 %v759
    %v3279 = vunpack.c.l.b16 %v760
    %v3280 = vunpack.c.l.b16 %v761
    %v3281 = vunpack.c.l.b16 %v762
    %v3282 = vunpack.c.l.b16 %v763
    %v3283 = vunpack.c.l.b16 %v764
    %v3284 = vunpack.c.l.b16 %v765
    %v3285 = vunpack.c.l.b16 %v766
    %v3286 = vunpack.c.l.b16 %v767
    %v3287 = vunpack.c.l.b16 %v768
    %v3288 = vunpack.c.l.b16 %v769
    %v3289 = vunpack.c.l.b16 %v770
    %v3290 = vunpack.c.l.b16 %v771
    %v3291 = vunpack.c.l.b16 %v772
    %v3292 = vunpack.c.l.b16 %v773
    %v3293 = vunpack.c.l.b16 %v774
    %v3294 = vunpack.c.l.b16 %v775
    %v3295 = vunpack.c.l.b16 %v776
    %v3296 = vunpack.c.l.b16 %v777
    %v3297 = vunpack.c.l.b16 %v778
    %v3298 = vunpack.c.l.b16 %v779
    %v3299 = vunpack.c.l.b16 %v780
    %v3300 = vunpack.c.l.b16 %v781
    %v3301 = vunpack.c.l.b16 %v782
    %v3302 = vunpack.c.l.b16 %v783
    %v3303 = vunpack.c.l.b16 %v784
    %v3304 = vunpack.c.l.b16 %v785
    %v3305 = vunpack.c.l.b16 %v786
    %v3306 = vunpack.c.l.b16 %v787
    %v3307 = vunpack.c.l.b16 %v788
    %v3308 = vunpack.c.l.b16 %v789
    %v3309 = vunpack.c.l.b16 %v790
    %v3310 = vunpack.c.l.b16 %v791
    %v3311 = vunpack.c.l.b16 %v792
    %v3312 = vunpack.c.l.b16 %v793
    %v3313 = vunpack.c.l.b16 %v794
    %v3314 = vunpack.c.l.b16 %v795
    %v3315 = vunpack.c.l.b16 %v796
    %v3316 = vunpack.c.l.b16 %v797
    %v3317 = vunpack.c.l.b16 %v798
    %v3318 = vunpack.c.l.b16 %v799
    %v3319 = vunpack.c.l.b16 %v800
    %v3320 = vunpack.c.l.b16 %v801
    %v3321 = vunpack.c.l.b16 %v802
    %v3322 = vunpack.c.l.b16 %v803
    %v3323 = vunpack.c.l.b16 %v804
    %v3324 = vunpack.c.l.b16 %v805
    %v3325 = vunpack.c.l.b16 %v806
    %v3326 = vunpack.c.l.b16 %v807
    %v3327 = vunpack.c.l.b16 %v808
    %v3328 = vunpack.c.l.b16 %v809
    %v3329 = vunpack.c.l.b16 %v810
    %v3330 = vunpack.c.l.b16 %v811
    %v3331 = vunpack.c.l.b16 %v812
    %v3332 = vunpack.c.l.b16 %v813
    %v3333 = vunpack.c.l.b16 %v814
    %v3334 = vunpack.c.l.b16 %v815
    %v3335 = vunpack.c.l.b16 %v816
    %v3336 = vunpack.c.l.b16 %v817
    %v3337 = vunpack.c.l.b16 %v818
    %v3338 = vunpack.c.l.b16 %v819
    %v3339 = vunpack.c.l.b16 %v820
    %v3340 = vunpack.c.l.b16 %v821
    %v3341 = vunpack.c.l.b16 %v822
    %v3342 = vunpack.c.l.b16 %v823
    %v3343 = vunpack.c.l.b16 %v824
    %v3344 = vunpack.c.l.b16 %v825
    %v3345 = vunpack.c.l.b16 %v826
    %v3346 = vunpack.c.l.b16 %v827
    %v3347 = vunpack.c.l.b16 %v828
    %v3348 = vunpack.c.l.b16 %v829
    %v3349 = vunpack.c.l.b16 %v830
    %v3350 = vunpack.c.l.b16 %v831
    %v3351 = vunpack.c.l.b16 %v832
    %v3352 = vunpack.c.l.b16 %v833
    %v3353 = vunpack.c.l.b16 %v834
    %v3354 = vunpack.c.l.b16 %v835
    %v3355 = vunpack.c.l.b16 %v836
    %v3356 = vunpack.c.l.b16 %v837
    %v3357 = vunpack.c.l.b16 %v838
    %v3358 = vunpack.c.l.b16 %v839
    %v3359 = vunpack.c.l.b16 %v840
    %v3360 = vunpack.c.l.b16 %v841
    %v3361 = vunpack.c.l.b16 %v842
    %v3362 = vunpack.c.l.b16 %v843
    %v3363 = vunpack.c.l.b16 %v844
    %v3364 = vunpack.c.l.b16 %v845
    %v3365 = vunpack.c.l.b16 %v846
    %v3366 = vunpack.c.l.b16 %v847
    %v3367 = vunpack.c.l.b16 %v848
    %v3368 = vunpack.c.l.b16 %v849
    %v3369 = vunpack.c.l.b16 %v850
    %v3370 = vunpack.c.l.b16 %v851
    %v3371 = vunpack.c.l.b16 %v852
    %v3372 = vunpack.c.l.b16 %v853
    %v3373 = vunpack.c.l.b16 %v854
    %v3374 = vunpack.c.l.b16 %v855
    %v3375 = vunpack.c.l.b16 %v856
    %v3376 = vunpack.c.l.b16 %v857
    %v3377 = vunpack.c.l.b16 %v858
    %v3378 = vunpack.c.l.b16 %v859
    %v3379 = vunpack.c.l.b16 %v860
    %v3380 = vunpack.c.l.b16 %v861
    %v3381 = vunpack.c.l.b16 %v862
    %v3382 = vunpack.c.l.b16 %v863
    %v3383 = vunpack.c.l.b16 %v864
    %v3384 = vunpack.c.l.b16 %v865
    %v3385 = vunpack.c.l.b16 %v866
    %v3386 = vunpack.c.l.b16 %v867
    %v3387 = vunpack.c.l.b16 %v868
    %v3388 = vunpack.c.l.b16 %v869
    %v3389 = vunpack.c.l.b16 %v870
    %v3390 = vunpack.c.l.b16 %v871
    %v3391 = vunpack.c.l.b16 %v872
    %v3392 = vunpack.c.l.b16 %v873
    %v3393 = vunpack.c.l.b16 %v874
    %v3394 = vunpack.c.l.b16 %v875
    %v3395 = vunpack.c.l.b16 %v876
    %v3396 = vunpack.c.l.b16 %v877
    %v3397 = vunpack.c.l.b16 %v878
    %v3398 = vunpack.c.l.b16 %v879
    %v3399 = vunpack.c.l.b16 %v880
    %v3400 = vunpack.c.l.b16 %v881
    %v3401 = vunpack.c.l.b16 %v882
    %v3402 = vunpack.c.l.b16 %v883
    %v3403 = vunpack.c.l.b16 %v884
    %v3404 = vunpack.c.l.b16 %v885
    %v3405 = vunpack.c.l.b16 %v886
    %v3406 = vunpack.c.l.b16 %v887
    %v3407 = vunpack.c.l.b16 %v888
    %v3408 = vunpack.c.l.b16 %v889
    %v3409 = vunpack.c.l.b16 %v890
    %v3410 = vunpack.c.l.b16 %v891
    %v3411 = vunpack.c.l.b16 %v892
    %v3412 = vunpack.c.l.b16 %v893
    %v3413 = vunpack.c.l.b16 %v894
    %v3414 = vunpack.c.l.b16 %v895
    %v3415 = vunpack.c.l.b16 %v896
    %v3416 = vunpack.c.l.b16 %v897
    %v3417 = vunpack.c.l.b16 %v898
    %v3418 = vunpack.c.l.b16 %v899
    %v3419 = vunpack.c.l.b16 %v900
    %v3420 = vunpack.c.l.b16 %v901
    %v3421 = vunpack.c.l.b16 %v902
    %v3422 = vunpack.c.l.b16 %v903
    %v3423 = vunpack.c.l.b16 %v904
    %v3424 = vunpack.c.l.b16 %v905
    %v3425 = vunpack.c.l.b16 %v906
    %v3426 = vunpack.c.l.b16 %v907
    %v3427 = vunpack.c.l.b16 %v908
    %v3428 = vunpack.c.l.b16 %v909
    %v3429 = vunpack.c.l.b16 %v910
    %v3430 = vunpack.c.l.b16 %v911
    %v3431 = vunpack.c.l.b16 %v912
    %v3432 = vunpack.c.l.b16 %v913
    %v3433 = vunpack.c.l.b16 %v914
    %v3434 = vunpack.c.l.b16 %v915
    %v3435 = vunpack.c.l.b16 %v916
    %v3436 = vunpack.c.l.b16 %v917
    %v3437 = vunpack.c.l.b16 %v918
    %v3438 = vunpack.c.l.b16 %v919
    %v3439 = vunpack.c.l.b16 %v920
    %v3440 = vunpack.c.l.b16 %v921
    %v3441 = vunpack.c.l.b16 %v922
    %v3442 = vunpack.c.l.b16 %v923
    %v3443 = vunpack.c.l.b16 %v924
    %v3444 = vunpack.c.l.b16 %v925
    %v3445 = vunpack.c.l.b16 %v926
    %v3446 = vunpack.c.l.b16 %v927
    %v3447 = vunpack.c.l.b16 %v928
    %v3448 = vunpack.c.l.b16 %v929
    %v3449 = vunpack.c.l.b16 %v930
    %v3450 = vunpack.c.l.b16 %v931
    %v3451 = vunpack.c.l.b16 %v932
    %v3452 = vunpack.c.l.b16 %v933
    %v3453 = vunpack.c.l.b16 %v934
    %v3454 = vunpack.c.l.b16 %v935
    %v3455 = vunpack.c.l.b16 %v936
    %v3456 = vunpack.c.l.b16 %v937
    %v3457 = vunpack.c.l.b16 %v938
    %v3458 = vunpack.c.l.b16 %v939
    %v3459 = vunpack.c.l.b16 %v940
    %v3460 = vunpack.c.l.b16 %v941
    %v3461 = vunpack.c.l.b16 %v942
    %v3462 = vunpack.c.l.b16 %v943
    %v3463 = vunpack.c.l.b16 %v944
    %v3464 = vunpack.c.l.b16 %v945
    %v3465 = vunpack.c.l.b16 %v946
    %v3466 = vunpack.c.l.b16 %v947
    %v3467 = vunpack.c.l.b16 %v948
    %v3468 = vunpack.c.l.b16 %v949
    %v3469 = vunpack.c.l.b16 %v950
    %v3470 = vunpack.c.l.b16 %v951
    %v3471 = vunpack.c.l.b16 %v952
    %v3472 = vunpack.c.l.b16 %v953
    %v3473 = vunpack.c.l.b16 %v954
    %v3474 = vunpack.c.l.b16 %v955
    %v3475 = vunpack.c.l.b16 %v956
    %v3476 = vunpack.c.l.b16 %v957
    %v3477 = vunpack.c.l.b16 %v958
    %v3478 = vunpack.c.l.b16 %v959
    %v3479 = vunpack.c.l.b16 %v960
    %v3480 = vunpack.c.l.b16 %v961
    %v3481 = vunpack.c.l.b16 %v962
    %v3482 = vunpack.c.l.b16 %v963
    %v3483 = vunpack.c.l.b16 %v964
    %v3484 = vunpack.c.l.b16 %v965
    %v3485 = vunpack.c.l.b16 %v966
    %v3486 = vunpack.c.l.b16 %v967
    %v3487 = vunpack.c.l.b16 %v968
    %v3488 = vunpack.c.l.b16 %v969
    %v3489 = vunpack.c.l.b16 %v970
    %v3490 = vunpack.c.l.b16 %v971
    %v3491 = vunpack.c.l.b16 %v972
    %v3492 = vunpack.c.l.b16 %v973
    %v3493 = vunpack.c.l.b16 %v974
    %v3494 = vunpack.c.l.b16 %v975
    %v3495 = vunpack.c.l.b16 %v976
    %v3496 = vunpack.c.l.b16 %v977
    %v3497 = vunpack.c.l.b16 %v978
    %v3498 = vunpack.c.l.b16 %v979
    %v3499 = vunpack.c.l.b16 %v980
    %v3500 = vunpack.c.l.b16 %v981
    %v3501 = vunpack.c.l.b16 %v982
    %v3502 = vunpack.c.l.b16 %v983
    %v3503 = vunpack.c.l.b16 %v984
    %v3504 = vunpack.c.l.b16 %v985
    %v3505 = vunpack.c.l.b16 %v986
    %v3506 = vunpack.c.l.b16 %v987
    %v3507 = vunpack.c.l.b16 %v988
    %v3508 = vunpack.c.l.b16 %v989
    %v3509 = vunpack.c.l.b16 %v990
    %v3510 = vunpack.c.l.b16 %v991
    %v3511 = vunpack.c.l.b16 %v992
    %v3512 = vunpack.c.l.b16 %v993
    %v3513 = vunpack.c.l.b16 %v994
    %v3514 = vunpack.c.l.b16 %v995
    %v3515 = vunpack.c.l.b16 %v996
    %v3516 = vunpack.c.l.b16 %v997
    %v3517 = vunpack.c.l.b16 %v998
    %v3518 = vunpack.c.l.b16 %v999
    %v3519 = vunpack.c.l.b16 %v1000
    %v3520 = vunpack.c.l.b16 %v1001
    %v3521 = vunpack.c.l.b16 %v1002
    %v3522 = vunpack.c.l.b16 %v1003
    %v3523 = vunpack.c.l.b16 %v1004
    %v3524 = vunpack.c.l.b16 %v1005
    %v3525 = vunpack.c.l.b16 %v1006
    %v3526 = vunpack.c.l.b16 %v1007
    %v3527 = vunpack.c.l.b16 %v1008
    %v3528 = vunpack.c.l.b16 %v1009
    %v3529 = vunpack.c.l.b16 %v1010
    %v3530 = vunpack.c.l.b16 %v1011
    %v3531 = vunpack.c.l.b16 %v1012
    %v3532 = vunpack.c.l.b16 %v1013
    %v3533 = vunpack.c.l.b16 %v1014
    %v3534 = vunpack.c.l.b16 %v1015
    %v3535 = vunpack.c.l.b16 %v1016
    %v3536 = vunpack.c.l.b16 %v1017
    %v3537 = vunpack.c.l.b16 %v1018
    %v3538 = vunpack.c.l.b16 %v1019
    %v3539 = vunpack.c.l.b16 %v1020
    %v3540 = vunpack.c.l.b16 %v1021
    %v3541 = vunpack.c.l.b16 %v1022
    %v3542 = vunpack.c.l.b16 %v1023
    %v3543 = vunpack.c.l.b16 %v1024
    %v3544 = vunpack.c.l.b16 %v1025
    %v3545 = vunpack.c.l.b16 %v1026
    %v3546 = vunpack.c.l.b16 %v1027
    %v3547 = vunpack.c.l.b16 %v1028
    %v3548 = vunpack.c.l.b16 %v1029
    %v3549 = vunpack.c.l.b16 %v1030
    %v3550 = vunpack.c.l.b16 %v1031
    %v3551 = vunpack.c.l.b16 %v1032
    %v3552 = vunpack.c.l.b16 %v1033
    %v3553 = vunpack.c.l.b16 %v1034
    %v3554 = vunpack.c.l.b16 %v1035
    %v3555 = vunpack.c.l.b16 %v1036
    %v3556 = vunpack.c.l.b16 %v1037
    %v3557 = vunpack.c.l.b16 %v1038
    %v3558 = vunpack.c.l.b16 %v1039
    %v3559 = vunpack.c.l.b16 %v1040
    %v3560 = vunpack.c.l.b16 %v1041
    %v3561 = vunpack.c.l.b16 %v1042
    %v3562 = vunpack.c.l.b16 %v1043
    %v3563 = vunpack.c.l.b16 %v1044
    %v3564 = vunpack.c.l.b16 %v1045
    %v3565 = vunpack.c.l.b16 %v1046
    %v3566 = vunpack.c.l.b16 %v1047
    %v3567 = vunpack.c.l.b16 %v1048
    %v3568 = vunpack.c.l.b16 %v1049
    %v3569 = vunpack.c.l.b16 %v1050
    %v3570 = vunpack.c.l.b16 %v1051
    %v3571 = vunpack.c.l.b16 %v1052
    %v3572 = vunpack.c.l.b16 %v1053
    %v3573 = vpack.c.b16 %v2550, %v2549
    %v3574 = vpack.c.b16 %v2552, %v2551
    %v3575 = vpack.c.b16 %v2554, %v2553
    %v3576 = vpack.c.b16 %v2556, %v2555
    %v3577 = vpack.c.b16 %v2558, %v2557
    %v3578 = vpack.c.b16 %v2560, %v2559
    %v3579 = vpack.c.b16 %v2562, %v2561
    %v3580 = vpack.c.b16 %v2564, %v2563
    %v3581 = vpack.c.b16 %v2566, %v2565
    %v3582 = vpack.c.b16 %v2568, %v2567
    %v3583 = vpack.c.b16 %v2570, %v2569
    %v3584 = vpack.c.b16 %v2572, %v2571
    %v3585 = vpack.c.b16 %v2574, %v2573
    %v3586 = vpack.c.b16 %v2576, %v2575
    %v3587 = vpack.c.b16 %v2578, %v2577
    %v3588 = vpack.c.b16 %v2580, %v2579
    %v3589 = vpack.c.b16 %v2582, %v2581
    %v3590 = vpack.c.b16 %v2584, %v2583
    %v3591 = vpack.c.b16 %v2586, %v2585
    %v3592 = vpack.c.b16 %v2588, %v2587
    %v3593 = vpack.c.b16 %v2590, %v2589
    %v3594 = vpack.c.b16 %v2592, %v2591
    %v3595 = vpack.c.b16 %v2594, %v2593
    %v3596 = vpack.c.b16 %v2596, %v2595
    %v3597 = vpack.c.b16 %v2598, %v2597
    %v3598 = vpack.c.b16 %v2600, %v2599
    %v3599 = vpack.c.b16 %v2602, %v2601
    %v3600 = vpack.c.b16 %v2604, %v2603
    %v3601 = vpack.c.b16 %v2606, %v2605
    %v3602 = vpack.c.b16 %v2608, %v2607
    %v3603 = vpack.c.b16 %v2610, %v2609
    %v3604 = vpack.c.b16 %v2612, %v2611
    %v3605 = vpack.c.b16 %v2614, %v2613
    %v3606 = vpack.c.b16 %v2616, %v2615
    %v3607 = vpack.c.b16 %v2618, %v2617
    %v3608 = vpack.c.b16 %v2620, %v2619
    %v3609 = vpack.c.b16 %v2622, %v2621
    %v3610 = vpack.c.b16 %v2624, %v2623
    %v3611 = vpack.c.b16 %v2626, %v2625
    %v3612 = vpack.c.b16 %v2628, %v2627
    %v3613 = vpack.c.b16 %v2630, %v2629
    %v3614 = vpack.c.b16 %v2632, %v2631
    %v3615 = vpack.c.b16 %v2634, %v2633
    %v3616 = vpack.c.b16 %v2636, %v2635
    %v3617 = vpack.c.b16 %v2638, %v2637
    %v3618 = vpack.c.b16 %v2640, %v2639
    %v3619 = vpack.c.b16 %v2642, %v2641
    %v3620 = vpack.c.b16 %v2644, %v2643
    %v3621 = vpack.c.b16 %v2646, %v2645
    %v3622 = vpack.c.b16 %v2648, %v2647
    %v3623 = vpack.c.b16 %v2650, %v2649
    %v3624 = vpack.c.b16 %v2652, %v2651
    %v3625 = vpack.c.b16 %v2654, %v2653
    %v3626 = vpack.c.b16 %v2656, %v2655
    %v3627 = vpack.c.b16 %v2658, %v2657
    %v3628 = vpack.c.b16 %v2660, %v2659
    %v3629 = vpack.c.b16 %v2662, %v2661
    %v3630 = vpack.c.b16 %v2664, %v2663
    %v3631 = vpack.c.b16 %v2666, %v2665
    %v3632 = vpack.c.b16 %v2668, %v2667
    %v3633 = vpack.c.b16 %v2670, %v2669
    %v3634 = vpack.c.b16 %v2672, %v2671
    %v3635 = vpack.c.b16 %v2674, %v2673
    %v3636 = vpack.c.b16 %v2676, %v2675
    %v3637 = vpack.c.b16 %v2678, %v2677
    %v3638 = vpack.c.b16 %v2680, %v2679
    %v3639 = vpack.c.b16 %v2682, %v2681
    %v3640 = vpack.c.b16 %v2684, %v2683
    %v3641 = vpack.c.b16 %v2686, %v2685
    %v3642 = vpack.c.b16 %v2688, %v2687
    %v3643 = vpack.c.b16 %v2690, %v2689
    %v3644 = vpack.c.b16 %v2692, %v2691
    %v3645 = vpack.c.b16 %v2694, %v2693
    %v3646 = vpack.c.b16 %v2696, %v2695
    %v3647 = vpack.c.b16 %v2698, %v2697
    %v3648 = vpack.c.b16 %v2700, %v2699
    %v3649 = vpack.c.b16 %v2702, %v2701
    %v3650 = vpack.c.b16 %v2704, %v2703
    %v3651 = vpack.c.b16 %v2706, %v2705
    %v3652 = vpack.c.b16 %v2708, %v2707
    %v3653 = vpack.c.b16 %v2710, %v2709
    %v3654 = vpack.c.b16 %v2712, %v2711
    %v3655 = vpack.c.b16 %v2714, %v2713
    %v3656 = vpack.c.b16 %v2716, %v2715
    %v3657 = vpack.c.b16 %v2718, %v2717
    %v3658 = vpack.c.b16 %v2720, %v2719
    %v3659 = vpack.c.b16 %v2722, %v2721
    %v3660 = vpack.c.b16 %v2724, %v2723
    %v3661 = vpack.c.b16 %v2726, %v2725
    %v3662 = vpack.c.b16 %v2728, %v2727
    %v3663 = vpack.c.b16 %v2730, %v2729
    %v3664 = vpack.c.b16 %v2732, %v2731
    %v3665 = vpack.c.b16 %v2734, %v2733
    %v3666 = vpack.c.b16 %v2736, %v2735
    %v3667 = vpack.c.b16 %v2738, %v2737
    %v3668 = vpack.c.b16 %v2740, %v2739
    %v3669 = vpack.c.b16 %v2742, %v2741
    %v3670 = vpack.c.b16 %v2744, %v2743
    %v3671 = vpack.c.b16 %v2746, %v2745
    %v3672 = vpack.c.b16 %v2748, %v2747
    %v3673 = vpack.c.b16 %v2750, %v2749
    %v3674 = vpack.c.b16 %v2752, %v2751
    %v3675 = vpack.c.b16 %v2754, %v2753
    %v3676 = vpack.c.b16 %v2756, %v2755
    %v3677 = vpack.c.b16 %v2758, %v2757
    %v3678 = vpack.c.b16 %v2760, %v2759
    %v3679 = vpack.c.b16 %v2762, %v2761
    %v3680 = vpack.c.b16 %v2764, %v2763
    %v3681 = vpack.c.b16 %v2766, %v2765
    %v3682 = vpack.c.b16 %v2768, %v2767
    %v3683 = vpack.c.b16 %v2770, %v2769
    %v3684 = vpack.c.b16 %v2772, %v2771
    %v3685 = vpack.c.b16 %v2774, %v2773
    %v3686 = vpack.c.b16 %v2776, %v2775
    %v3687 = vpack.c.b16 %v2778, %v2777
    %v3688 = vpack.c.b16 %v2780, %v2779
    %v3689 = vpack.c.b16 %v2782, %v2781
    %v3690 = vpack.c.b16 %v2784, %v2783
    %v3691 = vpack.c.b16 %v2786, %v2785
    %v3692 = vpack.c.b16 %v2788, %v2787
    %v3693 = vpack.c.b16 %v2790, %v2789
    %v3694 = vpack.c.b16 %v2792, %v2791
    %v3695 = vpack.c.b16 %v2794, %v2793
    %v3696 = vpack.c.b16 %v2796, %v2795
    %v3697 = vpack.c.b16 %v2798, %v2797
    %v3698 = vpack.c.b16 %v2800, %v2799
    %v3699 = vpack.c.b16 %v2802, %v2801
    %v3700 = vpack.c.b16 %v2804, %v2803
    %v3701 = vpack.c.b16 %v2806, %v2805
    %v3702 = vpack.c.b16 %v2808, %v2807
    %v3703 = vpack.c.b16 %v2810, %v2809
    %v3704 = vpack.c.b16 %v2812, %v2811
    %v3705 = vpack.c.b16 %v2814, %v2813
    %v3706 = vpack.c.b16 %v2816, %v2815
    %v3707 = vpack.c.b16 %v2818, %v2817
    %v3708 = vpack.c.b16 %v2820, %v2819
    %v3709 = vpack.c.b16 %v2822, %v2821
    %v3710 = vpack.c.b16 %v2824, %v2823
    %v3711 = vpack.c.b16 %v2826, %v2825
    %v3712 = vpack.c.b16 %v2828, %v2827
    %v3713 = vpack.c.b16 %v2830, %v2829
    %v3714 = vpack.c.b16 %v2832, %v2831
    %v3715 = vpack.c.b16 %v2834, %v2833
    %v3716 = vpack.c.b16 %v2836, %v2835
    %v3717 = vpack.c.b16 %v2838, %v2837
    %v3718 = vpack.c.b16 %v2840, %v2839
    %v3719 = vpack.c.b16 %v2842, %v2841
    %v3720 = vpack.c.b16 %v2844, %v2843
    %v3721 = vpack.c.b16 %v2846, %v2845
    %v3722 = vpack.c.b16 %v2848, %v2847
    %v3723 = vpack.c.b16 %v2850, %v2849
    %v3724 = vpack.c.b16 %v2852, %v2851
    %v3725 = vpack.c.b16 %v2854, %v2853
    %v3726 = vpack.c.b16 %v2856, %v2855
    %v3727 = vpack.c.b16 %v2858, %v2857
    %v3728 = vpack.c.b16 %v2860, %v2859
    %v3729 = vpack.c.b16 %v2862, %v2861
    %v3730 = vpack.c.b16 %v2864, %v2863
    %v3731 = vpack.c.b16 %v2866, %v2865
    %v3732 = vpack.c.b16 %v2868, %v2867
    %v3733 = vpack.c.b16 %v2870, %v2869
    %v3734 = vpack.c.b16 %v2872, %v2871
    %v3735 = vpack.c.b16 %v2874, %v2873
    %v3736 = vpack.c.b16 %v2876, %v2875
    %v3737 = vpack.c.b16 %v2878, %v2877
    %v3738 = vpack.c.b16 %v2880, %v2879
    %v3739 = vpack.c.b16 %v2882, %v2881
    %v3740 = vpack.c.b16 %v2884, %v2883
    %v3741 = vpack.c.b16 %v2886, %v2885
    %v3742 = vpack.c.b16 %v2888, %v2887
    %v3743 = vpack.c.b16 %v2890, %v2889
    %v3744 = vpack.c.b16 %v2892, %v2891
    %v3745 = vpack.c.b16 %v2894, %v2893
    %v3746 = vpack.c.b16 %v2896, %v2895
    %v3747 = vpack.c.b16 %v2898, %v2897
    %v3748 = vpack.c.b16 %v2900, %v2899
    %v3749 = vpack.c.b16 %v2902, %v2901
    %v3750 = vpack.c.b16 %v2904, %v2903
    %v3751 = vpack.c.b16 %v2906, %v2905
    %v3752 = vpack.c.b16 %v2908, %v2907
    %v3753 = vpack.c.b16 %v2910, %v2909
    %v3754 = vpack.c.b16 %v2912, %v2911
    %v3755 = vpack.c.b16 %v2914, %v2913
    %v3756 = vpack.c.b16 %v2916, %v2915
    %v3757 = vpack.c.b16 %v2918, %v2917
    %v3758 = vpack.c.b16 %v2920, %v2919
    %v3759 = vpack.c.b16 %v2922, %v2921
    %v3760 = vpack.c.b16 %v2924, %v2923
    %v3761 = vpack.c.b16 %v2926, %v2925
    %v3762 = vpack.c.b16 %v2928, %v2927
    %v3763 = vpack.c.b16 %v2930, %v2929
    %v3764 = vpack.c.b16 %v2932, %v2931
    %v3765 = vpack.c.b16 %v2934, %v2933
    %v3766 = vpack.c.b16 %v2936, %v2935
    %v3767 = vpack.c.b16 %v2938, %v2937
    %v3768 = vpack.c.b16 %v2940, %v2939
    %v3769 = vpack.c.b16 %v2942, %v2941
    %v3770 = vpack.c.b16 %v2944, %v2943
    %v3771 = vpack.c.b16 %v2946, %v2945
    %v3772 = vpack.c.b16 %v2948, %v2947
    %v3773 = vpack.c.b16 %v2950, %v2949
    %v3774 = vpack.c.b16 %v2952, %v2951
    %v3775 = vpack.c.b16 %v2954, %v2953
    %v3776 = vpack.c.b16 %v2956, %v2955
    %v3777 = vpack.c.b16 %v2958, %v2957
    %v3778 = vpack.c.b16 %v2960, %v2959
    %v3779 = vpack.c.b16 %v2962, %v2961
    %v3780 = vpack.c.b16 %v2964, %v2963
    %v3781 = vpack.c.b16 %v2966, %v2965
    %v3782 = vpack.c.b16 %v2968, %v2967
    %v3783 = vpack.c.b16 %v2970, %v2969
    %v3784 = vpack.c.b16 %v2972, %v2971
    %v3785 = vpack.c.b16 %v2974, %v2973
    %v3786 = vpack.c.b16 %v2976, %v2975
    %v3787 = vpack.c.b16 %v2978, %v2977
    %v3788 = vpack.c.b16 %v2980, %v2979
    %v3789 = vpack.c.b16 %v2982, %v2981
    %v3790 = vpack.c.b16 %v2984, %v2983
    %v3791 = vpack.c.b16 %v2986, %v2985
    %v3792 = vpack.c.b16 %v2988, %v2987
    %v3793 = vpack.c.b16 %v2990, %v2989
    %v3794 = vpack.c.b16 %v2992, %v2991
    %v3795 = vpack.c.b16 %v2994, %v2993
    %v3796 = vpack.c.b16 %v2996, %v2995
    %v3797 = vpack.c.b16 %v2998, %v2997
    %v3798 = vpack.c.b16 %v3000, %v2999
    %v3799 = vpack.c.b16 %v3002, %v3001
    %v3800 = vpack.c.b16 %v3004, %v3003
    %v3801 = vpack.c.b16 %v3006, %v3005
    %v3802 = vpack.c.b16 %v3008, %v3007
    %v3803 = vpack.c.b16 %v3010, %v3009
    %v3804 = vpack.c.b16 %v3012, %v3011
    %v3805 = vpack.c.b16 %v3014, %v3013
    %v3806 = vpack.c.b16 %v3016, %v3015
    %v3807 = vpack.c.b16 %v3018, %v3017
    %v3808 = vpack.c.b16 %v3020, %v3019
    %v3809 = vpack.c.b16 %v3022, %v3021
    %v3810 = vpack.c.b16 %v3024, %v3023
    %v3811 = vpack.c.b16 %v3026, %v3025
    %v3812 = vpack.c.b16 %v3028, %v3027
    %v3813 = vpack.c.b16 %v3030, %v3029
    %v3814 = vpack.c.b16 %v3032, %v3031
    %v3815 = vpack.c.b16 %v3034, %v3033
    %v3816 = vpack.c.b16 %v3036, %v3035
    %v3817 = vpack.c.b16 %v3038, %v3037
    %v3818 = vpack.c.b16 %v3040, %v3039
    %v3819 = vpack.c.b16 %v3042, %v3041
    %v3820 = vpack.c.b16 %v3044, %v3043
    %v3821 = vpack.c.b16 %v3046, %v3045
    %v3822 = vpack.c.b16 %v3048, %v3047
    %v3823 = vpack.c.b16 %v3050, %v3049
    %v3824 = vpack.c.b16 %v3052, %v3051
    %v3825 = vpack.c.b16 %v3054, %v3053
    %v3826 = vpack.c.b16 %v3056, %v3055
    %v3827 = vpack.c.b16 %v3058, %v3057
    %v3828 = vpack.c.b16 %v3060, %v3059
    %v3829 = vpack.c.b16 %v3062, %v3061
    %v3830 = vpack.c.b16 %v3064, %v3063
    %v3831 = vpack.c.b16 %v3066, %v3065
    %v3832 = vpack.c.b16 %v3068, %v3067
    %v3833 = vpack.c.b16 %v3070, %v3069
    %v3834 = vpack.c.b16 %v3072, %v3071
    %v3835 = vpack.c.b16 %v3074, %v3073
    %v3836 = vpack.c.b16 %v3076, %v3075
    %v3837 = vpack.c.b16 %v3078, %v3077
    %v3838 = vpack.c.b16 %v3080, %v3079
    %v3839 = vpack.c.b16 %v3082, %v3081
    %v3840 = vpack.c.b16 %v3084, %v3083
    %v3841 = vpack.c.b16 %v3086, %v3085
    %v3842 = vpack.c.b16 %v3088, %v3087
    %v3843 = vpack.c.b16 %v3090, %v3089
    %v3844 = vpack.c.b16 %v3092, %v3091
    %v3845 = vpack.c.b16 %v3094, %v3093
    %v3846 = vpack.c.b16 %v3096, %v3095
    %v3847 = vpack.c.b16 %v3098, %v3097
    %v3848 = vpack.c.b16 %v3100, %v3099
    %v3849 = vpack.c.b16 %v3102, %v3101
    %v3850 = vpack.c.b16 %v3104, %v3103
    %v3851 = vpack.c.b16 %v3106, %v3105
    %v3852 = vpack.c.b16 %v3108, %v3107
    %v3853 = vpack.c.b16 %v3110, %v3109
    %v3854 = vpack.c.b16 %v3112, %v3111
    %v3855 = vpack.c.b16 %v3114, %v3113
    %v3856 = vpack.c.b16 %v3116, %v3115
    %v3857 = vpack.c.b16 %v3118, %v3117
    %v3858 = vpack.c.b16 %v3120, %v3119
    %v3859 = vpack.c.b16 %v3122, %v3121
    %v3860 = vpack.c.b16 %v3124, %v3123
    %v3861 = vpack.c.b16 %v3126, %v3125
    %v3862 = vpack.c.b16 %v3128, %v3127
    %v3863 = vpack.c.b16 %v3130, %v3129
    %v3864 = vpack.c.b16 %v3132, %v3131
    %v3865 = vpack.c.b16 %v3134, %v3133
    %v3866 = vpack.c.b16 %v3136, %v3135
    %v3867 = vpack.c.b16 %v3138, %v3137
    %v3868 = vpack.c.b16 %v3140, %v3139
    %v3869 = vpack.c.b16 %v3142, %v3141
    %v3870 = vpack.c.b16 %v3144, %v3143
    %v3871 = vpack.c.b16 %v3146, %v3145
    %v3872 = vpack.c.b16 %v3148, %v3147
    %v3873 = vpack.c.b16 %v3150, %v3149
    %v3874 = vpack.c.b16 %v3152, %v3151
    %v3875 = vpack.c.b16 %v3154, %v3153
    %v3876 = vpack.c.b16 %v3156, %v3155
    %v3877 = vpack.c.b16 %v3158, %v3157
    %v3878 = vpack.c.b16 %v3160, %v3159
    %v3879 = vpack.c.b16 %v3162, %v3161
    %v3880 = vpack.c.b16 %v3164, %v3163
    %v3881 = vpack.c.b16 %v3166, %v3165
    %v3882 = vpack.c.b16 %v3168, %v3167
    %v3883 = vpack.c.b16 %v3170, %v3169
    %v3884 = vpack.c.b16 %v3172, %v3171
    %v3885 = vpack.c.b16 %v3174, %v3173
    %v3886 = vpack.c.b16 %v3176, %v3175
    %v3887 = vpack.c.b16 %v3178, %v3177
    %v3888 = vpack.c.b16 %v3180, %v3179
    %v3889 = vpack.c.b16 %v3182, %v3181
    %v3890 = vpack.c.b16 %v3184, %v3183
    %v3891 = vpack.c.b16 %v3186, %v3185
    %v3892 = vpack.c.b16 %v3188, %v3187
    %v3893 = vpack.c.b16 %v3190, %v3189
    %v3894 = vpack.c.b16 %v3192, %v3191
    %v3895 = vpack.c.b16 %v3194, %v3193
    %v3896 = vpack.c.b16 %v3196, %v3195
    %v3897 = vpack.c.b16 %v3198, %v3197
    %v3898 = vpack.c.b16 %v3200, %v3199
    %v3899 = vpack.c.b16 %v3202, %v3201
    %v3900 = vpack.c.b16 %v3204, %v3203
    %v3901 = vpack.c.b16 %v3206, %v3205
    %v3902 = vpack.c.b16 %v3208, %v3207
    %v3903 = vpack.c.b16 %v3210, %v3209
    %v3904 = vpack.c.b16 %v3212, %v3211
    %v3905 = vpack.c.b16 %v3214, %v3213
    %v3906 = vpack.c.b16 %v3216, %v3215
    %v3907 = vpack.c.b16 %v3218, %v3217
    %v3908 = vpack.c.b16 %v3220, %v3219
    %v3909 = vpack.c.b16 %v3222, %v3221
    %v3910 = vpack.c.b16 %v3224, %v3223
    %v3911 = vpack.c.b16 %v3226, %v3225
    %v3912 = vpack.c.b16 %v3228, %v3227
    %v3913 = vpack.c.b16 %v3230, %v3229
    %v3914 = vpack.c.b16 %v3232, %v3231
    %v3915 = vpack.c.b16 %v3234, %v3233
    %v3916 = vpack.c.b16 %v3236, %v3235
    %v3917 = vpack.c.b16 %v3238, %v3237
    %v3918 = vpack.c.b16 %v3240, %v3239
    %v3919 = vpack.c.b16 %v3242, %v3241
    %v3920 = vpack.c.b16 %v3244, %v3243
    %v3921 = vpack.c.b16 %v3246, %v3245
    %v3922 = vpack.c.b16 %v3248, %v3247
    %v3923 = vpack.c.b16 %v3250, %v3249
    %v3924 = vpack.c.b16 %v3252, %v3251
    %v3925 = vpack.c.b16 %v3254, %v3253
    %v3926 = vpack.c.b16 %v3256, %v3255
    %v3927 = vpack.c.b16 %v3258, %v3257
    %v3928 = vpack.c.b16 %v3260, %v3259
    %v3929 = vpack.c.b16 %v3262, %v3261
    %v3930 = vpack.c.b16 %v3264, %v3263
    %v3931 = vpack.c.b16 %v3266, %v3265
    %v3932 = vpack.c.b16 %v3268, %v3267
    %v3933 = vpack.c.b16 %v3270, %v3269
    %v3934 = vpack.c.b16 %v3272, %v3271
    %v3935 = vpack.c.b16 %v3274, %v3273
    %v3936 = vpack.c.b16 %v3276, %v3275
    %v3937 = vpack.c.b16 %v3278, %v3277
    %v3938 = vpack.c.b16 %v3280, %v3279
    %v3939 = vpack.c.b16 %v3282, %v3281
    %v3940 = vpack.c.b16 %v3284, %v3283
    %v3941 = vpack.c.b16 %v3286, %v3285
    %v3942 = vpack.c.b16 %v3288, %v3287
    %v3943 = vpack.c.b16 %v3290, %v3289
    %v3944 = vpack.c.b16 %v3292, %v3291
    %v3945 = vpack.c.b16 %v3294, %v3293
    %v3946 = vpack.c.b16 %v3296, %v3295
    %v3947 = vpack.c.b16 %v3298, %v3297
    %v3948 = vpack.c.b16 %v3300, %v3299
    %v3949 = vpack.c.b16 %v3302, %v3301
    %v3950 = vpack.c.b16 %v3304, %v3303
    %v3951 = vpack.c.b16 %v3306, %v3305
    %v3952 = vpack.c.b16 %v3308, %v3307
    %v3953 = vpack.c.b16 %v3310, %v3309
    %v3954 = vpack.c.b16 %v3312, %v3311
    %v3955 = vpack.c.b16 %v3314, %v3313
    %v3956 = vpack.c.b16 %v3316, %v3315
    %v3957 = vpack.c.b16 %v3318, %v3317
    %v3958 = vpack.c.b16 %v3320, %v3319
    %v3959 = vpack.c.b16 %v3322, %v3321
    %v3960 = vpack.c.b16 %v3324, %v3323
    %v3961 = vpack.c.b16 %v3326, %v3325
    %v3962 = vpack.c.b16 %v3328, %v3327
    %v3963 = vpack.c.b16 %v3330, %v3329
    %v3964 = vpack.c.b16 %v3332, %v3331
    %v3965 = vpack.c.b16 %v3334, %v3333
    %v3966 = vpack.c.b16 %v3336, %v3335
    %v3967 = vpack.c.b16 %v3338, %v3337
    %v3968 = vpack.c.b16 %v3340, %v3339
    %v3969 = vpack.c.b16 %v3342, %v3341
    %v3970 = vpack.c.b16 %v3344, %v3343
    %v3971 = vpack.c.b16 %v3346, %v3345
    %v3972 = vpack.c.b16 %v3348, %v3347
    %v3973 = vpack.c.b16 %v3350, %v3349
    %v3974 = vpack.c.b16 %v3352, %v3351
    %v3975 = vpack.c.b16 %v3354, %v3353
    %v3976 = vpack.c.b16 %v3356, %v3355
    %v3977 = vpack.c.b16 %v3358, %v3357
    %v3978 = vpack.c.b16 %v3360, %v3359
    %v3979 = vpack.c.b16 %v3362, %v3361
    %v3980 = vpack.c.b16 %v3364, %v3363
    %v3981 = vpack.c.b16 %v3366, %v3365
    %v3982 = vpack.c.b16 %v3368, %v3367
    %v3983 = vpack.c.b16 %v3370, %v3369
    %v3984 = vpack.c.b16 %v3372, %v3371
    %v3985 = vpack.c.b16 %v3374, %v3373
    %v3986 = vpack.c.b16 %v3376, %v3375
    %v3987 = vpack.c.b16 %v3378, %v3377
    %v3988 = vpack.c.b16 %v3380, %v3379
    %v3989 = vpack.c.b16 %v3382, %v3381
    %v3990 = vpack.c.b16 %v3384, %v3383
    %v3991 = vpack.c.b16 %v3386, %v3385
    %v3992 = vpack.c.b16 %v3388, %v3387
    %v3993 = vpack.c.b16 %v3390, %v3389
    %v3994 = vpack.c.b16 %v3392, %v3391
    %v3995 = vpack.c.b16 %v3394, %v3393
    %v3996 = vpack.c.b16 %v3396, %v3395
    %v3997 = vpack.c.b16 %v3398, %v3397
    %v3998 = vpack.c.b16 %v3400, %v3399
    %v3999 = vpack.c.b16 %v3402, %v3401
    %v4000 = vpack.c.b16 %v3404, %v3403
    %v4001 = vpack.c.b16 %v3406, %v3405
    %v4002 = vpack.c.b16 %v3408, %v3407
    %v4003 = vpack.c.b16 %v3410, %v3409
    %v4004 = vpack.c.b16 %v3412, %v3411
    %v4005 = vpack.c.b16 %v3414, %v3413
    %v4006 = vpack.c.b16 %v3416, %v3415
    %v4007 = vpack.c.b16 %v3418, %v3417
    %v4008 = vpack.c.b16 %v3420, %v3419
    %v4009 = vpack.c.b16 %v3422, %v3421
    %v4010 = vpack.c.b16 %v3424, %v3423
    %v4011 = vpack.c.b16 %v3426, %v3425
    %v4012 = vpack.c.b16 %v3428, %v3427
    %v4013 = vpack.c.b16 %v3430, %v3429
    %v4014 = vpack.c.b16 %v3432, %v3431
    %v4015 = vpack.c.b16 %v3434, %v3433
    %v4016 = vpack.c.b16 %v3436, %v3435
    %v4017 = vpack.c.b16 %v3438, %v3437
    %v4018 = vpack.c.b16 %v3440, %v3439
    %v4019 = vpack.c.b16 %v3442, %v3441
    %v4020 = vpack.c.b16 %v3444, %v3443
    %v4021 = vpack.c.b16 %v3446, %v3445
    %v4022 = vpack.c.b16 %v3448, %v3447
    %v4023 = vpack.c.b16 %v3450, %v3449
    %v4024 = vpack.c.b16 %v3452, %v3451
    %v4025 = vpack.c.b16 %v3454, %v3453
    %v4026 = vpack.c.b16 %v3456, %v3455
    %v4027 = vpack.c.b16 %v3458, %v3457
    %v4028 = vpack.c.b16 %v3460, %v3459
    %v4029 = vpack.c.b16 %v3462, %v3461
    %v4030 = vpack.c.b16 %v3464, %v3463
    %v4031 = vpack.c.b16 %v3466, %v3465
    %v4032 = vpack.c.b16 %v3468, %v3467
    %v4033 = vpack.c.b16 %v3470, %v3469
    %v4034 = vpack.c.b16 %v3472, %v3471
    %v4035 = vpack.c.b16 %v3474, %v3473
    %v4036 = vpack.c.b16 %v3476, %v3475
    %v4037 = vpack.c.b16 %v3478, %v3477
    %v4038 = vpack.c.b16 %v3480, %v3479
    %v4039 = vpack.c.b16 %v3482, %v3481
    %v4040 = vpack.c.b16 %v3484, %v3483
    %v4041 = vpack.c.b16 %v3486, %v3485
    %v4042 = vpack.c.b16 %v3488, %v3487
    %v4043 = vpack.c.b16 %v3490, %v3489
    %v4044 = vpack.c.b16 %v3492, %v3491
    %v4045 = vpack.c.b16 %v3494, %v3493
    %v4046 = vpack.c.b16 %v3496, %v3495
    %v4047 = vpack.c.b16 %v3498, %v3497
    %v4048 = vpack.c.b16 %v3500, %v3499
    %v4049 = vpack.c.b16 %v3502, %v3501
    %v4050 = vpack.c.b16 %v3504, %v3503
    %v4051 = vpack.c.b16 %v3506, %v3505
    %v4052 = vpack.c.b16 %v3508, %v3507
    %v4053 = vpack.c.b16 %v3510, %v3509
    %v4054 = vpack.c.b16 %v3512, %v3511
    %v4055 = vpack.c.b16 %v3514, %v3513
    %v4056 = vpack.c.b16 %v3516, %v3515
    %v4057 = vpack.c.b16 %v3518, %v3517
    %v4058 = vpack.c.b16 %v3520, %v3519
    %v4059 = vpack.c.b16 %v3522, %v3521
    %v4060 = vpack.c.b16 %v3524, %v3523
    %v4061 = vpack.c.b16 %v3526, %v3525
    %v4062 = vpack.c.b16 %v3528, %v3527
    %v4063 = vpack.c.b16 %v3530, %v3529
    %v4064 = vpack.c.b16 %v3532, %v3531
    %v4065 = vpack.c.b16 %v3534, %v3533
    %v4066 = vpack.c.b16 %v3536, %v3535
    %v4067 = vpack.c.b16 %v3538, %v3537
    %v4068 = vpack.c.b16 %v3540, %v3539
    %v4069 = vpack.c.b16 %v3542, %v3541
    %v4070 = vpack.c.b16 %v3544, %v3543
    %v4071 = vpack.c.b16 %v3546, %v3545
    %v4072 = vpack.c.b16 %v3548, %v3547
    %v4073 = vpack.c.b16 %v3550, %v3549
    %v4074 = vpack.c.b16 %v3552, %v3551
    %v4075 = vpack.c.b16 %v3554, %v3553
    %v4076 = vpack.c.b16 %v3556, %v3555
    %v4077 = vpack.c.b16 %v3558, %v3557
    %v4078 = vpack.c.b16 %v3560, %v3559
    %v4079 = vpack.c.b16 %v3562, %v3561
    %v4080 = vpack.c.b16 %v3564, %v3563
    %v4081 = vpack.c.b16 %v3566, %v3565
    %v4082 = vpack.c.b16 %v3568, %v3567
    %v4083 = vpack.c.b16 %v3570, %v3569
    %v4084 = vpack.c.b16 %v3572, %v3571
    %4597 = vmatprep.subr.bf16.mxu0 0
    %4598 = vmatpush1.bf16.msra.mxu0 %v3573
    %4599 = vmatprep.subr.bf16.mxu0 0
    %4600 = vmatpush1.bf16.msra.mxu0 %v3574
    %4601 = vmatprep.subr.bf16.mxu0 0
    %4602 = vmatpush1.bf16.msra.mxu0 %v3575
    %4603 = vmatprep.subr.bf16.mxu0 0
    %4604 = vmatpush1.bf16.msra.mxu0 %v3576
    %4605 = vmatprep.subr.bf16.mxu0 0
    %4606 = vmatpush1.bf16.msra.mxu0 %v3577
    %4607 = vmatprep.subr.bf16.mxu0 0
    %4608 = vmatpush1.bf16.msra.mxu0 %v3578
    %4609 = vmatprep.subr.bf16.mxu0 0
    %4610 = vmatpush1.bf16.msra.mxu0 %v3579
    %4611 = vmatprep.subr.bf16.mxu0 0
    %4612 = vmatpush1.bf16.msra.mxu0 %v3580
    %4613 = vmatprep.subr.bf16.mxu0 0
    %4614 = vmatpush1.bf16.msra.mxu0 %v3581
    %4615 = vmatprep.subr.bf16.mxu0 0
    %4616 = vmatpush1.bf16.msra.mxu0 %v3582
    %4617 = vmatprep.subr.bf16.mxu0 0
    %4618 = vmatpush1.bf16.msra.mxu0 %v3583
    %4619 = vmatprep.subr.bf16.mxu0 0
    %4620 = vmatpush1.bf16.msra.mxu0 %v3584
    %4621 = vmatprep.subr.bf16.mxu0 0
    %4622 = vmatpush1.bf16.msra.mxu0 %v3585
    %4623 = vmatprep.subr.bf16.mxu0 0
    %4624 = vmatpush1.bf16.msra.mxu0 %v3586
    %4625 = vmatprep.subr.bf16.mxu0 0
    %4626 = vmatpush1.bf16.msra.mxu0 %v3587
    %4627 = vmatprep.subr.bf16.mxu0 0
    %4628 = vmatpush1.bf16.msra.mxu0 %v3588
    %4629 = vmatprep.mubr.bf16.mxu0 %v1106
    %4630 = vmatmul.mubr.bf16.gmra.mrb[0].mxu0 %v1092
    %v4631 = vpop.f32.mrb[0].mxu0
    %v4632 = vadd.f32 %v1059, %v4631
    %v4633 = vpop.f32.mrb[0].mxu0
    %v4634 = vpop.f32.mrb[0].mxu0
    %v4635 = vpop.f32.mrb[0].mxu0
    %4636 = vdwg.mxu0
    %4637 = vmatprep.subr.bf16.mxu0 0
    %4638 = vmatpush1.bf16.msra.mxu0 %v3589
    %4639 = vmatprep.subr.bf16.mxu0 0
    %4640 = vmatpush1.bf16.msra.mxu0 %v3590
    %4641 = vmatprep.subr.bf16.mxu0 0
    %4642 = vmatpush1.bf16.msra.mxu0 %v3591
    %4643 = vmatprep.subr.bf16.mxu0 0
    %4644 = vmatpush1.bf16.msra.mxu0 %v3592
    %4645 = vmatprep.subr.bf16.mxu0 0
    %4646 = vmatpush1.bf16.msra.mxu0 %v3593
    %4647 = vmatprep.subr.bf16.mxu0 0
    %4648 = vmatpush1.bf16.msra.mxu0 %v3594
    %4649 = vmatprep.subr.bf16.mxu0 0
    %4650 = vmatpush1.bf16.msra.mxu0 %v3595
    %4651 = vmatprep.subr.bf16.mxu0 0
    %4652 = vmatpush1.bf16.msra.mxu0 %v3596
    %4653 = vmatprep.subr.bf16.mxu0 0
    %4654 = vmatpush1.bf16.msra.mxu0 %v3597
    %4655 = vmatprep.subr.bf16.mxu0 0
    %4656 = vmatpush1.bf16.msra.mxu0 %v3598
    %4657 = vmatprep.subr.bf16.mxu0 0
    %4658 = vmatpush1.bf16.msra.mxu0 %v3599
    %4659 = vmatprep.subr.bf16.mxu0 0
    %4660 = vmatpush1.bf16.msra.mxu0 %v3600
    %4661 = vmatprep.subr.bf16.mxu0 0
    %4662 = vmatpush1.bf16.msra.mxu0 %v3601
    %4663 = vmatprep.subr.bf16.mxu0 0
    %4664 = vmatpush1.bf16.msra.mxu0 %v3602
    %4665 = vmatprep.subr.bf16.mxu0 0
    %4666 = vmatpush1.bf16.msra.mxu0 %v3603
    %4667 = vmatprep.subr.bf16.mxu0 0
    %4668 = vmatpush1.bf16.msra.mxu0 %v3604
    %4669 = vmatprep.mubr.bf16.mxu0 %v1116
    %4670 = vmatmul.mubr.bf16.gmra.mrb[0].mxu0 %v1114
    %v4671 = vpop.f32.mrb[0].mxu0
    %v4672 = vadd.f32 %v4632, %v4671
    %v4673 = vpop.f32.mrb[0].mxu0
    %v4674 = vpop.f32.mrb[0].mxu0
    %v4675 = vpop.f32.mrb[0].mxu0
    %4676 = vdwg.mxu0
    %4677 = vmatprep.subr.bf16.mxu0 0
    %4678 = vmatpush1.bf16.msra.mxu0 %v3605
    %4679 = vmatprep.subr.bf16.mxu0 0
    %4680 = vmatpush1.bf16.msra.mxu0 %v3606
    %4681 = vmatprep.subr.bf16.mxu0 0
    %4682 = vmatpush1.bf16.msra.mxu0 %v3607
    %4683 = vmatprep.subr.bf16.mxu0 0
    %4684 = vmatpush1.bf16.msra.mxu0 %v3608
    %4685 = vmatprep.subr.bf16.mxu0 0
    %4686 = vmatpush1.bf16.msra.mxu0 %v3609
    %4687 = vmatprep.subr.bf16.mxu0 0
    %4688 = vmatpush1.bf16.msra.mxu0 %v3610
    %4689 = vmatprep.subr.bf16.mxu0 0
    %4690 = vmatpush1.bf16.msra.mxu0 %v3611
    %4691 = vmatprep.subr.bf16.mxu0 0
    %4692 = vmatpush1.bf16.msra.mxu0 %v3612
    %4693 = vmatprep.subr.bf16.mxu0 0
    %4694 = vmatpush1.bf16.msra.mxu0 %v3613
    %4695 = vmatprep.subr.bf16.mxu0 0
    %4696 = vmatpush1.bf16.msra.mxu0 %v3614
    %4697 = vmatprep.subr.bf16.mxu0 0
    %4698 = vmatpush1.bf16.msra.mxu0 %v3615
    %4699 = vmatprep.subr.bf16.mxu0 0
    %4700 = vmatpush1.bf16.msra.mxu0 %v3616
    %4701 = vmatprep.subr.bf16.mxu0 0
    %4702 = vmatpush1.bf16.msra.mxu0 %v3617
    %4703 = vmatprep.subr.bf16.mxu0 0
    %4704 = vmatpush1.bf16.msra.mxu0 %v3618
    %4705 = vmatprep.subr.bf16.mxu0 0
    %4706 = vmatpush1.bf16.msra.mxu0 %v3619
    %4707 = vmatprep.subr.bf16.mxu0 0
    %4708 = vmatpush1.bf16.msra.mxu0 %v3620
    %4709 = vmatprep.mubr.bf16.mxu0 %v1113
    %4710 = vmatmul.mubr.bf16.gmra.mrb[0].mxu0 %v1099
    %v4711 = vpop.f32.mrb[0].mxu0
    %v4712 = vadd.f32 %v4672, %v4711
    %v4713 = vpop.f32.mrb[0].mxu0
    %v4714 = vpop.f32.mrb[0].mxu0
    %v4715 = vpop.f32.mrb[0].mxu0
    %4716 = vdwg.mxu0
    %4717 = vmatprep.subr.bf16.mxu0 0
    %4718 = vmatpush1.bf16.msra.mxu0 %v3621
    %4719 = vmatprep.subr.bf16.mxu0 0
    %4720 = vmatpush1.bf16.msra.mxu0 %v3622
    %4721 = vmatprep.subr.bf16.mxu0 0
    %4722 = vmatpush1.bf16.msra.mxu0 %v3623
    %4723 = vmatprep.subr.bf16.mxu0 0
    %4724 = vmatpush1.bf16.msra.mxu0 %v3624
    %4725 = vmatprep.subr.bf16.mxu0 0
    %4726 = vmatpush1.bf16.msra.mxu0 %v3625
    %4727 = vmatprep.subr.bf16.mxu0 0
    %4728 = vmatpush1.bf16.msra.mxu0 %v3626
    %4729 = vmatprep.subr.bf16.mxu0 0
    %4730 = vmatpush1.bf16.msra.mxu0 %v3627
    %4731 = vmatprep.subr.bf16.mxu0 0
    %4732 = vmatpush1.bf16.msra.mxu0 %v3628
    %4733 = vmatprep.subr.bf16.mxu0 0
    %4734 = vmatpush1.bf16.msra.mxu0 %v3629
    %4735 = vmatprep.subr.bf16.mxu0 0
    %4736 = vmatpush1.bf16.msra.mxu0 %v3630
    %4737 = vmatprep.subr.bf16.mxu0 0
    %4738 = vmatpush1.bf16.msra.mxu0 %v3631
    %4739 = vmatprep.subr.bf16.mxu0 0
    %4740 = vmatpush1.bf16.msra.mxu0 %v3632
    %4741 = vmatprep.subr.bf16.mxu0 0
    %4742 = vmatpush1.bf16.msra.mxu0 %v3633
    %4743 = vmatprep.subr.bf16.mxu0 0
    %4744 = vmatpush1.bf16.msra.mxu0 %v3634
    %4745 = vmatprep.subr.bf16.mxu0 0
    %4746 = vmatpush1.bf16.msra.mxu0 %v3635
    %4747 = vmatprep.subr.bf16.mxu0 0
    %4748 = vmatpush1.bf16.msra.mxu0 %v3636
    %4749 = vmatprep.mubr.bf16.mxu0 %v1117
    %4750 = vmatmul.mubr.bf16.gmra.mrb[0].mxu0 %v1115
    %v4751 = vpop.f32.mrb[0].mxu0
    %v4752 = vadd.f32 %v4712, %v4751
    %v4753 = vpop.f32.mrb[0].mxu0
    %v4754 = vpop.f32.mrb[0].mxu0
    %v4755 = vpop.f32.mrb[0].mxu0
    %4756 = vdwg.mxu0
    %4757 = vmatprep.subr.bf16.mxu0 0
    %4758 = vmatpush1.bf16.msra.mxu0 %v3637
    %4759 = vmatprep.subr.bf16.mxu0 0
    %4760 = vmatpush1.bf16.msra.mxu0 %v3638
    %4761 = vmatprep.subr.bf16.mxu0 0
    %4762 = vmatpush1.bf16.msra.mxu0 %v3639
    %4763 = vmatprep.subr.bf16.mxu0 0
    %4764 = vmatpush1.bf16.msra.mxu0 %v3640
    %4765 = vmatprep.subr.bf16.mxu0 0
    %4766 = vmatpush1.bf16.msra.mxu0 %v3641
    %4767 = vmatprep.subr.bf16.mxu0 0
    %4768 = vmatpush1.bf16.msra.mxu0 %v3642
    %4769 = vmatprep.subr.bf16.mxu0 0
    %4770 = vmatpush1.bf16.msra.mxu0 %v3643
    %4771 = vmatprep.subr.bf16.mxu0 0
    %4772 = vmatpush1.bf16.msra.mxu0 %v3644
    %4773 = vmatprep.subr.bf16.mxu0 0
    %4774 = vmatpush1.bf16.msra.mxu0 %v3645
    %4775 = vmatprep.subr.bf16.mxu0 0
    %4776 = vmatpush1.bf16.msra.mxu0 %v3646
    %4777 = vmatprep.subr.bf16.mxu0 0
    %4778 = vmatpush1.bf16.msra.mxu0 %v3647
    %4779 = vmatprep.subr.bf16.mxu0 0
    %4780 = vmatpush1.bf16.msra.mxu0 %v3648
    %4781 = vmatprep.subr.bf16.mxu0 0
    %4782 = vmatpush1.bf16.msra.mxu0 %v3649
    %4783 = vmatprep.subr.bf16.mxu0 0
    %4784 = vmatpush1.bf16.msra.mxu0 %v3650
    %4785 = vmatprep.subr.bf16.mxu0 0
    %4786 = vmatpush1.bf16.msra.mxu0 %v3651
    %4787 = vmatprep.subr.bf16.mxu0 0
    %4788 = vmatpush1.bf16.msra.mxu0 %v3652
    %4789 = vmatprep.mubr.bf16.mxu0 %v1155
    %4790 = vmatmul.mubr.bf16.gmra.mrb[0].mxu0 %v1141
    %v4791 = vpop.f32.mrb[0].mxu0
    %v4792 = vadd.f32 %v4752, %v4791
    %v4793 = vpop.f32.mrb[0].mxu0
    %v4794 = vpop.f32.mrb[0].mxu0
    %v4795 = vpop.f32.mrb[0].mxu0
    %4796 = vdwg.mxu0
    %4797 = vmatprep.subr.bf16.mxu0 0
    %4798 = vmatpush1.bf16.msra.mxu0 %v3653
    %4799 = vmatprep.subr.bf16.mxu0 0
    %4800 = vmatpush1.bf16.msra.mxu0 %v3654
    %4801 = vmatprep.subr.bf16.mxu0 0
    %4802 = vmatpush1.bf16.msra.mxu0 %v3655
    %4803 = vmatprep.subr.bf16.mxu0 0
    %4804 = vmatpush1.bf16.msra.mxu0 %v3656
    %4805 = vmatprep.subr.bf16.mxu0 0
    %4806 = vmatpush1.bf16.msra.mxu0 %v3657
    %4807 = vmatprep.subr.bf16.mxu0 0
    %4808 = vmatpush1.bf16.msra.mxu0 %v3658
    %4809 = vmatprep.subr.bf16.mxu0 0
    %4810 = vmatpush1.bf16.msra.mxu0 %v3659
    %4811 = vmatprep.subr.bf16.mxu0 0
    %4812 = vmatpush1.bf16.msra.mxu0 %v3660
    %4813 = vmatprep.subr.bf16.mxu0 0
    %4814 = vmatpush1.bf16.msra.mxu0 %v3661
    %4815 = vmatprep.subr.bf16.mxu0 0
    %4816 = vmatpush1.bf16.msra.mxu0 %v3662
    %4817 = vmatprep.subr.bf16.mxu0 0
    %4818 = vmatpush1.bf16.msra.mxu0 %v3663
    %4819 = vmatprep.subr.bf16.mxu0 0
    %4820 = vmatpush1.bf16.msra.mxu0 %v3664
    %4821 = vmatprep.subr.bf16.mxu0 0
    %4822 = vmatpush1.bf16.msra.mxu0 %v3665
    %4823 = vmatprep.subr.bf16.mxu0 0
    %4824 = vmatpush1.bf16.msra.mxu0 %v3666
    %4825 = vmatprep.subr.bf16.mxu0 0
    %4826 = vmatpush1.bf16.msra.mxu0 %v3667
    %4827 = vmatprep.subr.bf16.mxu0 0
    %4828 = vmatpush1.bf16.msra.mxu0 %v3668
    %4829 = vmatprep.mubr.bf16.mxu0 %v1165
    %4830 = vmatmul.mubr.bf16.gmra.mrb[0].mxu0 %v1163
    %v4831 = vpop.f32.mrb[0].mxu0
    %v4832 = vadd.f32 %v4792, %v4831
    %v4833 = vpop.f32.mrb[0].mxu0
    %v4834 = vpop.f32.mrb[0].mxu0
    %v4835 = vpop.f32.mrb[0].mxu0
    %4836 = vdwg.mxu0
    %4837 = vmatprep.subr.bf16.mxu0 0
    %4838 = vmatpush1.bf16.msra.mxu0 %v3669
    %4839 = vmatprep.subr.bf16.mxu0 0
    %4840 = vmatpush1.bf16.msra.mxu0 %v3670
    %4841 = vmatprep.subr.bf16.mxu0 0
    %4842 = vmatpush1.bf16.msra.mxu0 %v3671
    %4843 = vmatprep.subr.bf16.mxu0 0
    %4844 = vmatpush1.bf16.msra.mxu0 %v3672
    %4845 = vmatprep.subr.bf16.mxu0 0
    %4846 = vmatpush1.bf16.msra.mxu0 %v3673
    %4847 = vmatprep.subr.bf16.mxu0 0
    %4848 = vmatpush1.bf16.msra.mxu0 %v3674
    %4849 = vmatprep.subr.bf16.mxu0 0
    %4850 = vmatpush1.bf16.msra.mxu0 %v3675
    %4851 = vmatprep.subr.bf16.mxu0 0
    %4852 = vmatpush1.bf16.msra.mxu0 %v3676
    %4853 = vmatprep.subr.bf16.mxu0 0
    %4854 = vmatpush1.bf16.msra.mxu0 %v3677
    %4855 = vmatprep.subr.bf16.mxu0 0
    %4856 = vmatpush1.bf16.msra.mxu0 %v3678
    %4857 = vmatprep.subr.bf16.mxu0 0
    %4858 = vmatpush1.bf16.msra.mxu0 %v3679
    %4859 = vmatprep.subr.bf16.mxu0 0
    %4860 = vmatpush1.bf16.msra.mxu0 %v3680
    %4861 = vmatprep.subr.bf16.mxu0 0
    %4862 = vmatpush1.bf16.msra.mxu0 %v3681
    %4863 = vmatprep.subr.bf16.mxu0 0
    %4864 = vmatpush1.bf16.msra.mxu0 %v3682
    %4865 = vmatprep.subr.bf16.mxu0 0
    %4866 = vmatpush1.bf16.msra.mxu0 %v3683
    %4867 = vmatprep.subr.bf16.mxu0 0
    %4868 = vmatpush1.bf16.msra.mxu0 %v3684
    %4869 = vmatprep.mubr.bf16.mxu0 %v1162
    %4870 = vmatmul.mubr.bf16.gmra.mrb[0].mxu0 %v1148
    %v4871 = vpop.f32.mrb[0].mxu0
    %v4872 = vadd.f32 %v4832, %v4871
    %v4873 = vpop.f32.mrb[0].mxu0
    %v4874 = vpop.f32.mrb[0].mxu0
    %v4875 = vpop.f32.mrb[0].mxu0
    %4876 = vdwg.mxu0
    %4877 = vmatprep.subr.bf16.mxu0 0
    %4878 = vmatpush1.bf16.msra.mxu0 %v3685
    %4879 = vmatprep.subr.bf16.mxu0 0
    %4880 = vmatpush1.bf16.msra.mxu0 %v3686
    %4881 = vmatprep.subr.bf16.mxu0 0
    %4882 = vmatpush1.bf16.msra.mxu0 %v3687
    %4883 = vmatprep.subr.bf16.mxu0 0
    %4884 = vmatpush1.bf16.msra.mxu0 %v3688
    %4885 = vmatprep.subr.bf16.mxu0 0
    %4886 = vmatpush1.bf16.msra.mxu0 %v3689
    %4887 = vmatprep.subr.bf16.mxu0 0
    %4888 = vmatpush1.bf16.msra.mxu0 %v3690
    %4889 = vmatprep.subr.bf16.mxu0 0
    %4890 = vmatpush1.bf16.msra.mxu0 %v3691
    %4891 = vmatprep.subr.bf16.mxu0 0
    %4892 = vmatpush1.bf16.msra.mxu0 %v3692
    %4893 = vmatprep.subr.bf16.mxu0 0
    %4894 = vmatpush1.bf16.msra.mxu0 %v3693
    %4895 = vmatprep.subr.bf16.mxu0 0
    %4896 = vmatpush1.bf16.msra.mxu0 %v3694
    %4897 = vmatprep.subr.bf16.mxu0 0
    %4898 = vmatpush1.bf16.msra.mxu0 %v3695
    %4899 = vmatprep.subr.bf16.mxu0 0
    %4900 = vmatpush1.bf16.msra.mxu0 %v3696
    %4901 = vmatprep.subr.bf16.mxu0 0
    %4902 = vmatpush1.bf16.msra.mxu0 %v3697
    %4903 = vmatprep.subr.bf16.mxu0 0
    %4904 = vmatpush1.bf16.msra.mxu0 %v3698
    %4905 = vmatprep.subr.bf16.mxu0 0
    %4906 = vmatpush1.bf16.msra.mxu0 %v3699
    %4907 = vmatprep.subr.bf16.mxu0 0
    %4908 = vmatpush1.bf16.msra.mxu0 %v3700
    %4909 = vmatprep.mubr.bf16.mxu0 %v1166
    %4910 = vmatmul.mubr.bf16.gmra.mrb[0].mxu0 %v1164
    %v4911 = vpop.f32.mrb[0].mxu0
    %v4912 = vadd.f32 %v4872, %v4911
    %v4913 = vpop.f32.mrb[0].mxu0
    %v4914 = vpop.f32.mrb[0].mxu0
    %v4915 = vpop.f32.mrb[0].mxu0
    %4916 = vdwg.mxu0
    %4917 = vmatprep.subr.bf16.mxu0 0
    %4918 = vmatpush1.bf16.msra.mxu0 %v3701
    %4919 = vmatprep.subr.bf16.mxu0 0
    %4920 = vmatpush1.bf16.msra.mxu0 %v3702
    %4921 = vmatprep.subr.bf16.mxu0 0
    %4922 = vmatpush1.bf16.msra.mxu0 %v3703
    %4923 = vmatprep.subr.bf16.mxu0 0
    %4924 = vmatpush1.bf16.msra.mxu0 %v3704
    %4925 = vmatprep.subr.bf16.mxu0 0
    %4926 = vmatpush1.bf16.msra.mxu0 %v3705
    %4927 = vmatprep.subr.bf16.mxu0 0
    %4928 = vmatpush1.bf16.msra.mxu0 %v3706
    %4929 = vmatprep.subr.bf16.mxu0 0
    %4930 = vmatpush1.bf16.msra.mxu0 %v3707
    %4931 = vmatprep.subr.bf16.mxu0 0
    %4932 = vmatpush1.bf16.msra.mxu0 %v3708
    %4933 = vmatprep.subr.bf16.mxu0 0
    %4934 = vmatpush1.bf16.msra.mxu0 %v3709
    %4935 = vmatprep.subr.bf16.mxu0 0
    %4936 = vmatpush1.bf16.msra.mxu0 %v3710
    %4937 = vmatprep.subr.bf16.mxu0 0
    %4938 = vmatpush1.bf16.msra.mxu0 %v3711
    %4939 = vmatprep.subr.bf16.mxu0 0
    %4940 = vmatpush1.bf16.msra.mxu0 %v3712
    %4941 = vmatprep.subr.bf16.mxu0 0
    %4942 = vmatpush1.bf16.msra.mxu0 %v3713
    %4943 = vmatprep.subr.bf16.mxu0 0
    %4944 = vmatpush1.bf16.msra.mxu0 %v3714
    %4945 = vmatprep.subr.bf16.mxu0 0
    %4946 = vmatpush1.bf16.msra.mxu0 %v3715
    %4947 = vmatprep.subr.bf16.mxu0 0
    %4948 = vmatpush1.bf16.msra.mxu0 %v3716
    %4949 = vmatprep.mubr.bf16.mxu0 %v1204
    %4950 = vmatmul.mubr.bf16.gmra.mrb[0].mxu0 %v1190
    %v4951 = vpop.f32.mrb[0].mxu0
    %v4952 = vadd.f32 %v4912, %v4951
    %v4953 = vpop.f32.mrb[0].mxu0
    %v4954 = vpop.f32.mrb[0].mxu0
    %v4955 = vpop.f32.mrb[0].mxu0
    %4956 = vdwg.mxu0
    %4957 = vmatprep.subr.bf16.mxu0 0
    %4958 = vmatpush1.bf16.msra.mxu0 %v3717
    %4959 = vmatprep.subr.bf16.mxu0 0
    %4960 = vmatpush1.bf16.msra.mxu0 %v3718
    %4961 = vmatprep.subr.bf16.mxu0 0
    %4962 = vmatpush1.bf16.msra.mxu0 %v3719
    %4963 = vmatprep.subr.bf16.mxu0 0
    %4964 = vmatpush1.bf16.msra.mxu0 %v3720
    %4965 = vmatprep.subr.bf16.mxu0 0
    %4966 = vmatpush1.bf16.msra.mxu0 %v3721
    %4967 = vmatprep.subr.bf16.mxu0 0
    %4968 = vmatpush1.bf16.msra.mxu0 %v3722
    %4969 = vmatprep.subr.bf16.mxu0 0
    %4970 = vmatpush1.bf16.msra.mxu0 %v3723
    %4971 = vmatprep.subr.bf16.mxu0 0
    %4972 = vmatpush1.bf16.msra.mxu0 %v3724
    %4973 = vmatprep.subr.bf16.mxu0 0
    %4974 = vmatpush1.bf16.msra.mxu0 %v3725
    %4975 = vmatprep.subr.bf16.mxu0 0
    %4976 = vmatpush1.bf16.msra.mxu0 %v3726
    %4977 = vmatprep.subr.bf16.mxu0 0
    %4978 = vmatpush1.bf16.msra.mxu0 %v3727
    %4979 = vmatprep.subr.bf16.mxu0 0
    %4980 = vmatpush1.bf16.msra.mxu0 %v3728
    %4981 = vmatprep.subr.bf16.mxu0 0
    %4982 = vmatpush1.bf16.msra.mxu0 %v3729
    %4983 = vmatprep.subr.bf16.mxu0 0
    %4984 = vmatpush1.bf16.msra.mxu0 %v3730
    %4985 = vmatprep.subr.bf16.mxu0 0
    %4986 = vmatpush1.bf16.msra.mxu0 %v3731
    %4987 = vmatprep.subr.bf16.mxu0 0
    %4988 = vmatpush1.bf16.msra.mxu0 %v3732
    %4989 = vmatprep.mubr.bf16.mxu0 %v1214
    %4990 = vmatmul.mubr.bf16.gmra.mrb[0].mxu0 %v1212
    %v4991 = vpop.f32.mrb[0].mxu0
    %v4992 = vadd.f32 %v4952, %v4991
    %v4993 = vpop.f32.mrb[0].mxu0
    %v4994 = vpop.f32.mrb[0].mxu0
    %v4995 = vpop.f32.mrb[0].mxu0
    %4996 = vdwg.mxu0
    %4997 = vmatprep.subr.bf16.mxu0 0
    %4998 = vmatpush1.bf16.msra.mxu0 %v3733
    %4999 = vmatprep.subr.bf16.mxu0 0
    %5000 = vmatpush1.bf16.msra.mxu0 %v3734
    %5001 = vmatprep.subr.bf16.mxu0 0
    %5002 = vmatpush1.bf16.msra.mxu0 %v3735
    %5003 = vmatprep.subr.bf16.mxu0 0
    %5004 = vmatpush1.bf16.msra.mxu0 %v3736
    %5005 = vmatprep.subr.bf16.mxu0 0
    %5006 = vmatpush1.bf16.msra.mxu0 %v3737
    %5007 = vmatprep.subr.bf16.mxu0 0
    %5008 = vmatpush1.bf16.msra.mxu0 %v3738
    %5009 = vmatprep.subr.bf16.mxu0 0
    %5010 = vmatpush1.bf16.msra.mxu0 %v3739
    %5011 = vmatprep.subr.bf16.mxu0 0
    %5012 = vmatpush1.bf16.msra.mxu0 %v3740
    %5013 = vmatprep.subr.bf16.mxu0 0
    %5014 = vmatpush1.bf16.msra.mxu0 %v3741
    %5015 = vmatprep.subr.bf16.mxu0 0
    %5016 = vmatpush1.bf16.msra.mxu0 %v3742
    %5017 = vmatprep.subr.bf16.mxu0 0
    %5018 = vmatpush1.bf16.msra.mxu0 %v3743
    %5019 = vmatprep.subr.bf16.mxu0 0
    %5020 = vmatpush1.bf16.msra.mxu0 %v3744
    %5021 = vmatprep.subr.bf16.mxu0 0
    %5022 = vmatpush1.bf16.msra.mxu0 %v3745
    %5023 = vmatprep.subr.bf16.mxu0 0
    %5024 = vmatpush1.bf16.msra.mxu0 %v3746
    %5025 = vmatprep.subr.bf16.mxu0 0
    %5026 = vmatpush1.bf16.msra.mxu0 %v3747
    %5027 = vmatprep.subr.bf16.mxu0 0
    %5028 = vmatpush1.bf16.msra.mxu0 %v3748
    %5029 = vmatprep.mubr.bf16.mxu0 %v1211
    %5030 = vmatmul.mubr.bf16.gmra.mrb[0].mxu0 %v1197
    %v5031 = vpop.f32.mrb[0].mxu0
    %v5032 = vadd.f32 %v4992, %v5031
    %v5033 = vpop.f32.mrb[0].mxu0
    %v5034 = vpop.f32.mrb[0].mxu0
    %v5035 = vpop.f32.mrb[0].mxu0
    %5036 = vdwg.mxu0
    %5037 = vmatprep.subr.bf16.mxu0 0
    %5038 = vmatpush1.bf16.msra.mxu0 %v3749
    %5039 = vmatprep.subr.bf16.mxu0 0
    %5040 = vmatpush1.bf16.msra.mxu0 %v3750
    %5041 = vmatprep.subr.bf16.mxu0 0
    %5042 = vmatpush1.bf16.msra.mxu0 %v3751
    %5043 = vmatprep.subr.bf16.mxu0 0
    %5044 = vmatpush1.bf16.msra.mxu0 %v3752
    %5045 = vmatprep.subr.bf16.mxu0 0
    %5046 = vmatpush1.bf16.msra.mxu0 %v3753
    %5047 = vmatprep.subr.bf16.mxu0 0
    %5048 = vmatpush1.bf16.msra.mxu0 %v3754
    %5049 = vmatprep.subr.bf16.mxu0 0
    %5050 = vmatpush1.bf16.msra.mxu0 %v3755
    %5051 = vmatprep.subr.bf16.mxu0 0
    %5052 = vmatpush1.bf16.msra.mxu0 %v3756
    %5053 = vmatprep.subr.bf16.mxu0 0
    %5054 = vmatpush1.bf16.msra.mxu0 %v3757
    %5055 = vmatprep.subr.bf16.mxu0 0
    %5056 = vmatpush1.bf16.msra.mxu0 %v3758
    %5057 = vmatprep.subr.bf16.mxu0 0
    %5058 = vmatpush1.bf16.msra.mxu0 %v3759
    %5059 = vmatprep.subr.bf16.mxu0 0
    %5060 = vmatpush1.bf16.msra.mxu0 %v3760
    %5061 = vmatprep.subr.bf16.mxu0 0
    %5062 = vmatpush1.bf16.msra.mxu0 %v3761
    %5063 = vmatprep.subr.bf16.mxu0 0
    %5064 = vmatpush1.bf16.msra.mxu0 %v3762
    %5065 = vmatprep.subr.bf16.mxu0 0
    %5066 = vmatpush1.bf16.msra.mxu0 %v3763
    %5067 = vmatprep.subr.bf16.mxu0 0
    %5068 = vmatpush1.bf16.msra.mxu0 %v3764
    %5069 = vmatprep.mubr.bf16.mxu0 %v1215
    %5070 = vmatmul.mubr.bf16.gmra.mrb[0].mxu0 %v1213
    %v5071 = vpop.f32.mrb[0].mxu0
    %v5072 = vadd.f32 %v5032, %v5071
    %v5073 = vpop.f32.mrb[0].mxu0
    %v5074 = vpop.f32.mrb[0].mxu0
    %v5075 = vpop.f32.mrb[0].mxu0
    %5076 = vdwg.mxu0
    %5077 = vmatprep.subr.bf16.mxu0 0
    %5078 = vmatpush1.bf16.msra.mxu0 %v3765
    %5079 = vmatprep.subr.bf16.mxu0 0
    %5080 = vmatpush1.bf16.msra.mxu0 %v3766
    %5081 = vmatprep.subr.bf16.mxu0 0
    %5082 = vmatpush1.bf16.msra.mxu0 %v3767
    %5083 = vmatprep.subr.bf16.mxu0 0
    %5084 = vmatpush1.bf16.msra.mxu0 %v3768
    %5085 = vmatprep.subr.bf16.mxu0 0
    %5086 = vmatpush1.bf16.msra.mxu0 %v3769
    %5087 = vmatprep.subr.bf16.mxu0 0
    %5088 = vmatpush1.bf16.msra.mxu0 %v3770
    %5089 = vmatprep.subr.bf16.mxu0 0
    %5090 = vmatpush1.bf16.msra.mxu0 %v3771
    %5091 = vmatprep.subr.bf16.mxu0 0
    %5092 = vmatpush1.bf16.msra.mxu0 %v3772
    %5093 = vmatprep.subr.bf16.mxu0 0
    %5094 = vmatpush1.bf16.msra.mxu0 %v3773
    %5095 = vmatprep.subr.bf16.mxu0 0
    %5096 = vmatpush1.bf16.msra.mxu0 %v3774
    %5097 = vmatprep.subr.bf16.mxu0 0
    %5098 = vmatpush1.bf16.msra.mxu0 %v3775
    %5099 = vmatprep.subr.bf16.mxu0 0
    %5100 = vmatpush1.bf16.msra.mxu0 %v3776
    %5101 = vmatprep.subr.bf16.mxu0 0
    %5102 = vmatpush1.bf16.msra.mxu0 %v3777
    %5103 = vmatprep.subr.bf16.mxu0 0
    %5104 = vmatpush1.bf16.msra.mxu0 %v3778
    %5105 = vmatprep.subr.bf16.mxu0 0
    %5106 = vmatpush1.bf16.msra.mxu0 %v3779
    %5107 = vmatprep.subr.bf16.mxu0 0
    %5108 = vmatpush1.bf16.msra.mxu0 %v3780
    %5109 = vmatprep.mubr.bf16.mxu0 %v1253
    %5110 = vmatmul.mubr.bf16.gmra.mrb[0].mxu0 %v1239
    %v5111 = vpop.f32.mrb[0].mxu0
    %v5112 = vadd.f32 %v5072, %v5111
    %v5113 = vpop.f32.mrb[0].mxu0
    %v5114 = vpop.f32.mrb[0].mxu0
    %v5115 = vpop.f32.mrb[0].mxu0
    %5116 = vdwg.mxu0
    %5117 = vmatprep.subr.bf16.mxu0 0
    %5118 = vmatpush1.bf16.msra.mxu0 %v3781
    %5119 = vmatprep.subr.bf16.mxu0 0
    %5120 = vmatpush1.bf16.msra.mxu0 %v3782
    %5121 = vmatprep.subr.bf16.mxu0 0
    %5122 = vmatpush1.bf16.msra.mxu0 %v3783
    %5123 = vmatprep.subr.bf16.mxu0 0
    %5124 = vmatpush1.bf16.msra.mxu0 %v3784
    %5125 = vmatprep.subr.bf16.mxu0 0
    %5126 = vmatpush1.bf16.msra.mxu0 %v3785
    %5127 = vmatprep.subr.bf16.mxu0 0
    %5128 = vmatpush1.bf16.msra.mxu0 %v3786
    %5129 = vmatprep.subr.bf16.mxu0 0
    %5130 = vmatpush1.bf16.msra.mxu0 %v3787
    %5131 = vmatprep.subr.bf16.mxu0 0
    %5132 = vmatpush1.bf16.msra.mxu0 %v3788
    %5133 = vmatprep.subr.bf16.mxu0 0
    %5134 = vmatpush1.bf16.msra.mxu0 %v3789
    %5135 = vmatprep.subr.bf16.mxu0 0
    %5136 = vmatpush1.bf16.msra.mxu0 %v3790
    %5137 = vmatprep.subr.bf16.mxu0 0
    %5138 = vmatpush1.bf16.msra.mxu0 %v3791
    %5139 = vmatprep.subr.bf16.mxu0 0
    %5140 = vmatpush1.bf16.msra.mxu0 %v3792
    %5141 = vmatprep.subr.bf16.mxu0 0
    %5142 = vmatpush1.bf16.msra.mxu0 %v3793
    %5143 = vmatprep.subr.bf16.mxu0 0
    %5144 = vmatpush1.bf16.msra.mxu0 %v3794
    %5145 = vmatprep.subr.bf16.mxu0 0
    %5146 = vmatpush1.bf16.msra.mxu0 %v3795
    %5147 = vmatprep.subr.bf16.mxu0 0
    %5148 = vmatpush1.bf16.msra.mxu0 %v3796
    %5149 = vmatprep.mubr.bf16.mxu0 %v1263
    %5150 = vmatmul.mubr.bf16.gmra.mrb[0].mxu0 %v1261
    %v5151 = vpop.f32.mrb[0].mxu0
    %v5152 = vadd.f32 %v5112, %v5151
    %v5153 = vpop.f32.mrb[0].mxu0
    %v5154 = vpop.f32.mrb[0].mxu0
    %v5155 = vpop.f32.mrb[0].mxu0
    %5156 = vdwg.mxu0
    %5157 = vmatprep.subr.bf16.mxu0 0
    %5158 = vmatpush1.bf16.msra.mxu0 %v3797
    %5159 = vmatprep.subr.bf16.mxu0 0
    %5160 = vmatpush1.bf16.msra.mxu0 %v3798
    %5161 = vmatprep.subr.bf16.mxu0 0
    %5162 = vmatpush1.bf16.msra.mxu0 %v3799
    %5163 = vmatprep.subr.bf16.mxu0 0
    %5164 = vmatpush1.bf16.msra.mxu0 %v3800
    %5165 = vmatprep.subr.bf16.mxu0 0
    %5166 = vmatpush1.bf16.msra.mxu0 %v3801
    %5167 = vmatprep.subr.bf16.mxu0 0
    %5168 = vmatpush1.bf16.msra.mxu0 %v3802
    %5169 = vmatprep.subr.bf16.mxu0 0
    %5170 = vmatpush1.bf16.msra.mxu0 %v3803
    %5171 = vmatprep.subr.bf16.mxu0 0
    %5172 = vmatpush1.bf16.msra.mxu0 %v3804
    %5173 = vmatprep.subr.bf16.mxu0 0
    %5174 = vmatpush1.bf16.msra.mxu0 %v3805
    %5175 = vmatprep.subr.bf16.mxu0 0
    %5176 = vmatpush1.bf16.msra.mxu0 %v3806
    %5177 = vmatprep.subr.bf16.mxu0 0
    %5178 = vmatpush1.bf16.msra.mxu0 %v3807
    %5179 = vmatprep.subr.bf16.mxu0 0
    %5180 = vmatpush1.bf16.msra.mxu0 %v3808
    %5181 = vmatprep.subr.bf16.mxu0 0
    %5182 = vmatpush1.bf16.msra.mxu0 %v3809
    %5183 = vmatprep.subr.bf16.mxu0 0
    %5184 = vmatpush1.bf16.msra.mxu0 %v3810
    %5185 = vmatprep.subr.bf16.mxu0 0
    %5186 = vmatpush1.bf16.msra.mxu0 %v3811
    %5187 = vmatprep.subr.bf16.mxu0 0
    %5188 = vmatpush1.bf16.msra.mxu0 %v3812
    %5189 = vmatprep.mubr.bf16.mxu0 %v1260
    %5190 = vmatmul.mubr.bf16.gmra.mrb[0].mxu0 %v1246
    %v5191 = vpop.f32.mrb[0].mxu0
    %v5192 = vadd.f32 %v5152, %v5191
    %v5193 = vpop.f32.mrb[0].mxu0
    %v5194 = vpop.f32.mrb[0].mxu0
    %v5195 = vpop.f32.mrb[0].mxu0
    %5196 = vdwg.mxu0
    %5197 = vmatprep.subr.bf16.mxu0 0
    %5198 = vmatpush1.bf16.msra.mxu0 %v3813
    %5199 = vmatprep.subr.bf16.mxu0 0
    %5200 = vmatpush1.bf16.msra.mxu0 %v3814
    %5201 = vmatprep.subr.bf16.mxu0 0
    %5202 = vmatpush1.bf16.msra.mxu0 %v3815
    %5203 = vmatprep.subr.bf16.mxu0 0
    %5204 = vmatpush1.bf16.msra.mxu0 %v3816
    %5205 = vmatprep.subr.bf16.mxu0 0
    %5206 = vmatpush1.bf16.msra.mxu0 %v3817
    %5207 = vmatprep.subr.bf16.mxu0 0
    %5208 = vmatpush1.bf16.msra.mxu0 %v3818
    %5209 = vmatprep.subr.bf16.mxu0 0
    %5210 = vmatpush1.bf16.msra.mxu0 %v3819
    %5211 = vmatprep.subr.bf16.mxu0 0
    %5212 = vmatpush1.bf16.msra.mxu0 %v3820
    %5213 = vmatprep.subr.bf16.mxu0 0
    %5214 = vmatpush1.bf16.msra.mxu0 %v3821
    %5215 = vmatprep.subr.bf16.mxu0 0
    %5216 = vmatpush1.bf16.msra.mxu0 %v3822
    %5217 = vmatprep.subr.bf16.mxu0 0
    %5218 = vmatpush1.bf16.msra.mxu0 %v3823
    %5219 = vmatprep.subr.bf16.mxu0 0
    %5220 = vmatpush1.bf16.msra.mxu0 %v3824
    %5221 = vmatprep.subr.bf16.mxu0 0
    %5222 = vmatpush1.bf16.msra.mxu0 %v3825
    %5223 = vmatprep.subr.bf16.mxu0 0
    %5224 = vmatpush1.bf16.msra.mxu0 %v3826
    %5225 = vmatprep.subr.bf16.mxu0 0
    %5226 = vmatpush1.bf16.msra.mxu0 %v3827
    %5227 = vmatprep.subr.bf16.mxu0 0
    %5228 = vmatpush1.bf16.msra.mxu0 %v3828
    %5229 = vmatprep.mubr.bf16.mxu0 %v1264
    %5230 = vmatmul.mubr.bf16.gmra.mrb[0].mxu0 %v1262
    %v5231 = vpop.f32.mrb[0].mxu0
    %v5232 = vadd.f32 %v5192, %v5231
    %v5233 = vpop.f32.mrb[0].mxu0
    %v5234 = vpop.f32.mrb[0].mxu0
    %v5235 = vpop.f32.mrb[0].mxu0
    %5236 = vdwg.mxu0
    %5237 = vmatprep.subr.bf16.mxu0 0
    %5238 = vmatpush1.bf16.msra.mxu0 %v3829
    %5239 = vmatprep.subr.bf16.mxu0 0
    %5240 = vmatpush1.bf16.msra.mxu0 %v3830
    %5241 = vmatprep.subr.bf16.mxu0 0
    %5242 = vmatpush1.bf16.msra.mxu0 %v3831
    %5243 = vmatprep.subr.bf16.mxu0 0
    %5244 = vmatpush1.bf16.msra.mxu0 %v3832
    %5245 = vmatprep.subr.bf16.mxu0 0
    %5246 = vmatpush1.bf16.msra.mxu0 %v3833
    %5247 = vmatprep.subr.bf16.mxu0 0
    %5248 = vmatpush1.bf16.msra.mxu0 %v3834
    %5249 = vmatprep.subr.bf16.mxu0 0
    %5250 = vmatpush1.bf16.msra.mxu0 %v3835
    %5251 = vmatprep.subr.bf16.mxu0 0
    %5252 = vmatpush1.bf16.msra.mxu0 %v3836
    %5253 = vmatprep.subr.bf16.mxu0 0
    %5254 = vmatpush1.bf16.msra.mxu0 %v3837
    %5255 = vmatprep.subr.bf16.mxu0 0
    %5256 = vmatpush1.bf16.msra.mxu0 %v3838
    %5257 = vmatprep.subr.bf16.mxu0 0
    %5258 = vmatpush1.bf16.msra.mxu0 %v3839
    %5259 = vmatprep.subr.bf16.mxu0 0
    %5260 = vmatpush1.bf16.msra.mxu0 %v3840
    %5261 = vmatprep.subr.bf16.mxu0 0
    %5262 = vmatpush1.bf16.msra.mxu0 %v3841
    %5263 = vmatprep.subr.bf16.mxu0 0
    %5264 = vmatpush1.bf16.msra.mxu0 %v3842
    %5265 = vmatprep.subr.bf16.mxu0 0
    %5266 = vmatpush1.bf16.msra.mxu0 %v3843
    %5267 = vmatprep.subr.bf16.mxu0 0
    %5268 = vmatpush1.bf16.msra.mxu0 %v3844
    %5269 = vmatprep.mubr.bf16.mxu0 %v1302
    %5270 = vmatmul.mubr.bf16.gmra.mrb[0].mxu0 %v1288
    %v5271 = vpop.f32.mrb[0].mxu0
    %v5272 = vadd.f32 %v5232, %v5271
    %v5273 = vpop.f32.mrb[0].mxu0
    %v5274 = vpop.f32.mrb[0].mxu0
    %v5275 = vpop.f32.mrb[0].mxu0
    %5276 = vdwg.mxu0
    %5277 = vmatprep.subr.bf16.mxu0 0
    %5278 = vmatpush1.bf16.msra.mxu0 %v3845
    %5279 = vmatprep.subr.bf16.mxu0 0
    %5280 = vmatpush1.bf16.msra.mxu0 %v3846
    %5281 = vmatprep.subr.bf16.mxu0 0
    %5282 = vmatpush1.bf16.msra.mxu0 %v3847
    %5283 = vmatprep.subr.bf16.mxu0 0
    %5284 = vmatpush1.bf16.msra.mxu0 %v3848
    %5285 = vmatprep.subr.bf16.mxu0 0
    %5286 = vmatpush1.bf16.msra.mxu0 %v3849
    %5287 = vmatprep.subr.bf16.mxu0 0
    %5288 = vmatpush1.bf16.msra.mxu0 %v3850
    %5289 = vmatprep.subr.bf16.mxu0 0
    %5290 = vmatpush1.bf16.msra.mxu0 %v3851
    %5291 = vmatprep.subr.bf16.mxu0 0
    %5292 = vmatpush1.bf16.msra.mxu0 %v3852
    %5293 = vmatprep.subr.bf16.mxu0 0
    %5294 = vmatpush1.bf16.msra.mxu0 %v3853
    %5295 = vmatprep.subr.bf16.mxu0 0
    %5296 = vmatpush1.bf16.msra.mxu0 %v3854
    %5297 = vmatprep.subr.bf16.mxu0 0
    %5298 = vmatpush1.bf16.msra.mxu0 %v3855
    %5299 = vmatprep.subr.bf16.mxu0 0
    %5300 = vmatpush1.bf16.msra.mxu0 %v3856
    %5301 = vmatprep.subr.bf16.mxu0 0
    %5302 = vmatpush1.bf16.msra.mxu0 %v3857
    %5303 = vmatprep.subr.bf16.mxu0 0
    %5304 = vmatpush1.bf16.msra.mxu0 %v3858
    %5305 = vmatprep.subr.bf16.mxu0 0
    %5306 = vmatpush1.bf16.msra.mxu0 %v3859
    %5307 = vmatprep.subr.bf16.mxu0 0
    %5308 = vmatpush1.bf16.msra.mxu0 %v3860
    %5309 = vmatprep.mubr.bf16.mxu0 %v1312
    %5310 = vmatmul.mubr.bf16.gmra.mrb[0].mxu0 %v1310
    %v5311 = vpop.f32.mrb[0].mxu0
    %v5312 = vadd.f32 %v5272, %v5311
    %v5313 = vpop.f32.mrb[0].mxu0
    %v5314 = vpop.f32.mrb[0].mxu0
    %v5315 = vpop.f32.mrb[0].mxu0
    %5316 = vdwg.mxu0
    %5317 = vmatprep.subr.bf16.mxu0 0
    %5318 = vmatpush1.bf16.msra.mxu0 %v3861
    %5319 = vmatprep.subr.bf16.mxu0 0
    %5320 = vmatpush1.bf16.msra.mxu0 %v3862
    %5321 = vmatprep.subr.bf16.mxu0 0
    %5322 = vmatpush1.bf16.msra.mxu0 %v3863
    %5323 = vmatprep.subr.bf16.mxu0 0
    %5324 = vmatpush1.bf16.msra.mxu0 %v3864
    %5325 = vmatprep.subr.bf16.mxu0 0
    %5326 = vmatpush1.bf16.msra.mxu0 %v3865
    %5327 = vmatprep.subr.bf16.mxu0 0
    %5328 = vmatpush1.bf16.msra.mxu0 %v3866
    %5329 = vmatprep.subr.bf16.mxu0 0
    %5330 = vmatpush1.bf16.msra.mxu0 %v3867
    %5331 = vmatprep.subr.bf16.mxu0 0
    %5332 = vmatpush1.bf16.msra.mxu0 %v3868
    %5333 = vmatprep.subr.bf16.mxu0 0
    %5334 = vmatpush1.bf16.msra.mxu0 %v3869
    %5335 = vmatprep.subr.bf16.mxu0 0
    %5336 = vmatpush1.bf16.msra.mxu0 %v3870
    %5337 = vmatprep.subr.bf16.mxu0 0
    %5338 = vmatpush1.bf16.msra.mxu0 %v3871
    %5339 = vmatprep.subr.bf16.mxu0 0
    %5340 = vmatpush1.bf16.msra.mxu0 %v3872
    %5341 = vmatprep.subr.bf16.mxu0 0
    %5342 = vmatpush1.bf16.msra.mxu0 %v3873
    %5343 = vmatprep.subr.bf16.mxu0 0
    %5344 = vmatpush1.bf16.msra.mxu0 %v3874
    %5345 = vmatprep.subr.bf16.mxu0 0
    %5346 = vmatpush1.bf16.msra.mxu0 %v3875
    %5347 = vmatprep.subr.bf16.mxu0 0
    %5348 = vmatpush1.bf16.msra.mxu0 %v3876
    %5349 = vmatprep.mubr.bf16.mxu0 %v1309
    %5350 = vmatmul.mubr.bf16.gmra.mrb[0].mxu0 %v1295
    %v5351 = vpop.f32.mrb[0].mxu0
    %v5352 = vadd.f32 %v5312, %v5351
    %v5353 = vpop.f32.mrb[0].mxu0
    %v5354 = vpop.f32.mrb[0].mxu0
    %v5355 = vpop.f32.mrb[0].mxu0
    %5356 = vdwg.mxu0
    %5357 = vmatprep.subr.bf16.mxu0 0
    %5358 = vmatpush1.bf16.msra.mxu0 %v3877
    %5359 = vmatprep.subr.bf16.mxu0 0
    %5360 = vmatpush1.bf16.msra.mxu0 %v3878
    %5361 = vmatprep.subr.bf16.mxu0 0
    %5362 = vmatpush1.bf16.msra.mxu0 %v3879
    %5363 = vmatprep.subr.bf16.mxu0 0
    %5364 = vmatpush1.bf16.msra.mxu0 %v3880
    %5365 = vmatprep.subr.bf16.mxu0 0
    %5366 = vmatpush1.bf16.msra.mxu0 %v3881
    %5367 = vmatprep.subr.bf16.mxu0 0
    %5368 = vmatpush1.bf16.msra.mxu0 %v3882
    %5369 = vmatprep.subr.bf16.mxu0 0
    %5370 = vmatpush1.bf16.msra.mxu0 %v3883
    %5371 = vmatprep.subr.bf16.mxu0 0
    %5372 = vmatpush1.bf16.msra.mxu0 %v3884
    %5373 = vmatprep.subr.bf16.mxu0 0
    %5374 = vmatpush1.bf16.msra.mxu0 %v3885
    %5375 = vmatprep.subr.bf16.mxu0 0
    %5376 = vmatpush1.bf16.msra.mxu0 %v3886
    %5377 = vmatprep.subr.bf16.mxu0 0
    %5378 = vmatpush1.bf16.msra.mxu0 %v3887
    %5379 = vmatprep.subr.bf16.mxu0 0
    %5380 = vmatpush1.bf16.msra.mxu0 %v3888
    %5381 = vmatprep.subr.bf16.mxu0 0
    %5382 = vmatpush1.bf16.msra.mxu0 %v3889
    %5383 = vmatprep.subr.bf16.mxu0 0
    %5384 = vmatpush1.bf16.msra.mxu0 %v3890
    %5385 = vmatprep.subr.bf16.mxu0 0
    %5386 = vmatpush1.bf16.msra.mxu0 %v3891
    %5387 = vmatprep.subr.bf16.mxu0 0
    %5388 = vmatpush1.bf16.msra.mxu0 %v3892
    %5389 = vmatprep.mubr.bf16.mxu0 %v1313
    %5390 = vmatmul.mubr.bf16.gmra.mrb[0].mxu0 %v1311
    %v5391 = vpop.f32.mrb[0].mxu0
    %v5392 = vadd.f32 %v5352, %v5391
    %v5393 = vpop.f32.mrb[0].mxu0
    %v5394 = vpop.f32.mrb[0].mxu0
    %v5395 = vpop.f32.mrb[0].mxu0
    %5396 = vdwg.mxu0
    %5397 = vmatprep.subr.bf16.mxu0 0
    %5398 = vmatpush1.bf16.msra.mxu0 %v3893
    %5399 = vmatprep.subr.bf16.mxu0 0
    %5400 = vmatpush1.bf16.msra.mxu0 %v3894
    %5401 = vmatprep.subr.bf16.mxu0 0
    %5402 = vmatpush1.bf16.msra.mxu0 %v3895
    %5403 = vmatprep.subr.bf16.mxu0 0
    %5404 = vmatpush1.bf16.msra.mxu0 %v3896
    %5405 = vmatprep.subr.bf16.mxu0 0
    %5406 = vmatpush1.bf16.msra.mxu0 %v3897
    %5407 = vmatprep.subr.bf16.mxu0 0
    %5408 = vmatpush1.bf16.msra.mxu0 %v3898
    %5409 = vmatprep.subr.bf16.mxu0 0
    %5410 = vmatpush1.bf16.msra.mxu0 %v3899
    %5411 = vmatprep.subr.bf16.mxu0 0
    %5412 = vmatpush1.bf16.msra.mxu0 %v3900
    %5413 = vmatprep.subr.bf16.mxu0 0
    %5414 = vmatpush1.bf16.msra.mxu0 %v3901
    %5415 = vmatprep.subr.bf16.mxu0 0
    %5416 = vmatpush1.bf16.msra.mxu0 %v3902
    %5417 = vmatprep.subr.bf16.mxu0 0
    %5418 = vmatpush1.bf16.msra.mxu0 %v3903
    %5419 = vmatprep.subr.bf16.mxu0 0
    %5420 = vmatpush1.bf16.msra.mxu0 %v3904
    %5421 = vmatprep.subr.bf16.mxu0 0
    %5422 = vmatpush1.bf16.msra.mxu0 %v3905
    %5423 = vmatprep.subr.bf16.mxu0 0
    %5424 = vmatpush1.bf16.msra.mxu0 %v3906
    %5425 = vmatprep.subr.bf16.mxu0 0
    %5426 = vmatpush1.bf16.msra.mxu0 %v3907
    %5427 = vmatprep.subr.bf16.mxu0 0
    %5428 = vmatpush1.bf16.msra.mxu0 %v3908
    %5429 = vmatprep.mubr.bf16.mxu0 %v1351
    %5430 = vmatmul.mubr.bf16.gmra.mrb[0].mxu0 %v1337
    %v5431 = vpop.f32.mrb[0].mxu0
    %v5432 = vadd.f32 %v5392, %v5431
    %v5433 = vpop.f32.mrb[0].mxu0
    %v5434 = vpop.f32.mrb[0].mxu0
    %v5435 = vpop.f32.mrb[0].mxu0
    %5436 = vdwg.mxu0
    %5437 = vmatprep.subr.bf16.mxu0 0
    %5438 = vmatpush1.bf16.msra.mxu0 %v3909
    %5439 = vmatprep.subr.bf16.mxu0 0
    %5440 = vmatpush1.bf16.msra.mxu0 %v3910
    %5441 = vmatprep.subr.bf16.mxu0 0
    %5442 = vmatpush1.bf16.msra.mxu0 %v3911
    %5443 = vmatprep.subr.bf16.mxu0 0
    %5444 = vmatpush1.bf16.msra.mxu0 %v3912
    %5445 = vmatprep.subr.bf16.mxu0 0
    %5446 = vmatpush1.bf16.msra.mxu0 %v3913
    %5447 = vmatprep.subr.bf16.mxu0 0
    %5448 = vmatpush1.bf16.msra.mxu0 %v3914
    %5449 = vmatprep.subr.bf16.mxu0 0
    %5450 = vmatpush1.bf16.msra.mxu0 %v3915
    %5451 = vmatprep.subr.bf16.mxu0 0
    %5452 = vmatpush1.bf16.msra.mxu0 %v3916
    %5453 = vmatprep.subr.bf16.mxu0 0
    %5454 = vmatpush1.bf16.msra.mxu0 %v3917
    %5455 = vmatprep.subr.bf16.mxu0 0
    %5456 = vmatpush1.bf16.msra.mxu0 %v3918
    %5457 = vmatprep.subr.bf16.mxu0 0
    %5458 = vmatpush1.bf16.msra.mxu0 %v3919
    %5459 = vmatprep.subr.bf16.mxu0 0
    %5460 = vmatpush1.bf16.msra.mxu0 %v3920
    %5461 = vmatprep.subr.bf16.mxu0 0
    %5462 = vmatpush1.bf16.msra.mxu0 %v3921
    %5463 = vmatprep.subr.bf16.mxu0 0
    %5464 = vmatpush1.bf16.msra.mxu0 %v3922
    %5465 = vmatprep.subr.bf16.mxu0 0
    %5466 = vmatpush1.bf16.msra.mxu0 %v3923
    %5467 = vmatprep.subr.bf16.mxu0 0
    %5468 = vmatpush1.bf16.msra.mxu0 %v3924
    %5469 = vmatprep.mubr.bf16.mxu0 %v1361
    %5470 = vmatmul.mubr.bf16.gmra.mrb[0].mxu0 %v1359
    %v5471 = vpop.f32.mrb[0].mxu0
    %v5472 = vadd.f32 %v5432, %v5471
    %v5473 = vpop.f32.mrb[0].mxu0
    %v5474 = vpop.f32.mrb[0].mxu0
    %v5475 = vpop.f32.mrb[0].mxu0
    %5476 = vdwg.mxu0
    %5477 = vmatprep.subr.bf16.mxu0 0
    %5478 = vmatpush1.bf16.msra.mxu0 %v3925
    %5479 = vmatprep.subr.bf16.mxu0 0
    %5480 = vmatpush1.bf16.msra.mxu0 %v3926
    %5481 = vmatprep.subr.bf16.mxu0 0
    %5482 = vmatpush1.bf16.msra.mxu0 %v3927
    %5483 = vmatprep.subr.bf16.mxu0 0
    %5484 = vmatpush1.bf16.msra.mxu0 %v3928
    %5485 = vmatprep.subr.bf16.mxu0 0
    %5486 = vmatpush1.bf16.msra.mxu0 %v3929
    %5487 = vmatprep.subr.bf16.mxu0 0
    %5488 = vmatpush1.bf16.msra.mxu0 %v3930
    %5489 = vmatprep.subr.bf16.mxu0 0
    %5490 = vmatpush1.bf16.msra.mxu0 %v3931
    %5491 = vmatprep.subr.bf16.mxu0 0
    %5492 = vmatpush1.bf16.msra.mxu0 %v3932
    %5493 = vmatprep.subr.bf16.mxu0 0
    %5494 = vmatpush1.bf16.msra.mxu0 %v3933
    %5495 = vmatprep.subr.bf16.mxu0 0
    %5496 = vmatpush1.bf16.msra.mxu0 %v3934
    %5497 = vmatprep.subr.bf16.mxu0 0
    %5498 = vmatpush1.bf16.msra.mxu0 %v3935
    %5499 = vmatprep.subr.bf16.mxu0 0
    %5500 = vmatpush1.bf16.msra.mxu0 %v3936
    %5501 = vmatprep.subr.bf16.mxu0 0
    %5502 = vmatpush1.bf16.msra.mxu0 %v3937
    %5503 = vmatprep.subr.bf16.mxu0 0
    %5504 = vmatpush1.bf16.msra.mxu0 %v3938
    %5505 = vmatprep.subr.bf16.mxu0 0
    %5506 = vmatpush1.bf16.msra.mxu0 %v3939
    %5507 = vmatprep.subr.bf16.mxu0 0
    %5508 = vmatpush1.bf16.msra.mxu0 %v3940
    %5509 = vmatprep.mubr.bf16.mxu0 %v1358
    %5510 = vmatmul.mubr.bf16.gmra.mrb[0].mxu0 %v1344
    %v5511 = vpop.f32.mrb[0].mxu0
    %v5512 = vadd.f32 %v5472, %v5511
    %v5513 = vpop.f32.mrb[0].mxu0
    %v5514 = vpop.f32.mrb[0].mxu0
    %v5515 = vpop.f32.mrb[0].mxu0
    %5516 = vdwg.mxu0
    %5517 = vmatprep.subr.bf16.mxu0 0
    %5518 = vmatpush1.bf16.msra.mxu0 %v3941
    %5519 = vmatprep.subr.bf16.mxu0 0
    %5520 = vmatpush1.bf16.msra.mxu0 %v3942
    %5521 = vmatprep.subr.bf16.mxu0 0
    %5522 = vmatpush1.bf16.msra.mxu0 %v3943
    %5523 = vmatprep.subr.bf16.mxu0 0
    %5524 = vmatpush1.bf16.msra.mxu0 %v3944
    %5525 = vmatprep.subr.bf16.mxu0 0
    %5526 = vmatpush1.bf16.msra.mxu0 %v3945
    %5527 = vmatprep.subr.bf16.mxu0 0
    %5528 = vmatpush1.bf16.msra.mxu0 %v3946
    %5529 = vmatprep.subr.bf16.mxu0 0
    %5530 = vmatpush1.bf16.msra.mxu0 %v3947
    %5531 = vmatprep.subr.bf16.mxu0 0
    %5532 = vmatpush1.bf16.msra.mxu0 %v3948
    %5533 = vmatprep.subr.bf16.mxu0 0
    %5534 = vmatpush1.bf16.msra.mxu0 %v3949
    %5535 = vmatprep.subr.bf16.mxu0 0
    %5536 = vmatpush1.bf16.msra.mxu0 %v3950
    %5537 = vmatprep.subr.bf16.mxu0 0
    %5538 = vmatpush1.bf16.msra.mxu0 %v3951
    %5539 = vmatprep.subr.bf16.mxu0 0
    %5540 = vmatpush1.bf16.msra.mxu0 %v3952
    %5541 = vmatprep.subr.bf16.mxu0 0
    %5542 = vmatpush1.bf16.msra.mxu0 %v3953
    %5543 = vmatprep.subr.bf16.mxu0 0
    %5544 = vmatpush1.bf16.msra.mxu0 %v3954
    %5545 = vmatprep.subr.bf16.mxu0 0
    %5546 = vmatpush1.bf16.msra.mxu0 %v3955
    %5547 = vmatprep.subr.bf16.mxu0 0
    %5548 = vmatpush1.bf16.msra.mxu0 %v3956
    %5549 = vmatprep.mubr.bf16.mxu0 %v1362
    %5550 = vmatmul.mubr.bf16.gmra.mrb[0].mxu0 %v1360
    %v5551 = vpop.f32.mrb[0].mxu0
    %v5552 = vadd.f32 %v5512, %v5551
    %v5553 = vpop.f32.mrb[0].mxu0
    %v5554 = vpop.f32.mrb[0].mxu0
    %v5555 = vpop.f32.mrb[0].mxu0
    %5556 = vdwg.mxu0
    %5557 = vmatprep.subr.bf16.mxu0 0
    %5558 = vmatpush1.bf16.msra.mxu0 %v3957
    %5559 = vmatprep.subr.bf16.mxu0 0
    %5560 = vmatpush1.bf16.msra.mxu0 %v3958
    %5561 = vmatprep.subr.bf16.mxu0 0
    %5562 = vmatpush1.bf16.msra.mxu0 %v3959
    %5563 = vmatprep.subr.bf16.mxu0 0
    %5564 = vmatpush1.bf16.msra.mxu0 %v3960
    %5565 = vmatprep.subr.bf16.mxu0 0
    %5566 = vmatpush1.bf16.msra.mxu0 %v3961
    %5567 = vmatprep.subr.bf16.mxu0 0
    %5568 = vmatpush1.bf16.msra.mxu0 %v3962
    %5569 = vmatprep.subr.bf16.mxu0 0
    %5570 = vmatpush1.bf16.msra.mxu0 %v3963
    %5571 = vmatprep.subr.bf16.mxu0 0
    %5572 = vmatpush1.bf16.msra.mxu0 %v3964
    %5573 = vmatprep.subr.bf16.mxu0 0
    %5574 = vmatpush1.bf16.msra.mxu0 %v3965
    %5575 = vmatprep.subr.bf16.mxu0 0
    %5576 = vmatpush1.bf16.msra.mxu0 %v3966
    %5577 = vmatprep.subr.bf16.mxu0 0
    %5578 = vmatpush1.bf16.msra.mxu0 %v3967
    %5579 = vmatprep.subr.bf16.mxu0 0
    %5580 = vmatpush1.bf16.msra.mxu0 %v3968
    %5581 = vmatprep.subr.bf16.mxu0 0
    %5582 = vmatpush1.bf16.msra.mxu0 %v3969
    %5583 = vmatprep.subr.bf16.mxu0 0
    %5584 = vmatpush1.bf16.msra.mxu0 %v3970
    %5585 = vmatprep.subr.bf16.mxu0 0
    %5586 = vmatpush1.bf16.msra.mxu0 %v3971
    %5587 = vmatprep.subr.bf16.mxu0 0
    %5588 = vmatpush1.bf16.msra.mxu0 %v3972
    %5589 = vmatprep.mubr.bf16.mxu0 %v1400
    %5590 = vmatmul.mubr.bf16.gmra.mrb[0].mxu0 %v1386
    %v5591 = vpop.f32.mrb[0].mxu0
    %v5592 = vadd.f32 %v5552, %v5591
    %v5593 = vpop.f32.mrb[0].mxu0
    %v5594 = vpop.f32.mrb[0].mxu0
    %v5595 = vpop.f32.mrb[0].mxu0
    %5596 = vdwg.mxu0
    %5597 = vmatprep.subr.bf16.mxu0 0
    %5598 = vmatpush1.bf16.msra.mxu0 %v3973
    %5599 = vmatprep.subr.bf16.mxu0 0
    %5600 = vmatpush1.bf16.msra.mxu0 %v3974
    %5601 = vmatprep.subr.bf16.mxu0 0
    %5602 = vmatpush1.bf16.msra.mxu0 %v3975
    %5603 = vmatprep.subr.bf16.mxu0 0
    %5604 = vmatpush1.bf16.msra.mxu0 %v3976
    %5605 = vmatprep.subr.bf16.mxu0 0
    %5606 = vmatpush1.bf16.msra.mxu0 %v3977
    %5607 = vmatprep.subr.bf16.mxu0 0
    %5608 = vmatpush1.bf16.msra.mxu0 %v3978
    %5609 = vmatprep.subr.bf16.mxu0 0
    %5610 = vmatpush1.bf16.msra.mxu0 %v3979
    %5611 = vmatprep.subr.bf16.mxu0 0
    %5612 = vmatpush1.bf16.msra.mxu0 %v3980
    %5613 = vmatprep.subr.bf16.mxu0 0
    %5614 = vmatpush1.bf16.msra.mxu0 %v3981
    %5615 = vmatprep.subr.bf16.mxu0 0
    %5616 = vmatpush1.bf16.msra.mxu0 %v3982
    %5617 = vmatprep.subr.bf16.mxu0 0
    %5618 = vmatpush1.bf16.msra.mxu0 %v3983
    %5619 = vmatprep.subr.bf16.mxu0 0
    %5620 = vmatpush1.bf16.msra.mxu0 %v3984
    %5621 = vmatprep.subr.bf16.mxu0 0
    %5622 = vmatpush1.bf16.msra.mxu0 %v3985
    %5623 = vmatprep.subr.bf16.mxu0 0
    %5624 = vmatpush1.bf16.msra.mxu0 %v3986
    %5625 = vmatprep.subr.bf16.mxu0 0
    %5626 = vmatpush1.bf16.msra.mxu0 %v3987
    %5627 = vmatprep.subr.bf16.mxu0 0
    %5628 = vmatpush1.bf16.msra.mxu0 %v3988
    %5629 = vmatprep.mubr.bf16.mxu0 %v1410
    %5630 = vmatmul.mubr.bf16.gmra.mrb[0].mxu0 %v1408
    %v5631 = vpop.f32.mrb[0].mxu0
    %v5632 = vadd.f32 %v5592, %v5631
    %v5633 = vpop.f32.mrb[0].mxu0
    %v5634 = vpop.f32.mrb[0].mxu0
    %v5635 = vpop.f32.mrb[0].mxu0
    %5636 = vdwg.mxu0
    %5637 = vmatprep.subr.bf16.mxu0 0
    %5638 = vmatpush1.bf16.msra.mxu0 %v3989
    %5639 = vmatprep.subr.bf16.mxu0 0
    %5640 = vmatpush1.bf16.msra.mxu0 %v3990
    %5641 = vmatprep.subr.bf16.mxu0 0
    %5642 = vmatpush1.bf16.msra.mxu0 %v3991
    %5643 = vmatprep.subr.bf16.mxu0 0
    %5644 = vmatpush1.bf16.msra.mxu0 %v3992
    %5645 = vmatprep.subr.bf16.mxu0 0
    %5646 = vmatpush1.bf16.msra.mxu0 %v3993
    %5647 = vmatprep.subr.bf16.mxu0 0
    %5648 = vmatpush1.bf16.msra.mxu0 %v3994
    %5649 = vmatprep.subr.bf16.mxu0 0
    %5650 = vmatpush1.bf16.msra.mxu0 %v3995
    %5651 = vmatprep.subr.bf16.mxu0 0
    %5652 = vmatpush1.bf16.msra.mxu0 %v3996
    %5653 = vmatprep.subr.bf16.mxu0 0
    %5654 = vmatpush1.bf16.msra.mxu0 %v3997
    %5655 = vmatprep.subr.bf16.mxu0 0
    %5656 = vmatpush1.bf16.msra.mxu0 %v3998
    %5657 = vmatprep.subr.bf16.mxu0 0
    %5658 = vmatpush1.bf16.msra.mxu0 %v3999
    %5659 = vmatprep.subr.bf16.mxu0 0
    %5660 = vmatpush1.bf16.msra.mxu0 %v4000
    %5661 = vmatprep.subr.bf16.mxu0 0
    %5662 = vmatpush1.bf16.msra.mxu0 %v4001
    %5663 = vmatprep.subr.bf16.mxu0 0
    %5664 = vmatpush1.bf16.msra.mxu0 %v4002
    %5665 = vmatprep.subr.bf16.mxu0 0
    %5666 = vmatpush1.bf16.msra.mxu0 %v4003
    %5667 = vmatprep.subr.bf16.mxu0 0
    %5668 = vmatpush1.bf16.msra.mxu0 %v4004
    %5669 = vmatprep.mubr.bf16.mxu0 %v1407
    %5670 = vmatmul.mubr.bf16.gmra.mrb[0].mxu0 %v1393
    %v5671 = vpop.f32.mrb[0].mxu0
    %v5672 = vadd.f32 %v5632, %v5671
    %v5673 = vpop.f32.mrb[0].mxu0
    %v5674 = vpop.f32.mrb[0].mxu0
    %v5675 = vpop.f32.mrb[0].mxu0
    %5676 = vdwg.mxu0
    %5677 = vmatprep.subr.bf16.mxu0 0
    %5678 = vmatpush1.bf16.msra.mxu0 %v4005
    %5679 = vmatprep.subr.bf16.mxu0 0
    %5680 = vmatpush1.bf16.msra.mxu0 %v4006
    %5681 = vmatprep.subr.bf16.mxu0 0
    %5682 = vmatpush1.bf16.msra.mxu0 %v4007
    %5683 = vmatprep.subr.bf16.mxu0 0
    %5684 = vmatpush1.bf16.msra.mxu0 %v4008
    %5685 = vmatprep.subr.bf16.mxu0 0
    %5686 = vmatpush1.bf16.msra.mxu0 %v4009
    %5687 = vmatprep.subr.bf16.mxu0 0
    %5688 = vmatpush1.bf16.msra.mxu0 %v4010
    %5689 = vmatprep.subr.bf16.mxu0 0
    %5690 = vmatpush1.bf16.msra.mxu0 %v4011
    %5691 = vmatprep.subr.bf16.mxu0 0
    %5692 = vmatpush1.bf16.msra.mxu0 %v4012
    %5693 = vmatprep.subr.bf16.mxu0 0
    %5694 = vmatpush1.bf16.msra.mxu0 %v4013
    %5695 = vmatprep.subr.bf16.mxu0 0
    %5696 = vmatpush1.bf16.msra.mxu0 %v4014
    %5697 = vmatprep.subr.bf16.mxu0 0
    %5698 = vmatpush1.bf16.msra.mxu0 %v4015
    %5699 = vmatprep.subr.bf16.mxu0 0
    %5700 = vmatpush1.bf16.msra.mxu0 %v4016
    %5701 = vmatprep.subr.bf16.mxu0 0
    %5702 = vmatpush1.bf16.msra.mxu0 %v4017
    %5703 = vmatprep.subr.bf16.mxu0 0
    %5704 = vmatpush1.bf16.msra.mxu0 %v4018
    %5705 = vmatprep.subr.bf16.mxu0 0
    %5706 = vmatpush1.bf16.msra.mxu0 %v4019
    %5707 = vmatprep.subr.bf16.mxu0 0
    %5708 = vmatpush1.bf16.msra.mxu0 %v4020
    %5709 = vmatprep.mubr.bf16.mxu0 %v1411
    %5710 = vmatmul.mubr.bf16.gmra.mrb[0].mxu0 %v1409
    %v5711 = vpop.f32.mrb[0].mxu0
    %v5712 = vadd.f32 %v5672, %v5711
    %v5713 = vpop.f32.mrb[0].mxu0
    %v5714 = vpop.f32.mrb[0].mxu0
    %v5715 = vpop.f32.mrb[0].mxu0
    %5716 = vdwg.mxu0
    %5717 = vmatprep.subr.bf16.mxu0 0
    %5718 = vmatpush1.bf16.msra.mxu0 %v4021
    %5719 = vmatprep.subr.bf16.mxu0 0
    %5720 = vmatpush1.bf16.msra.mxu0 %v4022
    %5721 = vmatprep.subr.bf16.mxu0 0
    %5722 = vmatpush1.bf16.msra.mxu0 %v4023
    %5723 = vmatprep.subr.bf16.mxu0 0
    %5724 = vmatpush1.bf16.msra.mxu0 %v4024
    %5725 = vmatprep.subr.bf16.mxu0 0
    %5726 = vmatpush1.bf16.msra.mxu0 %v4025
    %5727 = vmatprep.subr.bf16.mxu0 0
    %5728 = vmatpush1.bf16.msra.mxu0 %v4026
    %5729 = vmatprep.subr.bf16.mxu0 0
    %5730 = vmatpush1.bf16.msra.mxu0 %v4027
    %5731 = vmatprep.subr.bf16.mxu0 0
    %5732 = vmatpush1.bf16.msra.mxu0 %v4028
    %5733 = vmatprep.subr.bf16.mxu0 0
    %5734 = vmatpush1.bf16.msra.mxu0 %v4029
    %5735 = vmatprep.subr.bf16.mxu0 0
    %5736 = vmatpush1.bf16.msra.mxu0 %v4030
    %5737 = vmatprep.subr.bf16.mxu0 0
    %5738 = vmatpush1.bf16.msra.mxu0 %v4031
    %5739 = vmatprep.subr.bf16.mxu0 0
    %5740 = vmatpush1.bf16.msra.mxu0 %v4032
    %5741 = vmatprep.subr.bf16.mxu0 0
    %5742 = vmatpush1.bf16.msra.mxu0 %v4033
    %5743 = vmatprep.subr.bf16.mxu0 0
    %5744 = vmatpush1.bf16.msra.mxu0 %v4034
    %5745 = vmatprep.subr.bf16.mxu0 0
    %5746 = vmatpush1.bf16.msra.mxu0 %v4035
    %5747 = vmatprep.subr.bf16.mxu0 0
    %5748 = vmatpush1.bf16.msra.mxu0 %v4036
    %5749 = vmatprep.mubr.bf16.mxu0 %v1449
    %5750 = vmatmul.mubr.bf16.gmra.mrb[0].mxu0 %v1435
    %v5751 = vpop.f32.mrb[0].mxu0
    %v5752 = vadd.f32 %v5712, %v5751
    %v5753 = vpop.f32.mrb[0].mxu0
    %v5754 = vpop.f32.mrb[0].mxu0
    %v5755 = vpop.f32.mrb[0].mxu0
    %5756 = vdwg.mxu0
    %5757 = vmatprep.subr.bf16.mxu0 0
    %5758 = vmatpush1.bf16.msra.mxu0 %v4037
    %5759 = vmatprep.subr.bf16.mxu0 0
    %5760 = vmatpush1.bf16.msra.mxu0 %v4038
    %5761 = vmatprep.subr.bf16.mxu0 0
    %5762 = vmatpush1.bf16.msra.mxu0 %v4039
    %5763 = vmatprep.subr.bf16.mxu0 0
    %5764 = vmatpush1.bf16.msra.mxu0 %v4040
    %5765 = vmatprep.subr.bf16.mxu0 0
    %5766 = vmatpush1.bf16.msra.mxu0 %v4041
    %5767 = vmatprep.subr.bf16.mxu0 0
    %5768 = vmatpush1.bf16.msra.mxu0 %v4042
    %5769 = vmatprep.subr.bf16.mxu0 0
    %5770 = vmatpush1.bf16.msra.mxu0 %v4043
    %5771 = vmatprep.subr.bf16.mxu0 0
    %5772 = vmatpush1.bf16.msra.mxu0 %v4044
    %5773 = vmatprep.subr.bf16.mxu0 0
    %5774 = vmatpush1.bf16.msra.mxu0 %v4045
    %5775 = vmatprep.subr.bf16.mxu0 0
    %5776 = vmatpush1.bf16.msra.mxu0 %v4046
    %5777 = vmatprep.subr.bf16.mxu0 0
    %5778 = vmatpush1.bf16.msra.mxu0 %v4047
    %5779 = vmatprep.subr.bf16.mxu0 0
    %5780 = vmatpush1.bf16.msra.mxu0 %v4048
    %5781 = vmatprep.subr.bf16.mxu0 0
    %5782 = vmatpush1.bf16.msra.mxu0 %v4049
    %5783 = vmatprep.subr.bf16.mxu0 0
    %5784 = vmatpush1.bf16.msra.mxu0 %v4050
    %5785 = vmatprep.subr.bf16.mxu0 0
    %5786 = vmatpush1.bf16.msra.mxu0 %v4051
    %5787 = vmatprep.subr.bf16.mxu0 0
    %5788 = vmatpush1.bf16.msra.mxu0 %v4052
    %5789 = vmatprep.mubr.bf16.mxu0 %v1459
    %5790 = vmatmul.mubr.bf16.gmra.mrb[0].mxu0 %v1457
    %v5791 = vpop.f32.mrb[0].mxu0
    %v5792 = vadd.f32 %v5752, %v5791
    %v5793 = vpop.f32.mrb[0].mxu0
    %v5794 = vpop.f32.mrb[0].mxu0
    %v5795 = vpop.f32.mrb[0].mxu0
    %5796 = vdwg.mxu0
    %5797 = vmatprep.subr.bf16.mxu0 0
    %5798 = vmatpush1.bf16.msra.mxu0 %v4053
    %5799 = vmatprep.subr.bf16.mxu0 0
    %5800 = vmatpush1.bf16.msra.mxu0 %v4054
    %5801 = vmatprep.subr.bf16.mxu0 0
    %5802 = vmatpush1.bf16.msra.mxu0 %v4055
    %5803 = vmatprep.subr.bf16.mxu0 0
    %5804 = vmatpush1.bf16.msra.mxu0 %v4056
    %5805 = vmatprep.subr.bf16.mxu0 0
    %5806 = vmatpush1.bf16.msra.mxu0 %v4057
    %5807 = vmatprep.subr.bf16.mxu0 0
    %5808 = vmatpush1.bf16.msra.mxu0 %v4058
    %5809 = vmatprep.subr.bf16.mxu0 0
    %5810 = vmatpush1.bf16.msra.mxu0 %v4059
    %5811 = vmatprep.subr.bf16.mxu0 0
    %5812 = vmatpush1.bf16.msra.mxu0 %v4060
    %5813 = vmatprep.subr.bf16.mxu0 0
    %5814 = vmatpush1.bf16.msra.mxu0 %v4061
    %5815 = vmatprep.subr.bf16.mxu0 0
    %5816 = vmatpush1.bf16.msra.mxu0 %v4062
    %5817 = vmatprep.subr.bf16.mxu0 0
    %5818 = vmatpush1.bf16.msra.mxu0 %v4063
    %5819 = vmatprep.subr.bf16.mxu0 0
    %5820 = vmatpush1.bf16.msra.mxu0 %v4064
    %5821 = vmatprep.subr.bf16.mxu0 0
    %5822 = vmatpush1.bf16.msra.mxu0 %v4065
    %5823 = vmatprep.subr.bf16.mxu0 0
    %5824 = vmatpush1.bf16.msra.mxu0 %v4066
    %5825 = vmatprep.subr.bf16.mxu0 0
    %5826 = vmatpush1.bf16.msra.mxu0 %v4067
    %5827 = vmatprep.subr.bf16.mxu0 0
    %5828 = vmatpush1.bf16.msra.mxu0 %v4068
    %5829 = vmatprep.mubr.bf16.mxu0 %v1456
    %5830 = vmatmul.mubr.bf16.gmra.mrb[0].mxu0 %v1442
    %v5831 = vpop.f32.mrb[0].mxu0
    %v5832 = vadd.f32 %v5792, %v5831
    %v5833 = vpop.f32.mrb[0].mxu0
    %v5834 = vpop.f32.mrb[0].mxu0
    %v5835 = vpop.f32.mrb[0].mxu0
    %5836 = vdwg.mxu0
    %5837 = vmatprep.subr.bf16.mxu0 0
    %5838 = vmatpush1.bf16.msra.mxu0 %v4069
    %5839 = vmatprep.subr.bf16.mxu0 0
    %5840 = vmatpush1.bf16.msra.mxu0 %v4070
    %5841 = vmatprep.subr.bf16.mxu0 0
    %5842 = vmatpush1.bf16.msra.mxu0 %v4071
    %5843 = vmatprep.subr.bf16.mxu0 0
    %5844 = vmatpush1.bf16.msra.mxu0 %v4072
    %5845 = vmatprep.subr.bf16.mxu0 0
    %5846 = vmatpush1.bf16.msra.mxu0 %v4073
    %5847 = vmatprep.subr.bf16.mxu0 0
    %5848 = vmatpush1.bf16.msra.mxu0 %v4074
    %5849 = vmatprep.subr.bf16.mxu0 0
    %5850 = vmatpush1.bf16.msra.mxu0 %v4075
    %5851 = vmatprep.subr.bf16.mxu0 0
    %5852 = vmatpush1.bf16.msra.mxu0 %v4076
    %5853 = vmatprep.subr.bf16.mxu0 0
    %5854 = vmatpush1.bf16.msra.mxu0 %v4077
    %5855 = vmatprep.subr.bf16.mxu0 0
    %5856 = vmatpush1.bf16.msra.mxu0 %v4078
    %5857 = vmatprep.subr.bf16.mxu0 0
    %5858 = vmatpush1.bf16.msra.mxu0 %v4079
    %5859 = vmatprep.subr.bf16.mxu0 0
    %5860 = vmatpush1.bf16.msra.mxu0 %v4080
    %5861 = vmatprep.subr.bf16.mxu0 0
    %5862 = vmatpush1.bf16.msra.mxu0 %v4081
    %5863 = vmatprep.subr.bf16.mxu0 0
    %5864 = vmatpush1.bf16.msra.mxu0 %v4082
    %5865 = vmatprep.subr.bf16.mxu0 0
    %5866 = vmatpush1.bf16.msra.mxu0 %v4083
    %5867 = vmatprep.subr.bf16.mxu0 0
    %5868 = vmatpush1.bf16.msra.mxu0 %v4084
    %5869 = vmatprep.mubr.bf16.mxu0 %v1460
    %5870 = vmatmul.mubr.bf16.gmra.mrb[0].mxu0 %v1458
    %v5871 = vpop.f32.mrb[0].mxu0
    %v5872 = vadd.f32 %v5832, %v5871
    %v5873 = vpop.f32.mrb[0].mxu0
    %v5874 = vpop.f32.mrb[0].mxu0
    %v5875 = vpop.f32.mrb[0].mxu0
    %5876 = vdwg.mxu0
    %v5877 = vmax.f32 %v5872, 0.0
    %v5878 = vld [vmem:[%s3] sm:$0xff]
    %v5879 = vld [vmem:[%s3 + $0x8] sm:$0xff]
    %v5880 = vld [vmem:[%s3 + $0x10] sm:$0xff]
    %v5881 = vld [vmem:[%s3 + $0x18] sm:$0xff]
    %v5882 = vld [vmem:[%s3 + $0x20] sm:$0xff]
    %v5883 = vld [vmem:[%s3 + $0x28] sm:$0xff]
    %v5884 = vld [vmem:[%s3 + $0x30] sm:$0xff]
    %v5885 = vld [vmem:[%s3 + $0x38] sm:$0xff]
    %v5886 = vld [vmem:[%s4] sm:$0x1]
    %v5888 = vlaneseq
    %v5889 = vshrl.u32 %v5888, 7
    %v5890 = vsub.s32 0, %v5889
    %v5891 = vrot.slane %v5886, %v5890
    %vm5893 = vcmask 523264
    %v5895 = vsel %vm5893, %v5877, 0
    %5897 = vmatprep.subr.mxu0 0.0
    %5898 = vmatpush1.msra.mxu0 %v5878
    %5899 = vmatprep.subr.mxu0 0.0
    %5900 = vmatpush1.msra.mxu0 %v5879
    %5901 = vmatprep.subr.mxu0 0.0
    %5902 = vmatpush1.msra.mxu0 %v5880
    %5903 = vmatprep.subr.mxu0 0.0
    %5904 = vmatpush1.msra.mxu0 %v5881
    %5905 = vmatprep.subr.mxu0 0.0
    %5906 = vmatpush1.msra.mxu0 %v5882
    %5907 = vmatprep.subr.mxu0 0.0
    %5908 = vmatpush1.msra.mxu0 %v5883
    %5909 = vmatprep.subr.mxu0 0.0
    %5910 = vmatpush1.msra.mxu0 %v5884
    %5911 = vmatprep.subr.mxu0 0.0
    %5912 = vmatpush1.msra.mxu0 %v5885
    %5913 = vmatprep.subr.mxu0 0.0
    %5914 = vmatpush1.msra.mxu0 0.0
    %5915 = vmatprep.subr.mxu0 0.0
    %5916 = vmatpush1.msra.mxu0 0.0
    %5917 = vmatprep.subr.mxu0 0.0
    %5918 = vmatpush1.msra.mxu0 0.0
    %5919 = vmatprep.subr.mxu0 0.0
    %5920 = vmatpush1.msra.mxu0 0.0
    %5921 = vmatprep.subr.mxu0 0.0
    %5922 = vmatpush1.msra.mxu0 0.0
    %5923 = vmatprep.subr.mxu0 0.0
    %5924 = vmatpush1.msra.mxu0 0.0
    %5925 = vmatprep.subr.mxu0 0.0
    %5926 = vmatpush1.msra.mxu0 0.0
    %5927 = vmatprep.subr.mxu0 0.0
    %5928 = vmatpush1.msra.mxu0 0.0
    %5929 = vmatprep.subr.mxu0 0.0
    %5930 = vmatpush1.msra.mxu0 0.0
    %5931 = vmatprep.subr.mxu0 0.0
    %5932 = vmatpush1.msra.mxu0 0.0
    %5933 = vmatprep.subr.mxu0 0.0
    %5934 = vmatpush1.msra.mxu0 0.0
    %5935 = vmatprep.subr.mxu0 0.0
    %5936 = vmatpush1.msra.mxu0 0.0
    %5937 = vmatprep.subr.mxu0 0.0
    %5938 = vmatpush1.msra.mxu0 0.0
    %5939 = vmatprep.subr.mxu0 0.0
    %5940 = vmatpush1.msra.mxu0 0.0
    %5941 = vmatprep.subr.mxu0 0.0
    %5942 = vmatpush1.msra.mxu0 0.0
    %5943 = vmatprep.subr.mxu0 0.0
    %5944 = vmatpush1.msra.mxu0 0.0
    %5945 = vmatprep.subr.mxu0 0.0
    %5946 = vmatpush1.msra.mxu0 0.0
    %5947 = vmatprep.subr.mxu0 0.0
    %5948 = vmatpush1.msra.mxu0 0.0
    %5949 = vmatprep.subr.mxu0 0.0
    %5950 = vmatpush1.msra.mxu0 0.0
    %5951 = vmatprep.subr.mxu0 0.0
    %5952 = vmatpush1.msra.mxu0 0.0
    %5953 = vmatprep.subr.mxu0 0.0
    %5954 = vmatpush1.msra.mxu0 0.0
    %5955 = vmatprep.subr.mxu0 0.0
    %5956 = vmatpush1.msra.mxu0 0.0
    %5957 = vmatprep.subr.mxu0 0.0
    %5958 = vmatpush1.msra.mxu0 0.0
    %5959 = vmatprep.subr.mxu0 0.0
    %5960 = vmatpush1.msra.mxu0 0.0
    %5961 = vmatprep.mubr.f32.mxu0 0.0
    %5962 = vmatmul.mubr.f32.gmra.mrb[0].mxu0 %v5895
    %v5963 = vpop.f32.mrb[0].mxu0
    %v5964 = vadd.f32 %v5891, %v5963
    %v5965 = vpop.f32.mrb[0].mxu0
    %5966 = vdwg.mxu0
    %vm5967 = vcmask 17408
    %5968 = vst.msk [vmem:[#allocation2] sm:$0x3] %vm5967, %v5964
    // Predicated region
    $region22: #{simple_cnn_forward.3} parent=1 // pred_check
      _
    $region23: #{simple_cnn_forward.3} parent=1 // pred_check_branch
      %5970 = sbr.rel (0) target = $region25
    $region24: #{simple_cnn_forward.3} parent=1 // pred_region
      %s5972 = ssub.s32 32, 32
      %5973 = vsyncadd [#allocation3], %s5972
      %s5975 = sshll.u32 [#allocation2], 4
      %s5976 = int_to_ptr.vmem [resolvable:$true] %s5975
      %5978 = dma.vmem_to_hbm [thread:$0]  %s5976, 32, %s5, [#allocation3]
    $region25: #{simple_cnn_forward.3} parent=1 // pred_fallthru
      _
    // Predicated region
    $region26: #{simple_cnn_forward.3} parent=1 // pred_check
      _
    $region27: #{simple_cnn_forward.3} parent=1 // pred_check_branch
      %5980 = sbr.rel (0) target = $region29
    $region28: #{simple_cnn_forward.3} parent=1 // pred_region
      %5981 = dma.done [#allocation3], 32
    $region29: #{simple_cnn_forward.3} parent=1 // pred_fallthru
      _
    %5982 = vsyncpa [#allocation3], 1

</llo_original>
